<compile_context>
chip_gen: v7x
topology: tpu7x:2x2x1
jax: 0.10.0
libtpu: 0.0.40
codegen_flags: <defaults>
</compile_context>

<pallas_src>
import jax
import jax.numpy as jnp
from jax import lax
from jax.experimental import pallas as pl
from jax.experimental.pallas import tpu as pltpu


# ----------------------------- Pallas kernels ------------------------------

def _conv_relu_pool_kernel(p00_ref, p01_ref, p10_ref, p11_ref, w_ref, b_ref,
                           o_ref):
    """Fused 3x3-conv (im2col matmul) + bias + ReLU + 2x2/stride-2 max-pool.

    p{r}{s}_ref: (M, K) pooling-phase patch tensors, M = Hp*Wp rows for one
                 batch element, K = 9*Cin, one tensor per phase (r, s).
    w_ref:       (K, Cout) conv weight, rows in (kh, kw, cin) order.
    b_ref:       (1, Cout) bias.
    o_ref:       (M, Cout) pooled output.
    Since ReLU is monotone and the bias is constant per channel,
    pool(relu(conv + b)) == relu(max_{r,s}(conv_rs) + b).
    """
    w = w_ref[...]
    m = jnp.maximum(
        jnp.maximum(
            jnp.dot(p00_ref[...], w, preferred_element_type=jnp.float32),
            jnp.dot(p01_ref[...], w, preferred_element_type=jnp.float32)),
        jnp.maximum(
            jnp.dot(p10_ref[...], w, preferred_element_type=jnp.float32),
            jnp.dot(p11_ref[...], w, preferred_element_type=jnp.float32)))
    o_ref[...] = jnp.maximum(m + b_ref[...], 0.0).astype(o_ref.dtype)


def conv_relu_pool(phases, w_mat, b):
    """phases: 4 tensors (B, Hp*Wp, 9*Cin); returns pooled output (B, Hp*Wp, Cout)."""
    p00, p01, p10, p11 = phases
    B, M, K = p00.shape
    Cout = w_mat.shape[1]
    patch_spec = pl.BlockSpec((None, M, K), lambda b_: (b_, 0, 0))
    return pl.pallas_call(
        _conv_relu_pool_kernel,
        out_shape=jax.ShapeDtypeStruct((B, M, Cout), p00.dtype),
        grid=(B,),
        in_specs=[patch_spec, patch_spec, patch_spec, patch_spec,
                  pl.BlockSpec((K, Cout), lambda b_: (0, 0)),
                  pl.BlockSpec((1, Cout), lambda b_: (0, 0))],
        out_specs=pl.BlockSpec((None, M, Cout), lambda b_: (b_, 0, 0)),
        compiler_params=pltpu.CompilerParams(
            dimension_semantics=("parallel",)),
    )(p00, p01, p10, p11, w_mat, b.reshape(1, Cout))


def _fc_fused_kernel(xt_ref, w1_ref, b1_ref, w2_ref, b2_ref, o_ref):
    """out^T = W2 @ relu(W1 @ x^T + b1) + b2.

    Both dots keep the large PyTorch (out, in) weights as untransposed LHS, so
    no wrapper-side weight transpose is needed and the hidden (N1, B)
    activation never leaves VMEM."""
    h = jnp.dot(w1_ref[...], xt_ref[...], preferred_element_type=jnp.float32)
    h = jnp.maximum(h + b1_ref[...], 0.0)                          # (N1, B)
    o = jnp.dot(w2_ref[...], h, preferred_element_type=jnp.float32) + b2_ref[...]
    o_ref[...] = o.astype(o_ref.dtype)                             # (A, B)


def fc_fused(x_t, w1, b1, w2, b2):
    """x_t: (K, B) features (PyTorch view(B,-1) order, transposed).
    w1: (N1, K), w2: (A, N1) — PyTorch nn.Linear layouts, used as-is."""
    _, B = x_t.shape
    N1 = w1.shape[0]
    A = w2.shape[0]
    return pl.pallas_call(
        _fc_fused_kernel,
        out_shape=jax.ShapeDtypeStruct((A, B), x_t.dtype),
        compiler_params=pltpu.CompilerParams(
            vmem_limit_bytes=32 * 1024 * 1024),
    )(x_t, w1, b1.reshape(N1, 1), w2, b2.reshape(A, 1))


# ------------------------------ JAX glue ------------------------------------

def pooled_phase_patches(x_nhwc):
    """Pooling-phase im2col for fused conv3x3(pad=1) + maxpool2x2.

    Returns 4 patch tensors, each (B, (H//2)*(W//2), 9*C), phase (r, s) holding
    the patches of conv-output positions (2*ph+r, 2*pw+s).  This is cheap XLA
    slicing on the *small* input activation; the kernel consumes it directly so
    the full-resolution conv output never exists in HBM."""
    # TODO(synk): move patch extraction into the kernel (strided VMEM reads /
    # pltpu.roll) to also drop the XLA-side patch materialization.
    B, H, W, C = x_nhwc.shape
    assert H % 2 == 0 and W % 2 == 0
    Hp, Wp = H // 2, W // 2
    xp = jnp.pad(x_nhwc, ((0, 0), (1, 1), (1, 1), (0, 0)))
    phases = []
    for r in range(2):
        for s in range(2):
            cols = [xp[:, r + dy:r + dy + H:2, s + dx:s + dx + W:2, :]
                    for dy in range(3) for dx in range(3)]  # (dy, dx, cin) order
            phases.append(
                jnp.concatenate(cols, axis=-1).reshape(B, Hp * Wp, 9 * C))
    return phases


def conv_w_to_mat(w):
    """PyTorch conv weight (Cout, Cin, 3, 3) -> (9*Cin, Cout) in (kh, kw, cin) row order."""
    return jnp.transpose(w, (2, 3, 1, 0)).reshape(-1, w.shape[0])


def init_params(key, n_in_ch, n_actions):
    ks = jax.random.split(key, 8)
    p = {}
    # PyTorch parameter shapes: conv weight (Cout, Cin, kh, kw), linear (out, in).
    p["w1"] = jax.random.normal(ks[0], (16, n_in_ch, 3, 3), jnp.float32) * 0.05
    p["b1"] = jax.random.normal(ks[1], (16,), jnp.float32) * 0.01
    p["w2"] = jax.random.normal(ks[2], (32, 16, 3, 3), jnp.float32) * 0.05
    p["b2"] = jax.random.normal(ks[3], (32,), jnp.float32) * 0.01
    p["wf1"] = jax.random.normal(ks[4], (512, 32 * 4 * 25), jnp.float32) * 0.02
    p["bf1"] = jax.random.normal(ks[5], (512,), jnp.float32) * 0.01
    p["wf2"] = jax.random.normal(ks[6], (n_actions, 512), jnp.float32) * 0.02
    p["bf2"] = jax.random.normal(ks[7], (n_actions,), jnp.float32) * 0.01
    return p


def dqn_forward(p, x_nchw):
    B = x_nchw.shape[0]
    x = jnp.transpose(x_nchw, (0, 2, 3, 1))                    # NCHW -> NHWC
    H, W = x.shape[1], x.shape[2]

    # conv1 + bias + ReLU + 2x2 max-pool: one fused Pallas kernel.
    y = conv_relu_pool(pooled_phase_patches(x),
                       conv_w_to_mat(p["w1"]), p["b1"])        # (B, H/2*W/2, 16)
    y = y.reshape(B, H // 2, W // 2, 16)

    # conv2 + bias + ReLU + 2x2 max-pool: same fused kernel.
    z = conv_relu_pool(pooled_phase_patches(y),
                       conv_w_to_mat(p["w2"]), p["b2"])        # (B, H/4*W/4, 32)

    # Flatten in PyTorch NCHW order (x.view(B, -1)), kept transposed so the FC
    # kernel can use the (out, in) weights as untransposed matmul LHS.
    flat_t = jnp.transpose(z, (2, 1, 0)).reshape(-1, B)        # (32*H/4*W/4, B)

    out_t = fc_fused(flat_t, p["wf1"], p["bf1"], p["wf2"], p["bf2"])  # (A, B)
    return out_t.T                                             # (B, A)


def dqn_reference(p, x):
    """Pure-JAX reference mirroring the PyTorch forward, for validation."""
    def conv(x, w, b):
        y = lax.conv_general_dilated(
            x, w, window_strides=(1, 1), padding=((1, 1), (1, 1)),
            dimension_numbers=("NCHW", "OIHW", "NCHW"))
        return jax.nn.relu(y + b[None, :, None, None])

    def pool(x):
        return lax.reduce_window(x, -jnp.inf, lax.max,
                                 (1, 1, 2, 2), (1, 1, 2, 2), "VALID")

    y = pool(conv(x, p["w1"], p["b1"]))
    y = pool(conv(y, p["w2"], p["b2"]))
    y = y.reshape(y.shape[0], -1)
    y = jax.nn.relu(y @ p["wf1"].T + p["bf1"])
    return y @ p["wf2"].T + p["bf2"]


if __name__ == "__main__":
    key = jax.random.PRNGKey(0)
    kp, kx = jax.random.split(key)

    # fc1 expects 32*4*25 features -> input spatial (16, 100) after two 2x2 pools.
    n_states = (4, 16, 100)      # (channels, H, W)
    n_actions = 6
    batch = 2

    params = init_params(kp, n_states[0], n_actions)
    x = jax.random.normal(kx, (batch,) + n_states, jnp.float32)   # NCHW like PyTorch

    fwd = jax.jit(dqn_forward)
    out = jax.block_until_ready(fwd(params, x))
    ref = jax.block_until_ready(dqn_reference(params, x))

    assert out.shape == (batch, n_actions)
    assert jnp.allclose(out, ref, rtol=2e-2, atol=2e-2)
    print("KERNEL_OK")
</pallas_src>

<mosaic_0001>
module attributes {stable_mosaic.version = 11 : i64} {
  func.func @_conv_relu_pool_kernel(%arg0: i32, %arg1: memref<1x400x36xf32, #tpu.memory_space<vmem>>, %arg2: memref<1x400x36xf32, #tpu.memory_space<vmem>>, %arg3: memref<1x400x36xf32, #tpu.memory_space<vmem>>, %arg4: memref<1x400x36xf32, #tpu.memory_space<vmem>>, %arg5: memref<36x16xf32, #tpu.memory_space<vmem>>, %arg6: memref<1x16xf32, #tpu.memory_space<vmem>>, %arg7: memref<1x400x16xf32, #tpu.memory_space<vmem>>) attributes {dimension_semantics = [#tpu.dimension_semantics<parallel>], iteration_bounds = array<i64: 2>, scalar_prefetch = 0 : i64, scratch_operands = 0 : i64, tpu.core_type = #tpu.core_type<tc>, window_params = [{transform_indices = @transform_0, window_bounds = array<i64: 1, 400, 36>}, {transform_indices = @transform_1, window_bounds = array<i64: 1, 400, 36>}, {transform_indices = @transform_2, window_bounds = array<i64: 1, 400, 36>}, {transform_indices = @transform_3, window_bounds = array<i64: 1, 400, 36>}, {pipeline_mode = #tpu.pipeline_mode<synchronous>, transform_indices = @transform_4, window_bounds = array<i64: 36, 16>}, {pipeline_mode = #tpu.pipeline_mode<synchronous>, transform_indices = @transform_5, window_bounds = array<i64: 1, 16>}, {transform_indices = @transform_6, window_bounds = array<i64: 1, 400, 16>}]} {
    %c0 = arith.constant 0 : index
    %c0_0 = arith.constant 0 : index
    %0 = vector.load %arg5[%c0, %c0_0] : memref<36x16xf32, #tpu.memory_space<vmem>>, vector<36x16xf32>
    %c0_1 = arith.constant 0 : index
    %c0_2 = arith.constant 0 : index
    %c0_3 = arith.constant 0 : index
    %1 = vector.load %arg1[%c0_1, %c0_2, %c0_3] : memref<1x400x36xf32, #tpu.memory_space<vmem>>, vector<1x400x36xf32>
    %2 = vector.shape_cast %1 : vector<1x400x36xf32> to vector<400x36xf32>
    %cst = arith.constant dense<0.000000e+00> : vector<400x16xf32>
    %3 = tpu.matmul %2, %0, %cst {dimension_numbers = #tpu.dot_dimension_numbers<[1], [0], [0], [1], [0, 0, 1, 1], [], []>} : vector<400x36xf32>, vector<36x16xf32>, vector<400x16xf32> -> vector<400x16xf32>
    %c0_4 = arith.constant 0 : index
    %c0_5 = arith.constant 0 : index
    %c0_6 = arith.constant 0 : index
    %4 = vector.load %arg2[%c0_4, %c0_5, %c0_6] : memref<1x400x36xf32, #tpu.memory_space<vmem>>, vector<1x400x36xf32>
    %5 = vector.shape_cast %4 : vector<1x400x36xf32> to vector<400x36xf32>
    %cst_7 = arith.constant dense<0.000000e+00> : vector<400x16xf32>
    %6 = tpu.matmul %5, %0, %cst_7 {dimension_numbers = #tpu.dot_dimension_numbers<[1], [0], [0], [1], [0, 0, 1, 1], [], []>} : vector<400x36xf32>, vector<36x16xf32>, vector<400x16xf32> -> vector<400x16xf32>
    %7 = arith.maximumf %3, %6 : vector<400x16xf32>
    %c0_8 = arith.constant 0 : index
    %c0_9 = arith.constant 0 : index
    %c0_10 = arith.constant 0 : index
    %8 = vector.load %arg3[%c0_8, %c0_9, %c0_10] : memref<1x400x36xf32, #tpu.memory_space<vmem>>, vector<1x400x36xf32>
    %9 = vector.shape_cast %8 : vector<1x400x36xf32> to vector<400x36xf32>
    %cst_11 = arith.constant dense<0.000000e+00> : vector<400x16xf32>
    %10 = tpu.matmul %9, %0, %cst_11 {dimension_numbers = #tpu.dot_dimension_numbers<[1], [0], [0], [1], [0, 0, 1, 1], [], []>} : vector<400x36xf32>, vector<36x16xf32>, vector<400x16xf32> -> vector<400x16xf32>
    %c0_12 = arith.constant 0 : index
    %c0_13 = arith.constant 0 : index
    %c0_14 = arith.constant 0 : index
    %11 = vector.load %arg4[%c0_12, %c0_13, %c0_14] : memref<1x400x36xf32, #tpu.memory_space<vmem>>, vector<1x400x36xf32>
    %12 = vector.shape_cast %11 : vector<1x400x36xf32> to vector<400x36xf32>
    %cst_15 = arith.constant dense<0.000000e+00> : vector<400x16xf32>
    %13 = tpu.matmul %12, %0, %cst_15 {dimension_numbers = #tpu.dot_dimension_numbers<[1], [0], [0], [1], [0, 0, 1, 1], [], []>} : vector<400x36xf32>, vector<36x16xf32>, vector<400x16xf32> -> vector<400x16xf32>
    %14 = arith.maximumf %10, %13 : vector<400x16xf32>
    %15 = arith.maximumf %7, %14 : vector<400x16xf32>
    %c0_16 = arith.constant 0 : index
    %c0_17 = arith.constant 0 : index
    %16 = vector.load %arg6[%c0_16, %c0_17] : memref<1x16xf32, #tpu.memory_space<vmem>>, vector<1x16xf32>
    %17 = vector.broadcast %16 : vector<1x16xf32> to vector<400x16xf32>
    %18 = arith.addf %15, %17 : vector<400x16xf32>
    %cst_18 = arith.constant 0.000000e+00 : f32
    %19 = vector.broadcast %cst_18 : f32 to vector<400x16xf32>
    %20 = arith.maximumf %18, %19 : vector<400x16xf32>
    %c0_19 = arith.constant 0 : index
    %c0_20 = arith.constant 0 : index
    %c0_21 = arith.constant 0 : index
    %21 = vector.load %arg7[%c0_19, %c0_20, %c0_21] : memref<1x400x16xf32, #tpu.memory_space<vmem>>, vector<1x400x16xf32>
    %22 = vector.shape_cast %21 : vector<1x400x16xf32> to vector<400x16xf32>
    %23 = vector.shape_cast %20 : vector<400x16xf32> to vector<1x400x16xf32>
    tpu.vector_store %arg7[%c0_19, %c0_20, %c0_21], %23 {strides = array<i32>} : memref<1x400x16xf32, #tpu.memory_space<vmem>>, vector<1x400x16xf32>,
    return
  }
  func.func @transform_0(%arg0: i32) -> (i32, i32, i32) {
    %c0_i32 = arith.constant 0 : i32
    %c0_i32_0 = arith.constant 0 : i32
    %c0_i32_1 = arith.constant 0 : i32
    return %arg0, %c0_i32, %c0_i32_0 : i32, i32, i32
  }
  func.func @transform_1(%arg0: i32) -> (i32, i32, i32) {
    %c0_i32 = arith.constant 0 : i32
    %c0_i32_0 = arith.constant 0 : i32
    %c0_i32_1 = arith.constant 0 : i32
    return %arg0, %c0_i32, %c0_i32_0 : i32, i32, i32
  }
  func.func @transform_2(%arg0: i32) -> (i32, i32, i32) {
    %c0_i32 = arith.constant 0 : i32
    %c0_i32_0 = arith.constant 0 : i32
    %c0_i32_1 = arith.constant 0 : i32
    return %arg0, %c0_i32, %c0_i32_0 : i32, i32, i32
  }
  func.func @transform_3(%arg0: i32) -> (i32, i32, i32) {
    %c0_i32 = arith.constant 0 : i32
    %c0_i32_0 = arith.constant 0 : i32
    %c0_i32_1 = arith.constant 0 : i32
    return %arg0, %c0_i32, %c0_i32_0 : i32, i32, i32
  }
  func.func @transform_4(%arg0: i32) -> (i32, i32) {
    %c0_i32 = arith.constant 0 : i32
    %c0_i32_0 = arith.constant 0 : i32
    %c0_i32_1 = arith.constant 0 : i32
    return %c0_i32, %c0_i32_0 : i32, i32
  }
  func.func @transform_5(%arg0: i32) -> (i32, i32) {
    %c0_i32 = arith.constant 0 : i32
    %c0_i32_0 = arith.constant 0 : i32
    %c0_i32_1 = arith.constant 0 : i32
    return %c0_i32, %c0_i32_0 : i32, i32
  }
  func.func @transform_6(%arg0: i32) -> (i32, i32, i32) {
    %c0_i32 = arith.constant 0 : i32
    %c0_i32_0 = arith.constant 0 : i32
    %c0_i32_1 = arith.constant 0 : i32
    return %arg0, %c0_i32, %c0_i32_0 : i32, i32, i32
  }
}

module attributes {stable_mosaic.version = 11 : i64} {
  func.func @_conv_relu_pool_kernel(%arg0: i32, %arg1: memref<1x100x144xf32, #tpu.memory_space<vmem>>, %arg2: memref<1x100x144xf32, #tpu.memory_space<vmem>>, %arg3: memref<1x100x144xf32, #tpu.memory_space<vmem>>, %arg4: memref<1x100x144xf32, #tpu.memory_space<vmem>>, %arg5: memref<144x32xf32, #tpu.memory_space<vmem>>, %arg6: memref<1x32xf32, #tpu.memory_space<vmem>>, %arg7: memref<1x100x32xf32, #tpu.memory_space<vmem>>) attributes {dimension_semantics = [#tpu.dimension_semantics<parallel>], iteration_bounds = array<i64: 2>, scalar_prefetch = 0 : i64, scratch_operands = 0 : i64, tpu.core_type = #tpu.core_type<tc>, window_params = [{transform_indices = @transform_0, window_bounds = array<i64: 1, 100, 144>}, {transform_indices = @transform_1, window_bounds = array<i64: 1, 100, 144>}, {transform_indices = @transform_2, window_bounds = array<i64: 1, 100, 144>}, {transform_indices = @transform_3, window_bounds = array<i64: 1, 100, 144>}, {pipeline_mode = #tpu.pipeline_mode<synchronous>, transform_indices = @transform_4, window_bounds = array<i64: 144, 32>}, {pipeline_mode = #tpu.pipeline_mode<synchronous>, transform_indices = @transform_5, window_bounds = array<i64: 1, 32>}, {transform_indices = @transform_6, window_bounds = array<i64: 1, 100, 32>}]} {
    %c0 = arith.constant 0 : index
    %c0_0 = arith.constant 0 : index
    %0 = vector.load %arg5[%c0, %c0_0] : memref<144x32xf32, #tpu.memory_space<vmem>>, vector<144x32xf32>
    %c0_1 = arith.constant 0 : index
    %c0_2 = arith.constant 0 : index
    %c0_3 = arith.constant 0 : index
    %1 = vector.load %arg1[%c0_1, %c0_2, %c0_3] : memref<1x100x144xf32, #tpu.memory_space<vmem>>, vector<1x100x144xf32>
    %2 = vector.shape_cast %1 : vector<1x100x144xf32> to vector<100x144xf32>
    %cst = arith.constant dense<0.000000e+00> : vector<100x32xf32>
    %3 = tpu.matmul %2, %0, %cst {dimension_numbers = #tpu.dot_dimension_numbers<[1], [0], [0], [1], [0, 0, 1, 1], [], []>} : vector<100x144xf32>, vector<144x32xf32>, vector<100x32xf32> -> vector<100x32xf32>
    %c0_4 = arith.constant 0 : index
    %c0_5 = arith.constant 0 : index
    %c0_6 = arith.constant 0 : index
    %4 = vector.load %arg2[%c0_4, %c0_5, %c0_6] : memref<1x100x144xf32, #tpu.memory_space<vmem>>, vector<1x100x144xf32>
    %5 = vector.shape_cast %4 : vector<1x100x144xf32> to vector<100x144xf32>
    %cst_7 = arith.constant dense<0.000000e+00> : vector<100x32xf32>
    %6 = tpu.matmul %5, %0, %cst_7 {dimension_numbers = #tpu.dot_dimension_numbers<[1], [0], [0], [1], [0, 0, 1, 1], [], []>} : vector<100x144xf32>, vector<144x32xf32>, vector<100x32xf32> -> vector<100x32xf32>
    %7 = arith.maximumf %3, %6 : vector<100x32xf32>
    %c0_8 = arith.constant 0 : index
    %c0_9 = arith.constant 0 : index
    %c0_10 = arith.constant 0 : index
    %8 = vector.load %arg3[%c0_8, %c0_9, %c0_10] : memref<1x100x144xf32, #tpu.memory_space<vmem>>, vector<1x100x144xf32>
    %9 = vector.shape_cast %8 : vector<1x100x144xf32> to vector<100x144xf32>
    %cst_11 = arith.constant dense<0.000000e+00> : vector<100x32xf32>
    %10 = tpu.matmul %9, %0, %cst_11 {dimension_numbers = #tpu.dot_dimension_numbers<[1], [0], [0], [1], [0, 0, 1, 1], [], []>} : vector<100x144xf32>, vector<144x32xf32>, vector<100x32xf32> -> vector<100x32xf32>
    %c0_12 = arith.constant 0 : index
    %c0_13 = arith.constant 0 : index
    %c0_14 = arith.constant 0 : index
    %11 = vector.load %arg4[%c0_12, %c0_13, %c0_14] : memref<1x100x144xf32, #tpu.memory_space<vmem>>, vector<1x100x144xf32>
    %12 = vector.shape_cast %11 : vector<1x100x144xf32> to vector<100x144xf32>
    %cst_15 = arith.constant dense<0.000000e+00> : vector<100x32xf32>
    %13 = tpu.matmul %12, %0, %cst_15 {dimension_numbers = #tpu.dot_dimension_numbers<[1], [0], [0], [1], [0, 0, 1, 1], [], []>} : vector<100x144xf32>, vector<144x32xf32>, vector<100x32xf32> -> vector<100x32xf32>
    %14 = arith.maximumf %10, %13 : vector<100x32xf32>
    %15 = arith.maximumf %7, %14 : vector<100x32xf32>
    %c0_16 = arith.constant 0 : index
    %c0_17 = arith.constant 0 : index
    %16 = vector.load %arg6[%c0_16, %c0_17] : memref<1x32xf32, #tpu.memory_space<vmem>>, vector<1x32xf32>
    %17 = vector.broadcast %16 : vector<1x32xf32> to vector<100x32xf32>
    %18 = arith.addf %15, %17 : vector<100x32xf32>
    %cst_18 = arith.constant 0.000000e+00 : f32
    %19 = vector.broadcast %cst_18 : f32 to vector<100x32xf32>
    %20 = arith.maximumf %18, %19 : vector<100x32xf32>
    %c0_19 = arith.constant 0 : index
    %c0_20 = arith.constant 0 : index
    %c0_21 = arith.constant 0 : index
    %21 = vector.load %arg7[%c0_19, %c0_20, %c0_21] : memref<1x100x32xf32, #tpu.memory_space<vmem>>, vector<1x100x32xf32>
    %22 = vector.shape_cast %21 : vector<1x100x32xf32> to vector<100x32xf32>
    %23 = vector.shape_cast %20 : vector<100x32xf32> to vector<1x100x32xf32>
    tpu.vector_store %arg7[%c0_19, %c0_20, %c0_21], %23 {strides = array<i32>} : memref<1x100x32xf32, #tpu.memory_space<vmem>>, vector<1x100x32xf32>,
    return
  }
  func.func @transform_0(%arg0: i32) -> (i32, i32, i32) {
    %c0_i32 = arith.constant 0 : i32
    %c0_i32_0 = arith.constant 0 : i32
    %c0_i32_1 = arith.constant 0 : i32
    return %arg0, %c0_i32, %c0_i32_0 : i32, i32, i32
  }
  func.func @transform_1(%arg0: i32) -> (i32, i32, i32) {
    %c0_i32 = arith.constant 0 : i32
    %c0_i32_0 = arith.constant 0 : i32
    %c0_i32_1 = arith.constant 0 : i32
    return %arg0, %c0_i32, %c0_i32_0 : i32, i32, i32
  }
  func.func @transform_2(%arg0: i32) -> (i32, i32, i32) {
    %c0_i32 = arith.constant 0 : i32
    %c0_i32_0 = arith.constant 0 : i32
    %c0_i32_1 = arith.constant 0 : i32
    return %arg0, %c0_i32, %c0_i32_0 : i32, i32, i32
  }
  func.func @transform_3(%arg0: i32) -> (i32, i32, i32) {
    %c0_i32 = arith.constant 0 : i32
    %c0_i32_0 = arith.constant 0 : i32
    %c0_i32_1 = arith.constant 0 : i32
    return %arg0, %c0_i32, %c0_i32_0 : i32, i32, i32
  }
  func.func @transform_4(%arg0: i32) -> (i32, i32) {
    %c0_i32 = arith.constant 0 : i32
    %c0_i32_0 = arith.constant 0 : i32
    %c0_i32_1 = arith.constant 0 : i32
    return %c0_i32, %c0_i32_0 : i32, i32
  }
  func.func @transform_5(%arg0: i32) -> (i32, i32) {
    %c0_i32 = arith.constant 0 : i32
    %c0_i32_0 = arith.constant 0 : i32
    %c0_i32_1 = arith.constant 0 : i32
    return %c0_i32, %c0_i32_0 : i32, i32
  }
  func.func @transform_6(%arg0: i32) -> (i32, i32, i32) {
    %c0_i32 = arith.constant 0 : i32
    %c0_i32_0 = arith.constant 0 : i32
    %c0_i32_1 = arith.constant 0 : i32
    return %arg0, %c0_i32, %c0_i32_0 : i32, i32, i32
  }
}

module attributes {stable_mosaic.version = 11 : i64} {
  func.func @_fc_fused_kernel(%arg0: memref<3200x2xf32, #tpu.memory_space<vmem>>, %arg1: memref<512x3200xf32, #tpu.memory_space<vmem>>, %arg2: memref<512x1xf32, #tpu.memory_space<vmem>>, %arg3: memref<6x512xf32, #tpu.memory_space<vmem>>, %arg4: memref<6x1xf32, #tpu.memory_space<vmem>>, %arg5: memref<6x2xf32, #tpu.memory_space<vmem>>) attributes {dimension_semantics = [], scalar_prefetch = 0 : i64, scratch_operands = 0 : i64, tpu.core_type = #tpu.core_type<tc>} {
    %c0 = arith.constant 0 : index
    %c0_0 = arith.constant 0 : index
    %0 = vector.load %arg1[%c0, %c0_0] : memref<512x3200xf32, #tpu.memory_space<vmem>>, vector<512x3200xf32>
    %c0_1 = arith.constant 0 : index
    %c0_2 = arith.constant 0 : index
    %1 = vector.load %arg0[%c0_1, %c0_2] : memref<3200x2xf32, #tpu.memory_space<vmem>>, vector<3200x2xf32>
    %cst = arith.constant dense<0.000000e+00> : vector<512x2xf32>
    %2 = tpu.matmul %0, %1, %cst {dimension_numbers = #tpu.dot_dimension_numbers<[1], [0], [0], [1], [0, 0, 1, 1], [], []>} : vector<512x3200xf32>, vector<3200x2xf32>, vector<512x2xf32> -> vector<512x2xf32>
    %c0_3 = arith.constant 0 : index
    %c0_4 = arith.constant 0 : index
    %3 = vector.load %arg2[%c0_3, %c0_4] : memref<512x1xf32, #tpu.memory_space<vmem>>, vector<512x1xf32>
    %4 = vector.broadcast %3 : vector<512x1xf32> to vector<512x2xf32>
    %5 = arith.addf %2, %4 : vector<512x2xf32>
    %cst_5 = arith.constant 0.000000e+00 : f32
    %6 = vector.broadcast %cst_5 : f32 to vector<512x2xf32>
    %7 = arith.maximumf %5, %6 : vector<512x2xf32>
    %c0_6 = arith.constant 0 : index
    %c0_7 = arith.constant 0 : index
    %8 = vector.load %arg3[%c0_6, %c0_7] : memref<6x512xf32, #tpu.memory_space<vmem>>, vector<6x512xf32>
    %cst_8 = arith.constant dense<0.000000e+00> : vector<6x2xf32>
    %9 = tpu.matmul %8, %7, %cst_8 {dimension_numbers = #tpu.dot_dimension_numbers<[1], [0], [0], [1], [0, 0, 1, 1], [], []>} : vector<6x512xf32>, vector<512x2xf32>, vector<6x2xf32> -> vector<6x2xf32>
    %c0_9 = arith.constant 0 : index
    %c0_10 = arith.constant 0 : index
    %10 = vector.load %arg4[%c0_9, %c0_10] : memref<6x1xf32, #tpu.memory_space<vmem>>, vector<6x1xf32>
    %11 = vector.broadcast %10 : vector<6x1xf32> to vector<6x2xf32>
    %12 = arith.addf %9, %11 : vector<6x2xf32>
    %c0_11 = arith.constant 0 : index
    %c0_12 = arith.constant 0 : index
    %13 = vector.load %arg5[%c0_11, %c0_12] : memref<6x2xf32, #tpu.memory_space<vmem>>, vector<6x2xf32>
    tpu.vector_store %arg5[%c0_11, %c0_12], %12 {strides = array<i32>} : memref<6x2xf32, #tpu.memory_space<vmem>>, vector<6x2xf32>,
    return
  }
}

</mosaic_0001>

<llo_original>
// kernel: dqn_forward.3
$region0: #{dqn_forward.3}
  #allocation0 [shape = 'u32[]', space=smem, size = 0x4, offset = 0x4, fixed_abs, tag = 'smem constant byte address 0x4 - core index']
  #allocation1 [shape = 'u32[144,128]{1,0:T(1,128)}', space=vmem, size = 0x12000, scoped, tag = 'internal scratch']
  %s0 = inlined_call_operand.vmem [shape: f32[2,400,36], index: 0, kind: input, shape index: {}]
  %s1 = inlined_call_operand.vmem [shape: f32[2,400,36], index: 1, kind: input, shape index: {}]
  %s2 = inlined_call_operand.vmem [shape: f32[2,400,36], index: 2, kind: input, shape index: {}]
  %s3 = inlined_call_operand.vmem [shape: f32[2,400,36], index: 3, kind: input, shape index: {}]
  %s4 = inlined_call_operand.vmem [shape: f32[36,16], index: 4, kind: input, shape index: {}]
  %s5 = inlined_call_operand.vmem [shape: f32[1,16], index: 5, kind: input, shape index: {}]
  %s6 = inlined_call_operand.vmem [shape: f32[2,400,16], index: 6, kind: output, shape index: {}]
  %s7 = sld [smem:[#allocation0]]
  $region57: #{dqn_forward.3} parent=0
    _
  %s9 = ssub.s32 1, %s7
  %s10 = scalar_select 0, %s9, %s7
  loop: start=0, step=1, limit=4
  $region2: #{dqn_forward.3} parent=0 // loop_pre_header
    _
  $region3: #{dqn_forward.3} parent=0 // loop_header
    %s12 = sphi 0, %s16
    %p13 = scmp.ge.s32.totalorder %s12, 4
    %s22 = sphi 0, %s24
    %s25 = sphi 0, %s22
    %s26 = sphi 0, %s25
    %s42 = sphi 0, %s26
    %s48 = sphi 0, %s50
    %s51 = sphi 0, %s48
    %s52 = sphi 0, %s51
    %s68 = sphi 0, %s52
    %s74 = sphi 0, %s76
    %s77 = sphi 0, %s74
    %s78 = sphi 0, %s77
    %s94 = sphi 0, %s78
    %s100 = sphi 0, %s102
    %s103 = sphi 0, %s100
    %s104 = sphi 0, %s103
    %s120 = sphi 0, %s104
    %s124 = sphi 0, %s124
    %s126 = sphi 0, %s124
    %s127 = sphi 0, %s126
    %s141 = sphi 0, %s127
    %s145 = sphi 0, %s145
    %s147 = sphi 0, %s145
    %s148 = sphi 0, %s147
    %s162 = sphi 0, %s148
    %s168 = sphi 0, %s170
    %s171 = sphi 0, %s168
    %s172 = sphi 0, %s171
    %s188 = sphi 0, %s172
  $region4: #{dqn_forward.3} parent=0 // loop_header_branch
    %15 = sbr.rel (%p13) target = $region8
  $region5: #{dqn_forward.3} parent=0 // loop_body
    %s17 = ssub.s32 %s12, 1
    %s18 = ssub.s32 %s12, 2
    %s19 = sadd.s32 %s12, 1
    %s20 = ssub.s32 %s12, %s19
    %p21 = scmp.eq.s32.totalorder %s20, 0
    %s23 = sadd.s32 %s22, 1
    %s24 = scalar_select %p21, %s22, %s23
    %p27 = pneg %p21
    %p28 = scmp.eq.s32.totalorder %s12, 1
    %p29 = por %p27, %p28
    %p30 = scmp.ne.s32.totalorder %s22, %s25
    %p31 = scmp.eq.s32.totalorder %s12, 0
    %p32 = por %p30, %p31
    %p33 = scmp.ne.s32.totalorder %s22, %s25
    %p34 = scmp.eq.s32.totalorder %s17, 1
    %p35 = por %p33, %p34
    %p36 = scmp.ne.s32.totalorder %s25, %s26
    %p37 = scmp.eq.s32.totalorder %s17, 0
    %p38 = por %p36, %p37
    %p39 = scmp.ne.s32.totalorder %s25, %s26
    %p40 = scmp.eq.s32.totalorder %s18, 1
    %p41 = por %p39, %p40
    %p43 = scmp.ne.s32.totalorder %s26, %s42
    %p44 = scmp.eq.s32.totalorder %s18, 0
    %p45 = por %p43, %p44
    %s46 = ssub.s32 %s12, %s19
    %p47 = scmp.eq.s32.totalorder %s46, 0
    %s49 = sadd.s32 %s48, 1
    %s50 = scalar_select %p47, %s48, %s49
    %p53 = pneg %p47
    %p54 = scmp.eq.s32.totalorder %s12, 1
    %p55 = por %p53, %p54
    %p56 = scmp.ne.s32.totalorder %s48, %s51
    %p57 = scmp.eq.s32.totalorder %s12, 0
    %p58 = por %p56, %p57
    %p59 = scmp.ne.s32.totalorder %s48, %s51
    %p60 = scmp.eq.s32.totalorder %s17, 1
    %p61 = por %p59, %p60
    %p62 = scmp.ne.s32.totalorder %s51, %s52
    %p63 = scmp.eq.s32.totalorder %s17, 0
    %p64 = por %p62, %p63
    %p65 = scmp.ne.s32.totalorder %s51, %s52
    %p66 = scmp.eq.s32.totalorder %s18, 1
    %p67 = por %p65, %p66
    %p69 = scmp.ne.s32.totalorder %s52, %s68
    %p70 = scmp.eq.s32.totalorder %s18, 0
    %p71 = por %p69, %p70
    %s72 = ssub.s32 %s12, %s19
    %p73 = scmp.eq.s32.totalorder %s72, 0
    %s75 = sadd.s32 %s74, 1
    %s76 = scalar_select %p73, %s74, %s75
    %p79 = pneg %p73
    %p80 = scmp.eq.s32.totalorder %s12, 1
    %p81 = por %p79, %p80
    %p82 = scmp.ne.s32.totalorder %s74, %s77
    %p83 = scmp.eq.s32.totalorder %s12, 0
    %p84 = por %p82, %p83
    %p85 = scmp.ne.s32.totalorder %s74, %s77
    %p86 = scmp.eq.s32.totalorder %s17, 1
    %p87 = por %p85, %p86
    %p88 = scmp.ne.s32.totalorder %s77, %s78
    %p89 = scmp.eq.s32.totalorder %s17, 0
    %p90 = por %p88, %p89
    %p91 = scmp.ne.s32.totalorder %s77, %s78
    %p92 = scmp.eq.s32.totalorder %s18, 1
    %p93 = por %p91, %p92
    %p95 = scmp.ne.s32.totalorder %s78, %s94
    %p96 = scmp.eq.s32.totalorder %s18, 0
    %p97 = por %p95, %p96
    %s98 = ssub.s32 %s12, %s19
    %p99 = scmp.eq.s32.totalorder %s98, 0
    %s101 = sadd.s32 %s100, 1
    %s102 = scalar_select %p99, %s100, %s101
    %p105 = pneg %p99
    %p106 = scmp.eq.s32.totalorder %s12, 1
    %p107 = por %p105, %p106
    %p108 = scmp.ne.s32.totalorder %s100, %s103
    %p109 = scmp.eq.s32.totalorder %s12, 0
    %p110 = por %p108, %p109
    %p111 = scmp.ne.s32.totalorder %s100, %s103
    %p112 = scmp.eq.s32.totalorder %s17, 1
    %p113 = por %p111, %p112
    %p114 = scmp.ne.s32.totalorder %s103, %s104
    %p115 = scmp.eq.s32.totalorder %s17, 0
    %p116 = por %p114, %p115
    %p117 = scmp.ne.s32.totalorder %s103, %s104
    %p118 = scmp.eq.s32.totalorder %s18, 1
    %p119 = por %p117, %p118
    %p121 = scmp.ne.s32.totalorder %s104, %s120
    %p122 = scmp.eq.s32.totalorder %s18, 0
    %p123 = por %p121, %p122
    %s125 = sadd.s32 %s124, 1
    %p128 = scmp.eq.s32.totalorder %s12, 1
    %p129 = scmp.ne.s32.totalorder %s124, %s126
    %p130 = scmp.eq.s32.totalorder %s12, 0
    %p131 = por %p129, %p130
    %p132 = scmp.ne.s32.totalorder %s124, %s126
    %p133 = scmp.eq.s32.totalorder %s17, 1
    %p134 = por %p132, %p133
    %p135 = scmp.ne.s32.totalorder %s126, %s127
    %p136 = scmp.eq.s32.totalorder %s17, 0
    %p137 = por %p135, %p136
    %p138 = scmp.ne.s32.totalorder %s126, %s127
    %p139 = scmp.eq.s32.totalorder %s18, 1
    %p140 = por %p138, %p139
    %p142 = scmp.ne.s32.totalorder %s127, %s141
    %p143 = scmp.eq.s32.totalorder %s18, 0
    %p144 = por %p142, %p143
    %s146 = sadd.s32 %s145, 1
    %p149 = scmp.eq.s32.totalorder %s12, 1
    %p150 = scmp.ne.s32.totalorder %s145, %s147
    %p151 = scmp.eq.s32.totalorder %s12, 0
    %p152 = por %p150, %p151
    %p153 = scmp.ne.s32.totalorder %s145, %s147
    %p154 = scmp.eq.s32.totalorder %s17, 1
    %p155 = por %p153, %p154
    %p156 = scmp.ne.s32.totalorder %s147, %s148
    %p157 = scmp.eq.s32.totalorder %s17, 0
    %p158 = por %p156, %p157
    %p159 = scmp.ne.s32.totalorder %s147, %s148
    %p160 = scmp.eq.s32.totalorder %s18, 1
    %p161 = por %p159, %p160
    %p163 = scmp.ne.s32.totalorder %s148, %s162
    %p164 = scmp.eq.s32.totalorder %s18, 0
    %p165 = por %p163, %p164
    %s166 = ssub.s32 %s12, %s19
    %p167 = scmp.eq.s32.totalorder %s166, 0
    %s169 = sadd.s32 %s168, 1
    %s170 = scalar_select %p167, %s168, %s169
    %p173 = pneg %p167
    %p174 = scmp.eq.s32.totalorder %s12, 1
    %p175 = por %p173, %p174
    %p176 = scmp.ne.s32.totalorder %s168, %s171
    %p177 = scmp.eq.s32.totalorder %s12, 0
    %p178 = por %p176, %p177
    %p179 = scmp.ne.s32.totalorder %s168, %s171
    %p180 = scmp.eq.s32.totalorder %s17, 1
    %p181 = por %p179, %p180
    %p182 = scmp.ne.s32.totalorder %s171, %s172
    %p183 = scmp.eq.s32.totalorder %s17, 0
    %p184 = por %p182, %p183
    %p185 = scmp.ne.s32.totalorder %s171, %s172
    %p186 = scmp.eq.s32.totalorder %s18, 1
    %p187 = por %p185, %p186
    %p189 = scmp.ne.s32.totalorder %s172, %s188
    %p190 = scmp.eq.s32.totalorder %s18, 0
    %p191 = por %p189, %p190
    %p192 = scmp.le.s32.totalorder 1, %s12
    %p193 = scmp.lt.s32.totalorder %s12, 3
    %p194 = pnand %p192, %p193
    %p195 = pneg %p194
    // Predicated region
    $region9: #{dqn_forward.3} parent=5 // pred_check
      _
    $region10: #{dqn_forward.3} parent=5 // pred_check_branch
      %197 = sbr.rel (%p194) target = $region12
    $region11: #{dqn_forward.3} parent=5 // pred_region
      %s198 = ssub.s32 %s12, 1
      // Predicated region
      $region13: #{dqn_forward.3} parent=11 // pred_check
        %p199 = pneg %p137
      $region14: #{dqn_forward.3} parent=11 // pred_check_branch
        %201 = sbr.rel (%p199) target = $region16
      $region15: #{dqn_forward.3} parent=11 // pred_region
        _
      $region16: #{dqn_forward.3} parent=11 // pred_fallthru
        _
      // Predicated region
      $region17: #{dqn_forward.3} parent=11 // pred_check
        %p202 = pneg %p158
      $region18: #{dqn_forward.3} parent=11 // pred_check_branch
        %204 = sbr.rel (%p202) target = $region20
      $region19: #{dqn_forward.3} parent=11 // pred_region
        _
      $region20: #{dqn_forward.3} parent=11 // pred_fallthru
        _
    $region12: #{dqn_forward.3} parent=5 // pred_fallthru
      _
    %p205 = scmp.lt.s32.totalorder %s12, 2
    // Predicated region
    $region21: #{dqn_forward.3} parent=5 // pred_check
      %p206 = pneg %p205
    $region22: #{dqn_forward.3} parent=5 // pred_check_branch
      %208 = sbr.rel (%p206) target = $region24
    $region23: #{dqn_forward.3} parent=5 // pred_region
      // Predicated region
      $region25: #{dqn_forward.3} parent=23 // pred_check
        %p209 = pneg %p32
      $region26: #{dqn_forward.3} parent=23 // pred_check_branch
        %211 = sbr.rel (%p209) target = $region28
      $region27: #{dqn_forward.3} parent=23 // pred_region
        %p212 = scmp.lt.s32.totalorder %s12, 1
        %s213 = scalar_select %p212, %s12, 1
        %s214 = smul.addr %s213, 50
        %s215 = smul.addr %s214, 8
        %s216 = scalar_lea.vmem %s0, %s215
      $region28: #{dqn_forward.3} parent=23 // pred_fallthru
        _
      // Predicated region
      $region29: #{dqn_forward.3} parent=23 // pred_check
        %p217 = pneg %p58
      $region30: #{dqn_forward.3} parent=23 // pred_check_branch
        %219 = sbr.rel (%p217) target = $region32
      $region31: #{dqn_forward.3} parent=23 // pred_region
        %p220 = scmp.lt.s32.totalorder %s12, 1
        %s221 = scalar_select %p220, %s12, 1
        %s222 = smul.addr %s221, 50
        %s223 = smul.addr %s222, 8
        %s224 = scalar_lea.vmem %s1, %s223
      $region32: #{dqn_forward.3} parent=23 // pred_fallthru
        _
      // Predicated region
      $region33: #{dqn_forward.3} parent=23 // pred_check
        %p225 = pneg %p84
      $region34: #{dqn_forward.3} parent=23 // pred_check_branch
        %227 = sbr.rel (%p225) target = $region36
      $region35: #{dqn_forward.3} parent=23 // pred_region
        %p228 = scmp.lt.s32.totalorder %s12, 1
        %s229 = scalar_select %p228, %s12, 1
        %s230 = smul.addr %s229, 50
        %s231 = smul.addr %s230, 8
        %s232 = scalar_lea.vmem %s2, %s231
      $region36: #{dqn_forward.3} parent=23 // pred_fallthru
        _
      // Predicated region
      $region37: #{dqn_forward.3} parent=23 // pred_check
        %p233 = pneg %p110
      $region38: #{dqn_forward.3} parent=23 // pred_check_branch
        %235 = sbr.rel (%p233) target = $region40
      $region39: #{dqn_forward.3} parent=23 // pred_region
        %p236 = scmp.lt.s32.totalorder %s12, 1
        %s237 = scalar_select %p236, %s12, 1
        %s238 = smul.addr %s237, 50
        %s239 = smul.addr %s238, 8
        %s240 = scalar_lea.vmem %s3, %s239
      $region40: #{dqn_forward.3} parent=23 // pred_fallthru
        _
    $region24: #{dqn_forward.3} parent=5 // pred_fallthru
      _
    %p241 = scmp.le.s32.totalorder 1, %s12
    %p242 = scmp.lt.s32.totalorder %s12, 3
    %p243 = pnand %p241, %p242
    %p244 = pneg %p243
    // Predicated region
    $region41: #{dqn_forward.3} parent=5 // pred_check
      _
    $region42: #{dqn_forward.3} parent=5 // pred_check_branch
      %246 = sbr.rel (%p243) target = $region44
    $region43: #{dqn_forward.3} parent=5 // pred_region
      %s247 = ssub.s32 %s12, 1
      %p248 = scmp.lt.s32.totalorder %s17, 1
      %s249 = scalar_select %p248, %s17, 1
      %s250 = smul.addr %s249, 50
      %s251 = smul.addr %s250, 8
      %s252 = scalar_lea.vmem %s0, %s251
      %p253 = pneg %p38
      %p254 = pneg %p35
      %p255 = scmp.lt.s32.totalorder %s17, 1
      %s256 = scalar_select %p255, %s17, 1
      %s257 = smul.addr %s256, 50
      %s258 = smul.addr %s257, 8
      %s259 = scalar_lea.vmem %s1, %s258
      %p260 = pneg %p64
      %p261 = pneg %p61
      %p262 = scmp.lt.s32.totalorder %s17, 1
      %s263 = scalar_select %p262, %s17, 1
      %s264 = smul.addr %s263, 50
      %s265 = smul.addr %s264, 8
      %s266 = scalar_lea.vmem %s2, %s265
      %p267 = pneg %p90
      %p268 = pneg %p87
      %p269 = scmp.lt.s32.totalorder %s17, 1
      %s270 = scalar_select %p269, %s17, 1
      %s271 = smul.addr %s270, 50
      %s272 = smul.addr %s271, 8
      %s273 = scalar_lea.vmem %s3, %s272
      %p274 = pneg %p116
      %p275 = pneg %p113
      %p276 = pneg %p137
      %p277 = pneg %p134
      %p278 = pneg %p158
      %p279 = pneg %p155
      %p280 = pneg %p184
      %p281 = pneg %p181
      %p282 = scmp.lt.s32.totalorder %s17, 1
      %s283 = scalar_select %p282, %s17, 1
      %s284 = smul.addr %s283, 50
      %s285 = smul.addr %s284, 8
      %s286 = scalar_lea.vmem %s6, %s285
      %p287 = scmp.lt.s32.totalorder %s17, 1
      %s288 = scalar_select %p287, %s17, 1
      %s289 = smul.addr %s288, 50
      %s290 = smul.addr %s289, 8
      %s291 = scalar_lea.vmem %s0, %s290
      %p292 = scmp.lt.s32.totalorder %s17, 1
      %s293 = scalar_select %p292, %s17, 1
      %s294 = smul.addr %s293, 50
      %s295 = smul.addr %s294, 8
      %s296 = scalar_lea.vmem %s1, %s295
      %p297 = scmp.lt.s32.totalorder %s17, 1
      %s298 = scalar_select %p297, %s17, 1
      %s299 = smul.addr %s298, 50
      %s300 = smul.addr %s299, 8
      %s301 = scalar_lea.vmem %s2, %s300
      %p302 = scmp.lt.s32.totalorder %s17, 1
      %s303 = scalar_select %p302, %s17, 1
      %s304 = smul.addr %s303, 50
      %s305 = smul.addr %s304, 8
      %s306 = scalar_lea.vmem %s3, %s305
      %p307 = scmp.lt.s32.totalorder %s17, 1
      %s308 = scalar_select %p307, %s17, 1
      %s309 = smul.addr %s308, 50
      %s310 = smul.addr %s309, 8
      %s311 = scalar_lea.vmem %s6, %s310
      %v312 = vld [vmem:[%s4] sm:$0xff]
      %v313 = vld [vmem:[%s4 + $0x8] sm:$0xff]
      %v314 = vld [vmem:[%s4 + $0x10] sm:$0xff]
      %v315 = vld [vmem:[%s4 + $0x18] sm:$0xff]
      %v316 = vld [vmem:[%s4 + $0x20] sm:$0xf]
      %v317 = vld [vmem:[%s291] sm:$0xff]
      %v318 = vld [vmem:[%s291 + $0x8] sm:$0xff]
      %v319 = vld [vmem:[%s291 + $0x10] sm:$0xff]
      %v320 = vld [vmem:[%s291 + $0x18] sm:$0xff]
      %v321 = vld [vmem:[%s291 + $0x20] sm:$0xff]
      %v322 = vld [vmem:[%s291 + $0x28] sm:$0xff]
      %v323 = vld [vmem:[%s291 + $0x30] sm:$0xff]
      %v324 = vld [vmem:[%s291 + $0x38] sm:$0xff]
      %v325 = vld [vmem:[%s291 + $0x40] sm:$0xff]
      %v326 = vld [vmem:[%s291 + $0x48] sm:$0xff]
      %v327 = vld [vmem:[%s291 + $0x50] sm:$0xff]
      %v328 = vld [vmem:[%s291 + $0x58] sm:$0xff]
      %v329 = vld [vmem:[%s291 + $0x60] sm:$0xff]
      %v330 = vld [vmem:[%s291 + $0x68] sm:$0xff]
      %v331 = vld [vmem:[%s291 + $0x70] sm:$0xff]
      %v332 = vld [vmem:[%s291 + $0x78] sm:$0xff]
      %v333 = vld [vmem:[%s291 + $0x80] sm:$0xff]
      %v334 = vld [vmem:[%s291 + $0x88] sm:$0xff]
      %v335 = vld [vmem:[%s291 + $0x90] sm:$0xff]
      %v336 = vld [vmem:[%s291 + $0x98] sm:$0xff]
      %v337 = vld [vmem:[%s291 + $0xa0] sm:$0xff]
      %v338 = vld [vmem:[%s291 + $0xa8] sm:$0xff]
      %v339 = vld [vmem:[%s291 + $0xb0] sm:$0xff]
      %v340 = vld [vmem:[%s291 + $0xb8] sm:$0xff]
      %v341 = vld [vmem:[%s291 + $0xc0] sm:$0xff]
      %v342 = vld [vmem:[%s291 + $0xc8] sm:$0xff]
      %v343 = vld [vmem:[%s291 + $0xd0] sm:$0xff]
      %v344 = vld [vmem:[%s291 + $0xd8] sm:$0xff]
      %v345 = vld [vmem:[%s291 + $0xe0] sm:$0xff]
      %v346 = vld [vmem:[%s291 + $0xe8] sm:$0xff]
      %v347 = vld [vmem:[%s291 + $0xf0] sm:$0xff]
      %v348 = vld [vmem:[%s291 + $0xf8] sm:$0xff]
      %v349 = vld [vmem:[%s291 + $0x100] sm:$0xff]
      %v350 = vld [vmem:[%s291 + $0x108] sm:$0xff]
      %v351 = vld [vmem:[%s291 + $0x110] sm:$0xff]
      %v352 = vld [vmem:[%s291 + $0x118] sm:$0xff]
      %v353 = vld [vmem:[%s291 + $0x120] sm:$0xff]
      %v354 = vld [vmem:[%s291 + $0x128] sm:$0xff]
      %v355 = vld [vmem:[%s291 + $0x130] sm:$0xff]
      %v356 = vld [vmem:[%s291 + $0x138] sm:$0xff]
      %v357 = vld [vmem:[%s291 + $0x140] sm:$0xff]
      %v358 = vld [vmem:[%s291 + $0x148] sm:$0xff]
      %v359 = vld [vmem:[%s291 + $0x150] sm:$0xff]
      %v360 = vld [vmem:[%s291 + $0x158] sm:$0xff]
      %v361 = vld [vmem:[%s291 + $0x160] sm:$0xff]
      %v362 = vld [vmem:[%s291 + $0x168] sm:$0xff]
      %v363 = vld [vmem:[%s291 + $0x170] sm:$0xff]
      %v364 = vld [vmem:[%s291 + $0x178] sm:$0xff]
      %v365 = vld [vmem:[%s291 + $0x180] sm:$0xff]
      %v366 = vld [vmem:[%s291 + $0x188] sm:$0xff]
      %vm367 = vcmask 293888
      %v369 = vsel %vm367, %v317, 0
      %v372 = vsel %vm367, %v318, 0
      %v375 = vsel %vm367, %v319, 0
      %v378 = vsel %vm367, %v320, 0
      %v381 = vsel %vm367, %v321, 0
      %v384 = vsel %vm367, %v322, 0
      %v387 = vsel %vm367, %v323, 0
      %v390 = vsel %vm367, %v324, 0
      %v393 = vsel %vm367, %v325, 0
      %v396 = vsel %vm367, %v326, 0
      %v399 = vsel %vm367, %v327, 0
      %v402 = vsel %vm367, %v328, 0
      %v405 = vsel %vm367, %v329, 0
      %v408 = vsel %vm367, %v330, 0
      %v411 = vsel %vm367, %v331, 0
      %v414 = vsel %vm367, %v332, 0
      %v417 = vsel %vm367, %v333, 0
      %v420 = vsel %vm367, %v334, 0
      %v423 = vsel %vm367, %v335, 0
      %v426 = vsel %vm367, %v336, 0
      %v429 = vsel %vm367, %v337, 0
      %v432 = vsel %vm367, %v338, 0
      %v435 = vsel %vm367, %v339, 0
      %v438 = vsel %vm367, %v340, 0
      %v441 = vsel %vm367, %v341, 0
      %v444 = vsel %vm367, %v342, 0
      %v447 = vsel %vm367, %v343, 0
      %v450 = vsel %vm367, %v344, 0
      %v453 = vsel %vm367, %v345, 0
      %v456 = vsel %vm367, %v346, 0
      %v459 = vsel %vm367, %v347, 0
      %v462 = vsel %vm367, %v348, 0
      %v465 = vsel %vm367, %v349, 0
      %v468 = vsel %vm367, %v350, 0
      %v471 = vsel %vm367, %v351, 0
      %v474 = vsel %vm367, %v352, 0
      %v477 = vsel %vm367, %v353, 0
      %v480 = vsel %vm367, %v354, 0
      %v483 = vsel %vm367, %v355, 0
      %v486 = vsel %vm367, %v356, 0
      %v489 = vsel %vm367, %v357, 0
      %v492 = vsel %vm367, %v358, 0
      %v495 = vsel %vm367, %v359, 0
      %v498 = vsel %vm367, %v360, 0
      %v501 = vsel %vm367, %v361, 0
      %v504 = vsel %vm367, %v362, 0
      %v507 = vsel %vm367, %v363, 0
      %v510 = vsel %vm367, %v364, 0
      %v513 = vsel %vm367, %v365, 0
      %v516 = vsel %vm367, %v366, 0
      %vm518 = vcmask 1043456
      %v520 = vsel %vm518, %v316, 0
      %522 = vmatprep.subr.mxu0 0.0
      %523 = vmatpush1.msra.mxu0 %v312
      %524 = vmatprep.subr.mxu0 0.0
      %525 = vmatpush1.msra.mxu0 %v313
      %526 = vmatprep.subr.mxu0 0.0
      %527 = vmatpush1.msra.mxu0 %v314
      %528 = vmatprep.subr.mxu0 0.0
      %529 = vmatpush1.msra.mxu0 %v315
      %530 = vmatprep.subr.mxu0 0.0
      %531 = vmatpush1.msra.mxu0 %v520
      %532 = vmatprep.subr.mxu0 0.0
      %533 = vmatpush1.msra.mxu0 0.0
      %534 = vmatprep.subr.mxu0 0.0
      %535 = vmatpush1.msra.mxu0 0.0
      %536 = vmatprep.subr.mxu0 0.0
      %537 = vmatpush1.msra.mxu0 0.0
      %538 = vmatprep.subr.mxu0 0.0
      %539 = vmatpush1.msra.mxu0 0.0
      %540 = vmatprep.subr.mxu0 0.0
      %541 = vmatpush1.msra.mxu0 0.0
      %542 = vmatprep.subr.mxu0 0.0
      %543 = vmatpush1.msra.mxu0 0.0
      %544 = vmatprep.subr.mxu0 0.0
      %545 = vmatpush1.msra.mxu0 0.0
      %546 = vmatprep.subr.mxu0 0.0
      %547 = vmatpush1.msra.mxu0 0.0
      %548 = vmatprep.subr.mxu0 0.0
      %549 = vmatpush1.msra.mxu0 0.0
      %550 = vmatprep.subr.mxu0 0.0
      %551 = vmatpush1.msra.mxu0 0.0
      %552 = vmatprep.subr.mxu0 0.0
      %553 = vmatpush1.msra.mxu0 0.0
      %554 = vmatprep.subr.mxu0 0.0
      %555 = vmatpush1.msra.mxu0 0.0
      %556 = vmatprep.subr.mxu0 0.0
      %557 = vmatpush1.msra.mxu0 0.0
      %558 = vmatprep.subr.mxu0 0.0
      %559 = vmatpush1.msra.mxu0 0.0
      %560 = vmatprep.subr.mxu0 0.0
      %561 = vmatpush1.msra.mxu0 0.0
      %562 = vmatprep.subr.mxu0 0.0
      %563 = vmatpush1.msra.mxu0 0.0
      %564 = vmatprep.subr.mxu0 0.0
      %565 = vmatpush1.msra.mxu0 0.0
      %566 = vmatprep.subr.mxu0 0.0
      %567 = vmatpush1.msra.mxu0 0.0
      %568 = vmatprep.subr.mxu0 0.0
      %569 = vmatpush1.msra.mxu0 0.0
      %570 = vmatprep.subr.mxu0 0.0
      %571 = vmatpush1.msra.mxu0 0.0
      %572 = vmatprep.subr.mxu0 0.0
      %573 = vmatpush1.msra.mxu0 0.0
      %574 = vmatprep.subr.mxu0 0.0
      %575 = vmatpush1.msra.mxu0 0.0
      %576 = vmatprep.subr.mxu0 0.0
      %577 = vmatpush1.msra.mxu0 0.0
      %578 = vmatprep.subr.mxu0 0.0
      %579 = vmatpush1.msra.mxu0 0.0
      %580 = vmatprep.subr.mxu0 0.0
      %581 = vmatpush1.msra.mxu0 0.0
      %582 = vmatprep.subr.mxu0 0.0
      %583 = vmatpush1.msra.mxu0 0.0
      %584 = vmatprep.subr.mxu0 0.0
      %585 = vmatpush1.msra.mxu0 0.0
      %586 = vmatprep.mubr.f32.mxu0 0.0
      %587 = vmatmul.mubr.f32.gmra.mrb[0].mxu0 %v369
      %v588 = vpop.f32.mrb[0].mxu0
      %v589 = vadd.f32 0.0, %v588
      %v590 = vpop.f32.mrb[0].mxu0
      %591 = vmatprep.mubr.f32.mxu0 0.0
      %592 = vmatmul.mubr.f32.gmra.mrb[0].mxu0 %v372
      %v593 = vpop.f32.mrb[0].mxu0
      %v594 = vadd.f32 0.0, %v593
      %v595 = vpop.f32.mrb[0].mxu0
      %596 = vmatprep.mubr.f32.mxu0 0.0
      %597 = vmatmul.mubr.f32.gmra.mrb[0].mxu0 %v375
      %v598 = vpop.f32.mrb[0].mxu0
      %v599 = vadd.f32 0.0, %v598
      %v600 = vpop.f32.mrb[0].mxu0
      %601 = vmatprep.mubr.f32.mxu0 0.0
      %602 = vmatmul.mubr.f32.gmra.mrb[0].mxu0 %v378
      %v603 = vpop.f32.mrb[0].mxu0
      %v604 = vadd.f32 0.0, %v603
      %v605 = vpop.f32.mrb[0].mxu0
      %606 = vmatprep.mubr.f32.mxu0 0.0
      %607 = vmatmul.mubr.f32.gmra.mrb[0].mxu0 %v381
      %v608 = vpop.f32.mrb[0].mxu0
      %v609 = vadd.f32 0.0, %v608
      %v610 = vpop.f32.mrb[0].mxu0
      %611 = vmatprep.mubr.f32.mxu0 0.0
      %612 = vmatmul.mubr.f32.gmra.mrb[0].mxu0 %v384
      %v613 = vpop.f32.mrb[0].mxu0
      %v614 = vadd.f32 0.0, %v613
      %v615 = vpop.f32.mrb[0].mxu0
      %616 = vmatprep.mubr.f32.mxu0 0.0
      %617 = vmatmul.mubr.f32.gmra.mrb[0].mxu0 %v387
      %v618 = vpop.f32.mrb[0].mxu0
      %v619 = vadd.f32 0.0, %v618
      %v620 = vpop.f32.mrb[0].mxu0
      %621 = vmatprep.mubr.f32.mxu0 0.0
      %622 = vmatmul.mubr.f32.gmra.mrb[0].mxu0 %v390
      %v623 = vpop.f32.mrb[0].mxu0
      %v624 = vadd.f32 0.0, %v623
      %v625 = vpop.f32.mrb[0].mxu0
      %626 = vmatprep.mubr.f32.mxu0 0.0
      %627 = vmatmul.mubr.f32.gmra.mrb[0].mxu0 %v393
      %v628 = vpop.f32.mrb[0].mxu0
      %v629 = vadd.f32 0.0, %v628
      %v630 = vpop.f32.mrb[0].mxu0
      %631 = vmatprep.mubr.f32.mxu0 0.0
      %632 = vmatmul.mubr.f32.gmra.mrb[0].mxu0 %v396
      %v633 = vpop.f32.mrb[0].mxu0
      %v634 = vadd.f32 0.0, %v633
      %v635 = vpop.f32.mrb[0].mxu0
      %636 = vmatprep.mubr.f32.mxu0 0.0
      %637 = vmatmul.mubr.f32.gmra.mrb[0].mxu0 %v399
      %v638 = vpop.f32.mrb[0].mxu0
      %v639 = vadd.f32 0.0, %v638
      %v640 = vpop.f32.mrb[0].mxu0
      %641 = vmatprep.mubr.f32.mxu0 0.0
      %642 = vmatmul.mubr.f32.gmra.mrb[0].mxu0 %v402
      %v643 = vpop.f32.mrb[0].mxu0
      %v644 = vadd.f32 0.0, %v643
      %v645 = vpop.f32.mrb[0].mxu0
      %646 = vmatprep.mubr.f32.mxu0 0.0
      %647 = vmatmul.mubr.f32.gmra.mrb[0].mxu0 %v405
      %v648 = vpop.f32.mrb[0].mxu0
      %v649 = vadd.f32 0.0, %v648
      %v650 = vpop.f32.mrb[0].mxu0
      %651 = vmatprep.mubr.f32.mxu0 0.0
      %652 = vmatmul.mubr.f32.gmra.mrb[0].mxu0 %v408
      %v653 = vpop.f32.mrb[0].mxu0
      %v654 = vadd.f32 0.0, %v653
      %v655 = vpop.f32.mrb[0].mxu0
      %656 = vmatprep.mubr.f32.mxu0 0.0
      %657 = vmatmul.mubr.f32.gmra.mrb[0].mxu0 %v411
      %v658 = vpop.f32.mrb[0].mxu0
      %v659 = vadd.f32 0.0, %v658
      %v660 = vpop.f32.mrb[0].mxu0
      %661 = vmatprep.mubr.f32.mxu0 0.0
      %662 = vmatmul.mubr.f32.gmra.mrb[0].mxu0 %v414
      %v663 = vpop.f32.mrb[0].mxu0
      %v664 = vadd.f32 0.0, %v663
      %v665 = vpop.f32.mrb[0].mxu0
      %666 = vmatprep.mubr.f32.mxu0 0.0
      %667 = vmatmul.mubr.f32.gmra.mrb[0].mxu0 %v417
      %v668 = vpop.f32.mrb[0].mxu0
      %v669 = vadd.f32 0.0, %v668
      %v670 = vpop.f32.mrb[0].mxu0
      %671 = vmatprep.mubr.f32.mxu0 0.0
      %672 = vmatmul.mubr.f32.gmra.mrb[0].mxu0 %v420
      %v673 = vpop.f32.mrb[0].mxu0
      %v674 = vadd.f32 0.0, %v673
      %v675 = vpop.f32.mrb[0].mxu0
      %676 = vmatprep.mubr.f32.mxu0 0.0
      %677 = vmatmul.mubr.f32.gmra.mrb[0].mxu0 %v423
      %v678 = vpop.f32.mrb[0].mxu0
      %v679 = vadd.f32 0.0, %v678
      %v680 = vpop.f32.mrb[0].mxu0
      %681 = vmatprep.mubr.f32.mxu0 0.0
      %682 = vmatmul.mubr.f32.gmra.mrb[0].mxu0 %v426
      %v683 = vpop.f32.mrb[0].mxu0
      %v684 = vadd.f32 0.0, %v683
      %v685 = vpop.f32.mrb[0].mxu0
      %686 = vmatprep.mubr.f32.mxu0 0.0
      %687 = vmatmul.mubr.f32.gmra.mrb[0].mxu0 %v429
      %v688 = vpop.f32.mrb[0].mxu0
      %v689 = vadd.f32 0.0, %v688
      %v690 = vpop.f32.mrb[0].mxu0
      %691 = vmatprep.mubr.f32.mxu0 0.0
      %692 = vmatmul.mubr.f32.gmra.mrb[0].mxu0 %v432
      %v693 = vpop.f32.mrb[0].mxu0
      %v694 = vadd.f32 0.0, %v693
      %v695 = vpop.f32.mrb[0].mxu0
      %696 = vmatprep.mubr.f32.mxu0 0.0
      %697 = vmatmul.mubr.f32.gmra.mrb[0].mxu0 %v435
      %v698 = vpop.f32.mrb[0].mxu0
      %v699 = vadd.f32 0.0, %v698
      %v700 = vpop.f32.mrb[0].mxu0
      %701 = vmatprep.mubr.f32.mxu0 0.0
      %702 = vmatmul.mubr.f32.gmra.mrb[0].mxu0 %v438
      %v703 = vpop.f32.mrb[0].mxu0
      %v704 = vadd.f32 0.0, %v703
      %v705 = vpop.f32.mrb[0].mxu0
      %706 = vmatprep.mubr.f32.mxu0 0.0
      %707 = vmatmul.mubr.f32.gmra.mrb[0].mxu0 %v441
      %v708 = vpop.f32.mrb[0].mxu0
      %v709 = vadd.f32 0.0, %v708
      %v710 = vpop.f32.mrb[0].mxu0
      %711 = vmatprep.mubr.f32.mxu0 0.0
      %712 = vmatmul.mubr.f32.gmra.mrb[0].mxu0 %v444
      %v713 = vpop.f32.mrb[0].mxu0
      %v714 = vadd.f32 0.0, %v713
      %v715 = vpop.f32.mrb[0].mxu0
      %716 = vmatprep.mubr.f32.mxu0 0.0
      %717 = vmatmul.mubr.f32.gmra.mrb[0].mxu0 %v447
      %v718 = vpop.f32.mrb[0].mxu0
      %v719 = vadd.f32 0.0, %v718
      %v720 = vpop.f32.mrb[0].mxu0
      %721 = vmatprep.mubr.f32.mxu0 0.0
      %722 = vmatmul.mubr.f32.gmra.mrb[0].mxu0 %v450
      %v723 = vpop.f32.mrb[0].mxu0
      %v724 = vadd.f32 0.0, %v723
      %v725 = vpop.f32.mrb[0].mxu0
      %726 = vmatprep.mubr.f32.mxu0 0.0
      %727 = vmatmul.mubr.f32.gmra.mrb[0].mxu0 %v453
      %v728 = vpop.f32.mrb[0].mxu0
      %v729 = vadd.f32 0.0, %v728
      %v730 = vpop.f32.mrb[0].mxu0
      %731 = vmatprep.mubr.f32.mxu0 0.0
      %732 = vmatmul.mubr.f32.gmra.mrb[0].mxu0 %v456
      %v733 = vpop.f32.mrb[0].mxu0
      %v734 = vadd.f32 0.0, %v733
      %v735 = vpop.f32.mrb[0].mxu0
      %736 = vmatprep.mubr.f32.mxu0 0.0
      %737 = vmatmul.mubr.f32.gmra.mrb[0].mxu0 %v459
      %v738 = vpop.f32.mrb[0].mxu0
      %v739 = vadd.f32 0.0, %v738
      %v740 = vpop.f32.mrb[0].mxu0
      %741 = vmatprep.mubr.f32.mxu0 0.0
      %742 = vmatmul.mubr.f32.gmra.mrb[0].mxu0 %v462
      %v743 = vpop.f32.mrb[0].mxu0
      %v744 = vadd.f32 0.0, %v743
      %v745 = vpop.f32.mrb[0].mxu0
      %746 = vmatprep.mubr.f32.mxu0 0.0
      %747 = vmatmul.mubr.f32.gmra.mrb[0].mxu0 %v465
      %v748 = vpop.f32.mrb[0].mxu0
      %v749 = vadd.f32 0.0, %v748
      %v750 = vpop.f32.mrb[0].mxu0
      %751 = vmatprep.mubr.f32.mxu0 0.0
      %752 = vmatmul.mubr.f32.gmra.mrb[0].mxu0 %v468
      %v753 = vpop.f32.mrb[0].mxu0
      %v754 = vadd.f32 0.0, %v753
      %v755 = vpop.f32.mrb[0].mxu0
      %756 = vmatprep.mubr.f32.mxu0 0.0
      %757 = vmatmul.mubr.f32.gmra.mrb[0].mxu0 %v471
      %v758 = vpop.f32.mrb[0].mxu0
      %v759 = vadd.f32 0.0, %v758
      %v760 = vpop.f32.mrb[0].mxu0
      %761 = vmatprep.mubr.f32.mxu0 0.0
      %762 = vmatmul.mubr.f32.gmra.mrb[0].mxu0 %v474
      %v763 = vpop.f32.mrb[0].mxu0
      %v764 = vadd.f32 0.0, %v763
      %v765 = vpop.f32.mrb[0].mxu0
      %766 = vmatprep.mubr.f32.mxu0 0.0
      %767 = vmatmul.mubr.f32.gmra.mrb[0].mxu0 %v477
      %v768 = vpop.f32.mrb[0].mxu0
      %v769 = vadd.f32 0.0, %v768
      %v770 = vpop.f32.mrb[0].mxu0
      %771 = vmatprep.mubr.f32.mxu0 0.0
      %772 = vmatmul.mubr.f32.gmra.mrb[0].mxu0 %v480
      %v773 = vpop.f32.mrb[0].mxu0
      %v774 = vadd.f32 0.0, %v773
      %v775 = vpop.f32.mrb[0].mxu0
      %776 = vmatprep.mubr.f32.mxu0 0.0
      %777 = vmatmul.mubr.f32.gmra.mrb[0].mxu0 %v483
      %v778 = vpop.f32.mrb[0].mxu0
      %v779 = vadd.f32 0.0, %v778
      %v780 = vpop.f32.mrb[0].mxu0
      %781 = vmatprep.mubr.f32.mxu0 0.0
      %782 = vmatmul.mubr.f32.gmra.mrb[0].mxu0 %v486
      %v783 = vpop.f32.mrb[0].mxu0
      %v784 = vadd.f32 0.0, %v783
      %v785 = vpop.f32.mrb[0].mxu0
      %786 = vmatprep.mubr.f32.mxu0 0.0
      %787 = vmatmul.mubr.f32.gmra.mrb[0].mxu0 %v489
      %v788 = vpop.f32.mrb[0].mxu0
      %v789 = vadd.f32 0.0, %v788
      %v790 = vpop.f32.mrb[0].mxu0
      %791 = vmatprep.mubr.f32.mxu0 0.0
      %792 = vmatmul.mubr.f32.gmra.mrb[0].mxu0 %v492
      %v793 = vpop.f32.mrb[0].mxu0
      %v794 = vadd.f32 0.0, %v793
      %v795 = vpop.f32.mrb[0].mxu0
      %796 = vmatprep.mubr.f32.mxu0 0.0
      %797 = vmatmul.mubr.f32.gmra.mrb[0].mxu0 %v495
      %v798 = vpop.f32.mrb[0].mxu0
      %v799 = vadd.f32 0.0, %v798
      %v800 = vpop.f32.mrb[0].mxu0
      %801 = vmatprep.mubr.f32.mxu0 0.0
      %802 = vmatmul.mubr.f32.gmra.mrb[0].mxu0 %v498
      %v803 = vpop.f32.mrb[0].mxu0
      %v804 = vadd.f32 0.0, %v803
      %v805 = vpop.f32.mrb[0].mxu0
      %806 = vmatprep.mubr.f32.mxu0 0.0
      %807 = vmatmul.mubr.f32.gmra.mrb[0].mxu0 %v501
      %v808 = vpop.f32.mrb[0].mxu0
      %v809 = vadd.f32 0.0, %v808
      %v810 = vpop.f32.mrb[0].mxu0
      %811 = vmatprep.mubr.f32.mxu0 0.0
      %812 = vmatmul.mubr.f32.gmra.mrb[0].mxu0 %v504
      %v813 = vpop.f32.mrb[0].mxu0
      %v814 = vadd.f32 0.0, %v813
      %v815 = vpop.f32.mrb[0].mxu0
      %816 = vmatprep.mubr.f32.mxu0 0.0
      %817 = vmatmul.mubr.f32.gmra.mrb[0].mxu0 %v507
      %v818 = vpop.f32.mrb[0].mxu0
      %v819 = vadd.f32 0.0, %v818
      %v820 = vpop.f32.mrb[0].mxu0
      %821 = vmatprep.mubr.f32.mxu0 0.0
      %822 = vmatmul.mubr.f32.gmra.mrb[0].mxu0 %v510
      %v823 = vpop.f32.mrb[0].mxu0
      %v824 = vadd.f32 0.0, %v823
      %v825 = vpop.f32.mrb[0].mxu0
      %826 = vmatprep.mubr.f32.mxu0 0.0
      %827 = vmatmul.mubr.f32.gmra.mrb[0].mxu0 %v513
      %v828 = vpop.f32.mrb[0].mxu0
      %v829 = vadd.f32 0.0, %v828
      %v830 = vpop.f32.mrb[0].mxu0
      %831 = vmatprep.mubr.f32.mxu0 0.0
      %832 = vmatmul.mubr.f32.gmra.mrb[0].mxu0 %v516
      %v833 = vpop.f32.mrb[0].mxu0
      %v834 = vadd.f32 0.0, %v833
      %v835 = vpop.f32.mrb[0].mxu0
      %836 = vdwg.mxu0
      %v837 = vld [vmem:[%s296] sm:$0xff]
      %v838 = vld [vmem:[%s296 + $0x8] sm:$0xff]
      %v839 = vld [vmem:[%s296 + $0x10] sm:$0xff]
      %v840 = vld [vmem:[%s296 + $0x18] sm:$0xff]
      %v841 = vld [vmem:[%s296 + $0x20] sm:$0xff]
      %v842 = vld [vmem:[%s296 + $0x28] sm:$0xff]
      %v843 = vld [vmem:[%s296 + $0x30] sm:$0xff]
      %v844 = vld [vmem:[%s296 + $0x38] sm:$0xff]
      %v845 = vld [vmem:[%s296 + $0x40] sm:$0xff]
      %v846 = vld [vmem:[%s296 + $0x48] sm:$0xff]
      %v847 = vld [vmem:[%s296 + $0x50] sm:$0xff]
      %v848 = vld [vmem:[%s296 + $0x58] sm:$0xff]
      %v849 = vld [vmem:[%s296 + $0x60] sm:$0xff]
      %v850 = vld [vmem:[%s296 + $0x68] sm:$0xff]
      %v851 = vld [vmem:[%s296 + $0x70] sm:$0xff]
      %v852 = vld [vmem:[%s296 + $0x78] sm:$0xff]
      %v853 = vld [vmem:[%s296 + $0x80] sm:$0xff]
      %v854 = vld [vmem:[%s296 + $0x88] sm:$0xff]
      %v855 = vld [vmem:[%s296 + $0x90] sm:$0xff]
      %v856 = vld [vmem:[%s296 + $0x98] sm:$0xff]
      %v857 = vld [vmem:[%s296 + $0xa0] sm:$0xff]
      %v858 = vld [vmem:[%s296 + $0xa8] sm:$0xff]
      %v859 = vld [vmem:[%s296 + $0xb0] sm:$0xff]
      %v860 = vld [vmem:[%s296 + $0xb8] sm:$0xff]
      %v861 = vld [vmem:[%s296 + $0xc0] sm:$0xff]
      %v862 = vld [vmem:[%s296 + $0xc8] sm:$0xff]
      %v863 = vld [vmem:[%s296 + $0xd0] sm:$0xff]
      %v864 = vld [vmem:[%s296 + $0xd8] sm:$0xff]
      %v865 = vld [vmem:[%s296 + $0xe0] sm:$0xff]
      %v866 = vld [vmem:[%s296 + $0xe8] sm:$0xff]
      %v867 = vld [vmem:[%s296 + $0xf0] sm:$0xff]
      %v868 = vld [vmem:[%s296 + $0xf8] sm:$0xff]
      %v869 = vld [vmem:[%s296 + $0x100] sm:$0xff]
      %v870 = vld [vmem:[%s296 + $0x108] sm:$0xff]
      %v871 = vld [vmem:[%s296 + $0x110] sm:$0xff]
      %v872 = vld [vmem:[%s296 + $0x118] sm:$0xff]
      %v873 = vld [vmem:[%s296 + $0x120] sm:$0xff]
      %v874 = vld [vmem:[%s296 + $0x128] sm:$0xff]
      %v875 = vld [vmem:[%s296 + $0x130] sm:$0xff]
      %v876 = vld [vmem:[%s296 + $0x138] sm:$0xff]
      %v877 = vld [vmem:[%s296 + $0x140] sm:$0xff]
      %v878 = vld [vmem:[%s296 + $0x148] sm:$0xff]
      %v879 = vld [vmem:[%s296 + $0x150] sm:$0xff]
      %v880 = vld [vmem:[%s296 + $0x158] sm:$0xff]
      %v881 = vld [vmem:[%s296 + $0x160] sm:$0xff]
      %v882 = vld [vmem:[%s296 + $0x168] sm:$0xff]
      %v883 = vld [vmem:[%s296 + $0x170] sm:$0xff]
      %v884 = vld [vmem:[%s296 + $0x178] sm:$0xff]
      %v885 = vld [vmem:[%s296 + $0x180] sm:$0xff]
      %v886 = vld [vmem:[%s296 + $0x188] sm:$0xff]
      %v888 = vsel %vm367, %v837, 0
      %v891 = vsel %vm367, %v838, 0
      %v894 = vsel %vm367, %v839, 0
      %v897 = vsel %vm367, %v840, 0
      %v900 = vsel %vm367, %v841, 0
      %v903 = vsel %vm367, %v842, 0
      %v906 = vsel %vm367, %v843, 0
      %v909 = vsel %vm367, %v844, 0
      %v912 = vsel %vm367, %v845, 0
      %v915 = vsel %vm367, %v846, 0
      %v918 = vsel %vm367, %v847, 0
      %v921 = vsel %vm367, %v848, 0
      %v924 = vsel %vm367, %v849, 0
      %v927 = vsel %vm367, %v850, 0
      %v930 = vsel %vm367, %v851, 0
      %v933 = vsel %vm367, %v852, 0
      %v936 = vsel %vm367, %v853, 0
      %v939 = vsel %vm367, %v854, 0
      %v942 = vsel %vm367, %v855, 0
      %v945 = vsel %vm367, %v856, 0
      %v948 = vsel %vm367, %v857, 0
      %v951 = vsel %vm367, %v858, 0
      %v954 = vsel %vm367, %v859, 0
      %v957 = vsel %vm367, %v860, 0
      %v960 = vsel %vm367, %v861, 0
      %v963 = vsel %vm367, %v862, 0
      %v966 = vsel %vm367, %v863, 0
      %v969 = vsel %vm367, %v864, 0
      %v972 = vsel %vm367, %v865, 0
      %v975 = vsel %vm367, %v866, 0
      %v978 = vsel %vm367, %v867, 0
      %v981 = vsel %vm367, %v868, 0
      %v984 = vsel %vm367, %v869, 0
      %v987 = vsel %vm367, %v870, 0
      %v990 = vsel %vm367, %v871, 0
      %v993 = vsel %vm367, %v872, 0
      %v996 = vsel %vm367, %v873, 0
      %v999 = vsel %vm367, %v874, 0
      %v1002 = vsel %vm367, %v875, 0
      %v1005 = vsel %vm367, %v876, 0
      %v1008 = vsel %vm367, %v877, 0
      %v1011 = vsel %vm367, %v878, 0
      %v1014 = vsel %vm367, %v879, 0
      %v1017 = vsel %vm367, %v880, 0
      %v1020 = vsel %vm367, %v881, 0
      %v1023 = vsel %vm367, %v882, 0
      %v1026 = vsel %vm367, %v883, 0
      %v1029 = vsel %vm367, %v884, 0
      %v1032 = vsel %vm367, %v885, 0
      %v1035 = vsel %vm367, %v886, 0
      %1037 = vmatprep.subr.mxu0 0.0
      %1038 = vmatpush1.msra.mxu0 %v312
      %1039 = vmatprep.subr.mxu0 0.0
      %1040 = vmatpush1.msra.mxu0 %v313
      %1041 = vmatprep.subr.mxu0 0.0
      %1042 = vmatpush1.msra.mxu0 %v314
      %1043 = vmatprep.subr.mxu0 0.0
      %1044 = vmatpush1.msra.mxu0 %v315
      %1045 = vmatprep.subr.mxu0 0.0
      %1046 = vmatpush1.msra.mxu0 %v520
      %1047 = vmatprep.subr.mxu0 0.0
      %1048 = vmatpush1.msra.mxu0 0.0
      %1049 = vmatprep.subr.mxu0 0.0
      %1050 = vmatpush1.msra.mxu0 0.0
      %1051 = vmatprep.subr.mxu0 0.0
      %1052 = vmatpush1.msra.mxu0 0.0
      %1053 = vmatprep.subr.mxu0 0.0
      %1054 = vmatpush1.msra.mxu0 0.0
      %1055 = vmatprep.subr.mxu0 0.0
      %1056 = vmatpush1.msra.mxu0 0.0
      %1057 = vmatprep.subr.mxu0 0.0
      %1058 = vmatpush1.msra.mxu0 0.0
      %1059 = vmatprep.subr.mxu0 0.0
      %1060 = vmatpush1.msra.mxu0 0.0
      %1061 = vmatprep.subr.mxu0 0.0
      %1062 = vmatpush1.msra.mxu0 0.0
      %1063 = vmatprep.subr.mxu0 0.0
      %1064 = vmatpush1.msra.mxu0 0.0
      %1065 = vmatprep.subr.mxu0 0.0
      %1066 = vmatpush1.msra.mxu0 0.0
      %1067 = vmatprep.subr.mxu0 0.0
      %1068 = vmatpush1.msra.mxu0 0.0
      %1069 = vmatprep.subr.mxu0 0.0
      %1070 = vmatpush1.msra.mxu0 0.0
      %1071 = vmatprep.subr.mxu0 0.0
      %1072 = vmatpush1.msra.mxu0 0.0
      %1073 = vmatprep.subr.mxu0 0.0
      %1074 = vmatpush1.msra.mxu0 0.0
      %1075 = vmatprep.subr.mxu0 0.0
      %1076 = vmatpush1.msra.mxu0 0.0
      %1077 = vmatprep.subr.mxu0 0.0
      %1078 = vmatpush1.msra.mxu0 0.0
      %1079 = vmatprep.subr.mxu0 0.0
      %1080 = vmatpush1.msra.mxu0 0.0
      %1081 = vmatprep.subr.mxu0 0.0
      %1082 = vmatpush1.msra.mxu0 0.0
      %1083 = vmatprep.subr.mxu0 0.0
      %1084 = vmatpush1.msra.mxu0 0.0
      %1085 = vmatprep.subr.mxu0 0.0
      %1086 = vmatpush1.msra.mxu0 0.0
      %1087 = vmatprep.subr.mxu0 0.0
      %1088 = vmatpush1.msra.mxu0 0.0
      %1089 = vmatprep.subr.mxu0 0.0
      %1090 = vmatpush1.msra.mxu0 0.0
      %1091 = vmatprep.subr.mxu0 0.0
      %1092 = vmatpush1.msra.mxu0 0.0
      %1093 = vmatprep.subr.mxu0 0.0
      %1094 = vmatpush1.msra.mxu0 0.0
      %1095 = vmatprep.subr.mxu0 0.0
      %1096 = vmatpush1.msra.mxu0 0.0
      %1097 = vmatprep.subr.mxu0 0.0
      %1098 = vmatpush1.msra.mxu0 0.0
      %1099 = vmatprep.subr.mxu0 0.0
      %1100 = vmatpush1.msra.mxu0 0.0
      %1101 = vmatprep.mubr.f32.mxu0 0.0
      %1102 = vmatmul.mubr.f32.gmra.mrb[0].mxu0 %v888
      %v1103 = vpop.f32.mrb[0].mxu0
      %v1104 = vadd.f32 0.0, %v1103
      %v1105 = vpop.f32.mrb[0].mxu0
      %1106 = vmatprep.mubr.f32.mxu0 0.0
      %1107 = vmatmul.mubr.f32.gmra.mrb[0].mxu0 %v891
      %v1108 = vpop.f32.mrb[0].mxu0
      %v1109 = vadd.f32 0.0, %v1108
      %v1110 = vpop.f32.mrb[0].mxu0
      %1111 = vmatprep.mubr.f32.mxu0 0.0
      %1112 = vmatmul.mubr.f32.gmra.mrb[0].mxu0 %v894
      %v1113 = vpop.f32.mrb[0].mxu0
      %v1114 = vadd.f32 0.0, %v1113
      %v1115 = vpop.f32.mrb[0].mxu0
      %1116 = vmatprep.mubr.f32.mxu0 0.0
      %1117 = vmatmul.mubr.f32.gmra.mrb[0].mxu0 %v897
      %v1118 = vpop.f32.mrb[0].mxu0
      %v1119 = vadd.f32 0.0, %v1118
      %v1120 = vpop.f32.mrb[0].mxu0
      %1121 = vmatprep.mubr.f32.mxu0 0.0
      %1122 = vmatmul.mubr.f32.gmra.mrb[0].mxu0 %v900
      %v1123 = vpop.f32.mrb[0].mxu0
      %v1124 = vadd.f32 0.0, %v1123
      %v1125 = vpop.f32.mrb[0].mxu0
      %1126 = vmatprep.mubr.f32.mxu0 0.0
      %1127 = vmatmul.mubr.f32.gmra.mrb[0].mxu0 %v903
      %v1128 = vpop.f32.mrb[0].mxu0
      %v1129 = vadd.f32 0.0, %v1128
      %v1130 = vpop.f32.mrb[0].mxu0
      %1131 = vmatprep.mubr.f32.mxu0 0.0
      %1132 = vmatmul.mubr.f32.gmra.mrb[0].mxu0 %v906
      %v1133 = vpop.f32.mrb[0].mxu0
      %v1134 = vadd.f32 0.0, %v1133
      %v1135 = vpop.f32.mrb[0].mxu0
      %1136 = vmatprep.mubr.f32.mxu0 0.0
      %1137 = vmatmul.mubr.f32.gmra.mrb[0].mxu0 %v909
      %v1138 = vpop.f32.mrb[0].mxu0
      %v1139 = vadd.f32 0.0, %v1138
      %v1140 = vpop.f32.mrb[0].mxu0
      %1141 = vmatprep.mubr.f32.mxu0 0.0
      %1142 = vmatmul.mubr.f32.gmra.mrb[0].mxu0 %v912
      %v1143 = vpop.f32.mrb[0].mxu0
      %v1144 = vadd.f32 0.0, %v1143
      %v1145 = vpop.f32.mrb[0].mxu0
      %1146 = vmatprep.mubr.f32.mxu0 0.0
      %1147 = vmatmul.mubr.f32.gmra.mrb[0].mxu0 %v915
      %v1148 = vpop.f32.mrb[0].mxu0
      %v1149 = vadd.f32 0.0, %v1148
      %v1150 = vpop.f32.mrb[0].mxu0
      %1151 = vmatprep.mubr.f32.mxu0 0.0
      %1152 = vmatmul.mubr.f32.gmra.mrb[0].mxu0 %v918
      %v1153 = vpop.f32.mrb[0].mxu0
      %v1154 = vadd.f32 0.0, %v1153
      %v1155 = vpop.f32.mrb[0].mxu0
      %1156 = vmatprep.mubr.f32.mxu0 0.0
      %1157 = vmatmul.mubr.f32.gmra.mrb[0].mxu0 %v921
      %v1158 = vpop.f32.mrb[0].mxu0
      %v1159 = vadd.f32 0.0, %v1158
      %v1160 = vpop.f32.mrb[0].mxu0
      %1161 = vmatprep.mubr.f32.mxu0 0.0
      %1162 = vmatmul.mubr.f32.gmra.mrb[0].mxu0 %v924
      %v1163 = vpop.f32.mrb[0].mxu0
      %v1164 = vadd.f32 0.0, %v1163
      %v1165 = vpop.f32.mrb[0].mxu0
      %1166 = vmatprep.mubr.f32.mxu0 0.0
      %1167 = vmatmul.mubr.f32.gmra.mrb[0].mxu0 %v927
      %v1168 = vpop.f32.mrb[0].mxu0
      %v1169 = vadd.f32 0.0, %v1168
      %v1170 = vpop.f32.mrb[0].mxu0
      %1171 = vmatprep.mubr.f32.mxu0 0.0
      %1172 = vmatmul.mubr.f32.gmra.mrb[0].mxu0 %v930
      %v1173 = vpop.f32.mrb[0].mxu0
      %v1174 = vadd.f32 0.0, %v1173
      %v1175 = vpop.f32.mrb[0].mxu0
      %1176 = vmatprep.mubr.f32.mxu0 0.0
      %1177 = vmatmul.mubr.f32.gmra.mrb[0].mxu0 %v933
      %v1178 = vpop.f32.mrb[0].mxu0
      %v1179 = vadd.f32 0.0, %v1178
      %v1180 = vpop.f32.mrb[0].mxu0
      %1181 = vmatprep.mubr.f32.mxu0 0.0
      %1182 = vmatmul.mubr.f32.gmra.mrb[0].mxu0 %v936
      %v1183 = vpop.f32.mrb[0].mxu0
      %v1184 = vadd.f32 0.0, %v1183
      %v1185 = vpop.f32.mrb[0].mxu0
      %1186 = vmatprep.mubr.f32.mxu0 0.0
      %1187 = vmatmul.mubr.f32.gmra.mrb[0].mxu0 %v939
      %v1188 = vpop.f32.mrb[0].mxu0
      %v1189 = vadd.f32 0.0, %v1188
      %v1190 = vpop.f32.mrb[0].mxu0
      %1191 = vmatprep.mubr.f32.mxu0 0.0
      %1192 = vmatmul.mubr.f32.gmra.mrb[0].mxu0 %v942
      %v1193 = vpop.f32.mrb[0].mxu0
      %v1194 = vadd.f32 0.0, %v1193
      %v1195 = vpop.f32.mrb[0].mxu0
      %1196 = vmatprep.mubr.f32.mxu0 0.0
      %1197 = vmatmul.mubr.f32.gmra.mrb[0].mxu0 %v945
      %v1198 = vpop.f32.mrb[0].mxu0
      %v1199 = vadd.f32 0.0, %v1198
      %v1200 = vpop.f32.mrb[0].mxu0
      %1201 = vmatprep.mubr.f32.mxu0 0.0
      %1202 = vmatmul.mubr.f32.gmra.mrb[0].mxu0 %v948
      %v1203 = vpop.f32.mrb[0].mxu0
      %v1204 = vadd.f32 0.0, %v1203
      %v1205 = vpop.f32.mrb[0].mxu0
      %1206 = vmatprep.mubr.f32.mxu0 0.0
      %1207 = vmatmul.mubr.f32.gmra.mrb[0].mxu0 %v951
      %v1208 = vpop.f32.mrb[0].mxu0
      %v1209 = vadd.f32 0.0, %v1208
      %v1210 = vpop.f32.mrb[0].mxu0
      %1211 = vmatprep.mubr.f32.mxu0 0.0
      %1212 = vmatmul.mubr.f32.gmra.mrb[0].mxu0 %v954
      %v1213 = vpop.f32.mrb[0].mxu0
      %v1214 = vadd.f32 0.0, %v1213
      %v1215 = vpop.f32.mrb[0].mxu0
      %1216 = vmatprep.mubr.f32.mxu0 0.0
      %1217 = vmatmul.mubr.f32.gmra.mrb[0].mxu0 %v957
      %v1218 = vpop.f32.mrb[0].mxu0
      %v1219 = vadd.f32 0.0, %v1218
      %v1220 = vpop.f32.mrb[0].mxu0
      %1221 = vmatprep.mubr.f32.mxu0 0.0
      %1222 = vmatmul.mubr.f32.gmra.mrb[0].mxu0 %v960
      %v1223 = vpop.f32.mrb[0].mxu0
      %v1224 = vadd.f32 0.0, %v1223
      %v1225 = vpop.f32.mrb[0].mxu0
      %1226 = vmatprep.mubr.f32.mxu0 0.0
      %1227 = vmatmul.mubr.f32.gmra.mrb[0].mxu0 %v963
      %v1228 = vpop.f32.mrb[0].mxu0
      %v1229 = vadd.f32 0.0, %v1228
      %v1230 = vpop.f32.mrb[0].mxu0
      %1231 = vmatprep.mubr.f32.mxu0 0.0
      %1232 = vmatmul.mubr.f32.gmra.mrb[0].mxu0 %v966
      %v1233 = vpop.f32.mrb[0].mxu0
      %v1234 = vadd.f32 0.0, %v1233
      %v1235 = vpop.f32.mrb[0].mxu0
      %1236 = vmatprep.mubr.f32.mxu0 0.0
      %1237 = vmatmul.mubr.f32.gmra.mrb[0].mxu0 %v969
      %v1238 = vpop.f32.mrb[0].mxu0
      %v1239 = vadd.f32 0.0, %v1238
      %v1240 = vpop.f32.mrb[0].mxu0
      %1241 = vmatprep.mubr.f32.mxu0 0.0
      %1242 = vmatmul.mubr.f32.gmra.mrb[0].mxu0 %v972
      %v1243 = vpop.f32.mrb[0].mxu0
      %v1244 = vadd.f32 0.0, %v1243
      %v1245 = vpop.f32.mrb[0].mxu0
      %1246 = vmatprep.mubr.f32.mxu0 0.0
      %1247 = vmatmul.mubr.f32.gmra.mrb[0].mxu0 %v975
      %v1248 = vpop.f32.mrb[0].mxu0
      %v1249 = vadd.f32 0.0, %v1248
      %v1250 = vpop.f32.mrb[0].mxu0
      %1251 = vmatprep.mubr.f32.mxu0 0.0
      %1252 = vmatmul.mubr.f32.gmra.mrb[0].mxu0 %v978
      %v1253 = vpop.f32.mrb[0].mxu0
      %v1254 = vadd.f32 0.0, %v1253
      %v1255 = vpop.f32.mrb[0].mxu0
      %1256 = vmatprep.mubr.f32.mxu0 0.0
      %1257 = vmatmul.mubr.f32.gmra.mrb[0].mxu0 %v981
      %v1258 = vpop.f32.mrb[0].mxu0
      %v1259 = vadd.f32 0.0, %v1258
      %v1260 = vpop.f32.mrb[0].mxu0
      %1261 = vmatprep.mubr.f32.mxu0 0.0
      %1262 = vmatmul.mubr.f32.gmra.mrb[0].mxu0 %v984
      %v1263 = vpop.f32.mrb[0].mxu0
      %v1264 = vadd.f32 0.0, %v1263
      %v1265 = vpop.f32.mrb[0].mxu0
      %1266 = vmatprep.mubr.f32.mxu0 0.0
      %1267 = vmatmul.mubr.f32.gmra.mrb[0].mxu0 %v987
      %v1268 = vpop.f32.mrb[0].mxu0
      %v1269 = vadd.f32 0.0, %v1268
      %v1270 = vpop.f32.mrb[0].mxu0
      %1271 = vmatprep.mubr.f32.mxu0 0.0
      %1272 = vmatmul.mubr.f32.gmra.mrb[0].mxu0 %v990
      %v1273 = vpop.f32.mrb[0].mxu0
      %v1274 = vadd.f32 0.0, %v1273
      %v1275 = vpop.f32.mrb[0].mxu0
      %1276 = vmatprep.mubr.f32.mxu0 0.0
      %1277 = vmatmul.mubr.f32.gmra.mrb[0].mxu0 %v993
      %v1278 = vpop.f32.mrb[0].mxu0
      %v1279 = vadd.f32 0.0, %v1278
      %v1280 = vpop.f32.mrb[0].mxu0
      %1281 = vmatprep.mubr.f32.mxu0 0.0
      %1282 = vmatmul.mubr.f32.gmra.mrb[0].mxu0 %v996
      %v1283 = vpop.f32.mrb[0].mxu0
      %v1284 = vadd.f32 0.0, %v1283
      %v1285 = vpop.f32.mrb[0].mxu0
      %1286 = vmatprep.mubr.f32.mxu0 0.0
      %1287 = vmatmul.mubr.f32.gmra.mrb[0].mxu0 %v999
      %v1288 = vpop.f32.mrb[0].mxu0
      %v1289 = vadd.f32 0.0, %v1288
      %v1290 = vpop.f32.mrb[0].mxu0
      %1291 = vmatprep.mubr.f32.mxu0 0.0
      %1292 = vmatmul.mubr.f32.gmra.mrb[0].mxu0 %v1002
      %v1293 = vpop.f32.mrb[0].mxu0
      %v1294 = vadd.f32 0.0, %v1293
      %v1295 = vpop.f32.mrb[0].mxu0
      %1296 = vmatprep.mubr.f32.mxu0 0.0
      %1297 = vmatmul.mubr.f32.gmra.mrb[0].mxu0 %v1005
      %v1298 = vpop.f32.mrb[0].mxu0
      %v1299 = vadd.f32 0.0, %v1298
      %v1300 = vpop.f32.mrb[0].mxu0
      %1301 = vmatprep.mubr.f32.mxu0 0.0
      %1302 = vmatmul.mubr.f32.gmra.mrb[0].mxu0 %v1008
      %v1303 = vpop.f32.mrb[0].mxu0
      %v1304 = vadd.f32 0.0, %v1303
      %v1305 = vpop.f32.mrb[0].mxu0
      %1306 = vmatprep.mubr.f32.mxu0 0.0
      %1307 = vmatmul.mubr.f32.gmra.mrb[0].mxu0 %v1011
      %v1308 = vpop.f32.mrb[0].mxu0
      %v1309 = vadd.f32 0.0, %v1308
      %v1310 = vpop.f32.mrb[0].mxu0
      %1311 = vmatprep.mubr.f32.mxu0 0.0
      %1312 = vmatmul.mubr.f32.gmra.mrb[0].mxu0 %v1014
      %v1313 = vpop.f32.mrb[0].mxu0
      %v1314 = vadd.f32 0.0, %v1313
      %v1315 = vpop.f32.mrb[0].mxu0
      %1316 = vmatprep.mubr.f32.mxu0 0.0
      %1317 = vmatmul.mubr.f32.gmra.mrb[0].mxu0 %v1017
      %v1318 = vpop.f32.mrb[0].mxu0
      %v1319 = vadd.f32 0.0, %v1318
      %v1320 = vpop.f32.mrb[0].mxu0
      %1321 = vmatprep.mubr.f32.mxu0 0.0
      %1322 = vmatmul.mubr.f32.gmra.mrb[0].mxu0 %v1020
      %v1323 = vpop.f32.mrb[0].mxu0
      %v1324 = vadd.f32 0.0, %v1323
      %v1325 = vpop.f32.mrb[0].mxu0
      %1326 = vmatprep.mubr.f32.mxu0 0.0
      %1327 = vmatmul.mubr.f32.gmra.mrb[0].mxu0 %v1023
      %v1328 = vpop.f32.mrb[0].mxu0
      %v1329 = vadd.f32 0.0, %v1328
      %v1330 = vpop.f32.mrb[0].mxu0
      %1331 = vmatprep.mubr.f32.mxu0 0.0
      %1332 = vmatmul.mubr.f32.gmra.mrb[0].mxu0 %v1026
      %v1333 = vpop.f32.mrb[0].mxu0
      %v1334 = vadd.f32 0.0, %v1333
      %v1335 = vpop.f32.mrb[0].mxu0
      %1336 = vmatprep.mubr.f32.mxu0 0.0
      %1337 = vmatmul.mubr.f32.gmra.mrb[0].mxu0 %v1029
      %v1338 = vpop.f32.mrb[0].mxu0
      %v1339 = vadd.f32 0.0, %v1338
      %v1340 = vpop.f32.mrb[0].mxu0
      %1341 = vmatprep.mubr.f32.mxu0 0.0
      %1342 = vmatmul.mubr.f32.gmra.mrb[0].mxu0 %v1032
      %v1343 = vpop.f32.mrb[0].mxu0
      %v1344 = vadd.f32 0.0, %v1343
      %v1345 = vpop.f32.mrb[0].mxu0
      %1346 = vmatprep.mubr.f32.mxu0 0.0
      %1347 = vmatmul.mubr.f32.gmra.mrb[0].mxu0 %v1035
      %v1348 = vpop.f32.mrb[0].mxu0
      %v1349 = vadd.f32 0.0, %v1348
      %v1350 = vpop.f32.mrb[0].mxu0
      %1351 = vdwg.mxu0
      %v1352 = vmax.f32 %v589, %v1104
      %v1353 = vmax.f32 %v594, %v1109
      %v1354 = vmax.f32 %v599, %v1114
      %v1355 = vmax.f32 %v604, %v1119
      %v1356 = vmax.f32 %v609, %v1124
      %v1357 = vmax.f32 %v614, %v1129
      %v1358 = vmax.f32 %v619, %v1134
      %v1359 = vmax.f32 %v624, %v1139
      %v1360 = vmax.f32 %v629, %v1144
      %v1361 = vmax.f32 %v634, %v1149
      %v1362 = vmax.f32 %v639, %v1154
      %v1363 = vmax.f32 %v644, %v1159
      %v1364 = vmax.f32 %v649, %v1164
      %v1365 = vmax.f32 %v654, %v1169
      %v1366 = vmax.f32 %v659, %v1174
      %v1367 = vmax.f32 %v664, %v1179
      %v1368 = vmax.f32 %v669, %v1184
      %v1369 = vmax.f32 %v674, %v1189
      %v1370 = vmax.f32 %v679, %v1194
      %v1371 = vmax.f32 %v684, %v1199
      %v1372 = vmax.f32 %v689, %v1204
      %v1373 = vmax.f32 %v694, %v1209
      %v1374 = vmax.f32 %v699, %v1214
      %v1375 = vmax.f32 %v704, %v1219
      %v1376 = vmax.f32 %v709, %v1224
      %v1377 = vmax.f32 %v714, %v1229
      %v1378 = vmax.f32 %v719, %v1234
      %v1379 = vmax.f32 %v724, %v1239
      %v1380 = vmax.f32 %v729, %v1244
      %v1381 = vmax.f32 %v734, %v1249
      %v1382 = vmax.f32 %v739, %v1254
      %v1383 = vmax.f32 %v744, %v1259
      %v1384 = vmax.f32 %v749, %v1264
      %v1385 = vmax.f32 %v754, %v1269
      %v1386 = vmax.f32 %v759, %v1274
      %v1387 = vmax.f32 %v764, %v1279
      %v1388 = vmax.f32 %v769, %v1284
      %v1389 = vmax.f32 %v774, %v1289
      %v1390 = vmax.f32 %v779, %v1294
      %v1391 = vmax.f32 %v784, %v1299
      %v1392 = vmax.f32 %v789, %v1304
      %v1393 = vmax.f32 %v794, %v1309
      %v1394 = vmax.f32 %v799, %v1314
      %v1395 = vmax.f32 %v804, %v1319
      %v1396 = vmax.f32 %v809, %v1324
      %v1397 = vmax.f32 %v814, %v1329
      %v1398 = vmax.f32 %v819, %v1334
      %v1399 = vmax.f32 %v824, %v1339
      %v1400 = vmax.f32 %v829, %v1344
      %v1401 = vmax.f32 %v834, %v1349
      %v1402 = vld [vmem:[%s301] sm:$0xff]
      %v1403 = vld [vmem:[%s301 + $0x8] sm:$0xff]
      %v1404 = vld [vmem:[%s301 + $0x10] sm:$0xff]
      %v1405 = vld [vmem:[%s301 + $0x18] sm:$0xff]
      %v1406 = vld [vmem:[%s301 + $0x20] sm:$0xff]
      %v1407 = vld [vmem:[%s301 + $0x28] sm:$0xff]
      %v1408 = vld [vmem:[%s301 + $0x30] sm:$0xff]
      %v1409 = vld [vmem:[%s301 + $0x38] sm:$0xff]
      %v1410 = vld [vmem:[%s301 + $0x40] sm:$0xff]
      %v1411 = vld [vmem:[%s301 + $0x48] sm:$0xff]
      %v1412 = vld [vmem:[%s301 + $0x50] sm:$0xff]
      %v1413 = vld [vmem:[%s301 + $0x58] sm:$0xff]
      %v1414 = vld [vmem:[%s301 + $0x60] sm:$0xff]
      %v1415 = vld [vmem:[%s301 + $0x68] sm:$0xff]
      %v1416 = vld [vmem:[%s301 + $0x70] sm:$0xff]
      %v1417 = vld [vmem:[%s301 + $0x78] sm:$0xff]
      %v1418 = vld [vmem:[%s301 + $0x80] sm:$0xff]
      %v1419 = vld [vmem:[%s301 + $0x88] sm:$0xff]
      %v1420 = vld [vmem:[%s301 + $0x90] sm:$0xff]
      %v1421 = vld [vmem:[%s301 + $0x98] sm:$0xff]
      %v1422 = vld [vmem:[%s301 + $0xa0] sm:$0xff]
      %v1423 = vld [vmem:[%s301 + $0xa8] sm:$0xff]
      %v1424 = vld [vmem:[%s301 + $0xb0] sm:$0xff]
      %v1425 = vld [vmem:[%s301 + $0xb8] sm:$0xff]
      %v1426 = vld [vmem:[%s301 + $0xc0] sm:$0xff]
      %v1427 = vld [vmem:[%s301 + $0xc8] sm:$0xff]
      %v1428 = vld [vmem:[%s301 + $0xd0] sm:$0xff]
      %v1429 = vld [vmem:[%s301 + $0xd8] sm:$0xff]
      %v1430 = vld [vmem:[%s301 + $0xe0] sm:$0xff]
      %v1431 = vld [vmem:[%s301 + $0xe8] sm:$0xff]
      %v1432 = vld [vmem:[%s301 + $0xf0] sm:$0xff]
      %v1433 = vld [vmem:[%s301 + $0xf8] sm:$0xff]
      %v1434 = vld [vmem:[%s301 + $0x100] sm:$0xff]
      %v1435 = vld [vmem:[%s301 + $0x108] sm:$0xff]
      %v1436 = vld [vmem:[%s301 + $0x110] sm:$0xff]
      %v1437 = vld [vmem:[%s301 + $0x118] sm:$0xff]
      %v1438 = vld [vmem:[%s301 + $0x120] sm:$0xff]
      %v1439 = vld [vmem:[%s301 + $0x128] sm:$0xff]
      %v1440 = vld [vmem:[%s301 + $0x130] sm:$0xff]
      %v1441 = vld [vmem:[%s301 + $0x138] sm:$0xff]
      %v1442 = vld [vmem:[%s301 + $0x140] sm:$0xff]
      %v1443 = vld [vmem:[%s301 + $0x148] sm:$0xff]
      %v1444 = vld [vmem:[%s301 + $0x150] sm:$0xff]
      %v1445 = vld [vmem:[%s301 + $0x158] sm:$0xff]
      %v1446 = vld [vmem:[%s301 + $0x160] sm:$0xff]
      %v1447 = vld [vmem:[%s301 + $0x168] sm:$0xff]
      %v1448 = vld [vmem:[%s301 + $0x170] sm:$0xff]
      %v1449 = vld [vmem:[%s301 + $0x178] sm:$0xff]
      %v1450 = vld [vmem:[%s301 + $0x180] sm:$0xff]
      %v1451 = vld [vmem:[%s301 + $0x188] sm:$0xff]
      %v1453 = vsel %vm367, %v1402, 0
      %v1456 = vsel %vm367, %v1403, 0
      %v1459 = vsel %vm367, %v1404, 0
      %v1462 = vsel %vm367, %v1405, 0
      %v1465 = vsel %vm367, %v1406, 0
      %v1468 = vsel %vm367, %v1407, 0
      %v1471 = vsel %vm367, %v1408, 0
      %v1474 = vsel %vm367, %v1409, 0
      %v1477 = vsel %vm367, %v1410, 0
      %v1480 = vsel %vm367, %v1411, 0
      %v1483 = vsel %vm367, %v1412, 0
      %v1486 = vsel %vm367, %v1413, 0
      %v1489 = vsel %vm367, %v1414, 0
      %v1492 = vsel %vm367, %v1415, 0
      %v1495 = vsel %vm367, %v1416, 0
      %v1498 = vsel %vm367, %v1417, 0
      %v1501 = vsel %vm367, %v1418, 0
      %v1504 = vsel %vm367, %v1419, 0
      %v1507 = vsel %vm367, %v1420, 0
      %v1510 = vsel %vm367, %v1421, 0
      %v1513 = vsel %vm367, %v1422, 0
      %v1516 = vsel %vm367, %v1423, 0
      %v1519 = vsel %vm367, %v1424, 0
      %v1522 = vsel %vm367, %v1425, 0
      %v1525 = vsel %vm367, %v1426, 0
      %v1528 = vsel %vm367, %v1427, 0
      %v1531 = vsel %vm367, %v1428, 0
      %v1534 = vsel %vm367, %v1429, 0
      %v1537 = vsel %vm367, %v1430, 0
      %v1540 = vsel %vm367, %v1431, 0
      %v1543 = vsel %vm367, %v1432, 0
      %v1546 = vsel %vm367, %v1433, 0
      %v1549 = vsel %vm367, %v1434, 0
      %v1552 = vsel %vm367, %v1435, 0
      %v1555 = vsel %vm367, %v1436, 0
      %v1558 = vsel %vm367, %v1437, 0
      %v1561 = vsel %vm367, %v1438, 0
      %v1564 = vsel %vm367, %v1439, 0
      %v1567 = vsel %vm367, %v1440, 0
      %v1570 = vsel %vm367, %v1441, 0
      %v1573 = vsel %vm367, %v1442, 0
      %v1576 = vsel %vm367, %v1443, 0
      %v1579 = vsel %vm367, %v1444, 0
      %v1582 = vsel %vm367, %v1445, 0
      %v1585 = vsel %vm367, %v1446, 0
      %v1588 = vsel %vm367, %v1447, 0
      %v1591 = vsel %vm367, %v1448, 0
      %v1594 = vsel %vm367, %v1449, 0
      %v1597 = vsel %vm367, %v1450, 0
      %v1600 = vsel %vm367, %v1451, 0
      %1602 = vmatprep.subr.mxu0 0.0
      %1603 = vmatpush1.msra.mxu0 %v312
      %1604 = vmatprep.subr.mxu0 0.0
      %1605 = vmatpush1.msra.mxu0 %v313
      %1606 = vmatprep.subr.mxu0 0.0
      %1607 = vmatpush1.msra.mxu0 %v314
      %1608 = vmatprep.subr.mxu0 0.0
      %1609 = vmatpush1.msra.mxu0 %v315
      %1610 = vmatprep.subr.mxu0 0.0
      %1611 = vmatpush1.msra.mxu0 %v520
      %1612 = vmatprep.subr.mxu0 0.0
      %1613 = vmatpush1.msra.mxu0 0.0
      %1614 = vmatprep.subr.mxu0 0.0
      %1615 = vmatpush1.msra.mxu0 0.0
      %1616 = vmatprep.subr.mxu0 0.0
      %1617 = vmatpush1.msra.mxu0 0.0
      %1618 = vmatprep.subr.mxu0 0.0
      %1619 = vmatpush1.msra.mxu0 0.0
      %1620 = vmatprep.subr.mxu0 0.0
      %1621 = vmatpush1.msra.mxu0 0.0
      %1622 = vmatprep.subr.mxu0 0.0
      %1623 = vmatpush1.msra.mxu0 0.0
      %1624 = vmatprep.subr.mxu0 0.0
      %1625 = vmatpush1.msra.mxu0 0.0
      %1626 = vmatprep.subr.mxu0 0.0
      %1627 = vmatpush1.msra.mxu0 0.0
      %1628 = vmatprep.subr.mxu0 0.0
      %1629 = vmatpush1.msra.mxu0 0.0
      %1630 = vmatprep.subr.mxu0 0.0
      %1631 = vmatpush1.msra.mxu0 0.0
      %1632 = vmatprep.subr.mxu0 0.0
      %1633 = vmatpush1.msra.mxu0 0.0
      %1634 = vmatprep.subr.mxu0 0.0
      %1635 = vmatpush1.msra.mxu0 0.0
      %1636 = vmatprep.subr.mxu0 0.0
      %1637 = vmatpush1.msra.mxu0 0.0
      %1638 = vmatprep.subr.mxu0 0.0
      %1639 = vmatpush1.msra.mxu0 0.0
      %1640 = vmatprep.subr.mxu0 0.0
      %1641 = vmatpush1.msra.mxu0 0.0
      %1642 = vmatprep.subr.mxu0 0.0
      %1643 = vmatpush1.msra.mxu0 0.0
      %1644 = vmatprep.subr.mxu0 0.0
      %1645 = vmatpush1.msra.mxu0 0.0
      %1646 = vmatprep.subr.mxu0 0.0
      %1647 = vmatpush1.msra.mxu0 0.0
      %1648 = vmatprep.subr.mxu0 0.0
      %1649 = vmatpush1.msra.mxu0 0.0
      %1650 = vmatprep.subr.mxu0 0.0
      %1651 = vmatpush1.msra.mxu0 0.0
      %1652 = vmatprep.subr.mxu0 0.0
      %1653 = vmatpush1.msra.mxu0 0.0
      %1654 = vmatprep.subr.mxu0 0.0
      %1655 = vmatpush1.msra.mxu0 0.0
      %1656 = vmatprep.subr.mxu0 0.0
      %1657 = vmatpush1.msra.mxu0 0.0
      %1658 = vmatprep.subr.mxu0 0.0
      %1659 = vmatpush1.msra.mxu0 0.0
      %1660 = vmatprep.subr.mxu0 0.0
      %1661 = vmatpush1.msra.mxu0 0.0
      %1662 = vmatprep.subr.mxu0 0.0
      %1663 = vmatpush1.msra.mxu0 0.0
      %1664 = vmatprep.subr.mxu0 0.0
      %1665 = vmatpush1.msra.mxu0 0.0
      %1666 = vmatprep.mubr.f32.mxu0 0.0
      %1667 = vmatmul.mubr.f32.gmra.mrb[0].mxu0 %v1453
      %v1668 = vpop.f32.mrb[0].mxu0
      %v1669 = vadd.f32 0.0, %v1668
      %v1670 = vpop.f32.mrb[0].mxu0
      %1671 = vmatprep.mubr.f32.mxu0 0.0
      %1672 = vmatmul.mubr.f32.gmra.mrb[0].mxu0 %v1456
      %v1673 = vpop.f32.mrb[0].mxu0
      %v1674 = vadd.f32 0.0, %v1673
      %v1675 = vpop.f32.mrb[0].mxu0
      %1676 = vmatprep.mubr.f32.mxu0 0.0
      %1677 = vmatmul.mubr.f32.gmra.mrb[0].mxu0 %v1459
      %v1678 = vpop.f32.mrb[0].mxu0
      %v1679 = vadd.f32 0.0, %v1678
      %v1680 = vpop.f32.mrb[0].mxu0
      %1681 = vmatprep.mubr.f32.mxu0 0.0
      %1682 = vmatmul.mubr.f32.gmra.mrb[0].mxu0 %v1462
      %v1683 = vpop.f32.mrb[0].mxu0
      %v1684 = vadd.f32 0.0, %v1683
      %v1685 = vpop.f32.mrb[0].mxu0
      %1686 = vmatprep.mubr.f32.mxu0 0.0
      %1687 = vmatmul.mubr.f32.gmra.mrb[0].mxu0 %v1465
      %v1688 = vpop.f32.mrb[0].mxu0
      %v1689 = vadd.f32 0.0, %v1688
      %v1690 = vpop.f32.mrb[0].mxu0
      %1691 = vmatprep.mubr.f32.mxu0 0.0
      %1692 = vmatmul.mubr.f32.gmra.mrb[0].mxu0 %v1468
      %v1693 = vpop.f32.mrb[0].mxu0
      %v1694 = vadd.f32 0.0, %v1693
      %v1695 = vpop.f32.mrb[0].mxu0
      %1696 = vmatprep.mubr.f32.mxu0 0.0
      %1697 = vmatmul.mubr.f32.gmra.mrb[0].mxu0 %v1471
      %v1698 = vpop.f32.mrb[0].mxu0
      %v1699 = vadd.f32 0.0, %v1698
      %v1700 = vpop.f32.mrb[0].mxu0
      %1701 = vmatprep.mubr.f32.mxu0 0.0
      %1702 = vmatmul.mubr.f32.gmra.mrb[0].mxu0 %v1474
      %v1703 = vpop.f32.mrb[0].mxu0
      %v1704 = vadd.f32 0.0, %v1703
      %v1705 = vpop.f32.mrb[0].mxu0
      %1706 = vmatprep.mubr.f32.mxu0 0.0
      %1707 = vmatmul.mubr.f32.gmra.mrb[0].mxu0 %v1477
      %v1708 = vpop.f32.mrb[0].mxu0
      %v1709 = vadd.f32 0.0, %v1708
      %v1710 = vpop.f32.mrb[0].mxu0
      %1711 = vmatprep.mubr.f32.mxu0 0.0
      %1712 = vmatmul.mubr.f32.gmra.mrb[0].mxu0 %v1480
      %v1713 = vpop.f32.mrb[0].mxu0
      %v1714 = vadd.f32 0.0, %v1713
      %v1715 = vpop.f32.mrb[0].mxu0
      %1716 = vmatprep.mubr.f32.mxu0 0.0
      %1717 = vmatmul.mubr.f32.gmra.mrb[0].mxu0 %v1483
      %v1718 = vpop.f32.mrb[0].mxu0
      %v1719 = vadd.f32 0.0, %v1718
      %v1720 = vpop.f32.mrb[0].mxu0
      %1721 = vmatprep.mubr.f32.mxu0 0.0
      %1722 = vmatmul.mubr.f32.gmra.mrb[0].mxu0 %v1486
      %v1723 = vpop.f32.mrb[0].mxu0
      %v1724 = vadd.f32 0.0, %v1723
      %v1725 = vpop.f32.mrb[0].mxu0
      %1726 = vmatprep.mubr.f32.mxu0 0.0
      %1727 = vmatmul.mubr.f32.gmra.mrb[0].mxu0 %v1489
      %v1728 = vpop.f32.mrb[0].mxu0
      %v1729 = vadd.f32 0.0, %v1728
      %v1730 = vpop.f32.mrb[0].mxu0
      %1731 = vmatprep.mubr.f32.mxu0 0.0
      %1732 = vmatmul.mubr.f32.gmra.mrb[0].mxu0 %v1492
      %v1733 = vpop.f32.mrb[0].mxu0
      %v1734 = vadd.f32 0.0, %v1733
      %v1735 = vpop.f32.mrb[0].mxu0
      %1736 = vmatprep.mubr.f32.mxu0 0.0
      %1737 = vmatmul.mubr.f32.gmra.mrb[0].mxu0 %v1495
      %v1738 = vpop.f32.mrb[0].mxu0
      %v1739 = vadd.f32 0.0, %v1738
      %v1740 = vpop.f32.mrb[0].mxu0
      %1741 = vmatprep.mubr.f32.mxu0 0.0
      %1742 = vmatmul.mubr.f32.gmra.mrb[0].mxu0 %v1498
      %v1743 = vpop.f32.mrb[0].mxu0
      %v1744 = vadd.f32 0.0, %v1743
      %v1745 = vpop.f32.mrb[0].mxu0
      %1746 = vmatprep.mubr.f32.mxu0 0.0
      %1747 = vmatmul.mubr.f32.gmra.mrb[0].mxu0 %v1501
      %v1748 = vpop.f32.mrb[0].mxu0
      %v1749 = vadd.f32 0.0, %v1748
      %v1750 = vpop.f32.mrb[0].mxu0
      %1751 = vmatprep.mubr.f32.mxu0 0.0
      %1752 = vmatmul.mubr.f32.gmra.mrb[0].mxu0 %v1504
      %v1753 = vpop.f32.mrb[0].mxu0
      %v1754 = vadd.f32 0.0, %v1753
      %v1755 = vpop.f32.mrb[0].mxu0
      %1756 = vmatprep.mubr.f32.mxu0 0.0
      %1757 = vmatmul.mubr.f32.gmra.mrb[0].mxu0 %v1507
      %v1758 = vpop.f32.mrb[0].mxu0
      %v1759 = vadd.f32 0.0, %v1758
      %v1760 = vpop.f32.mrb[0].mxu0
      %1761 = vmatprep.mubr.f32.mxu0 0.0
      %1762 = vmatmul.mubr.f32.gmra.mrb[0].mxu0 %v1510
      %v1763 = vpop.f32.mrb[0].mxu0
      %v1764 = vadd.f32 0.0, %v1763
      %v1765 = vpop.f32.mrb[0].mxu0
      %1766 = vmatprep.mubr.f32.mxu0 0.0
      %1767 = vmatmul.mubr.f32.gmra.mrb[0].mxu0 %v1513
      %v1768 = vpop.f32.mrb[0].mxu0
      %v1769 = vadd.f32 0.0, %v1768
      %v1770 = vpop.f32.mrb[0].mxu0
      %1771 = vmatprep.mubr.f32.mxu0 0.0
      %1772 = vmatmul.mubr.f32.gmra.mrb[0].mxu0 %v1516
      %v1773 = vpop.f32.mrb[0].mxu0
      %v1774 = vadd.f32 0.0, %v1773
      %v1775 = vpop.f32.mrb[0].mxu0
      %1776 = vmatprep.mubr.f32.mxu0 0.0
      %1777 = vmatmul.mubr.f32.gmra.mrb[0].mxu0 %v1519
      %v1778 = vpop.f32.mrb[0].mxu0
      %v1779 = vadd.f32 0.0, %v1778
      %v1780 = vpop.f32.mrb[0].mxu0
      %1781 = vmatprep.mubr.f32.mxu0 0.0
      %1782 = vmatmul.mubr.f32.gmra.mrb[0].mxu0 %v1522
      %v1783 = vpop.f32.mrb[0].mxu0
      %v1784 = vadd.f32 0.0, %v1783
      %v1785 = vpop.f32.mrb[0].mxu0
      %1786 = vmatprep.mubr.f32.mxu0 0.0
      %1787 = vmatmul.mubr.f32.gmra.mrb[0].mxu0 %v1525
      %v1788 = vpop.f32.mrb[0].mxu0
      %v1789 = vadd.f32 0.0, %v1788
      %v1790 = vpop.f32.mrb[0].mxu0
      %1791 = vmatprep.mubr.f32.mxu0 0.0
      %1792 = vmatmul.mubr.f32.gmra.mrb[0].mxu0 %v1528
      %v1793 = vpop.f32.mrb[0].mxu0
      %v1794 = vadd.f32 0.0, %v1793
      %v1795 = vpop.f32.mrb[0].mxu0
      %1796 = vmatprep.mubr.f32.mxu0 0.0
      %1797 = vmatmul.mubr.f32.gmra.mrb[0].mxu0 %v1531
      %v1798 = vpop.f32.mrb[0].mxu0
      %v1799 = vadd.f32 0.0, %v1798
      %v1800 = vpop.f32.mrb[0].mxu0
      %1801 = vmatprep.mubr.f32.mxu0 0.0
      %1802 = vmatmul.mubr.f32.gmra.mrb[0].mxu0 %v1534
      %v1803 = vpop.f32.mrb[0].mxu0
      %v1804 = vadd.f32 0.0, %v1803
      %v1805 = vpop.f32.mrb[0].mxu0
      %1806 = vmatprep.mubr.f32.mxu0 0.0
      %1807 = vmatmul.mubr.f32.gmra.mrb[0].mxu0 %v1537
      %v1808 = vpop.f32.mrb[0].mxu0
      %v1809 = vadd.f32 0.0, %v1808
      %v1810 = vpop.f32.mrb[0].mxu0
      %1811 = vmatprep.mubr.f32.mxu0 0.0
      %1812 = vmatmul.mubr.f32.gmra.mrb[0].mxu0 %v1540
      %v1813 = vpop.f32.mrb[0].mxu0
      %v1814 = vadd.f32 0.0, %v1813
      %v1815 = vpop.f32.mrb[0].mxu0
      %1816 = vmatprep.mubr.f32.mxu0 0.0
      %1817 = vmatmul.mubr.f32.gmra.mrb[0].mxu0 %v1543
      %v1818 = vpop.f32.mrb[0].mxu0
      %v1819 = vadd.f32 0.0, %v1818
      %v1820 = vpop.f32.mrb[0].mxu0
      %1821 = vmatprep.mubr.f32.mxu0 0.0
      %1822 = vmatmul.mubr.f32.gmra.mrb[0].mxu0 %v1546
      %v1823 = vpop.f32.mrb[0].mxu0
      %v1824 = vadd.f32 0.0, %v1823
      %v1825 = vpop.f32.mrb[0].mxu0
      %1826 = vmatprep.mubr.f32.mxu0 0.0
      %1827 = vmatmul.mubr.f32.gmra.mrb[0].mxu0 %v1549
      %v1828 = vpop.f32.mrb[0].mxu0
      %v1829 = vadd.f32 0.0, %v1828
      %v1830 = vpop.f32.mrb[0].mxu0
      %1831 = vmatprep.mubr.f32.mxu0 0.0
      %1832 = vmatmul.mubr.f32.gmra.mrb[0].mxu0 %v1552
      %v1833 = vpop.f32.mrb[0].mxu0
      %v1834 = vadd.f32 0.0, %v1833
      %v1835 = vpop.f32.mrb[0].mxu0
      %1836 = vmatprep.mubr.f32.mxu0 0.0
      %1837 = vmatmul.mubr.f32.gmra.mrb[0].mxu0 %v1555
      %v1838 = vpop.f32.mrb[0].mxu0
      %v1839 = vadd.f32 0.0, %v1838
      %v1840 = vpop.f32.mrb[0].mxu0
      %1841 = vmatprep.mubr.f32.mxu0 0.0
      %1842 = vmatmul.mubr.f32.gmra.mrb[0].mxu0 %v1558
      %v1843 = vpop.f32.mrb[0].mxu0
      %v1844 = vadd.f32 0.0, %v1843
      %v1845 = vpop.f32.mrb[0].mxu0
      %1846 = vmatprep.mubr.f32.mxu0 0.0
      %1847 = vmatmul.mubr.f32.gmra.mrb[0].mxu0 %v1561
      %v1848 = vpop.f32.mrb[0].mxu0
      %v1849 = vadd.f32 0.0, %v1848
      %v1850 = vpop.f32.mrb[0].mxu0
      %1851 = vmatprep.mubr.f32.mxu0 0.0
      %1852 = vmatmul.mubr.f32.gmra.mrb[0].mxu0 %v1564
      %v1853 = vpop.f32.mrb[0].mxu0
      %v1854 = vadd.f32 0.0, %v1853
      %v1855 = vpop.f32.mrb[0].mxu0
      %1856 = vmatprep.mubr.f32.mxu0 0.0
      %1857 = vmatmul.mubr.f32.gmra.mrb[0].mxu0 %v1567
      %v1858 = vpop.f32.mrb[0].mxu0
      %v1859 = vadd.f32 0.0, %v1858
      %v1860 = vpop.f32.mrb[0].mxu0
      %1861 = vmatprep.mubr.f32.mxu0 0.0
      %1862 = vmatmul.mubr.f32.gmra.mrb[0].mxu0 %v1570
      %v1863 = vpop.f32.mrb[0].mxu0
      %v1864 = vadd.f32 0.0, %v1863
      %v1865 = vpop.f32.mrb[0].mxu0
      %1866 = vmatprep.mubr.f32.mxu0 0.0
      %1867 = vmatmul.mubr.f32.gmra.mrb[0].mxu0 %v1573
      %v1868 = vpop.f32.mrb[0].mxu0
      %v1869 = vadd.f32 0.0, %v1868
      %v1870 = vpop.f32.mrb[0].mxu0
      %1871 = vmatprep.mubr.f32.mxu0 0.0
      %1872 = vmatmul.mubr.f32.gmra.mrb[0].mxu0 %v1576
      %v1873 = vpop.f32.mrb[0].mxu0
      %v1874 = vadd.f32 0.0, %v1873
      %v1875 = vpop.f32.mrb[0].mxu0
      %1876 = vmatprep.mubr.f32.mxu0 0.0
      %1877 = vmatmul.mubr.f32.gmra.mrb[0].mxu0 %v1579
      %v1878 = vpop.f32.mrb[0].mxu0
      %v1879 = vadd.f32 0.0, %v1878
      %v1880 = vpop.f32.mrb[0].mxu0
      %1881 = vmatprep.mubr.f32.mxu0 0.0
      %1882 = vmatmul.mubr.f32.gmra.mrb[0].mxu0 %v1582
      %v1883 = vpop.f32.mrb[0].mxu0
      %v1884 = vadd.f32 0.0, %v1883
      %v1885 = vpop.f32.mrb[0].mxu0
      %1886 = vmatprep.mubr.f32.mxu0 0.0
      %1887 = vmatmul.mubr.f32.gmra.mrb[0].mxu0 %v1585
      %v1888 = vpop.f32.mrb[0].mxu0
      %v1889 = vadd.f32 0.0, %v1888
      %v1890 = vpop.f32.mrb[0].mxu0
      %1891 = vmatprep.mubr.f32.mxu0 0.0
      %1892 = vmatmul.mubr.f32.gmra.mrb[0].mxu0 %v1588
      %v1893 = vpop.f32.mrb[0].mxu0
      %v1894 = vadd.f32 0.0, %v1893
      %v1895 = vpop.f32.mrb[0].mxu0
      %1896 = vmatprep.mubr.f32.mxu0 0.0
      %1897 = vmatmul.mubr.f32.gmra.mrb[0].mxu0 %v1591
      %v1898 = vpop.f32.mrb[0].mxu0
      %v1899 = vadd.f32 0.0, %v1898
      %v1900 = vpop.f32.mrb[0].mxu0
      %1901 = vmatprep.mubr.f32.mxu0 0.0
      %1902 = vmatmul.mubr.f32.gmra.mrb[0].mxu0 %v1594
      %v1903 = vpop.f32.mrb[0].mxu0
      %v1904 = vadd.f32 0.0, %v1903
      %v1905 = vpop.f32.mrb[0].mxu0
      %1906 = vmatprep.mubr.f32.mxu0 0.0
      %1907 = vmatmul.mubr.f32.gmra.mrb[0].mxu0 %v1597
      %v1908 = vpop.f32.mrb[0].mxu0
      %v1909 = vadd.f32 0.0, %v1908
      %v1910 = vpop.f32.mrb[0].mxu0
      %1911 = vmatprep.mubr.f32.mxu0 0.0
      %1912 = vmatmul.mubr.f32.gmra.mrb[0].mxu0 %v1600
      %v1913 = vpop.f32.mrb[0].mxu0
      %v1914 = vadd.f32 0.0, %v1913
      %v1915 = vpop.f32.mrb[0].mxu0
      %1916 = vdwg.mxu0
      %v1917 = vld [vmem:[%s306] sm:$0xff]
      %v1918 = vld [vmem:[%s306 + $0x8] sm:$0xff]
      %v1919 = vld [vmem:[%s306 + $0x10] sm:$0xff]
      %v1920 = vld [vmem:[%s306 + $0x18] sm:$0xff]
      %v1921 = vld [vmem:[%s306 + $0x20] sm:$0xff]
      %v1922 = vld [vmem:[%s306 + $0x28] sm:$0xff]
      %v1923 = vld [vmem:[%s306 + $0x30] sm:$0xff]
      %v1924 = vld [vmem:[%s306 + $0x38] sm:$0xff]
      %v1925 = vld [vmem:[%s306 + $0x40] sm:$0xff]
      %v1926 = vld [vmem:[%s306 + $0x48] sm:$0xff]
      %v1927 = vld [vmem:[%s306 + $0x50] sm:$0xff]
      %v1928 = vld [vmem:[%s306 + $0x58] sm:$0xff]
      %v1929 = vld [vmem:[%s306 + $0x60] sm:$0xff]
      %v1930 = vld [vmem:[%s306 + $0x68] sm:$0xff]
      %v1931 = vld [vmem:[%s306 + $0x70] sm:$0xff]
      %v1932 = vld [vmem:[%s306 + $0x78] sm:$0xff]
      %v1933 = vld [vmem:[%s306 + $0x80] sm:$0xff]
      %v1934 = vld [vmem:[%s306 + $0x88] sm:$0xff]
      %v1935 = vld [vmem:[%s306 + $0x90] sm:$0xff]
      %v1936 = vld [vmem:[%s306 + $0x98] sm:$0xff]
      %v1937 = vld [vmem:[%s306 + $0xa0] sm:$0xff]
      %v1938 = vld [vmem:[%s306 + $0xa8] sm:$0xff]
      %v1939 = vld [vmem:[%s306 + $0xb0] sm:$0xff]
      %v1940 = vld [vmem:[%s306 + $0xb8] sm:$0xff]
      %v1941 = vld [vmem:[%s306 + $0xc0] sm:$0xff]
      %v1942 = vld [vmem:[%s306 + $0xc8] sm:$0xff]
      %v1943 = vld [vmem:[%s306 + $0xd0] sm:$0xff]
      %v1944 = vld [vmem:[%s306 + $0xd8] sm:$0xff]
      %v1945 = vld [vmem:[%s306 + $0xe0] sm:$0xff]
      %v1946 = vld [vmem:[%s306 + $0xe8] sm:$0xff]
      %v1947 = vld [vmem:[%s306 + $0xf0] sm:$0xff]
      %v1948 = vld [vmem:[%s306 + $0xf8] sm:$0xff]
      %v1949 = vld [vmem:[%s306 + $0x100] sm:$0xff]
      %v1950 = vld [vmem:[%s306 + $0x108] sm:$0xff]
      %v1951 = vld [vmem:[%s306 + $0x110] sm:$0xff]
      %v1952 = vld [vmem:[%s306 + $0x118] sm:$0xff]
      %v1953 = vld [vmem:[%s306 + $0x120] sm:$0xff]
      %v1954 = vld [vmem:[%s306 + $0x128] sm:$0xff]
      %v1955 = vld [vmem:[%s306 + $0x130] sm:$0xff]
      %v1956 = vld [vmem:[%s306 + $0x138] sm:$0xff]
      %v1957 = vld [vmem:[%s306 + $0x140] sm:$0xff]
      %v1958 = vld [vmem:[%s306 + $0x148] sm:$0xff]
      %v1959 = vld [vmem:[%s306 + $0x150] sm:$0xff]
      %v1960 = vld [vmem:[%s306 + $0x158] sm:$0xff]
      %v1961 = vld [vmem:[%s306 + $0x160] sm:$0xff]
      %v1962 = vld [vmem:[%s306 + $0x168] sm:$0xff]
      %v1963 = vld [vmem:[%s306 + $0x170] sm:$0xff]
      %v1964 = vld [vmem:[%s306 + $0x178] sm:$0xff]
      %v1965 = vld [vmem:[%s306 + $0x180] sm:$0xff]
      %v1966 = vld [vmem:[%s306 + $0x188] sm:$0xff]
      %v1968 = vsel %vm367, %v1917, 0
      %v1971 = vsel %vm367, %v1918, 0
      %v1974 = vsel %vm367, %v1919, 0
      %v1977 = vsel %vm367, %v1920, 0
      %v1980 = vsel %vm367, %v1921, 0
      %v1983 = vsel %vm367, %v1922, 0
      %v1986 = vsel %vm367, %v1923, 0
      %v1989 = vsel %vm367, %v1924, 0
      %v1992 = vsel %vm367, %v1925, 0
      %v1995 = vsel %vm367, %v1926, 0
      %v1998 = vsel %vm367, %v1927, 0
      %v2001 = vsel %vm367, %v1928, 0
      %v2004 = vsel %vm367, %v1929, 0
      %v2007 = vsel %vm367, %v1930, 0
      %v2010 = vsel %vm367, %v1931, 0
      %v2013 = vsel %vm367, %v1932, 0
      %v2016 = vsel %vm367, %v1933, 0
      %v2019 = vsel %vm367, %v1934, 0
      %v2022 = vsel %vm367, %v1935, 0
      %v2025 = vsel %vm367, %v1936, 0
      %v2028 = vsel %vm367, %v1937, 0
      %v2031 = vsel %vm367, %v1938, 0
      %v2034 = vsel %vm367, %v1939, 0
      %v2037 = vsel %vm367, %v1940, 0
      %v2040 = vsel %vm367, %v1941, 0
      %v2043 = vsel %vm367, %v1942, 0
      %v2046 = vsel %vm367, %v1943, 0
      %v2049 = vsel %vm367, %v1944, 0
      %v2052 = vsel %vm367, %v1945, 0
      %v2055 = vsel %vm367, %v1946, 0
      %v2058 = vsel %vm367, %v1947, 0
      %v2061 = vsel %vm367, %v1948, 0
      %v2064 = vsel %vm367, %v1949, 0
      %v2067 = vsel %vm367, %v1950, 0
      %v2070 = vsel %vm367, %v1951, 0
      %v2073 = vsel %vm367, %v1952, 0
      %v2076 = vsel %vm367, %v1953, 0
      %v2079 = vsel %vm367, %v1954, 0
      %v2082 = vsel %vm367, %v1955, 0
      %v2085 = vsel %vm367, %v1956, 0
      %v2088 = vsel %vm367, %v1957, 0
      %v2091 = vsel %vm367, %v1958, 0
      %v2094 = vsel %vm367, %v1959, 0
      %v2097 = vsel %vm367, %v1960, 0
      %v2100 = vsel %vm367, %v1961, 0
      %v2103 = vsel %vm367, %v1962, 0
      %v2106 = vsel %vm367, %v1963, 0
      %v2109 = vsel %vm367, %v1964, 0
      %v2112 = vsel %vm367, %v1965, 0
      %v2115 = vsel %vm367, %v1966, 0
      %2117 = vmatprep.subr.mxu0 0.0
      %2118 = vmatpush1.msra.mxu0 %v312
      %2119 = vmatprep.subr.mxu0 0.0
      %2120 = vmatpush1.msra.mxu0 %v313
      %2121 = vmatprep.subr.mxu0 0.0
      %2122 = vmatpush1.msra.mxu0 %v314
      %2123 = vmatprep.subr.mxu0 0.0
      %2124 = vmatpush1.msra.mxu0 %v315
      %2125 = vmatprep.subr.mxu0 0.0
      %2126 = vmatpush1.msra.mxu0 %v520
      %2127 = vmatprep.subr.mxu0 0.0
      %2128 = vmatpush1.msra.mxu0 0.0
      %2129 = vmatprep.subr.mxu0 0.0
      %2130 = vmatpush1.msra.mxu0 0.0
      %2131 = vmatprep.subr.mxu0 0.0
      %2132 = vmatpush1.msra.mxu0 0.0
      %2133 = vmatprep.subr.mxu0 0.0
      %2134 = vmatpush1.msra.mxu0 0.0
      %2135 = vmatprep.subr.mxu0 0.0
      %2136 = vmatpush1.msra.mxu0 0.0
      %2137 = vmatprep.subr.mxu0 0.0
      %2138 = vmatpush1.msra.mxu0 0.0
      %2139 = vmatprep.subr.mxu0 0.0
      %2140 = vmatpush1.msra.mxu0 0.0
      %2141 = vmatprep.subr.mxu0 0.0
      %2142 = vmatpush1.msra.mxu0 0.0
      %2143 = vmatprep.subr.mxu0 0.0
      %2144 = vmatpush1.msra.mxu0 0.0
      %2145 = vmatprep.subr.mxu0 0.0
      %2146 = vmatpush1.msra.mxu0 0.0
      %2147 = vmatprep.subr.mxu0 0.0
      %2148 = vmatpush1.msra.mxu0 0.0
      %2149 = vmatprep.subr.mxu0 0.0
      %2150 = vmatpush1.msra.mxu0 0.0
      %2151 = vmatprep.subr.mxu0 0.0
      %2152 = vmatpush1.msra.mxu0 0.0
      %2153 = vmatprep.subr.mxu0 0.0
      %2154 = vmatpush1.msra.mxu0 0.0
      %2155 = vmatprep.subr.mxu0 0.0
      %2156 = vmatpush1.msra.mxu0 0.0
      %2157 = vmatprep.subr.mxu0 0.0
      %2158 = vmatpush1.msra.mxu0 0.0
      %2159 = vmatprep.subr.mxu0 0.0
      %2160 = vmatpush1.msra.mxu0 0.0
      %2161 = vmatprep.subr.mxu0 0.0
      %2162 = vmatpush1.msra.mxu0 0.0
      %2163 = vmatprep.subr.mxu0 0.0
      %2164 = vmatpush1.msra.mxu0 0.0
      %2165 = vmatprep.subr.mxu0 0.0
      %2166 = vmatpush1.msra.mxu0 0.0
      %2167 = vmatprep.subr.mxu0 0.0
      %2168 = vmatpush1.msra.mxu0 0.0
      %2169 = vmatprep.subr.mxu0 0.0
      %2170 = vmatpush1.msra.mxu0 0.0
      %2171 = vmatprep.subr.mxu0 0.0
      %2172 = vmatpush1.msra.mxu0 0.0
      %2173 = vmatprep.subr.mxu0 0.0
      %2174 = vmatpush1.msra.mxu0 0.0
      %2175 = vmatprep.subr.mxu0 0.0
      %2176 = vmatpush1.msra.mxu0 0.0
      %2177 = vmatprep.subr.mxu0 0.0
      %2178 = vmatpush1.msra.mxu0 0.0
      %2179 = vmatprep.subr.mxu0 0.0
      %2180 = vmatpush1.msra.mxu0 0.0
      %2181 = vmatprep.mubr.f32.mxu0 0.0
      %2182 = vmatmul.mubr.f32.gmra.mrb[0].mxu0 %v1968
      %v2183 = vpop.f32.mrb[0].mxu0
      %v2184 = vadd.f32 0.0, %v2183
      %v2185 = vpop.f32.mrb[0].mxu0
      %2186 = vmatprep.mubr.f32.mxu0 0.0
      %2187 = vmatmul.mubr.f32.gmra.mrb[0].mxu0 %v1971
      %v2188 = vpop.f32.mrb[0].mxu0
      %v2189 = vadd.f32 0.0, %v2188
      %v2190 = vpop.f32.mrb[0].mxu0
      %2191 = vmatprep.mubr.f32.mxu0 0.0
      %2192 = vmatmul.mubr.f32.gmra.mrb[0].mxu0 %v1974
      %v2193 = vpop.f32.mrb[0].mxu0
      %v2194 = vadd.f32 0.0, %v2193
      %v2195 = vpop.f32.mrb[0].mxu0
      %2196 = vmatprep.mubr.f32.mxu0 0.0
      %2197 = vmatmul.mubr.f32.gmra.mrb[0].mxu0 %v1977
      %v2198 = vpop.f32.mrb[0].mxu0
      %v2199 = vadd.f32 0.0, %v2198
      %v2200 = vpop.f32.mrb[0].mxu0
      %2201 = vmatprep.mubr.f32.mxu0 0.0
      %2202 = vmatmul.mubr.f32.gmra.mrb[0].mxu0 %v1980
      %v2203 = vpop.f32.mrb[0].mxu0
      %v2204 = vadd.f32 0.0, %v2203
      %v2205 = vpop.f32.mrb[0].mxu0
      %2206 = vmatprep.mubr.f32.mxu0 0.0
      %2207 = vmatmul.mubr.f32.gmra.mrb[0].mxu0 %v1983
      %v2208 = vpop.f32.mrb[0].mxu0
      %v2209 = vadd.f32 0.0, %v2208
      %v2210 = vpop.f32.mrb[0].mxu0
      %2211 = vmatprep.mubr.f32.mxu0 0.0
      %2212 = vmatmul.mubr.f32.gmra.mrb[0].mxu0 %v1986
      %v2213 = vpop.f32.mrb[0].mxu0
      %v2214 = vadd.f32 0.0, %v2213
      %v2215 = vpop.f32.mrb[0].mxu0
      %2216 = vmatprep.mubr.f32.mxu0 0.0
      %2217 = vmatmul.mubr.f32.gmra.mrb[0].mxu0 %v1989
      %v2218 = vpop.f32.mrb[0].mxu0
      %v2219 = vadd.f32 0.0, %v2218
      %v2220 = vpop.f32.mrb[0].mxu0
      %2221 = vmatprep.mubr.f32.mxu0 0.0
      %2222 = vmatmul.mubr.f32.gmra.mrb[0].mxu0 %v1992
      %v2223 = vpop.f32.mrb[0].mxu0
      %v2224 = vadd.f32 0.0, %v2223
      %v2225 = vpop.f32.mrb[0].mxu0
      %2226 = vmatprep.mubr.f32.mxu0 0.0
      %2227 = vmatmul.mubr.f32.gmra.mrb[0].mxu0 %v1995
      %v2228 = vpop.f32.mrb[0].mxu0
      %v2229 = vadd.f32 0.0, %v2228
      %v2230 = vpop.f32.mrb[0].mxu0
      %2231 = vmatprep.mubr.f32.mxu0 0.0
      %2232 = vmatmul.mubr.f32.gmra.mrb[0].mxu0 %v1998
      %v2233 = vpop.f32.mrb[0].mxu0
      %v2234 = vadd.f32 0.0, %v2233
      %v2235 = vpop.f32.mrb[0].mxu0
      %2236 = vmatprep.mubr.f32.mxu0 0.0
      %2237 = vmatmul.mubr.f32.gmra.mrb[0].mxu0 %v2001
      %v2238 = vpop.f32.mrb[0].mxu0
      %v2239 = vadd.f32 0.0, %v2238
      %v2240 = vpop.f32.mrb[0].mxu0
      %2241 = vmatprep.mubr.f32.mxu0 0.0
      %2242 = vmatmul.mubr.f32.gmra.mrb[0].mxu0 %v2004
      %v2243 = vpop.f32.mrb[0].mxu0
      %v2244 = vadd.f32 0.0, %v2243
      %v2245 = vpop.f32.mrb[0].mxu0
      %2246 = vmatprep.mubr.f32.mxu0 0.0
      %2247 = vmatmul.mubr.f32.gmra.mrb[0].mxu0 %v2007
      %v2248 = vpop.f32.mrb[0].mxu0
      %v2249 = vadd.f32 0.0, %v2248
      %v2250 = vpop.f32.mrb[0].mxu0
      %2251 = vmatprep.mubr.f32.mxu0 0.0
      %2252 = vmatmul.mubr.f32.gmra.mrb[0].mxu0 %v2010
      %v2253 = vpop.f32.mrb[0].mxu0
      %v2254 = vadd.f32 0.0, %v2253
      %v2255 = vpop.f32.mrb[0].mxu0
      %2256 = vmatprep.mubr.f32.mxu0 0.0
      %2257 = vmatmul.mubr.f32.gmra.mrb[0].mxu0 %v2013
      %v2258 = vpop.f32.mrb[0].mxu0
      %v2259 = vadd.f32 0.0, %v2258
      %v2260 = vpop.f32.mrb[0].mxu0
      %2261 = vmatprep.mubr.f32.mxu0 0.0
      %2262 = vmatmul.mubr.f32.gmra.mrb[0].mxu0 %v2016
      %v2263 = vpop.f32.mrb[0].mxu0
      %v2264 = vadd.f32 0.0, %v2263
      %v2265 = vpop.f32.mrb[0].mxu0
      %2266 = vmatprep.mubr.f32.mxu0 0.0
      %2267 = vmatmul.mubr.f32.gmra.mrb[0].mxu0 %v2019
      %v2268 = vpop.f32.mrb[0].mxu0
      %v2269 = vadd.f32 0.0, %v2268
      %v2270 = vpop.f32.mrb[0].mxu0
      %2271 = vmatprep.mubr.f32.mxu0 0.0
      %2272 = vmatmul.mubr.f32.gmra.mrb[0].mxu0 %v2022
      %v2273 = vpop.f32.mrb[0].mxu0
      %v2274 = vadd.f32 0.0, %v2273
      %v2275 = vpop.f32.mrb[0].mxu0
      %2276 = vmatprep.mubr.f32.mxu0 0.0
      %2277 = vmatmul.mubr.f32.gmra.mrb[0].mxu0 %v2025
      %v2278 = vpop.f32.mrb[0].mxu0
      %v2279 = vadd.f32 0.0, %v2278
      %v2280 = vpop.f32.mrb[0].mxu0
      %2281 = vmatprep.mubr.f32.mxu0 0.0
      %2282 = vmatmul.mubr.f32.gmra.mrb[0].mxu0 %v2028
      %v2283 = vpop.f32.mrb[0].mxu0
      %v2284 = vadd.f32 0.0, %v2283
      %v2285 = vpop.f32.mrb[0].mxu0
      %2286 = vmatprep.mubr.f32.mxu0 0.0
      %2287 = vmatmul.mubr.f32.gmra.mrb[0].mxu0 %v2031
      %v2288 = vpop.f32.mrb[0].mxu0
      %v2289 = vadd.f32 0.0, %v2288
      %v2290 = vpop.f32.mrb[0].mxu0
      %2291 = vmatprep.mubr.f32.mxu0 0.0
      %2292 = vmatmul.mubr.f32.gmra.mrb[0].mxu0 %v2034
      %v2293 = vpop.f32.mrb[0].mxu0
      %v2294 = vadd.f32 0.0, %v2293
      %v2295 = vpop.f32.mrb[0].mxu0
      %2296 = vmatprep.mubr.f32.mxu0 0.0
      %2297 = vmatmul.mubr.f32.gmra.mrb[0].mxu0 %v2037
      %v2298 = vpop.f32.mrb[0].mxu0
      %v2299 = vadd.f32 0.0, %v2298
      %v2300 = vpop.f32.mrb[0].mxu0
      %2301 = vmatprep.mubr.f32.mxu0 0.0
      %2302 = vmatmul.mubr.f32.gmra.mrb[0].mxu0 %v2040
      %v2303 = vpop.f32.mrb[0].mxu0
      %v2304 = vadd.f32 0.0, %v2303
      %v2305 = vpop.f32.mrb[0].mxu0
      %2306 = vmatprep.mubr.f32.mxu0 0.0
      %2307 = vmatmul.mubr.f32.gmra.mrb[0].mxu0 %v2043
      %v2308 = vpop.f32.mrb[0].mxu0
      %v2309 = vadd.f32 0.0, %v2308
      %v2310 = vpop.f32.mrb[0].mxu0
      %2311 = vmatprep.mubr.f32.mxu0 0.0
      %2312 = vmatmul.mubr.f32.gmra.mrb[0].mxu0 %v2046
      %v2313 = vpop.f32.mrb[0].mxu0
      %v2314 = vadd.f32 0.0, %v2313
      %v2315 = vpop.f32.mrb[0].mxu0
      %2316 = vmatprep.mubr.f32.mxu0 0.0
      %2317 = vmatmul.mubr.f32.gmra.mrb[0].mxu0 %v2049
      %v2318 = vpop.f32.mrb[0].mxu0
      %v2319 = vadd.f32 0.0, %v2318
      %v2320 = vpop.f32.mrb[0].mxu0
      %2321 = vmatprep.mubr.f32.mxu0 0.0
      %2322 = vmatmul.mubr.f32.gmra.mrb[0].mxu0 %v2052
      %v2323 = vpop.f32.mrb[0].mxu0
      %v2324 = vadd.f32 0.0, %v2323
      %v2325 = vpop.f32.mrb[0].mxu0
      %2326 = vmatprep.mubr.f32.mxu0 0.0
      %2327 = vmatmul.mubr.f32.gmra.mrb[0].mxu0 %v2055
      %v2328 = vpop.f32.mrb[0].mxu0
      %v2329 = vadd.f32 0.0, %v2328
      %v2330 = vpop.f32.mrb[0].mxu0
      %2331 = vmatprep.mubr.f32.mxu0 0.0
      %2332 = vmatmul.mubr.f32.gmra.mrb[0].mxu0 %v2058
      %v2333 = vpop.f32.mrb[0].mxu0
      %v2334 = vadd.f32 0.0, %v2333
      %v2335 = vpop.f32.mrb[0].mxu0
      %2336 = vmatprep.mubr.f32.mxu0 0.0
      %2337 = vmatmul.mubr.f32.gmra.mrb[0].mxu0 %v2061
      %v2338 = vpop.f32.mrb[0].mxu0
      %v2339 = vadd.f32 0.0, %v2338
      %v2340 = vpop.f32.mrb[0].mxu0
      %2341 = vmatprep.mubr.f32.mxu0 0.0
      %2342 = vmatmul.mubr.f32.gmra.mrb[0].mxu0 %v2064
      %v2343 = vpop.f32.mrb[0].mxu0
      %v2344 = vadd.f32 0.0, %v2343
      %v2345 = vpop.f32.mrb[0].mxu0
      %2346 = vmatprep.mubr.f32.mxu0 0.0
      %2347 = vmatmul.mubr.f32.gmra.mrb[0].mxu0 %v2067
      %v2348 = vpop.f32.mrb[0].mxu0
      %v2349 = vadd.f32 0.0, %v2348
      %v2350 = vpop.f32.mrb[0].mxu0
      %2351 = vmatprep.mubr.f32.mxu0 0.0
      %2352 = vmatmul.mubr.f32.gmra.mrb[0].mxu0 %v2070
      %v2353 = vpop.f32.mrb[0].mxu0
      %v2354 = vadd.f32 0.0, %v2353
      %v2355 = vpop.f32.mrb[0].mxu0
      %2356 = vmatprep.mubr.f32.mxu0 0.0
      %2357 = vmatmul.mubr.f32.gmra.mrb[0].mxu0 %v2073
      %v2358 = vpop.f32.mrb[0].mxu0
      %v2359 = vadd.f32 0.0, %v2358
      %v2360 = vpop.f32.mrb[0].mxu0
      %2361 = vmatprep.mubr.f32.mxu0 0.0
      %2362 = vmatmul.mubr.f32.gmra.mrb[0].mxu0 %v2076
      %v2363 = vpop.f32.mrb[0].mxu0
      %v2364 = vadd.f32 0.0, %v2363
      %v2365 = vpop.f32.mrb[0].mxu0
      %2366 = vmatprep.mubr.f32.mxu0 0.0
      %2367 = vmatmul.mubr.f32.gmra.mrb[0].mxu0 %v2079
      %v2368 = vpop.f32.mrb[0].mxu0
      %v2369 = vadd.f32 0.0, %v2368
      %v2370 = vpop.f32.mrb[0].mxu0
      %2371 = vmatprep.mubr.f32.mxu0 0.0
      %2372 = vmatmul.mubr.f32.gmra.mrb[0].mxu0 %v2082
      %v2373 = vpop.f32.mrb[0].mxu0
      %v2374 = vadd.f32 0.0, %v2373
      %v2375 = vpop.f32.mrb[0].mxu0
      %2376 = vmatprep.mubr.f32.mxu0 0.0
      %2377 = vmatmul.mubr.f32.gmra.mrb[0].mxu0 %v2085
      %v2378 = vpop.f32.mrb[0].mxu0
      %v2379 = vadd.f32 0.0, %v2378
      %v2380 = vpop.f32.mrb[0].mxu0
      %2381 = vmatprep.mubr.f32.mxu0 0.0
      %2382 = vmatmul.mubr.f32.gmra.mrb[0].mxu0 %v2088
      %v2383 = vpop.f32.mrb[0].mxu0
      %v2384 = vadd.f32 0.0, %v2383
      %v2385 = vpop.f32.mrb[0].mxu0
      %2386 = vmatprep.mubr.f32.mxu0 0.0
      %2387 = vmatmul.mubr.f32.gmra.mrb[0].mxu0 %v2091
      %v2388 = vpop.f32.mrb[0].mxu0
      %v2389 = vadd.f32 0.0, %v2388
      %v2390 = vpop.f32.mrb[0].mxu0
      %2391 = vmatprep.mubr.f32.mxu0 0.0
      %2392 = vmatmul.mubr.f32.gmra.mrb[0].mxu0 %v2094
      %v2393 = vpop.f32.mrb[0].mxu0
      %v2394 = vadd.f32 0.0, %v2393
      %v2395 = vpop.f32.mrb[0].mxu0
      %2396 = vmatprep.mubr.f32.mxu0 0.0
      %2397 = vmatmul.mubr.f32.gmra.mrb[0].mxu0 %v2097
      %v2398 = vpop.f32.mrb[0].mxu0
      %v2399 = vadd.f32 0.0, %v2398
      %v2400 = vpop.f32.mrb[0].mxu0
      %2401 = vmatprep.mubr.f32.mxu0 0.0
      %2402 = vmatmul.mubr.f32.gmra.mrb[0].mxu0 %v2100
      %v2403 = vpop.f32.mrb[0].mxu0
      %v2404 = vadd.f32 0.0, %v2403
      %v2405 = vpop.f32.mrb[0].mxu0
      %2406 = vmatprep.mubr.f32.mxu0 0.0
      %2407 = vmatmul.mubr.f32.gmra.mrb[0].mxu0 %v2103
      %v2408 = vpop.f32.mrb[0].mxu0
      %v2409 = vadd.f32 0.0, %v2408
      %v2410 = vpop.f32.mrb[0].mxu0
      %2411 = vmatprep.mubr.f32.mxu0 0.0
      %2412 = vmatmul.mubr.f32.gmra.mrb[0].mxu0 %v2106
      %v2413 = vpop.f32.mrb[0].mxu0
      %v2414 = vadd.f32 0.0, %v2413
      %v2415 = vpop.f32.mrb[0].mxu0
      %2416 = vmatprep.mubr.f32.mxu0 0.0
      %2417 = vmatmul.mubr.f32.gmra.mrb[0].mxu0 %v2109
      %v2418 = vpop.f32.mrb[0].mxu0
      %v2419 = vadd.f32 0.0, %v2418
      %v2420 = vpop.f32.mrb[0].mxu0
      %2421 = vmatprep.mubr.f32.mxu0 0.0
      %2422 = vmatmul.mubr.f32.gmra.mrb[0].mxu0 %v2112
      %v2423 = vpop.f32.mrb[0].mxu0
      %v2424 = vadd.f32 0.0, %v2423
      %v2425 = vpop.f32.mrb[0].mxu0
      %2426 = vmatprep.mubr.f32.mxu0 0.0
      %2427 = vmatmul.mubr.f32.gmra.mrb[0].mxu0 %v2115
      %v2428 = vpop.f32.mrb[0].mxu0
      %v2429 = vadd.f32 0.0, %v2428
      %v2430 = vpop.f32.mrb[0].mxu0
      %2431 = vdwg.mxu0
      %v2432 = vmax.f32 %v1669, %v2184
      %v2433 = vmax.f32 %v1674, %v2189
      %v2434 = vmax.f32 %v1679, %v2194
      %v2435 = vmax.f32 %v1684, %v2199
      %v2436 = vmax.f32 %v1689, %v2204
      %v2437 = vmax.f32 %v1694, %v2209
      %v2438 = vmax.f32 %v1699, %v2214
      %v2439 = vmax.f32 %v1704, %v2219
      %v2440 = vmax.f32 %v1709, %v2224
      %v2441 = vmax.f32 %v1714, %v2229
      %v2442 = vmax.f32 %v1719, %v2234
      %v2443 = vmax.f32 %v1724, %v2239
      %v2444 = vmax.f32 %v1729, %v2244
      %v2445 = vmax.f32 %v1734, %v2249
      %v2446 = vmax.f32 %v1739, %v2254
      %v2447 = vmax.f32 %v1744, %v2259
      %v2448 = vmax.f32 %v1749, %v2264
      %v2449 = vmax.f32 %v1754, %v2269
      %v2450 = vmax.f32 %v1759, %v2274
      %v2451 = vmax.f32 %v1764, %v2279
      %v2452 = vmax.f32 %v1769, %v2284
      %v2453 = vmax.f32 %v1774, %v2289
      %v2454 = vmax.f32 %v1779, %v2294
      %v2455 = vmax.f32 %v1784, %v2299
      %v2456 = vmax.f32 %v1789, %v2304
      %v2457 = vmax.f32 %v1794, %v2309
      %v2458 = vmax.f32 %v1799, %v2314
      %v2459 = vmax.f32 %v1804, %v2319
      %v2460 = vmax.f32 %v1809, %v2324
      %v2461 = vmax.f32 %v1814, %v2329
      %v2462 = vmax.f32 %v1819, %v2334
      %v2463 = vmax.f32 %v1824, %v2339
      %v2464 = vmax.f32 %v1829, %v2344
      %v2465 = vmax.f32 %v1834, %v2349
      %v2466 = vmax.f32 %v1839, %v2354
      %v2467 = vmax.f32 %v1844, %v2359
      %v2468 = vmax.f32 %v1849, %v2364
      %v2469 = vmax.f32 %v1854, %v2369
      %v2470 = vmax.f32 %v1859, %v2374
      %v2471 = vmax.f32 %v1864, %v2379
      %v2472 = vmax.f32 %v1869, %v2384
      %v2473 = vmax.f32 %v1874, %v2389
      %v2474 = vmax.f32 %v1879, %v2394
      %v2475 = vmax.f32 %v1884, %v2399
      %v2476 = vmax.f32 %v1889, %v2404
      %v2477 = vmax.f32 %v1894, %v2409
      %v2478 = vmax.f32 %v1899, %v2414
      %v2479 = vmax.f32 %v1904, %v2419
      %v2480 = vmax.f32 %v1909, %v2424
      %v2481 = vmax.f32 %v1914, %v2429
      %v2482 = vmax.f32 %v1352, %v2432
      %v2483 = vmax.f32 %v1353, %v2433
      %v2484 = vmax.f32 %v1354, %v2434
      %v2485 = vmax.f32 %v1355, %v2435
      %v2486 = vmax.f32 %v1356, %v2436
      %v2487 = vmax.f32 %v1357, %v2437
      %v2488 = vmax.f32 %v1358, %v2438
      %v2489 = vmax.f32 %v1359, %v2439
      %v2490 = vmax.f32 %v1360, %v2440
      %v2491 = vmax.f32 %v1361, %v2441
      %v2492 = vmax.f32 %v1362, %v2442
      %v2493 = vmax.f32 %v1363, %v2443
      %v2494 = vmax.f32 %v1364, %v2444
      %v2495 = vmax.f32 %v1365, %v2445
      %v2496 = vmax.f32 %v1366, %v2446
      %v2497 = vmax.f32 %v1367, %v2447
      %v2498 = vmax.f32 %v1368, %v2448
      %v2499 = vmax.f32 %v1369, %v2449
      %v2500 = vmax.f32 %v1370, %v2450
      %v2501 = vmax.f32 %v1371, %v2451
      %v2502 = vmax.f32 %v1372, %v2452
      %v2503 = vmax.f32 %v1373, %v2453
      %v2504 = vmax.f32 %v1374, %v2454
      %v2505 = vmax.f32 %v1375, %v2455
      %v2506 = vmax.f32 %v1376, %v2456
      %v2507 = vmax.f32 %v1377, %v2457
      %v2508 = vmax.f32 %v1378, %v2458
      %v2509 = vmax.f32 %v1379, %v2459
      %v2510 = vmax.f32 %v1380, %v2460
      %v2511 = vmax.f32 %v1381, %v2461
      %v2512 = vmax.f32 %v1382, %v2462
      %v2513 = vmax.f32 %v1383, %v2463
      %v2514 = vmax.f32 %v1384, %v2464
      %v2515 = vmax.f32 %v1385, %v2465
      %v2516 = vmax.f32 %v1386, %v2466
      %v2517 = vmax.f32 %v1387, %v2467
      %v2518 = vmax.f32 %v1388, %v2468
      %v2519 = vmax.f32 %v1389, %v2469
      %v2520 = vmax.f32 %v1390, %v2470
      %v2521 = vmax.f32 %v1391, %v2471
      %v2522 = vmax.f32 %v1392, %v2472
      %v2523 = vmax.f32 %v1393, %v2473
      %v2524 = vmax.f32 %v1394, %v2474
      %v2525 = vmax.f32 %v1395, %v2475
      %v2526 = vmax.f32 %v1396, %v2476
      %v2527 = vmax.f32 %v1397, %v2477
      %v2528 = vmax.f32 %v1398, %v2478
      %v2529 = vmax.f32 %v1399, %v2479
      %v2530 = vmax.f32 %v1400, %v2480
      %v2531 = vmax.f32 %v1401, %v2481
      %v2532 = vld [vmem:[%s5] sm:$0x1]
      %v2534 = vlaneseq
      %v2535 = vshrl.u32 %v2534, 7
      %v2536 = vsub.s32 0, %v2535
      %v2537 = vrot.slane %v2532, %v2536
      %v2539 = vadd.f32 %v2482, %v2537
      %v2540 = vadd.f32 %v2483, %v2537
      %v2541 = vadd.f32 %v2484, %v2537
      %v2542 = vadd.f32 %v2485, %v2537
      %v2543 = vadd.f32 %v2486, %v2537
      %v2544 = vadd.f32 %v2487, %v2537
      %v2545 = vadd.f32 %v2488, %v2537
      %v2546 = vadd.f32 %v2489, %v2537
      %v2547 = vadd.f32 %v2490, %v2537
      %v2548 = vadd.f32 %v2491, %v2537
      %v2549 = vadd.f32 %v2492, %v2537
      %v2550 = vadd.f32 %v2493, %v2537
      %v2551 = vadd.f32 %v2494, %v2537
      %v2552 = vadd.f32 %v2495, %v2537
      %v2553 = vadd.f32 %v2496, %v2537
      %v2554 = vadd.f32 %v2497, %v2537
      %v2555 = vadd.f32 %v2498, %v2537
      %v2556 = vadd.f32 %v2499, %v2537
      %v2557 = vadd.f32 %v2500, %v2537
      %v2558 = vadd.f32 %v2501, %v2537
      %v2559 = vadd.f32 %v2502, %v2537
      %v2560 = vadd.f32 %v2503, %v2537
      %v2561 = vadd.f32 %v2504, %v2537
      %v2562 = vadd.f32 %v2505, %v2537
      %v2563 = vadd.f32 %v2506, %v2537
      %v2564 = vadd.f32 %v2507, %v2537
      %v2565 = vadd.f32 %v2508, %v2537
      %v2566 = vadd.f32 %v2509, %v2537
      %v2567 = vadd.f32 %v2510, %v2537
      %v2568 = vadd.f32 %v2511, %v2537
      %v2569 = vadd.f32 %v2512, %v2537
      %v2570 = vadd.f32 %v2513, %v2537
      %v2571 = vadd.f32 %v2514, %v2537
      %v2572 = vadd.f32 %v2515, %v2537
      %v2573 = vadd.f32 %v2516, %v2537
      %v2574 = vadd.f32 %v2517, %v2537
      %v2575 = vadd.f32 %v2518, %v2537
      %v2576 = vadd.f32 %v2519, %v2537
      %v2577 = vadd.f32 %v2520, %v2537
      %v2578 = vadd.f32 %v2521, %v2537
      %v2579 = vadd.f32 %v2522, %v2537
      %v2580 = vadd.f32 %v2523, %v2537
      %v2581 = vadd.f32 %v2524, %v2537
      %v2582 = vadd.f32 %v2525, %v2537
      %v2583 = vadd.f32 %v2526, %v2537
      %v2584 = vadd.f32 %v2527, %v2537
      %v2585 = vadd.f32 %v2528, %v2537
      %v2586 = vadd.f32 %v2529, %v2537
      %v2587 = vadd.f32 %v2530, %v2537
      %v2588 = vadd.f32 %v2531, %v2537
      %v2589 = vmax.f32 %v2539, 0.0
      %v2590 = vmax.f32 %v2540, 0.0
      %v2591 = vmax.f32 %v2541, 0.0
      %v2592 = vmax.f32 %v2542, 0.0
      %v2593 = vmax.f32 %v2543, 0.0
      %v2594 = vmax.f32 %v2544, 0.0
      %v2595 = vmax.f32 %v2545, 0.0
      %v2596 = vmax.f32 %v2546, 0.0
      %v2597 = vmax.f32 %v2547, 0.0
      %v2598 = vmax.f32 %v2548, 0.0
      %v2599 = vmax.f32 %v2549, 0.0
      %v2600 = vmax.f32 %v2550, 0.0
      %v2601 = vmax.f32 %v2551, 0.0
      %v2602 = vmax.f32 %v2552, 0.0
      %v2603 = vmax.f32 %v2553, 0.0
      %v2604 = vmax.f32 %v2554, 0.0
      %v2605 = vmax.f32 %v2555, 0.0
      %v2606 = vmax.f32 %v2556, 0.0
      %v2607 = vmax.f32 %v2557, 0.0
      %v2608 = vmax.f32 %v2558, 0.0
      %v2609 = vmax.f32 %v2559, 0.0
      %v2610 = vmax.f32 %v2560, 0.0
      %v2611 = vmax.f32 %v2561, 0.0
      %v2612 = vmax.f32 %v2562, 0.0
      %v2613 = vmax.f32 %v2563, 0.0
      %v2614 = vmax.f32 %v2564, 0.0
      %v2615 = vmax.f32 %v2565, 0.0
      %v2616 = vmax.f32 %v2566, 0.0
      %v2617 = vmax.f32 %v2567, 0.0
      %v2618 = vmax.f32 %v2568, 0.0
      %v2619 = vmax.f32 %v2569, 0.0
      %v2620 = vmax.f32 %v2570, 0.0
      %v2621 = vmax.f32 %v2571, 0.0
      %v2622 = vmax.f32 %v2572, 0.0
      %v2623 = vmax.f32 %v2573, 0.0
      %v2624 = vmax.f32 %v2574, 0.0
      %v2625 = vmax.f32 %v2575, 0.0
      %v2626 = vmax.f32 %v2576, 0.0
      %v2627 = vmax.f32 %v2577, 0.0
      %v2628 = vmax.f32 %v2578, 0.0
      %v2629 = vmax.f32 %v2579, 0.0
      %v2630 = vmax.f32 %v2580, 0.0
      %v2631 = vmax.f32 %v2581, 0.0
      %v2632 = vmax.f32 %v2582, 0.0
      %v2633 = vmax.f32 %v2583, 0.0
      %v2634 = vmax.f32 %v2584, 0.0
      %v2635 = vmax.f32 %v2585, 0.0
      %v2636 = vmax.f32 %v2586, 0.0
      %v2637 = vmax.f32 %v2587, 0.0
      %v2638 = vmax.f32 %v2588, 0.0
      %vm2639 = vcmask 130048
      %2640 = vst.msk [vmem:[%s311] sm:$0xff] %vm2639, %v2589
      %2641 = vst.msk [vmem:[%s311 + $0x8] sm:$0xff] %vm2639, %v2590
      %2642 = vst.msk [vmem:[%s311 + $0x10] sm:$0xff] %vm2639, %v2591
      %2643 = vst.msk [vmem:[%s311 + $0x18] sm:$0xff] %vm2639, %v2592
      %2644 = vst.msk [vmem:[%s311 + $0x20] sm:$0xff] %vm2639, %v2593
      %2645 = vst.msk [vmem:[%s311 + $0x28] sm:$0xff] %vm2639, %v2594
      %2646 = vst.msk [vmem:[%s311 + $0x30] sm:$0xff] %vm2639, %v2595
      %2647 = vst.msk [vmem:[%s311 + $0x38] sm:$0xff] %vm2639, %v2596
      %2648 = vst.msk [vmem:[%s311 + $0x40] sm:$0xff] %vm2639, %v2597
      %2649 = vst.msk [vmem:[%s311 + $0x48] sm:$0xff] %vm2639, %v2598
      %2650 = vst.msk [vmem:[%s311 + $0x50] sm:$0xff] %vm2639, %v2599
      %2651 = vst.msk [vmem:[%s311 + $0x58] sm:$0xff] %vm2639, %v2600
      %2652 = vst.msk [vmem:[%s311 + $0x60] sm:$0xff] %vm2639, %v2601
      %2653 = vst.msk [vmem:[%s311 + $0x68] sm:$0xff] %vm2639, %v2602
      %2654 = vst.msk [vmem:[%s311 + $0x70] sm:$0xff] %vm2639, %v2603
      %2655 = vst.msk [vmem:[%s311 + $0x78] sm:$0xff] %vm2639, %v2604
      %2656 = vst.msk [vmem:[%s311 + $0x80] sm:$0xff] %vm2639, %v2605
      %2657 = vst.msk [vmem:[%s311 + $0x88] sm:$0xff] %vm2639, %v2606
      %2658 = vst.msk [vmem:[%s311 + $0x90] sm:$0xff] %vm2639, %v2607
      %2659 = vst.msk [vmem:[%s311 + $0x98] sm:$0xff] %vm2639, %v2608
      %2660 = vst.msk [vmem:[%s311 + $0xa0] sm:$0xff] %vm2639, %v2609
      %2661 = vst.msk [vmem:[%s311 + $0xa8] sm:$0xff] %vm2639, %v2610
      %2662 = vst.msk [vmem:[%s311 + $0xb0] sm:$0xff] %vm2639, %v2611
      %2663 = vst.msk [vmem:[%s311 + $0xb8] sm:$0xff] %vm2639, %v2612
      %2664 = vst.msk [vmem:[%s311 + $0xc0] sm:$0xff] %vm2639, %v2613
      %2665 = vst.msk [vmem:[%s311 + $0xc8] sm:$0xff] %vm2639, %v2614
      %2666 = vst.msk [vmem:[%s311 + $0xd0] sm:$0xff] %vm2639, %v2615
      %2667 = vst.msk [vmem:[%s311 + $0xd8] sm:$0xff] %vm2639, %v2616
      %2668 = vst.msk [vmem:[%s311 + $0xe0] sm:$0xff] %vm2639, %v2617
      %2669 = vst.msk [vmem:[%s311 + $0xe8] sm:$0xff] %vm2639, %v2618
      %2670 = vst.msk [vmem:[%s311 + $0xf0] sm:$0xff] %vm2639, %v2619
      %2671 = vst.msk [vmem:[%s311 + $0xf8] sm:$0xff] %vm2639, %v2620
      %2672 = vst.msk [vmem:[%s311 + $0x100] sm:$0xff] %vm2639, %v2621
      %2673 = vst.msk [vmem:[%s311 + $0x108] sm:$0xff] %vm2639, %v2622
      %2674 = vst.msk [vmem:[%s311 + $0x110] sm:$0xff] %vm2639, %v2623
      %2675 = vst.msk [vmem:[%s311 + $0x118] sm:$0xff] %vm2639, %v2624
      %2676 = vst.msk [vmem:[%s311 + $0x120] sm:$0xff] %vm2639, %v2625
      %2677 = vst.msk [vmem:[%s311 + $0x128] sm:$0xff] %vm2639, %v2626
      %2678 = vst.msk [vmem:[%s311 + $0x130] sm:$0xff] %vm2639, %v2627
      %2679 = vst.msk [vmem:[%s311 + $0x138] sm:$0xff] %vm2639, %v2628
      %2680 = vst.msk [vmem:[%s311 + $0x140] sm:$0xff] %vm2639, %v2629
      %2681 = vst.msk [vmem:[%s311 + $0x148] sm:$0xff] %vm2639, %v2630
      %2682 = vst.msk [vmem:[%s311 + $0x150] sm:$0xff] %vm2639, %v2631
      %2683 = vst.msk [vmem:[%s311 + $0x158] sm:$0xff] %vm2639, %v2632
      %2684 = vst.msk [vmem:[%s311 + $0x160] sm:$0xff] %vm2639, %v2633
      %2685 = vst.msk [vmem:[%s311 + $0x168] sm:$0xff] %vm2639, %v2634
      %2686 = vst.msk [vmem:[%s311 + $0x170] sm:$0xff] %vm2639, %v2635
      %2687 = vst.msk [vmem:[%s311 + $0x178] sm:$0xff] %vm2639, %v2636
      %2688 = vst.msk [vmem:[%s311 + $0x180] sm:$0xff] %vm2639, %v2637
      %2689 = vst.msk [vmem:[%s311 + $0x188] sm:$0xff] %vm2639, %v2638
      %p2690 = scmp.lt.s32.totalorder %s17, 1
      %s2691 = scalar_select %p2690, %s17, 1
      %s2692 = smul.addr %s2691, 50
      %s2693 = smul.addr %s2692, 8
      %s2694 = scalar_lea.vmem %s6, %s2693
      // Predicated region
      $region45: #{dqn_forward.3} parent=43 // pred_check
        %p2695 = pneg %p181
      $region46: #{dqn_forward.3} parent=43 // pred_check_branch
        %2697 = sbr.rel (%p2695) target = $region48
      $region47: #{dqn_forward.3} parent=43 // pred_region
        _
      $region48: #{dqn_forward.3} parent=43 // pred_fallthru
        _
    $region44: #{dqn_forward.3} parent=5 // pred_fallthru
      _
    %p2698 = scmp.le.s32.totalorder 2, %s12
    // Predicated region
    $region49: #{dqn_forward.3} parent=5 // pred_check
      %p2699 = pneg %p2698
    $region50: #{dqn_forward.3} parent=5 // pred_check_branch
      %2701 = sbr.rel (%p2699) target = $region52
    $region51: #{dqn_forward.3} parent=5 // pred_region
      %s2702 = ssub.s32 %s12, 2
      // Predicated region
      $region53: #{dqn_forward.3} parent=51 // pred_check
        %p2703 = pneg %p187
      $region54: #{dqn_forward.3} parent=51 // pred_check_branch
        %2705 = sbr.rel (%p2703) target = $region56
      $region55: #{dqn_forward.3} parent=51 // pred_region
        %p2706 = scmp.lt.s32.totalorder %s18, 1
        %s2707 = scalar_select %p2706, %s18, 1
        %s2708 = smul.addr %s2707, 50
        %s2709 = smul.addr %s2708, 8
        %s2710 = scalar_lea.vmem %s6, %s2709
      $region56: #{dqn_forward.3} parent=51 // pred_fallthru
        _
    $region52: #{dqn_forward.3} parent=5 // pred_fallthru
      _
  $region6: #{dqn_forward.3} parent=0 // loop_footer
    %s16 = sadd.s32 1, %s12
  $region7: #{dqn_forward.3} parent=0 // loop_footer_branch
    %11 = sbr.rel target = $region3
  $region8: #{dqn_forward.3} parent=0 // loop_exit
    _

// kernel: dqn_forward.4
$region0: #{dqn_forward.4}
  #allocation0 [shape = 'u32[]', space=smem, size = 0x4, offset = 0x4, fixed_abs, tag = 'smem constant byte address 0x4 - core index']
  #allocation1 [shape = 'u32[144,128]{1,0:T(1,128)}', space=vmem, size = 0x12000, scoped, tag = 'internal scratch']
  %s0 = inlined_call_operand.vmem [shape: f32[2,100,144], index: 0, kind: input, shape index: {}]
  %s1 = inlined_call_operand.vmem [shape: f32[2,100,144], index: 1, kind: input, shape index: {}]
  %s2 = inlined_call_operand.vmem [shape: f32[2,100,144], index: 2, kind: input, shape index: {}]
  %s3 = inlined_call_operand.vmem [shape: f32[2,100,144], index: 3, kind: input, shape index: {}]
  %s4 = inlined_call_operand.vmem [shape: f32[144,32], index: 4, kind: input, shape index: {}]
  %s5 = inlined_call_operand.vmem [shape: f32[1,32], index: 5, kind: input, shape index: {}]
  %s6 = inlined_call_operand.vmem [shape: f32[2,100,32], index: 6, kind: output, shape index: {}]
  %s7 = sld [smem:[#allocation0]]
  $region57: #{dqn_forward.4} parent=0
    _
  %s9 = ssub.s32 1, %s7
  %s10 = scalar_select 0, %s9, %s7
  loop: start=0, step=1, limit=4
  $region2: #{dqn_forward.4} parent=0 // loop_pre_header
    _
  $region3: #{dqn_forward.4} parent=0 // loop_header
    %s12 = sphi 0, %s16
    %p13 = scmp.ge.s32.totalorder %s12, 4
    %s22 = sphi 0, %s24
    %s25 = sphi 0, %s22
    %s26 = sphi 0, %s25
    %s42 = sphi 0, %s26
    %s48 = sphi 0, %s50
    %s51 = sphi 0, %s48
    %s52 = sphi 0, %s51
    %s68 = sphi 0, %s52
    %s74 = sphi 0, %s76
    %s77 = sphi 0, %s74
    %s78 = sphi 0, %s77
    %s94 = sphi 0, %s78
    %s100 = sphi 0, %s102
    %s103 = sphi 0, %s100
    %s104 = sphi 0, %s103
    %s120 = sphi 0, %s104
    %s124 = sphi 0, %s124
    %s126 = sphi 0, %s124
    %s127 = sphi 0, %s126
    %s141 = sphi 0, %s127
    %s145 = sphi 0, %s145
    %s147 = sphi 0, %s145
    %s148 = sphi 0, %s147
    %s162 = sphi 0, %s148
    %s168 = sphi 0, %s170
    %s171 = sphi 0, %s168
    %s172 = sphi 0, %s171
    %s188 = sphi 0, %s172
  $region4: #{dqn_forward.4} parent=0 // loop_header_branch
    %15 = sbr.rel (%p13) target = $region8
  $region5: #{dqn_forward.4} parent=0 // loop_body
    %s17 = ssub.s32 %s12, 1
    %s18 = ssub.s32 %s12, 2
    %s19 = sadd.s32 %s12, 1
    %s20 = ssub.s32 %s12, %s19
    %p21 = scmp.eq.s32.totalorder %s20, 0
    %s23 = sadd.s32 %s22, 1
    %s24 = scalar_select %p21, %s22, %s23
    %p27 = pneg %p21
    %p28 = scmp.eq.s32.totalorder %s12, 1
    %p29 = por %p27, %p28
    %p30 = scmp.ne.s32.totalorder %s22, %s25
    %p31 = scmp.eq.s32.totalorder %s12, 0
    %p32 = por %p30, %p31
    %p33 = scmp.ne.s32.totalorder %s22, %s25
    %p34 = scmp.eq.s32.totalorder %s17, 1
    %p35 = por %p33, %p34
    %p36 = scmp.ne.s32.totalorder %s25, %s26
    %p37 = scmp.eq.s32.totalorder %s17, 0
    %p38 = por %p36, %p37
    %p39 = scmp.ne.s32.totalorder %s25, %s26
    %p40 = scmp.eq.s32.totalorder %s18, 1
    %p41 = por %p39, %p40
    %p43 = scmp.ne.s32.totalorder %s26, %s42
    %p44 = scmp.eq.s32.totalorder %s18, 0
    %p45 = por %p43, %p44
    %s46 = ssub.s32 %s12, %s19
    %p47 = scmp.eq.s32.totalorder %s46, 0
    %s49 = sadd.s32 %s48, 1
    %s50 = scalar_select %p47, %s48, %s49
    %p53 = pneg %p47
    %p54 = scmp.eq.s32.totalorder %s12, 1
    %p55 = por %p53, %p54
    %p56 = scmp.ne.s32.totalorder %s48, %s51
    %p57 = scmp.eq.s32.totalorder %s12, 0
    %p58 = por %p56, %p57
    %p59 = scmp.ne.s32.totalorder %s48, %s51
    %p60 = scmp.eq.s32.totalorder %s17, 1
    %p61 = por %p59, %p60
    %p62 = scmp.ne.s32.totalorder %s51, %s52
    %p63 = scmp.eq.s32.totalorder %s17, 0
    %p64 = por %p62, %p63
    %p65 = scmp.ne.s32.totalorder %s51, %s52
    %p66 = scmp.eq.s32.totalorder %s18, 1
    %p67 = por %p65, %p66
    %p69 = scmp.ne.s32.totalorder %s52, %s68
    %p70 = scmp.eq.s32.totalorder %s18, 0
    %p71 = por %p69, %p70
    %s72 = ssub.s32 %s12, %s19
    %p73 = scmp.eq.s32.totalorder %s72, 0
    %s75 = sadd.s32 %s74, 1
    %s76 = scalar_select %p73, %s74, %s75
    %p79 = pneg %p73
    %p80 = scmp.eq.s32.totalorder %s12, 1
    %p81 = por %p79, %p80
    %p82 = scmp.ne.s32.totalorder %s74, %s77
    %p83 = scmp.eq.s32.totalorder %s12, 0
    %p84 = por %p82, %p83
    %p85 = scmp.ne.s32.totalorder %s74, %s77
    %p86 = scmp.eq.s32.totalorder %s17, 1
    %p87 = por %p85, %p86
    %p88 = scmp.ne.s32.totalorder %s77, %s78
    %p89 = scmp.eq.s32.totalorder %s17, 0
    %p90 = por %p88, %p89
    %p91 = scmp.ne.s32.totalorder %s77, %s78
    %p92 = scmp.eq.s32.totalorder %s18, 1
    %p93 = por %p91, %p92
    %p95 = scmp.ne.s32.totalorder %s78, %s94
    %p96 = scmp.eq.s32.totalorder %s18, 0
    %p97 = por %p95, %p96
    %s98 = ssub.s32 %s12, %s19
    %p99 = scmp.eq.s32.totalorder %s98, 0
    %s101 = sadd.s32 %s100, 1
    %s102 = scalar_select %p99, %s100, %s101
    %p105 = pneg %p99
    %p106 = scmp.eq.s32.totalorder %s12, 1
    %p107 = por %p105, %p106
    %p108 = scmp.ne.s32.totalorder %s100, %s103
    %p109 = scmp.eq.s32.totalorder %s12, 0
    %p110 = por %p108, %p109
    %p111 = scmp.ne.s32.totalorder %s100, %s103
    %p112 = scmp.eq.s32.totalorder %s17, 1
    %p113 = por %p111, %p112
    %p114 = scmp.ne.s32.totalorder %s103, %s104
    %p115 = scmp.eq.s32.totalorder %s17, 0
    %p116 = por %p114, %p115
    %p117 = scmp.ne.s32.totalorder %s103, %s104
    %p118 = scmp.eq.s32.totalorder %s18, 1
    %p119 = por %p117, %p118
    %p121 = scmp.ne.s32.totalorder %s104, %s120
    %p122 = scmp.eq.s32.totalorder %s18, 0
    %p123 = por %p121, %p122
    %s125 = sadd.s32 %s124, 1
    %p128 = scmp.eq.s32.totalorder %s12, 1
    %p129 = scmp.ne.s32.totalorder %s124, %s126
    %p130 = scmp.eq.s32.totalorder %s12, 0
    %p131 = por %p129, %p130
    %p132 = scmp.ne.s32.totalorder %s124, %s126
    %p133 = scmp.eq.s32.totalorder %s17, 1
    %p134 = por %p132, %p133
    %p135 = scmp.ne.s32.totalorder %s126, %s127
    %p136 = scmp.eq.s32.totalorder %s17, 0
    %p137 = por %p135, %p136
    %p138 = scmp.ne.s32.totalorder %s126, %s127
    %p139 = scmp.eq.s32.totalorder %s18, 1
    %p140 = por %p138, %p139
    %p142 = scmp.ne.s32.totalorder %s127, %s141
    %p143 = scmp.eq.s32.totalorder %s18, 0
    %p144 = por %p142, %p143
    %s146 = sadd.s32 %s145, 1
    %p149 = scmp.eq.s32.totalorder %s12, 1
    %p150 = scmp.ne.s32.totalorder %s145, %s147
    %p151 = scmp.eq.s32.totalorder %s12, 0
    %p152 = por %p150, %p151
    %p153 = scmp.ne.s32.totalorder %s145, %s147
    %p154 = scmp.eq.s32.totalorder %s17, 1
    %p155 = por %p153, %p154
    %p156 = scmp.ne.s32.totalorder %s147, %s148
    %p157 = scmp.eq.s32.totalorder %s17, 0
    %p158 = por %p156, %p157
    %p159 = scmp.ne.s32.totalorder %s147, %s148
    %p160 = scmp.eq.s32.totalorder %s18, 1
    %p161 = por %p159, %p160
    %p163 = scmp.ne.s32.totalorder %s148, %s162
    %p164 = scmp.eq.s32.totalorder %s18, 0
    %p165 = por %p163, %p164
    %s166 = ssub.s32 %s12, %s19
    %p167 = scmp.eq.s32.totalorder %s166, 0
    %s169 = sadd.s32 %s168, 1
    %s170 = scalar_select %p167, %s168, %s169
    %p173 = pneg %p167
    %p174 = scmp.eq.s32.totalorder %s12, 1
    %p175 = por %p173, %p174
    %p176 = scmp.ne.s32.totalorder %s168, %s171
    %p177 = scmp.eq.s32.totalorder %s12, 0
    %p178 = por %p176, %p177
    %p179 = scmp.ne.s32.totalorder %s168, %s171
    %p180 = scmp.eq.s32.totalorder %s17, 1
    %p181 = por %p179, %p180
    %p182 = scmp.ne.s32.totalorder %s171, %s172
    %p183 = scmp.eq.s32.totalorder %s17, 0
    %p184 = por %p182, %p183
    %p185 = scmp.ne.s32.totalorder %s171, %s172
    %p186 = scmp.eq.s32.totalorder %s18, 1
    %p187 = por %p185, %p186
    %p189 = scmp.ne.s32.totalorder %s172, %s188
    %p190 = scmp.eq.s32.totalorder %s18, 0
    %p191 = por %p189, %p190
    %p192 = scmp.le.s32.totalorder 1, %s12
    %p193 = scmp.lt.s32.totalorder %s12, 3
    %p194 = pnand %p192, %p193
    %p195 = pneg %p194
    // Predicated region
    $region9: #{dqn_forward.4} parent=5 // pred_check
      _
    $region10: #{dqn_forward.4} parent=5 // pred_check_branch
      %197 = sbr.rel (%p194) target = $region12
    $region11: #{dqn_forward.4} parent=5 // pred_region
      %s198 = ssub.s32 %s12, 1
      // Predicated region
      $region13: #{dqn_forward.4} parent=11 // pred_check
        %p199 = pneg %p137
      $region14: #{dqn_forward.4} parent=11 // pred_check_branch
        %201 = sbr.rel (%p199) target = $region16
      $region15: #{dqn_forward.4} parent=11 // pred_region
        _
      $region16: #{dqn_forward.4} parent=11 // pred_fallthru
        _
      // Predicated region
      $region17: #{dqn_forward.4} parent=11 // pred_check
        %p202 = pneg %p158
      $region18: #{dqn_forward.4} parent=11 // pred_check_branch
        %204 = sbr.rel (%p202) target = $region20
      $region19: #{dqn_forward.4} parent=11 // pred_region
        _
      $region20: #{dqn_forward.4} parent=11 // pred_fallthru
        _
    $region12: #{dqn_forward.4} parent=5 // pred_fallthru
      _
    %p205 = scmp.lt.s32.totalorder %s12, 2
    // Predicated region
    $region21: #{dqn_forward.4} parent=5 // pred_check
      %p206 = pneg %p205
    $region22: #{dqn_forward.4} parent=5 // pred_check_branch
      %208 = sbr.rel (%p206) target = $region24
    $region23: #{dqn_forward.4} parent=5 // pred_region
      // Predicated region
      $region25: #{dqn_forward.4} parent=23 // pred_check
        %p209 = pneg %p32
      $region26: #{dqn_forward.4} parent=23 // pred_check_branch
        %211 = sbr.rel (%p209) target = $region28
      $region27: #{dqn_forward.4} parent=23 // pred_region
        %p212 = scmp.lt.s32.totalorder %s12, 1
        %s213 = scalar_select %p212, %s12, 1
        %s214 = smul.addr %s213, 26
        %s215 = smul.addr %s214, 8
        %s216 = scalar_lea.vmem %s0, %s215
      $region28: #{dqn_forward.4} parent=23 // pred_fallthru
        _
      // Predicated region
      $region29: #{dqn_forward.4} parent=23 // pred_check
        %p217 = pneg %p58
      $region30: #{dqn_forward.4} parent=23 // pred_check_branch
        %219 = sbr.rel (%p217) target = $region32
      $region31: #{dqn_forward.4} parent=23 // pred_region
        %p220 = scmp.lt.s32.totalorder %s12, 1
        %s221 = scalar_select %p220, %s12, 1
        %s222 = smul.addr %s221, 26
        %s223 = smul.addr %s222, 8
        %s224 = scalar_lea.vmem %s1, %s223
      $region32: #{dqn_forward.4} parent=23 // pred_fallthru
        _
      // Predicated region
      $region33: #{dqn_forward.4} parent=23 // pred_check
        %p225 = pneg %p84
      $region34: #{dqn_forward.4} parent=23 // pred_check_branch
        %227 = sbr.rel (%p225) target = $region36
      $region35: #{dqn_forward.4} parent=23 // pred_region
        %p228 = scmp.lt.s32.totalorder %s12, 1
        %s229 = scalar_select %p228, %s12, 1
        %s230 = smul.addr %s229, 26
        %s231 = smul.addr %s230, 8
        %s232 = scalar_lea.vmem %s2, %s231
      $region36: #{dqn_forward.4} parent=23 // pred_fallthru
        _
      // Predicated region
      $region37: #{dqn_forward.4} parent=23 // pred_check
        %p233 = pneg %p110
      $region38: #{dqn_forward.4} parent=23 // pred_check_branch
        %235 = sbr.rel (%p233) target = $region40
      $region39: #{dqn_forward.4} parent=23 // pred_region
        %p236 = scmp.lt.s32.totalorder %s12, 1
        %s237 = scalar_select %p236, %s12, 1
        %s238 = smul.addr %s237, 26
        %s239 = smul.addr %s238, 8
        %s240 = scalar_lea.vmem %s3, %s239
      $region40: #{dqn_forward.4} parent=23 // pred_fallthru
        _
    $region24: #{dqn_forward.4} parent=5 // pred_fallthru
      _
    %p241 = scmp.le.s32.totalorder 1, %s12
    %p242 = scmp.lt.s32.totalorder %s12, 3
    %p243 = pnand %p241, %p242
    %p244 = pneg %p243
    // Predicated region
    $region41: #{dqn_forward.4} parent=5 // pred_check
      _
    $region42: #{dqn_forward.4} parent=5 // pred_check_branch
      %246 = sbr.rel (%p243) target = $region44
    $region43: #{dqn_forward.4} parent=5 // pred_region
      %s247 = ssub.s32 %s12, 1
      %p248 = scmp.lt.s32.totalorder %s17, 1
      %s249 = scalar_select %p248, %s17, 1
      %s250 = smul.addr %s249, 26
      %s251 = smul.addr %s250, 8
      %s252 = scalar_lea.vmem %s0, %s251
      %p253 = pneg %p38
      %p254 = pneg %p35
      %p255 = scmp.lt.s32.totalorder %s17, 1
      %s256 = scalar_select %p255, %s17, 1
      %s257 = smul.addr %s256, 26
      %s258 = smul.addr %s257, 8
      %s259 = scalar_lea.vmem %s1, %s258
      %p260 = pneg %p64
      %p261 = pneg %p61
      %p262 = scmp.lt.s32.totalorder %s17, 1
      %s263 = scalar_select %p262, %s17, 1
      %s264 = smul.addr %s263, 26
      %s265 = smul.addr %s264, 8
      %s266 = scalar_lea.vmem %s2, %s265
      %p267 = pneg %p90
      %p268 = pneg %p87
      %p269 = scmp.lt.s32.totalorder %s17, 1
      %s270 = scalar_select %p269, %s17, 1
      %s271 = smul.addr %s270, 26
      %s272 = smul.addr %s271, 8
      %s273 = scalar_lea.vmem %s3, %s272
      %p274 = pneg %p116
      %p275 = pneg %p113
      %p276 = pneg %p137
      %p277 = pneg %p134
      %p278 = pneg %p158
      %p279 = pneg %p155
      %p280 = pneg %p184
      %p281 = pneg %p181
      %p282 = scmp.lt.s32.totalorder %s17, 1
      %s283 = scalar_select %p282, %s17, 1
      %s284 = smul.addr %s283, 13
      %s285 = smul.addr %s284, 8
      %s286 = scalar_lea.vmem %s6, %s285
      %p287 = scmp.lt.s32.totalorder %s17, 1
      %s288 = scalar_select %p287, %s17, 1
      %s289 = smul.addr %s288, 26
      %s290 = smul.addr %s289, 8
      %s291 = scalar_lea.vmem %s0, %s290
      %p292 = scmp.lt.s32.totalorder %s17, 1
      %s293 = scalar_select %p292, %s17, 1
      %s294 = smul.addr %s293, 26
      %s295 = smul.addr %s294, 8
      %s296 = scalar_lea.vmem %s1, %s295
      %p297 = scmp.lt.s32.totalorder %s17, 1
      %s298 = scalar_select %p297, %s17, 1
      %s299 = smul.addr %s298, 26
      %s300 = smul.addr %s299, 8
      %s301 = scalar_lea.vmem %s2, %s300
      %p302 = scmp.lt.s32.totalorder %s17, 1
      %s303 = scalar_select %p302, %s17, 1
      %s304 = smul.addr %s303, 26
      %s305 = smul.addr %s304, 8
      %s306 = scalar_lea.vmem %s3, %s305
      %p307 = scmp.lt.s32.totalorder %s17, 1
      %s308 = scalar_select %p307, %s17, 1
      %s309 = smul.addr %s308, 13
      %s310 = smul.addr %s309, 8
      %s311 = scalar_lea.vmem %s6, %s310
      %v312 = vld [vmem:[%s4] sm:$0xff]
      %v313 = vld [vmem:[%s4 + $0x8] sm:$0xff]
      %v314 = vld [vmem:[%s4 + $0x10] sm:$0xff]
      %v315 = vld [vmem:[%s4 + $0x18] sm:$0xff]
      %v316 = vld [vmem:[%s4 + $0x20] sm:$0xff]
      %v317 = vld [vmem:[%s4 + $0x28] sm:$0xff]
      %v318 = vld [vmem:[%s4 + $0x30] sm:$0xff]
      %v319 = vld [vmem:[%s4 + $0x38] sm:$0xff]
      %v320 = vld [vmem:[%s4 + $0x40] sm:$0xff]
      %v321 = vld [vmem:[%s4 + $0x48] sm:$0xff]
      %v322 = vld [vmem:[%s4 + $0x50] sm:$0xff]
      %v323 = vld [vmem:[%s4 + $0x58] sm:$0xff]
      %v324 = vld [vmem:[%s4 + $0x60] sm:$0xff]
      %v325 = vld [vmem:[%s4 + $0x68] sm:$0xff]
      %v326 = vld [vmem:[%s4 + $0x70] sm:$0xff]
      %v327 = vld [vmem:[%s4 + $0x78] sm:$0xff]
      %v328 = vld [vmem:[%s4 + $0x80] sm:$0xff]
      %v329 = vld [vmem:[%s4 + $0x88] sm:$0xff]
      %v330 = vld [vmem:[%s291] sm:$0xff]
      %v331 = vld [vmem:[%s291 + $0x8] sm:$0xff]
      %v332 = vld [vmem:[%s291 + $0x10] sm:$0xff]
      %v333 = vld [vmem:[%s291 + $0x18] sm:$0xff]
      %v334 = vld [vmem:[%s291 + $0x20] sm:$0xff]
      %v335 = vld [vmem:[%s291 + $0x28] sm:$0xff]
      %v336 = vld [vmem:[%s291 + $0x30] sm:$0xff]
      %v337 = vld [vmem:[%s291 + $0x38] sm:$0xff]
      %v338 = vld [vmem:[%s291 + $0x40] sm:$0xff]
      %v339 = vld [vmem:[%s291 + $0x48] sm:$0xff]
      %v340 = vld [vmem:[%s291 + $0x50] sm:$0xff]
      %v341 = vld [vmem:[%s291 + $0x58] sm:$0xff]
      %v342 = vld [vmem:[%s291 + $0x60] sm:$0xff]
      %v343 = vld [vmem:[%s291 + $0x68] sm:$0xff]
      %v344 = vld [vmem:[%s291 + $0x70] sm:$0xff]
      %v345 = vld [vmem:[%s291 + $0x78] sm:$0xff]
      %v346 = vld [vmem:[%s291 + $0x80] sm:$0xff]
      %v347 = vld [vmem:[%s291 + $0x88] sm:$0xff]
      %v348 = vld [vmem:[%s291 + $0x90] sm:$0xff]
      %v349 = vld [vmem:[%s291 + $0x98] sm:$0xff]
      %v350 = vld [vmem:[%s291 + $0xa0] sm:$0xff]
      %v351 = vld [vmem:[%s291 + $0xa8] sm:$0xff]
      %v352 = vld [vmem:[%s291 + $0xb0] sm:$0xff]
      %v353 = vld [vmem:[%s291 + $0xb8] sm:$0xff]
      %v354 = vld [vmem:[%s291 + $0xc0] sm:$0xf]
      %v355 = vld [vmem:[%s291 + $0xc8] sm:$0xf]
      %vm356 = vcmask 130048
      %v358 = vsel %vm356, %v331, 0
      %v361 = vsel %vm356, %v333, 0
      %v364 = vsel %vm356, %v335, 0
      %v367 = vsel %vm356, %v337, 0
      %v370 = vsel %vm356, %v339, 0
      %v373 = vsel %vm356, %v341, 0
      %v376 = vsel %vm356, %v343, 0
      %v379 = vsel %vm356, %v345, 0
      %v382 = vsel %vm356, %v347, 0
      %v385 = vsel %vm356, %v349, 0
      %v388 = vsel %vm356, %v351, 0
      %v391 = vsel %vm356, %v353, 0
      %v394 = vsel %vm356, %v355, 0
      %396 = vmatprep.subr.mxu0 0.0
      %397 = vmatpush1.msra.mxu0 %v312
      %398 = vmatprep.subr.mxu0 0.0
      %399 = vmatpush1.msra.mxu0 %v313
      %400 = vmatprep.subr.mxu0 0.0
      %401 = vmatpush1.msra.mxu0 %v314
      %402 = vmatprep.subr.mxu0 0.0
      %403 = vmatpush1.msra.mxu0 %v315
      %404 = vmatprep.subr.mxu0 0.0
      %405 = vmatpush1.msra.mxu0 %v316
      %406 = vmatprep.subr.mxu0 0.0
      %407 = vmatpush1.msra.mxu0 %v317
      %408 = vmatprep.subr.mxu0 0.0
      %409 = vmatpush1.msra.mxu0 %v318
      %410 = vmatprep.subr.mxu0 0.0
      %411 = vmatpush1.msra.mxu0 %v319
      %412 = vmatprep.subr.mxu0 0.0
      %413 = vmatpush1.msra.mxu0 %v320
      %414 = vmatprep.subr.mxu0 0.0
      %415 = vmatpush1.msra.mxu0 %v321
      %416 = vmatprep.subr.mxu0 0.0
      %417 = vmatpush1.msra.mxu0 %v322
      %418 = vmatprep.subr.mxu0 0.0
      %419 = vmatpush1.msra.mxu0 %v323
      %420 = vmatprep.subr.mxu0 0.0
      %421 = vmatpush1.msra.mxu0 %v324
      %422 = vmatprep.subr.mxu0 0.0
      %423 = vmatpush1.msra.mxu0 %v325
      %424 = vmatprep.subr.mxu0 0.0
      %425 = vmatpush1.msra.mxu0 %v326
      %426 = vmatprep.subr.mxu0 0.0
      %427 = vmatpush1.msra.mxu0 %v327
      %428 = vmatprep.subr.mxu0 0.0
      %429 = vmatpush1.msra.mxu0 %v328
      %430 = vmatprep.subr.mxu0 0.0
      %431 = vmatpush1.msra.mxu0 %v329
      %432 = vmatprep.subr.mxu0 0.0
      %433 = vmatpush1.msra.mxu0 0.0
      %434 = vmatprep.subr.mxu0 0.0
      %435 = vmatpush1.msra.mxu0 0.0
      %436 = vmatprep.subr.mxu0 0.0
      %437 = vmatpush1.msra.mxu0 0.0
      %438 = vmatprep.subr.mxu0 0.0
      %439 = vmatpush1.msra.mxu0 0.0
      %440 = vmatprep.subr.mxu0 0.0
      %441 = vmatpush1.msra.mxu0 0.0
      %442 = vmatprep.subr.mxu0 0.0
      %443 = vmatpush1.msra.mxu0 0.0
      %444 = vmatprep.subr.mxu0 0.0
      %445 = vmatpush1.msra.mxu0 0.0
      %446 = vmatprep.subr.mxu0 0.0
      %447 = vmatpush1.msra.mxu0 0.0
      %448 = vmatprep.subr.mxu0 0.0
      %449 = vmatpush1.msra.mxu0 0.0
      %450 = vmatprep.subr.mxu0 0.0
      %451 = vmatpush1.msra.mxu0 0.0
      %452 = vmatprep.subr.mxu0 0.0
      %453 = vmatpush1.msra.mxu0 0.0
      %454 = vmatprep.subr.mxu0 0.0
      %455 = vmatpush1.msra.mxu0 0.0
      %456 = vmatprep.subr.mxu0 0.0
      %457 = vmatpush1.msra.mxu0 0.0
      %458 = vmatprep.subr.mxu0 0.0
      %459 = vmatpush1.msra.mxu0 0.0
      %460 = vmatprep.mubr.f32.mxu0 %v358
      %461 = vmatmul.mubr.f32.gmra.mrb[0].mxu0 %v330
      %v462 = vpop.f32.mrb[0].mxu0
      %v463 = vadd.f32 0.0, %v462
      %v464 = vpop.f32.mrb[0].mxu0
      %465 = vmatprep.mubr.f32.mxu0 %v361
      %466 = vmatmul.mubr.f32.gmra.mrb[0].mxu0 %v332
      %v467 = vpop.f32.mrb[0].mxu0
      %v468 = vadd.f32 0.0, %v467
      %v469 = vpop.f32.mrb[0].mxu0
      %470 = vmatprep.mubr.f32.mxu0 %v364
      %471 = vmatmul.mubr.f32.gmra.mrb[0].mxu0 %v334
      %v472 = vpop.f32.mrb[0].mxu0
      %v473 = vadd.f32 0.0, %v472
      %v474 = vpop.f32.mrb[0].mxu0
      %475 = vmatprep.mubr.f32.mxu0 %v367
      %476 = vmatmul.mubr.f32.gmra.mrb[0].mxu0 %v336
      %v477 = vpop.f32.mrb[0].mxu0
      %v478 = vadd.f32 0.0, %v477
      %v479 = vpop.f32.mrb[0].mxu0
      %480 = vmatprep.mubr.f32.mxu0 %v370
      %481 = vmatmul.mubr.f32.gmra.mrb[0].mxu0 %v338
      %v482 = vpop.f32.mrb[0].mxu0
      %v483 = vadd.f32 0.0, %v482
      %v484 = vpop.f32.mrb[0].mxu0
      %485 = vmatprep.mubr.f32.mxu0 %v373
      %486 = vmatmul.mubr.f32.gmra.mrb[0].mxu0 %v340
      %v487 = vpop.f32.mrb[0].mxu0
      %v488 = vadd.f32 0.0, %v487
      %v489 = vpop.f32.mrb[0].mxu0
      %490 = vmatprep.mubr.f32.mxu0 %v376
      %491 = vmatmul.mubr.f32.gmra.mrb[0].mxu0 %v342
      %v492 = vpop.f32.mrb[0].mxu0
      %v493 = vadd.f32 0.0, %v492
      %v494 = vpop.f32.mrb[0].mxu0
      %495 = vmatprep.mubr.f32.mxu0 %v379
      %496 = vmatmul.mubr.f32.gmra.mrb[0].mxu0 %v344
      %v497 = vpop.f32.mrb[0].mxu0
      %v498 = vadd.f32 0.0, %v497
      %v499 = vpop.f32.mrb[0].mxu0
      %500 = vmatprep.mubr.f32.mxu0 %v382
      %501 = vmatmul.mubr.f32.gmra.mrb[0].mxu0 %v346
      %v502 = vpop.f32.mrb[0].mxu0
      %v503 = vadd.f32 0.0, %v502
      %v504 = vpop.f32.mrb[0].mxu0
      %505 = vmatprep.mubr.f32.mxu0 %v385
      %506 = vmatmul.mubr.f32.gmra.mrb[0].mxu0 %v348
      %v507 = vpop.f32.mrb[0].mxu0
      %v508 = vadd.f32 0.0, %v507
      %v509 = vpop.f32.mrb[0].mxu0
      %510 = vmatprep.mubr.f32.mxu0 %v388
      %511 = vmatmul.mubr.f32.gmra.mrb[0].mxu0 %v350
      %v512 = vpop.f32.mrb[0].mxu0
      %v513 = vadd.f32 0.0, %v512
      %v514 = vpop.f32.mrb[0].mxu0
      %515 = vmatprep.mubr.f32.mxu0 %v391
      %516 = vmatmul.mubr.f32.gmra.mrb[0].mxu0 %v352
      %v517 = vpop.f32.mrb[0].mxu0
      %v518 = vadd.f32 0.0, %v517
      %v519 = vpop.f32.mrb[0].mxu0
      %520 = vmatprep.mubr.f32.mxu0 %v394
      %521 = vmatmul.mubr.f32.gmra.mrb[0].mxu0 %v354
      %v522 = vpop.f32.mrb[0].mxu0
      %v523 = vadd.f32 0.0, %v522
      %v524 = vpop.f32.mrb[0].mxu0
      %525 = vdwg.mxu0
      %v526 = vld [vmem:[%s296] sm:$0xff]
      %v527 = vld [vmem:[%s296 + $0x8] sm:$0xff]
      %v528 = vld [vmem:[%s296 + $0x10] sm:$0xff]
      %v529 = vld [vmem:[%s296 + $0x18] sm:$0xff]
      %v530 = vld [vmem:[%s296 + $0x20] sm:$0xff]
      %v531 = vld [vmem:[%s296 + $0x28] sm:$0xff]
      %v532 = vld [vmem:[%s296 + $0x30] sm:$0xff]
      %v533 = vld [vmem:[%s296 + $0x38] sm:$0xff]
      %v534 = vld [vmem:[%s296 + $0x40] sm:$0xff]
      %v535 = vld [vmem:[%s296 + $0x48] sm:$0xff]
      %v536 = vld [vmem:[%s296 + $0x50] sm:$0xff]
      %v537 = vld [vmem:[%s296 + $0x58] sm:$0xff]
      %v538 = vld [vmem:[%s296 + $0x60] sm:$0xff]
      %v539 = vld [vmem:[%s296 + $0x68] sm:$0xff]
      %v540 = vld [vmem:[%s296 + $0x70] sm:$0xff]
      %v541 = vld [vmem:[%s296 + $0x78] sm:$0xff]
      %v542 = vld [vmem:[%s296 + $0x80] sm:$0xff]
      %v543 = vld [vmem:[%s296 + $0x88] sm:$0xff]
      %v544 = vld [vmem:[%s296 + $0x90] sm:$0xff]
      %v545 = vld [vmem:[%s296 + $0x98] sm:$0xff]
      %v546 = vld [vmem:[%s296 + $0xa0] sm:$0xff]
      %v547 = vld [vmem:[%s296 + $0xa8] sm:$0xff]
      %v548 = vld [vmem:[%s296 + $0xb0] sm:$0xff]
      %v549 = vld [vmem:[%s296 + $0xb8] sm:$0xff]
      %v550 = vld [vmem:[%s296 + $0xc0] sm:$0xf]
      %v551 = vld [vmem:[%s296 + $0xc8] sm:$0xf]
      %v553 = vsel %vm356, %v527, 0
      %v556 = vsel %vm356, %v529, 0
      %v559 = vsel %vm356, %v531, 0
      %v562 = vsel %vm356, %v533, 0
      %v565 = vsel %vm356, %v535, 0
      %v568 = vsel %vm356, %v537, 0
      %v571 = vsel %vm356, %v539, 0
      %v574 = vsel %vm356, %v541, 0
      %v577 = vsel %vm356, %v543, 0
      %v580 = vsel %vm356, %v545, 0
      %v583 = vsel %vm356, %v547, 0
      %v586 = vsel %vm356, %v549, 0
      %v589 = vsel %vm356, %v551, 0
      %591 = vmatprep.subr.mxu0 0.0
      %592 = vmatpush1.msra.mxu0 %v312
      %593 = vmatprep.subr.mxu0 0.0
      %594 = vmatpush1.msra.mxu0 %v313
      %595 = vmatprep.subr.mxu0 0.0
      %596 = vmatpush1.msra.mxu0 %v314
      %597 = vmatprep.subr.mxu0 0.0
      %598 = vmatpush1.msra.mxu0 %v315
      %599 = vmatprep.subr.mxu0 0.0
      %600 = vmatpush1.msra.mxu0 %v316
      %601 = vmatprep.subr.mxu0 0.0
      %602 = vmatpush1.msra.mxu0 %v317
      %603 = vmatprep.subr.mxu0 0.0
      %604 = vmatpush1.msra.mxu0 %v318
      %605 = vmatprep.subr.mxu0 0.0
      %606 = vmatpush1.msra.mxu0 %v319
      %607 = vmatprep.subr.mxu0 0.0
      %608 = vmatpush1.msra.mxu0 %v320
      %609 = vmatprep.subr.mxu0 0.0
      %610 = vmatpush1.msra.mxu0 %v321
      %611 = vmatprep.subr.mxu0 0.0
      %612 = vmatpush1.msra.mxu0 %v322
      %613 = vmatprep.subr.mxu0 0.0
      %614 = vmatpush1.msra.mxu0 %v323
      %615 = vmatprep.subr.mxu0 0.0
      %616 = vmatpush1.msra.mxu0 %v324
      %617 = vmatprep.subr.mxu0 0.0
      %618 = vmatpush1.msra.mxu0 %v325
      %619 = vmatprep.subr.mxu0 0.0
      %620 = vmatpush1.msra.mxu0 %v326
      %621 = vmatprep.subr.mxu0 0.0
      %622 = vmatpush1.msra.mxu0 %v327
      %623 = vmatprep.subr.mxu0 0.0
      %624 = vmatpush1.msra.mxu0 %v328
      %625 = vmatprep.subr.mxu0 0.0
      %626 = vmatpush1.msra.mxu0 %v329
      %627 = vmatprep.subr.mxu0 0.0
      %628 = vmatpush1.msra.mxu0 0.0
      %629 = vmatprep.subr.mxu0 0.0
      %630 = vmatpush1.msra.mxu0 0.0
      %631 = vmatprep.subr.mxu0 0.0
      %632 = vmatpush1.msra.mxu0 0.0
      %633 = vmatprep.subr.mxu0 0.0
      %634 = vmatpush1.msra.mxu0 0.0
      %635 = vmatprep.subr.mxu0 0.0
      %636 = vmatpush1.msra.mxu0 0.0
      %637 = vmatprep.subr.mxu0 0.0
      %638 = vmatpush1.msra.mxu0 0.0
      %639 = vmatprep.subr.mxu0 0.0
      %640 = vmatpush1.msra.mxu0 0.0
      %641 = vmatprep.subr.mxu0 0.0
      %642 = vmatpush1.msra.mxu0 0.0
      %643 = vmatprep.subr.mxu0 0.0
      %644 = vmatpush1.msra.mxu0 0.0
      %645 = vmatprep.subr.mxu0 0.0
      %646 = vmatpush1.msra.mxu0 0.0
      %647 = vmatprep.subr.mxu0 0.0
      %648 = vmatpush1.msra.mxu0 0.0
      %649 = vmatprep.subr.mxu0 0.0
      %650 = vmatpush1.msra.mxu0 0.0
      %651 = vmatprep.subr.mxu0 0.0
      %652 = vmatpush1.msra.mxu0 0.0
      %653 = vmatprep.subr.mxu0 0.0
      %654 = vmatpush1.msra.mxu0 0.0
      %655 = vmatprep.mubr.f32.mxu0 %v553
      %656 = vmatmul.mubr.f32.gmra.mrb[0].mxu0 %v526
      %v657 = vpop.f32.mrb[0].mxu0
      %v658 = vadd.f32 0.0, %v657
      %v659 = vpop.f32.mrb[0].mxu0
      %660 = vmatprep.mubr.f32.mxu0 %v556
      %661 = vmatmul.mubr.f32.gmra.mrb[0].mxu0 %v528
      %v662 = vpop.f32.mrb[0].mxu0
      %v663 = vadd.f32 0.0, %v662
      %v664 = vpop.f32.mrb[0].mxu0
      %665 = vmatprep.mubr.f32.mxu0 %v559
      %666 = vmatmul.mubr.f32.gmra.mrb[0].mxu0 %v530
      %v667 = vpop.f32.mrb[0].mxu0
      %v668 = vadd.f32 0.0, %v667
      %v669 = vpop.f32.mrb[0].mxu0
      %670 = vmatprep.mubr.f32.mxu0 %v562
      %671 = vmatmul.mubr.f32.gmra.mrb[0].mxu0 %v532
      %v672 = vpop.f32.mrb[0].mxu0
      %v673 = vadd.f32 0.0, %v672
      %v674 = vpop.f32.mrb[0].mxu0
      %675 = vmatprep.mubr.f32.mxu0 %v565
      %676 = vmatmul.mubr.f32.gmra.mrb[0].mxu0 %v534
      %v677 = vpop.f32.mrb[0].mxu0
      %v678 = vadd.f32 0.0, %v677
      %v679 = vpop.f32.mrb[0].mxu0
      %680 = vmatprep.mubr.f32.mxu0 %v568
      %681 = vmatmul.mubr.f32.gmra.mrb[0].mxu0 %v536
      %v682 = vpop.f32.mrb[0].mxu0
      %v683 = vadd.f32 0.0, %v682
      %v684 = vpop.f32.mrb[0].mxu0
      %685 = vmatprep.mubr.f32.mxu0 %v571
      %686 = vmatmul.mubr.f32.gmra.mrb[0].mxu0 %v538
      %v687 = vpop.f32.mrb[0].mxu0
      %v688 = vadd.f32 0.0, %v687
      %v689 = vpop.f32.mrb[0].mxu0
      %690 = vmatprep.mubr.f32.mxu0 %v574
      %691 = vmatmul.mubr.f32.gmra.mrb[0].mxu0 %v540
      %v692 = vpop.f32.mrb[0].mxu0
      %v693 = vadd.f32 0.0, %v692
      %v694 = vpop.f32.mrb[0].mxu0
      %695 = vmatprep.mubr.f32.mxu0 %v577
      %696 = vmatmul.mubr.f32.gmra.mrb[0].mxu0 %v542
      %v697 = vpop.f32.mrb[0].mxu0
      %v698 = vadd.f32 0.0, %v697
      %v699 = vpop.f32.mrb[0].mxu0
      %700 = vmatprep.mubr.f32.mxu0 %v580
      %701 = vmatmul.mubr.f32.gmra.mrb[0].mxu0 %v544
      %v702 = vpop.f32.mrb[0].mxu0
      %v703 = vadd.f32 0.0, %v702
      %v704 = vpop.f32.mrb[0].mxu0
      %705 = vmatprep.mubr.f32.mxu0 %v583
      %706 = vmatmul.mubr.f32.gmra.mrb[0].mxu0 %v546
      %v707 = vpop.f32.mrb[0].mxu0
      %v708 = vadd.f32 0.0, %v707
      %v709 = vpop.f32.mrb[0].mxu0
      %710 = vmatprep.mubr.f32.mxu0 %v586
      %711 = vmatmul.mubr.f32.gmra.mrb[0].mxu0 %v548
      %v712 = vpop.f32.mrb[0].mxu0
      %v713 = vadd.f32 0.0, %v712
      %v714 = vpop.f32.mrb[0].mxu0
      %715 = vmatprep.mubr.f32.mxu0 %v589
      %716 = vmatmul.mubr.f32.gmra.mrb[0].mxu0 %v550
      %v717 = vpop.f32.mrb[0].mxu0
      %v718 = vadd.f32 0.0, %v717
      %v719 = vpop.f32.mrb[0].mxu0
      %720 = vdwg.mxu0
      %v721 = vmax.f32 %v463, %v658
      %v722 = vmax.f32 %v468, %v663
      %v723 = vmax.f32 %v473, %v668
      %v724 = vmax.f32 %v478, %v673
      %v725 = vmax.f32 %v483, %v678
      %v726 = vmax.f32 %v488, %v683
      %v727 = vmax.f32 %v493, %v688
      %v728 = vmax.f32 %v498, %v693
      %v729 = vmax.f32 %v503, %v698
      %v730 = vmax.f32 %v508, %v703
      %v731 = vmax.f32 %v513, %v708
      %v732 = vmax.f32 %v518, %v713
      %v733 = vmax.f32 %v523, %v718
      %v734 = vld [vmem:[%s301] sm:$0xff]
      %v735 = vld [vmem:[%s301 + $0x8] sm:$0xff]
      %v736 = vld [vmem:[%s301 + $0x10] sm:$0xff]
      %v737 = vld [vmem:[%s301 + $0x18] sm:$0xff]
      %v738 = vld [vmem:[%s301 + $0x20] sm:$0xff]
      %v739 = vld [vmem:[%s301 + $0x28] sm:$0xff]
      %v740 = vld [vmem:[%s301 + $0x30] sm:$0xff]
      %v741 = vld [vmem:[%s301 + $0x38] sm:$0xff]
      %v742 = vld [vmem:[%s301 + $0x40] sm:$0xff]
      %v743 = vld [vmem:[%s301 + $0x48] sm:$0xff]
      %v744 = vld [vmem:[%s301 + $0x50] sm:$0xff]
      %v745 = vld [vmem:[%s301 + $0x58] sm:$0xff]
      %v746 = vld [vmem:[%s301 + $0x60] sm:$0xff]
      %v747 = vld [vmem:[%s301 + $0x68] sm:$0xff]
      %v748 = vld [vmem:[%s301 + $0x70] sm:$0xff]
      %v749 = vld [vmem:[%s301 + $0x78] sm:$0xff]
      %v750 = vld [vmem:[%s301 + $0x80] sm:$0xff]
      %v751 = vld [vmem:[%s301 + $0x88] sm:$0xff]
      %v752 = vld [vmem:[%s301 + $0x90] sm:$0xff]
      %v753 = vld [vmem:[%s301 + $0x98] sm:$0xff]
      %v754 = vld [vmem:[%s301 + $0xa0] sm:$0xff]
      %v755 = vld [vmem:[%s301 + $0xa8] sm:$0xff]
      %v756 = vld [vmem:[%s301 + $0xb0] sm:$0xff]
      %v757 = vld [vmem:[%s301 + $0xb8] sm:$0xff]
      %v758 = vld [vmem:[%s301 + $0xc0] sm:$0xf]
      %v759 = vld [vmem:[%s301 + $0xc8] sm:$0xf]
      %v761 = vsel %vm356, %v735, 0
      %v764 = vsel %vm356, %v737, 0
      %v767 = vsel %vm356, %v739, 0
      %v770 = vsel %vm356, %v741, 0
      %v773 = vsel %vm356, %v743, 0
      %v776 = vsel %vm356, %v745, 0
      %v779 = vsel %vm356, %v747, 0
      %v782 = vsel %vm356, %v749, 0
      %v785 = vsel %vm356, %v751, 0
      %v788 = vsel %vm356, %v753, 0
      %v791 = vsel %vm356, %v755, 0
      %v794 = vsel %vm356, %v757, 0
      %v797 = vsel %vm356, %v759, 0
      %799 = vmatprep.subr.mxu0 0.0
      %800 = vmatpush1.msra.mxu0 %v312
      %801 = vmatprep.subr.mxu0 0.0
      %802 = vmatpush1.msra.mxu0 %v313
      %803 = vmatprep.subr.mxu0 0.0
      %804 = vmatpush1.msra.mxu0 %v314
      %805 = vmatprep.subr.mxu0 0.0
      %806 = vmatpush1.msra.mxu0 %v315
      %807 = vmatprep.subr.mxu0 0.0
      %808 = vmatpush1.msra.mxu0 %v316
      %809 = vmatprep.subr.mxu0 0.0
      %810 = vmatpush1.msra.mxu0 %v317
      %811 = vmatprep.subr.mxu0 0.0
      %812 = vmatpush1.msra.mxu0 %v318
      %813 = vmatprep.subr.mxu0 0.0
      %814 = vmatpush1.msra.mxu0 %v319
      %815 = vmatprep.subr.mxu0 0.0
      %816 = vmatpush1.msra.mxu0 %v320
      %817 = vmatprep.subr.mxu0 0.0
      %818 = vmatpush1.msra.mxu0 %v321
      %819 = vmatprep.subr.mxu0 0.0
      %820 = vmatpush1.msra.mxu0 %v322
      %821 = vmatprep.subr.mxu0 0.0
      %822 = vmatpush1.msra.mxu0 %v323
      %823 = vmatprep.subr.mxu0 0.0
      %824 = vmatpush1.msra.mxu0 %v324
      %825 = vmatprep.subr.mxu0 0.0
      %826 = vmatpush1.msra.mxu0 %v325
      %827 = vmatprep.subr.mxu0 0.0
      %828 = vmatpush1.msra.mxu0 %v326
      %829 = vmatprep.subr.mxu0 0.0
      %830 = vmatpush1.msra.mxu0 %v327
      %831 = vmatprep.subr.mxu0 0.0
      %832 = vmatpush1.msra.mxu0 %v328
      %833 = vmatprep.subr.mxu0 0.0
      %834 = vmatpush1.msra.mxu0 %v329
      %835 = vmatprep.subr.mxu0 0.0
      %836 = vmatpush1.msra.mxu0 0.0
      %837 = vmatprep.subr.mxu0 0.0
      %838 = vmatpush1.msra.mxu0 0.0
      %839 = vmatprep.subr.mxu0 0.0
      %840 = vmatpush1.msra.mxu0 0.0
      %841 = vmatprep.subr.mxu0 0.0
      %842 = vmatpush1.msra.mxu0 0.0
      %843 = vmatprep.subr.mxu0 0.0
      %844 = vmatpush1.msra.mxu0 0.0
      %845 = vmatprep.subr.mxu0 0.0
      %846 = vmatpush1.msra.mxu0 0.0
      %847 = vmatprep.subr.mxu0 0.0
      %848 = vmatpush1.msra.mxu0 0.0
      %849 = vmatprep.subr.mxu0 0.0
      %850 = vmatpush1.msra.mxu0 0.0
      %851 = vmatprep.subr.mxu0 0.0
      %852 = vmatpush1.msra.mxu0 0.0
      %853 = vmatprep.subr.mxu0 0.0
      %854 = vmatpush1.msra.mxu0 0.0
      %855 = vmatprep.subr.mxu0 0.0
      %856 = vmatpush1.msra.mxu0 0.0
      %857 = vmatprep.subr.mxu0 0.0
      %858 = vmatpush1.msra.mxu0 0.0
      %859 = vmatprep.subr.mxu0 0.0
      %860 = vmatpush1.msra.mxu0 0.0
      %861 = vmatprep.subr.mxu0 0.0
      %862 = vmatpush1.msra.mxu0 0.0
      %863 = vmatprep.mubr.f32.mxu0 %v761
      %864 = vmatmul.mubr.f32.gmra.mrb[0].mxu0 %v734
      %v865 = vpop.f32.mrb[0].mxu0
      %v866 = vadd.f32 0.0, %v865
      %v867 = vpop.f32.mrb[0].mxu0
      %868 = vmatprep.mubr.f32.mxu0 %v764
      %869 = vmatmul.mubr.f32.gmra.mrb[0].mxu0 %v736
      %v870 = vpop.f32.mrb[0].mxu0
      %v871 = vadd.f32 0.0, %v870
      %v872 = vpop.f32.mrb[0].mxu0
      %873 = vmatprep.mubr.f32.mxu0 %v767
      %874 = vmatmul.mubr.f32.gmra.mrb[0].mxu0 %v738
      %v875 = vpop.f32.mrb[0].mxu0
      %v876 = vadd.f32 0.0, %v875
      %v877 = vpop.f32.mrb[0].mxu0
      %878 = vmatprep.mubr.f32.mxu0 %v770
      %879 = vmatmul.mubr.f32.gmra.mrb[0].mxu0 %v740
      %v880 = vpop.f32.mrb[0].mxu0
      %v881 = vadd.f32 0.0, %v880
      %v882 = vpop.f32.mrb[0].mxu0
      %883 = vmatprep.mubr.f32.mxu0 %v773
      %884 = vmatmul.mubr.f32.gmra.mrb[0].mxu0 %v742
      %v885 = vpop.f32.mrb[0].mxu0
      %v886 = vadd.f32 0.0, %v885
      %v887 = vpop.f32.mrb[0].mxu0
      %888 = vmatprep.mubr.f32.mxu0 %v776
      %889 = vmatmul.mubr.f32.gmra.mrb[0].mxu0 %v744
      %v890 = vpop.f32.mrb[0].mxu0
      %v891 = vadd.f32 0.0, %v890
      %v892 = vpop.f32.mrb[0].mxu0
      %893 = vmatprep.mubr.f32.mxu0 %v779
      %894 = vmatmul.mubr.f32.gmra.mrb[0].mxu0 %v746
      %v895 = vpop.f32.mrb[0].mxu0
      %v896 = vadd.f32 0.0, %v895
      %v897 = vpop.f32.mrb[0].mxu0
      %898 = vmatprep.mubr.f32.mxu0 %v782
      %899 = vmatmul.mubr.f32.gmra.mrb[0].mxu0 %v748
      %v900 = vpop.f32.mrb[0].mxu0
      %v901 = vadd.f32 0.0, %v900
      %v902 = vpop.f32.mrb[0].mxu0
      %903 = vmatprep.mubr.f32.mxu0 %v785
      %904 = vmatmul.mubr.f32.gmra.mrb[0].mxu0 %v750
      %v905 = vpop.f32.mrb[0].mxu0
      %v906 = vadd.f32 0.0, %v905
      %v907 = vpop.f32.mrb[0].mxu0
      %908 = vmatprep.mubr.f32.mxu0 %v788
      %909 = vmatmul.mubr.f32.gmra.mrb[0].mxu0 %v752
      %v910 = vpop.f32.mrb[0].mxu0
      %v911 = vadd.f32 0.0, %v910
      %v912 = vpop.f32.mrb[0].mxu0
      %913 = vmatprep.mubr.f32.mxu0 %v791
      %914 = vmatmul.mubr.f32.gmra.mrb[0].mxu0 %v754
      %v915 = vpop.f32.mrb[0].mxu0
      %v916 = vadd.f32 0.0, %v915
      %v917 = vpop.f32.mrb[0].mxu0
      %918 = vmatprep.mubr.f32.mxu0 %v794
      %919 = vmatmul.mubr.f32.gmra.mrb[0].mxu0 %v756
      %v920 = vpop.f32.mrb[0].mxu0
      %v921 = vadd.f32 0.0, %v920
      %v922 = vpop.f32.mrb[0].mxu0
      %923 = vmatprep.mubr.f32.mxu0 %v797
      %924 = vmatmul.mubr.f32.gmra.mrb[0].mxu0 %v758
      %v925 = vpop.f32.mrb[0].mxu0
      %v926 = vadd.f32 0.0, %v925
      %v927 = vpop.f32.mrb[0].mxu0
      %928 = vdwg.mxu0
      %v929 = vld [vmem:[%s306] sm:$0xff]
      %v930 = vld [vmem:[%s306 + $0x8] sm:$0xff]
      %v931 = vld [vmem:[%s306 + $0x10] sm:$0xff]
      %v932 = vld [vmem:[%s306 + $0x18] sm:$0xff]
      %v933 = vld [vmem:[%s306 + $0x20] sm:$0xff]
      %v934 = vld [vmem:[%s306 + $0x28] sm:$0xff]
      %v935 = vld [vmem:[%s306 + $0x30] sm:$0xff]
      %v936 = vld [vmem:[%s306 + $0x38] sm:$0xff]
      %v937 = vld [vmem:[%s306 + $0x40] sm:$0xff]
      %v938 = vld [vmem:[%s306 + $0x48] sm:$0xff]
      %v939 = vld [vmem:[%s306 + $0x50] sm:$0xff]
      %v940 = vld [vmem:[%s306 + $0x58] sm:$0xff]
      %v941 = vld [vmem:[%s306 + $0x60] sm:$0xff]
      %v942 = vld [vmem:[%s306 + $0x68] sm:$0xff]
      %v943 = vld [vmem:[%s306 + $0x70] sm:$0xff]
      %v944 = vld [vmem:[%s306 + $0x78] sm:$0xff]
      %v945 = vld [vmem:[%s306 + $0x80] sm:$0xff]
      %v946 = vld [vmem:[%s306 + $0x88] sm:$0xff]
      %v947 = vld [vmem:[%s306 + $0x90] sm:$0xff]
      %v948 = vld [vmem:[%s306 + $0x98] sm:$0xff]
      %v949 = vld [vmem:[%s306 + $0xa0] sm:$0xff]
      %v950 = vld [vmem:[%s306 + $0xa8] sm:$0xff]
      %v951 = vld [vmem:[%s306 + $0xb0] sm:$0xff]
      %v952 = vld [vmem:[%s306 + $0xb8] sm:$0xff]
      %v953 = vld [vmem:[%s306 + $0xc0] sm:$0xf]
      %v954 = vld [vmem:[%s306 + $0xc8] sm:$0xf]
      %v956 = vsel %vm356, %v930, 0
      %v959 = vsel %vm356, %v932, 0
      %v962 = vsel %vm356, %v934, 0
      %v965 = vsel %vm356, %v936, 0
      %v968 = vsel %vm356, %v938, 0
      %v971 = vsel %vm356, %v940, 0
      %v974 = vsel %vm356, %v942, 0
      %v977 = vsel %vm356, %v944, 0
      %v980 = vsel %vm356, %v946, 0
      %v983 = vsel %vm356, %v948, 0
      %v986 = vsel %vm356, %v950, 0
      %v989 = vsel %vm356, %v952, 0
      %v992 = vsel %vm356, %v954, 0
      %994 = vmatprep.subr.mxu0 0.0
      %995 = vmatpush1.msra.mxu0 %v312
      %996 = vmatprep.subr.mxu0 0.0
      %997 = vmatpush1.msra.mxu0 %v313
      %998 = vmatprep.subr.mxu0 0.0
      %999 = vmatpush1.msra.mxu0 %v314
      %1000 = vmatprep.subr.mxu0 0.0
      %1001 = vmatpush1.msra.mxu0 %v315
      %1002 = vmatprep.subr.mxu0 0.0
      %1003 = vmatpush1.msra.mxu0 %v316
      %1004 = vmatprep.subr.mxu0 0.0
      %1005 = vmatpush1.msra.mxu0 %v317
      %1006 = vmatprep.subr.mxu0 0.0
      %1007 = vmatpush1.msra.mxu0 %v318
      %1008 = vmatprep.subr.mxu0 0.0
      %1009 = vmatpush1.msra.mxu0 %v319
      %1010 = vmatprep.subr.mxu0 0.0
      %1011 = vmatpush1.msra.mxu0 %v320
      %1012 = vmatprep.subr.mxu0 0.0
      %1013 = vmatpush1.msra.mxu0 %v321
      %1014 = vmatprep.subr.mxu0 0.0
      %1015 = vmatpush1.msra.mxu0 %v322
      %1016 = vmatprep.subr.mxu0 0.0
      %1017 = vmatpush1.msra.mxu0 %v323
      %1018 = vmatprep.subr.mxu0 0.0
      %1019 = vmatpush1.msra.mxu0 %v324
      %1020 = vmatprep.subr.mxu0 0.0
      %1021 = vmatpush1.msra.mxu0 %v325
      %1022 = vmatprep.subr.mxu0 0.0
      %1023 = vmatpush1.msra.mxu0 %v326
      %1024 = vmatprep.subr.mxu0 0.0
      %1025 = vmatpush1.msra.mxu0 %v327
      %1026 = vmatprep.subr.mxu0 0.0
      %1027 = vmatpush1.msra.mxu0 %v328
      %1028 = vmatprep.subr.mxu0 0.0
      %1029 = vmatpush1.msra.mxu0 %v329
      %1030 = vmatprep.subr.mxu0 0.0
      %1031 = vmatpush1.msra.mxu0 0.0
      %1032 = vmatprep.subr.mxu0 0.0
      %1033 = vmatpush1.msra.mxu0 0.0
      %1034 = vmatprep.subr.mxu0 0.0
      %1035 = vmatpush1.msra.mxu0 0.0
      %1036 = vmatprep.subr.mxu0 0.0
      %1037 = vmatpush1.msra.mxu0 0.0
      %1038 = vmatprep.subr.mxu0 0.0
      %1039 = vmatpush1.msra.mxu0 0.0
      %1040 = vmatprep.subr.mxu0 0.0
      %1041 = vmatpush1.msra.mxu0 0.0
      %1042 = vmatprep.subr.mxu0 0.0
      %1043 = vmatpush1.msra.mxu0 0.0
      %1044 = vmatprep.subr.mxu0 0.0
      %1045 = vmatpush1.msra.mxu0 0.0
      %1046 = vmatprep.subr.mxu0 0.0
      %1047 = vmatpush1.msra.mxu0 0.0
      %1048 = vmatprep.subr.mxu0 0.0
      %1049 = vmatpush1.msra.mxu0 0.0
      %1050 = vmatprep.subr.mxu0 0.0
      %1051 = vmatpush1.msra.mxu0 0.0
      %1052 = vmatprep.subr.mxu0 0.0
      %1053 = vmatpush1.msra.mxu0 0.0
      %1054 = vmatprep.subr.mxu0 0.0
      %1055 = vmatpush1.msra.mxu0 0.0
      %1056 = vmatprep.subr.mxu0 0.0
      %1057 = vmatpush1.msra.mxu0 0.0
      %1058 = vmatprep.mubr.f32.mxu0 %v956
      %1059 = vmatmul.mubr.f32.gmra.mrb[0].mxu0 %v929
      %v1060 = vpop.f32.mrb[0].mxu0
      %v1061 = vadd.f32 0.0, %v1060
      %v1062 = vpop.f32.mrb[0].mxu0
      %1063 = vmatprep.mubr.f32.mxu0 %v959
      %1064 = vmatmul.mubr.f32.gmra.mrb[0].mxu0 %v931
      %v1065 = vpop.f32.mrb[0].mxu0
      %v1066 = vadd.f32 0.0, %v1065
      %v1067 = vpop.f32.mrb[0].mxu0
      %1068 = vmatprep.mubr.f32.mxu0 %v962
      %1069 = vmatmul.mubr.f32.gmra.mrb[0].mxu0 %v933
      %v1070 = vpop.f32.mrb[0].mxu0
      %v1071 = vadd.f32 0.0, %v1070
      %v1072 = vpop.f32.mrb[0].mxu0
      %1073 = vmatprep.mubr.f32.mxu0 %v965
      %1074 = vmatmul.mubr.f32.gmra.mrb[0].mxu0 %v935
      %v1075 = vpop.f32.mrb[0].mxu0
      %v1076 = vadd.f32 0.0, %v1075
      %v1077 = vpop.f32.mrb[0].mxu0
      %1078 = vmatprep.mubr.f32.mxu0 %v968
      %1079 = vmatmul.mubr.f32.gmra.mrb[0].mxu0 %v937
      %v1080 = vpop.f32.mrb[0].mxu0
      %v1081 = vadd.f32 0.0, %v1080
      %v1082 = vpop.f32.mrb[0].mxu0
      %1083 = vmatprep.mubr.f32.mxu0 %v971
      %1084 = vmatmul.mubr.f32.gmra.mrb[0].mxu0 %v939
      %v1085 = vpop.f32.mrb[0].mxu0
      %v1086 = vadd.f32 0.0, %v1085
      %v1087 = vpop.f32.mrb[0].mxu0
      %1088 = vmatprep.mubr.f32.mxu0 %v974
      %1089 = vmatmul.mubr.f32.gmra.mrb[0].mxu0 %v941
      %v1090 = vpop.f32.mrb[0].mxu0
      %v1091 = vadd.f32 0.0, %v1090
      %v1092 = vpop.f32.mrb[0].mxu0
      %1093 = vmatprep.mubr.f32.mxu0 %v977
      %1094 = vmatmul.mubr.f32.gmra.mrb[0].mxu0 %v943
      %v1095 = vpop.f32.mrb[0].mxu0
      %v1096 = vadd.f32 0.0, %v1095
      %v1097 = vpop.f32.mrb[0].mxu0
      %1098 = vmatprep.mubr.f32.mxu0 %v980
      %1099 = vmatmul.mubr.f32.gmra.mrb[0].mxu0 %v945
      %v1100 = vpop.f32.mrb[0].mxu0
      %v1101 = vadd.f32 0.0, %v1100
      %v1102 = vpop.f32.mrb[0].mxu0
      %1103 = vmatprep.mubr.f32.mxu0 %v983
      %1104 = vmatmul.mubr.f32.gmra.mrb[0].mxu0 %v947
      %v1105 = vpop.f32.mrb[0].mxu0
      %v1106 = vadd.f32 0.0, %v1105
      %v1107 = vpop.f32.mrb[0].mxu0
      %1108 = vmatprep.mubr.f32.mxu0 %v986
      %1109 = vmatmul.mubr.f32.gmra.mrb[0].mxu0 %v949
      %v1110 = vpop.f32.mrb[0].mxu0
      %v1111 = vadd.f32 0.0, %v1110
      %v1112 = vpop.f32.mrb[0].mxu0
      %1113 = vmatprep.mubr.f32.mxu0 %v989
      %1114 = vmatmul.mubr.f32.gmra.mrb[0].mxu0 %v951
      %v1115 = vpop.f32.mrb[0].mxu0
      %v1116 = vadd.f32 0.0, %v1115
      %v1117 = vpop.f32.mrb[0].mxu0
      %1118 = vmatprep.mubr.f32.mxu0 %v992
      %1119 = vmatmul.mubr.f32.gmra.mrb[0].mxu0 %v953
      %v1120 = vpop.f32.mrb[0].mxu0
      %v1121 = vadd.f32 0.0, %v1120
      %v1122 = vpop.f32.mrb[0].mxu0
      %1123 = vdwg.mxu0
      %v1124 = vmax.f32 %v866, %v1061
      %v1125 = vmax.f32 %v871, %v1066
      %v1126 = vmax.f32 %v876, %v1071
      %v1127 = vmax.f32 %v881, %v1076
      %v1128 = vmax.f32 %v886, %v1081
      %v1129 = vmax.f32 %v891, %v1086
      %v1130 = vmax.f32 %v896, %v1091
      %v1131 = vmax.f32 %v901, %v1096
      %v1132 = vmax.f32 %v906, %v1101
      %v1133 = vmax.f32 %v911, %v1106
      %v1134 = vmax.f32 %v916, %v1111
      %v1135 = vmax.f32 %v921, %v1116
      %v1136 = vmax.f32 %v926, %v1121
      %v1137 = vmax.f32 %v721, %v1124
      %v1138 = vmax.f32 %v722, %v1125
      %v1139 = vmax.f32 %v723, %v1126
      %v1140 = vmax.f32 %v724, %v1127
      %v1141 = vmax.f32 %v725, %v1128
      %v1142 = vmax.f32 %v726, %v1129
      %v1143 = vmax.f32 %v727, %v1130
      %v1144 = vmax.f32 %v728, %v1131
      %v1145 = vmax.f32 %v729, %v1132
      %v1146 = vmax.f32 %v730, %v1133
      %v1147 = vmax.f32 %v731, %v1134
      %v1148 = vmax.f32 %v732, %v1135
      %v1149 = vmax.f32 %v733, %v1136
      %v1150 = vld [vmem:[%s5] sm:$0x1]
      %v1152 = vlaneseq
      %v1153 = vshrl.u32 %v1152, 7
      %v1154 = vsub.s32 0, %v1153
      %v1155 = vrot.slane %v1150, %v1154
      %v1157 = vadd.f32 %v1137, %v1155
      %v1158 = vadd.f32 %v1138, %v1155
      %v1159 = vadd.f32 %v1139, %v1155
      %v1160 = vadd.f32 %v1140, %v1155
      %v1161 = vadd.f32 %v1141, %v1155
      %v1162 = vadd.f32 %v1142, %v1155
      %v1163 = vadd.f32 %v1143, %v1155
      %v1164 = vadd.f32 %v1144, %v1155
      %v1165 = vadd.f32 %v1145, %v1155
      %v1166 = vadd.f32 %v1146, %v1155
      %v1167 = vadd.f32 %v1147, %v1155
      %v1168 = vadd.f32 %v1148, %v1155
      %v1169 = vadd.f32 %v1149, %v1155
      %v1170 = vmax.f32 %v1157, 0.0
      %v1171 = vmax.f32 %v1158, 0.0
      %v1172 = vmax.f32 %v1159, 0.0
      %v1173 = vmax.f32 %v1160, 0.0
      %v1174 = vmax.f32 %v1161, 0.0
      %v1175 = vmax.f32 %v1162, 0.0
      %v1176 = vmax.f32 %v1163, 0.0
      %v1177 = vmax.f32 %v1164, 0.0
      %v1178 = vmax.f32 %v1165, 0.0
      %v1179 = vmax.f32 %v1166, 0.0
      %v1180 = vmax.f32 %v1167, 0.0
      %v1181 = vmax.f32 %v1168, 0.0
      %v1182 = vmax.f32 %v1169, 0.0
      %vm1183 = vcmask 261120
      %1184 = vst.msk [vmem:[%s311] sm:$0xff] %vm1183, %v1170
      %1185 = vst.msk [vmem:[%s311 + $0x8] sm:$0xff] %vm1183, %v1171
      %1186 = vst.msk [vmem:[%s311 + $0x10] sm:$0xff] %vm1183, %v1172
      %1187 = vst.msk [vmem:[%s311 + $0x18] sm:$0xff] %vm1183, %v1173
      %1188 = vst.msk [vmem:[%s311 + $0x20] sm:$0xff] %vm1183, %v1174
      %1189 = vst.msk [vmem:[%s311 + $0x28] sm:$0xff] %vm1183, %v1175
      %1190 = vst.msk [vmem:[%s311 + $0x30] sm:$0xff] %vm1183, %v1176
      %1191 = vst.msk [vmem:[%s311 + $0x38] sm:$0xff] %vm1183, %v1177
      %1192 = vst.msk [vmem:[%s311 + $0x40] sm:$0xff] %vm1183, %v1178
      %1193 = vst.msk [vmem:[%s311 + $0x48] sm:$0xff] %vm1183, %v1179
      %1194 = vst.msk [vmem:[%s311 + $0x50] sm:$0xff] %vm1183, %v1180
      %1195 = vst.msk [vmem:[%s311 + $0x58] sm:$0xff] %vm1183, %v1181
      %vm1196 = vcmask 257024
      %1197 = vst.msk [vmem:[%s311 + $0x60] sm:$0xf] %vm1196, %v1182
      %p1198 = scmp.lt.s32.totalorder %s17, 1
      %s1199 = scalar_select %p1198, %s17, 1
      %s1200 = smul.addr %s1199, 13
      %s1201 = smul.addr %s1200, 8
      %s1202 = scalar_lea.vmem %s6, %s1201
      // Predicated region
      $region45: #{dqn_forward.4} parent=43 // pred_check
        %p1203 = pneg %p181
      $region46: #{dqn_forward.4} parent=43 // pred_check_branch
        %1205 = sbr.rel (%p1203) target = $region48
      $region47: #{dqn_forward.4} parent=43 // pred_region
        _
      $region48: #{dqn_forward.4} parent=43 // pred_fallthru
        _
    $region44: #{dqn_forward.4} parent=5 // pred_fallthru
      _
    %p1206 = scmp.le.s32.totalorder 2, %s12
    // Predicated region
    $region49: #{dqn_forward.4} parent=5 // pred_check
      %p1207 = pneg %p1206
    $region50: #{dqn_forward.4} parent=5 // pred_check_branch
      %1209 = sbr.rel (%p1207) target = $region52
    $region51: #{dqn_forward.4} parent=5 // pred_region
      %s1210 = ssub.s32 %s12, 2
      // Predicated region
      $region53: #{dqn_forward.4} parent=51 // pred_check
        %p1211 = pneg %p187
      $region54: #{dqn_forward.4} parent=51 // pred_check_branch
        %1213 = sbr.rel (%p1211) target = $region56
      $region55: #{dqn_forward.4} parent=51 // pred_region
        %p1214 = scmp.lt.s32.totalorder %s18, 1
        %s1215 = scalar_select %p1214, %s18, 1
        %s1216 = smul.addr %s1215, 13
        %s1217 = smul.addr %s1216, 8
        %s1218 = scalar_lea.vmem %s6, %s1217
      $region56: #{dqn_forward.4} parent=51 // pred_fallthru
        _
    $region52: #{dqn_forward.4} parent=5 // pred_fallthru
      _
  $region6: #{dqn_forward.4} parent=0 // loop_footer
    %s16 = sadd.s32 1, %s12
  $region7: #{dqn_forward.4} parent=0 // loop_footer_branch
    %11 = sbr.rel target = $region3
  $region8: #{dqn_forward.4} parent=0 // loop_exit
    _

// kernel: dqn_forward.5
$region0: #{dqn_forward.5}
  #allocation0 [shape = 'u32[]', space=smem, size = 0x4, offset = 0x4, fixed_abs, tag = 'smem constant byte address 0x4 - core index']
  #allocation1 [shape = 'u32[144,128]{1,0:T(1,128)}', space=vmem, size = 0x12000, scoped, tag = 'internal scratch']
  %s0 = inlined_call_operand.vmem [shape: f32[3200,2], index: 0, kind: input, shape index: {}]
  %s1 = inlined_call_operand.vmem [shape: f32[512,3200], index: 1, kind: input, shape index: {}]
  %s2 = inlined_call_operand.vmem [shape: f32[512,1], index: 2, kind: input, shape index: {}]
  %s3 = inlined_call_operand.vmem [shape: f32[6,512], index: 3, kind: input, shape index: {}]
  %s4 = inlined_call_operand.vmem [shape: f32[6,1], index: 4, kind: input, shape index: {}]
  %s5 = inlined_call_operand.vmem [shape: f32[6,2], index: 5, kind: output, shape index: {}]
  %s6 = sld [smem:[#allocation0]]
  $region30: #{dqn_forward.5} parent=0
    _
  %s8 = ssub.s32 1, %s6
  %s9 = scalar_select 0, %s8, %s6
  // Predicated region
  $region2: #{dqn_forward.5} parent=0 // pred_check
    _
  $region3: #{dqn_forward.5} parent=0 // pred_check_branch
    %11 = sbr.rel (0) target = $region5
  $region4: #{dqn_forward.5} parent=0 // pred_region
    _
  $region5: #{dqn_forward.5} parent=0 // pred_fallthru
    _
  // Predicated region
  $region6: #{dqn_forward.5} parent=0 // pred_check
    _
  $region7: #{dqn_forward.5} parent=0 // pred_check_branch
    %13 = sbr.rel (0) target = $region9
  $region8: #{dqn_forward.5} parent=0 // pred_region
    _
  $region9: #{dqn_forward.5} parent=0 // pred_fallthru
    _
  // Predicated region
  $region10: #{dqn_forward.5} parent=0 // pred_check
    _
  $region11: #{dqn_forward.5} parent=0 // pred_check_branch
    %15 = sbr.rel (0) target = $region13
  $region12: #{dqn_forward.5} parent=0 // pred_region
    _
  $region13: #{dqn_forward.5} parent=0 // pred_fallthru
    _
  // Predicated region
  $region14: #{dqn_forward.5} parent=0 // pred_check
    _
  $region15: #{dqn_forward.5} parent=0 // pred_check_branch
    %17 = sbr.rel (0) target = $region17
  $region16: #{dqn_forward.5} parent=0 // pred_region
    _
  $region17: #{dqn_forward.5} parent=0 // pred_fallthru
    _
  // Predicated region
  $region18: #{dqn_forward.5} parent=0 // pred_check
    _
  $region19: #{dqn_forward.5} parent=0 // pred_check_branch
    %19 = sbr.rel (0) target = $region21
  $region20: #{dqn_forward.5} parent=0 // pred_region
    _
  $region21: #{dqn_forward.5} parent=0 // pred_fallthru
    _
  %v20 = vld [vmem:[%s1] sm:$0xff]
  %v21 = vld [vmem:[%s1 + $0x8] sm:$0xff]
  %v22 = vld [vmem:[%s1 + $0x10] sm:$0xff]
  %v23 = vld [vmem:[%s1 + $0x18] sm:$0xff]
  %v24 = vld [vmem:[%s1 + $0x20] sm:$0xff]
  %v25 = vld [vmem:[%s1 + $0x28] sm:$0xff]
  %v26 = vld [vmem:[%s1 + $0x30] sm:$0xff]
  %v27 = vld [vmem:[%s1 + $0x38] sm:$0xff]
  %v28 = vld [vmem:[%s1 + $0x40] sm:$0xff]
  %v29 = vld [vmem:[%s1 + $0x48] sm:$0xff]
  %v30 = vld [vmem:[%s1 + $0x50] sm:$0xff]
  %v31 = vld [vmem:[%s1 + $0x58] sm:$0xff]
  %v32 = vld [vmem:[%s1 + $0x60] sm:$0xff]
  %v33 = vld [vmem:[%s1 + $0x68] sm:$0xff]
  %v34 = vld [vmem:[%s1 + $0x70] sm:$0xff]
  %v35 = vld [vmem:[%s1 + $0x78] sm:$0xff]
  %v36 = vld [vmem:[%s1 + $0x80] sm:$0xff]
  %v37 = vld [vmem:[%s1 + $0x88] sm:$0xff]
  %v38 = vld [vmem:[%s1 + $0x90] sm:$0xff]
  %v39 = vld [vmem:[%s1 + $0x98] sm:$0xff]
  %v40 = vld [vmem:[%s1 + $0xa0] sm:$0xff]
  %v41 = vld [vmem:[%s1 + $0xa8] sm:$0xff]
  %v42 = vld [vmem:[%s1 + $0xb0] sm:$0xff]
  %v43 = vld [vmem:[%s1 + $0xb8] sm:$0xff]
  %v44 = vld [vmem:[%s1 + $0xc0] sm:$0xff]
  %v45 = vld [vmem:[%s1 + $0xc8] sm:$0xff]
  %v46 = vld [vmem:[%s1 + $0xd0] sm:$0xff]
  %v47 = vld [vmem:[%s1 + $0xd8] sm:$0xff]
  %v48 = vld [vmem:[%s1 + $0xe0] sm:$0xff]
  %v49 = vld [vmem:[%s1 + $0xe8] sm:$0xff]
  %v50 = vld [vmem:[%s1 + $0xf0] sm:$0xff]
  %v51 = vld [vmem:[%s1 + $0xf8] sm:$0xff]
  %v52 = vld [vmem:[%s1 + $0x100] sm:$0xff]
  %v53 = vld [vmem:[%s1 + $0x108] sm:$0xff]
  %v54 = vld [vmem:[%s1 + $0x110] sm:$0xff]
  %v55 = vld [vmem:[%s1 + $0x118] sm:$0xff]
  %v56 = vld [vmem:[%s1 + $0x120] sm:$0xff]
  %v57 = vld [vmem:[%s1 + $0x128] sm:$0xff]
  %v58 = vld [vmem:[%s1 + $0x130] sm:$0xff]
  %v59 = vld [vmem:[%s1 + $0x138] sm:$0xff]
  %v60 = vld [vmem:[%s1 + $0x140] sm:$0xff]
  %v61 = vld [vmem:[%s1 + $0x148] sm:$0xff]
  %v62 = vld [vmem:[%s1 + $0x150] sm:$0xff]
  %v63 = vld [vmem:[%s1 + $0x158] sm:$0xff]
  %v64 = vld [vmem:[%s1 + $0x160] sm:$0xff]
  %v65 = vld [vmem:[%s1 + $0x168] sm:$0xff]
  %v66 = vld [vmem:[%s1 + $0x170] sm:$0xff]
  %v67 = vld [vmem:[%s1 + $0x178] sm:$0xff]
  %v68 = vld [vmem:[%s1 + $0x180] sm:$0xff]
  %v69 = vld [vmem:[%s1 + $0x188] sm:$0xff]
  %v70 = vld [vmem:[%s1 + $0x190] sm:$0xff]
  %v71 = vld [vmem:[%s1 + $0x198] sm:$0xff]
  %v72 = vld [vmem:[%s1 + $0x1a0] sm:$0xff]
  %v73 = vld [vmem:[%s1 + $0x1a8] sm:$0xff]
  %v74 = vld [vmem:[%s1 + $0x1b0] sm:$0xff]
  %v75 = vld [vmem:[%s1 + $0x1b8] sm:$0xff]
  %v76 = vld [vmem:[%s1 + $0x1c0] sm:$0xff]
  %v77 = vld [vmem:[%s1 + $0x1c8] sm:$0xff]
  %v78 = vld [vmem:[%s1 + $0x1d0] sm:$0xff]
  %v79 = vld [vmem:[%s1 + $0x1d8] sm:$0xff]
  %v80 = vld [vmem:[%s1 + $0x1e0] sm:$0xff]
  %v81 = vld [vmem:[%s1 + $0x1e8] sm:$0xff]
  %v82 = vld [vmem:[%s1 + $0x1f0] sm:$0xff]
  %v83 = vld [vmem:[%s1 + $0x1f8] sm:$0xff]
  %v84 = vld [vmem:[%s1 + $0x200] sm:$0xff]
  %v85 = vld [vmem:[%s1 + $0x208] sm:$0xff]
  %v86 = vld [vmem:[%s1 + $0x210] sm:$0xff]
  %v87 = vld [vmem:[%s1 + $0x218] sm:$0xff]
  %v88 = vld [vmem:[%s1 + $0x220] sm:$0xff]
  %v89 = vld [vmem:[%s1 + $0x228] sm:$0xff]
  %v90 = vld [vmem:[%s1 + $0x230] sm:$0xff]
  %v91 = vld [vmem:[%s1 + $0x238] sm:$0xff]
  %v92 = vld [vmem:[%s1 + $0x240] sm:$0xff]
  %v93 = vld [vmem:[%s1 + $0x248] sm:$0xff]
  %v94 = vld [vmem:[%s1 + $0x250] sm:$0xff]
  %v95 = vld [vmem:[%s1 + $0x258] sm:$0xff]
  %v96 = vld [vmem:[%s1 + $0x260] sm:$0xff]
  %v97 = vld [vmem:[%s1 + $0x268] sm:$0xff]
  %v98 = vld [vmem:[%s1 + $0x270] sm:$0xff]
  %v99 = vld [vmem:[%s1 + $0x278] sm:$0xff]
  %v100 = vld [vmem:[%s1 + $0x280] sm:$0xff]
  %v101 = vld [vmem:[%s1 + $0x288] sm:$0xff]
  %v102 = vld [vmem:[%s1 + $0x290] sm:$0xff]
  %v103 = vld [vmem:[%s1 + $0x298] sm:$0xff]
  %v104 = vld [vmem:[%s1 + $0x2a0] sm:$0xff]
  %v105 = vld [vmem:[%s1 + $0x2a8] sm:$0xff]
  %v106 = vld [vmem:[%s1 + $0x2b0] sm:$0xff]
  %v107 = vld [vmem:[%s1 + $0x2b8] sm:$0xff]
  %v108 = vld [vmem:[%s1 + $0x2c0] sm:$0xff]
  %v109 = vld [vmem:[%s1 + $0x2c8] sm:$0xff]
  %v110 = vld [vmem:[%s1 + $0x2d0] sm:$0xff]
  %v111 = vld [vmem:[%s1 + $0x2d8] sm:$0xff]
  %v112 = vld [vmem:[%s1 + $0x2e0] sm:$0xff]
  %v113 = vld [vmem:[%s1 + $0x2e8] sm:$0xff]
  %v114 = vld [vmem:[%s1 + $0x2f0] sm:$0xff]
  %v115 = vld [vmem:[%s1 + $0x2f8] sm:$0xff]
  %v116 = vld [vmem:[%s1 + $0x300] sm:$0xff]
  %v117 = vld [vmem:[%s1 + $0x308] sm:$0xff]
  %v118 = vld [vmem:[%s1 + $0x310] sm:$0xff]
  %v119 = vld [vmem:[%s1 + $0x318] sm:$0xff]
  %v120 = vld [vmem:[%s1 + $0x320] sm:$0xff]
  %v121 = vld [vmem:[%s1 + $0x328] sm:$0xff]
  %v122 = vld [vmem:[%s1 + $0x330] sm:$0xff]
  %v123 = vld [vmem:[%s1 + $0x338] sm:$0xff]
  %v124 = vld [vmem:[%s1 + $0x340] sm:$0xff]
  %v125 = vld [vmem:[%s1 + $0x348] sm:$0xff]
  %v126 = vld [vmem:[%s1 + $0x350] sm:$0xff]
  %v127 = vld [vmem:[%s1 + $0x358] sm:$0xff]
  %v128 = vld [vmem:[%s1 + $0x360] sm:$0xff]
  %v129 = vld [vmem:[%s1 + $0x368] sm:$0xff]
  %v130 = vld [vmem:[%s1 + $0x370] sm:$0xff]
  %v131 = vld [vmem:[%s1 + $0x378] sm:$0xff]
  %v132 = vld [vmem:[%s1 + $0x380] sm:$0xff]
  %v133 = vld [vmem:[%s1 + $0x388] sm:$0xff]
  %v134 = vld [vmem:[%s1 + $0x390] sm:$0xff]
  %v135 = vld [vmem:[%s1 + $0x398] sm:$0xff]
  %v136 = vld [vmem:[%s1 + $0x3a0] sm:$0xff]
  %v137 = vld [vmem:[%s1 + $0x3a8] sm:$0xff]
  %v138 = vld [vmem:[%s1 + $0x3b0] sm:$0xff]
  %v139 = vld [vmem:[%s1 + $0x3b8] sm:$0xff]
  %v140 = vld [vmem:[%s1 + $0x3c0] sm:$0xff]
  %v141 = vld [vmem:[%s1 + $0x3c8] sm:$0xff]
  %v142 = vld [vmem:[%s1 + $0x3d0] sm:$0xff]
  %v143 = vld [vmem:[%s1 + $0x3d8] sm:$0xff]
  %v144 = vld [vmem:[%s1 + $0x3e0] sm:$0xff]
  %v145 = vld [vmem:[%s1 + $0x3e8] sm:$0xff]
  %v146 = vld [vmem:[%s1 + $0x3f0] sm:$0xff]
  %v147 = vld [vmem:[%s1 + $0x3f8] sm:$0xff]
  %v148 = vld [vmem:[%s1 + $0x400] sm:$0xff]
  %v149 = vld [vmem:[%s1 + $0x408] sm:$0xff]
  %v150 = vld [vmem:[%s1 + $0x410] sm:$0xff]
  %v151 = vld [vmem:[%s1 + $0x418] sm:$0xff]
  %v152 = vld [vmem:[%s1 + $0x420] sm:$0xff]
  %v153 = vld [vmem:[%s1 + $0x428] sm:$0xff]
  %v154 = vld [vmem:[%s1 + $0x430] sm:$0xff]
  %v155 = vld [vmem:[%s1 + $0x438] sm:$0xff]
  %v156 = vld [vmem:[%s1 + $0x440] sm:$0xff]
  %v157 = vld [vmem:[%s1 + $0x448] sm:$0xff]
  %v158 = vld [vmem:[%s1 + $0x450] sm:$0xff]
  %v159 = vld [vmem:[%s1 + $0x458] sm:$0xff]
  %v160 = vld [vmem:[%s1 + $0x460] sm:$0xff]
  %v161 = vld [vmem:[%s1 + $0x468] sm:$0xff]
  %v162 = vld [vmem:[%s1 + $0x470] sm:$0xff]
  %v163 = vld [vmem:[%s1 + $0x478] sm:$0xff]
  %v164 = vld [vmem:[%s1 + $0x480] sm:$0xff]
  %v165 = vld [vmem:[%s1 + $0x488] sm:$0xff]
  %v166 = vld [vmem:[%s1 + $0x490] sm:$0xff]
  %v167 = vld [vmem:[%s1 + $0x498] sm:$0xff]
  %v168 = vld [vmem:[%s1 + $0x4a0] sm:$0xff]
  %v169 = vld [vmem:[%s1 + $0x4a8] sm:$0xff]
  %v170 = vld [vmem:[%s1 + $0x4b0] sm:$0xff]
  %v171 = vld [vmem:[%s1 + $0x4b8] sm:$0xff]
  %v172 = vld [vmem:[%s1 + $0x4c0] sm:$0xff]
  %v173 = vld [vmem:[%s1 + $0x4c8] sm:$0xff]
  %v174 = vld [vmem:[%s1 + $0x4d0] sm:$0xff]
  %v175 = vld [vmem:[%s1 + $0x4d8] sm:$0xff]
  %v176 = vld [vmem:[%s1 + $0x4e0] sm:$0xff]
  %v177 = vld [vmem:[%s1 + $0x4e8] sm:$0xff]
  %v178 = vld [vmem:[%s1 + $0x4f0] sm:$0xff]
  %v179 = vld [vmem:[%s1 + $0x4f8] sm:$0xff]
  %v180 = vld [vmem:[%s1 + $0x500] sm:$0xff]
  %v181 = vld [vmem:[%s1 + $0x508] sm:$0xff]
  %v182 = vld [vmem:[%s1 + $0x510] sm:$0xff]
  %v183 = vld [vmem:[%s1 + $0x518] sm:$0xff]
  %v184 = vld [vmem:[%s1 + $0x520] sm:$0xff]
  %v185 = vld [vmem:[%s1 + $0x528] sm:$0xff]
  %v186 = vld [vmem:[%s1 + $0x530] sm:$0xff]
  %v187 = vld [vmem:[%s1 + $0x538] sm:$0xff]
  %v188 = vld [vmem:[%s1 + $0x540] sm:$0xff]
  %v189 = vld [vmem:[%s1 + $0x548] sm:$0xff]
  %v190 = vld [vmem:[%s1 + $0x550] sm:$0xff]
  %v191 = vld [vmem:[%s1 + $0x558] sm:$0xff]
  %v192 = vld [vmem:[%s1 + $0x560] sm:$0xff]
  %v193 = vld [vmem:[%s1 + $0x568] sm:$0xff]
  %v194 = vld [vmem:[%s1 + $0x570] sm:$0xff]
  %v195 = vld [vmem:[%s1 + $0x578] sm:$0xff]
  %v196 = vld [vmem:[%s1 + $0x580] sm:$0xff]
  %v197 = vld [vmem:[%s1 + $0x588] sm:$0xff]
  %v198 = vld [vmem:[%s1 + $0x590] sm:$0xff]
  %v199 = vld [vmem:[%s1 + $0x598] sm:$0xff]
  %v200 = vld [vmem:[%s1 + $0x5a0] sm:$0xff]
  %v201 = vld [vmem:[%s1 + $0x5a8] sm:$0xff]
  %v202 = vld [vmem:[%s1 + $0x5b0] sm:$0xff]
  %v203 = vld [vmem:[%s1 + $0x5b8] sm:$0xff]
  %v204 = vld [vmem:[%s1 + $0x5c0] sm:$0xff]
  %v205 = vld [vmem:[%s1 + $0x5c8] sm:$0xff]
  %v206 = vld [vmem:[%s1 + $0x5d0] sm:$0xff]
  %v207 = vld [vmem:[%s1 + $0x5d8] sm:$0xff]
  %v208 = vld [vmem:[%s1 + $0x5e0] sm:$0xff]
  %v209 = vld [vmem:[%s1 + $0x5e8] sm:$0xff]
  %v210 = vld [vmem:[%s1 + $0x5f0] sm:$0xff]
  %v211 = vld [vmem:[%s1 + $0x5f8] sm:$0xff]
  %v212 = vld [vmem:[%s1 + $0x600] sm:$0xff]
  %v213 = vld [vmem:[%s1 + $0x608] sm:$0xff]
  %v214 = vld [vmem:[%s1 + $0x610] sm:$0xff]
  %v215 = vld [vmem:[%s1 + $0x618] sm:$0xff]
  %v216 = vld [vmem:[%s1 + $0x620] sm:$0xff]
  %v217 = vld [vmem:[%s1 + $0x628] sm:$0xff]
  %v218 = vld [vmem:[%s1 + $0x630] sm:$0xff]
  %v219 = vld [vmem:[%s1 + $0x638] sm:$0xff]
  %v220 = vld [vmem:[%s1 + $0x640] sm:$0xff]
  %v221 = vld [vmem:[%s1 + $0x648] sm:$0xff]
  %v222 = vld [vmem:[%s1 + $0x650] sm:$0xff]
  %v223 = vld [vmem:[%s1 + $0x658] sm:$0xff]
  %v224 = vld [vmem:[%s1 + $0x660] sm:$0xff]
  %v225 = vld [vmem:[%s1 + $0x668] sm:$0xff]
  %v226 = vld [vmem:[%s1 + $0x670] sm:$0xff]
  %v227 = vld [vmem:[%s1 + $0x678] sm:$0xff]
  %v228 = vld [vmem:[%s1 + $0x680] sm:$0xff]
  %v229 = vld [vmem:[%s1 + $0x688] sm:$0xff]
  %v230 = vld [vmem:[%s1 + $0x690] sm:$0xff]
  %v231 = vld [vmem:[%s1 + $0x698] sm:$0xff]
  %v232 = vld [vmem:[%s1 + $0x6a0] sm:$0xff]
  %v233 = vld [vmem:[%s1 + $0x6a8] sm:$0xff]
  %v234 = vld [vmem:[%s1 + $0x6b0] sm:$0xff]
  %v235 = vld [vmem:[%s1 + $0x6b8] sm:$0xff]
  %v236 = vld [vmem:[%s1 + $0x6c0] sm:$0xff]
  %v237 = vld [vmem:[%s1 + $0x6c8] sm:$0xff]
  %v238 = vld [vmem:[%s1 + $0x6d0] sm:$0xff]
  %v239 = vld [vmem:[%s1 + $0x6d8] sm:$0xff]
  %v240 = vld [vmem:[%s1 + $0x6e0] sm:$0xff]
  %v241 = vld [vmem:[%s1 + $0x6e8] sm:$0xff]
  %v242 = vld [vmem:[%s1 + $0x6f0] sm:$0xff]
  %v243 = vld [vmem:[%s1 + $0x6f8] sm:$0xff]
  %v244 = vld [vmem:[%s1 + $0x700] sm:$0xff]
  %v245 = vld [vmem:[%s1 + $0x708] sm:$0xff]
  %v246 = vld [vmem:[%s1 + $0x710] sm:$0xff]
  %v247 = vld [vmem:[%s1 + $0x718] sm:$0xff]
  %v248 = vld [vmem:[%s1 + $0x720] sm:$0xff]
  %v249 = vld [vmem:[%s1 + $0x728] sm:$0xff]
  %v250 = vld [vmem:[%s1 + $0x730] sm:$0xff]
  %v251 = vld [vmem:[%s1 + $0x738] sm:$0xff]
  %v252 = vld [vmem:[%s1 + $0x740] sm:$0xff]
  %v253 = vld [vmem:[%s1 + $0x748] sm:$0xff]
  %v254 = vld [vmem:[%s1 + $0x750] sm:$0xff]
  %v255 = vld [vmem:[%s1 + $0x758] sm:$0xff]
  %v256 = vld [vmem:[%s1 + $0x760] sm:$0xff]
  %v257 = vld [vmem:[%s1 + $0x768] sm:$0xff]
  %v258 = vld [vmem:[%s1 + $0x770] sm:$0xff]
  %v259 = vld [vmem:[%s1 + $0x778] sm:$0xff]
  %v260 = vld [vmem:[%s1 + $0x780] sm:$0xff]
  %v261 = vld [vmem:[%s1 + $0x788] sm:$0xff]
  %v262 = vld [vmem:[%s1 + $0x790] sm:$0xff]
  %v263 = vld [vmem:[%s1 + $0x798] sm:$0xff]
  %v264 = vld [vmem:[%s1 + $0x7a0] sm:$0xff]
  %v265 = vld [vmem:[%s1 + $0x7a8] sm:$0xff]
  %v266 = vld [vmem:[%s1 + $0x7b0] sm:$0xff]
  %v267 = vld [vmem:[%s1 + $0x7b8] sm:$0xff]
  %v268 = vld [vmem:[%s1 + $0x7c0] sm:$0xff]
  %v269 = vld [vmem:[%s1 + $0x7c8] sm:$0xff]
  %v270 = vld [vmem:[%s1 + $0x7d0] sm:$0xff]
  %v271 = vld [vmem:[%s1 + $0x7d8] sm:$0xff]
  %v272 = vld [vmem:[%s1 + $0x7e0] sm:$0xff]
  %v273 = vld [vmem:[%s1 + $0x7e8] sm:$0xff]
  %v274 = vld [vmem:[%s1 + $0x7f0] sm:$0xff]
  %v275 = vld [vmem:[%s1 + $0x7f8] sm:$0xff]
  %v276 = vld [vmem:[%s1 + $0x800] sm:$0xff]
  %v277 = vld [vmem:[%s1 + $0x808] sm:$0xff]
  %v278 = vld [vmem:[%s1 + $0x810] sm:$0xff]
  %v279 = vld [vmem:[%s1 + $0x818] sm:$0xff]
  %v280 = vld [vmem:[%s1 + $0x820] sm:$0xff]
  %v281 = vld [vmem:[%s1 + $0x828] sm:$0xff]
  %v282 = vld [vmem:[%s1 + $0x830] sm:$0xff]
  %v283 = vld [vmem:[%s1 + $0x838] sm:$0xff]
  %v284 = vld [vmem:[%s1 + $0x840] sm:$0xff]
  %v285 = vld [vmem:[%s1 + $0x848] sm:$0xff]
  %v286 = vld [vmem:[%s1 + $0x850] sm:$0xff]
  %v287 = vld [vmem:[%s1 + $0x858] sm:$0xff]
  %v288 = vld [vmem:[%s1 + $0x860] sm:$0xff]
  %v289 = vld [vmem:[%s1 + $0x868] sm:$0xff]
  %v290 = vld [vmem:[%s1 + $0x870] sm:$0xff]
  %v291 = vld [vmem:[%s1 + $0x878] sm:$0xff]
  %v292 = vld [vmem:[%s1 + $0x880] sm:$0xff]
  %v293 = vld [vmem:[%s1 + $0x888] sm:$0xff]
  %v294 = vld [vmem:[%s1 + $0x890] sm:$0xff]
  %v295 = vld [vmem:[%s1 + $0x898] sm:$0xff]
  %v296 = vld [vmem:[%s1 + $0x8a0] sm:$0xff]
  %v297 = vld [vmem:[%s1 + $0x8a8] sm:$0xff]
  %v298 = vld [vmem:[%s1 + $0x8b0] sm:$0xff]
  %v299 = vld [vmem:[%s1 + $0x8b8] sm:$0xff]
  %v300 = vld [vmem:[%s1 + $0x8c0] sm:$0xff]
  %v301 = vld [vmem:[%s1 + $0x8c8] sm:$0xff]
  %v302 = vld [vmem:[%s1 + $0x8d0] sm:$0xff]
  %v303 = vld [vmem:[%s1 + $0x8d8] sm:$0xff]
  %v304 = vld [vmem:[%s1 + $0x8e0] sm:$0xff]
  %v305 = vld [vmem:[%s1 + $0x8e8] sm:$0xff]
  %v306 = vld [vmem:[%s1 + $0x8f0] sm:$0xff]
  %v307 = vld [vmem:[%s1 + $0x8f8] sm:$0xff]
  %v308 = vld [vmem:[%s1 + $0x900] sm:$0xff]
  %v309 = vld [vmem:[%s1 + $0x908] sm:$0xff]
  %v310 = vld [vmem:[%s1 + $0x910] sm:$0xff]
  %v311 = vld [vmem:[%s1 + $0x918] sm:$0xff]
  %v312 = vld [vmem:[%s1 + $0x920] sm:$0xff]
  %v313 = vld [vmem:[%s1 + $0x928] sm:$0xff]
  %v314 = vld [vmem:[%s1 + $0x930] sm:$0xff]
  %v315 = vld [vmem:[%s1 + $0x938] sm:$0xff]
  %v316 = vld [vmem:[%s1 + $0x940] sm:$0xff]
  %v317 = vld [vmem:[%s1 + $0x948] sm:$0xff]
  %v318 = vld [vmem:[%s1 + $0x950] sm:$0xff]
  %v319 = vld [vmem:[%s1 + $0x958] sm:$0xff]
  %v320 = vld [vmem:[%s1 + $0x960] sm:$0xff]
  %v321 = vld [vmem:[%s1 + $0x968] sm:$0xff]
  %v322 = vld [vmem:[%s1 + $0x970] sm:$0xff]
  %v323 = vld [vmem:[%s1 + $0x978] sm:$0xff]
  %v324 = vld [vmem:[%s1 + $0x980] sm:$0xff]
  %v325 = vld [vmem:[%s1 + $0x988] sm:$0xff]
  %v326 = vld [vmem:[%s1 + $0x990] sm:$0xff]
  %v327 = vld [vmem:[%s1 + $0x998] sm:$0xff]
  %v328 = vld [vmem:[%s1 + $0x9a0] sm:$0xff]
  %v329 = vld [vmem:[%s1 + $0x9a8] sm:$0xff]
  %v330 = vld [vmem:[%s1 + $0x9b0] sm:$0xff]
  %v331 = vld [vmem:[%s1 + $0x9b8] sm:$0xff]
  %v332 = vld [vmem:[%s1 + $0x9c0] sm:$0xff]
  %v333 = vld [vmem:[%s1 + $0x9c8] sm:$0xff]
  %v334 = vld [vmem:[%s1 + $0x9d0] sm:$0xff]
  %v335 = vld [vmem:[%s1 + $0x9d8] sm:$0xff]
  %v336 = vld [vmem:[%s1 + $0x9e0] sm:$0xff]
  %v337 = vld [vmem:[%s1 + $0x9e8] sm:$0xff]
  %v338 = vld [vmem:[%s1 + $0x9f0] sm:$0xff]
  %v339 = vld [vmem:[%s1 + $0x9f8] sm:$0xff]
  %v340 = vld [vmem:[%s1 + $0xa00] sm:$0xff]
  %v341 = vld [vmem:[%s1 + $0xa08] sm:$0xff]
  %v342 = vld [vmem:[%s1 + $0xa10] sm:$0xff]
  %v343 = vld [vmem:[%s1 + $0xa18] sm:$0xff]
  %v344 = vld [vmem:[%s1 + $0xa20] sm:$0xff]
  %v345 = vld [vmem:[%s1 + $0xa28] sm:$0xff]
  %v346 = vld [vmem:[%s1 + $0xa30] sm:$0xff]
  %v347 = vld [vmem:[%s1 + $0xa38] sm:$0xff]
  %v348 = vld [vmem:[%s1 + $0xa40] sm:$0xff]
  %v349 = vld [vmem:[%s1 + $0xa48] sm:$0xff]
  %v350 = vld [vmem:[%s1 + $0xa50] sm:$0xff]
  %v351 = vld [vmem:[%s1 + $0xa58] sm:$0xff]
  %v352 = vld [vmem:[%s1 + $0xa60] sm:$0xff]
  %v353 = vld [vmem:[%s1 + $0xa68] sm:$0xff]
  %v354 = vld [vmem:[%s1 + $0xa70] sm:$0xff]
  %v355 = vld [vmem:[%s1 + $0xa78] sm:$0xff]
  %v356 = vld [vmem:[%s1 + $0xa80] sm:$0xff]
  %v357 = vld [vmem:[%s1 + $0xa88] sm:$0xff]
  %v358 = vld [vmem:[%s1 + $0xa90] sm:$0xff]
  %v359 = vld [vmem:[%s1 + $0xa98] sm:$0xff]
  %v360 = vld [vmem:[%s1 + $0xaa0] sm:$0xff]
  %v361 = vld [vmem:[%s1 + $0xaa8] sm:$0xff]
  %v362 = vld [vmem:[%s1 + $0xab0] sm:$0xff]
  %v363 = vld [vmem:[%s1 + $0xab8] sm:$0xff]
  %v364 = vld [vmem:[%s1 + $0xac0] sm:$0xff]
  %v365 = vld [vmem:[%s1 + $0xac8] sm:$0xff]
  %v366 = vld [vmem:[%s1 + $0xad0] sm:$0xff]
  %v367 = vld [vmem:[%s1 + $0xad8] sm:$0xff]
  %v368 = vld [vmem:[%s1 + $0xae0] sm:$0xff]
  %v369 = vld [vmem:[%s1 + $0xae8] sm:$0xff]
  %v370 = vld [vmem:[%s1 + $0xaf0] sm:$0xff]
  %v371 = vld [vmem:[%s1 + $0xaf8] sm:$0xff]
  %v372 = vld [vmem:[%s1 + $0xb00] sm:$0xff]
  %v373 = vld [vmem:[%s1 + $0xb08] sm:$0xff]
  %v374 = vld [vmem:[%s1 + $0xb10] sm:$0xff]
  %v375 = vld [vmem:[%s1 + $0xb18] sm:$0xff]
  %v376 = vld [vmem:[%s1 + $0xb20] sm:$0xff]
  %v377 = vld [vmem:[%s1 + $0xb28] sm:$0xff]
  %v378 = vld [vmem:[%s1 + $0xb30] sm:$0xff]
  %v379 = vld [vmem:[%s1 + $0xb38] sm:$0xff]
  %v380 = vld [vmem:[%s1 + $0xb40] sm:$0xff]
  %v381 = vld [vmem:[%s1 + $0xb48] sm:$0xff]
  %v382 = vld [vmem:[%s1 + $0xb50] sm:$0xff]
  %v383 = vld [vmem:[%s1 + $0xb58] sm:$0xff]
  %v384 = vld [vmem:[%s1 + $0xb60] sm:$0xff]
  %v385 = vld [vmem:[%s1 + $0xb68] sm:$0xff]
  %v386 = vld [vmem:[%s1 + $0xb70] sm:$0xff]
  %v387 = vld [vmem:[%s1 + $0xb78] sm:$0xff]
  %v388 = vld [vmem:[%s1 + $0xb80] sm:$0xff]
  %v389 = vld [vmem:[%s1 + $0xb88] sm:$0xff]
  %v390 = vld [vmem:[%s1 + $0xb90] sm:$0xff]
  %v391 = vld [vmem:[%s1 + $0xb98] sm:$0xff]
  %v392 = vld [vmem:[%s1 + $0xba0] sm:$0xff]
  %v393 = vld [vmem:[%s1 + $0xba8] sm:$0xff]
  %v394 = vld [vmem:[%s1 + $0xbb0] sm:$0xff]
  %v395 = vld [vmem:[%s1 + $0xbb8] sm:$0xff]
  %v396 = vld [vmem:[%s1 + $0xbc0] sm:$0xff]
  %v397 = vld [vmem:[%s1 + $0xbc8] sm:$0xff]
  %v398 = vld [vmem:[%s1 + $0xbd0] sm:$0xff]
  %v399 = vld [vmem:[%s1 + $0xbd8] sm:$0xff]
  %v400 = vld [vmem:[%s1 + $0xbe0] sm:$0xff]
  %v401 = vld [vmem:[%s1 + $0xbe8] sm:$0xff]
  %v402 = vld [vmem:[%s1 + $0xbf0] sm:$0xff]
  %v403 = vld [vmem:[%s1 + $0xbf8] sm:$0xff]
  %v404 = vld [vmem:[%s1 + $0xc00] sm:$0xff]
  %v405 = vld [vmem:[%s1 + $0xc08] sm:$0xff]
  %v406 = vld [vmem:[%s1 + $0xc10] sm:$0xff]
  %v407 = vld [vmem:[%s1 + $0xc18] sm:$0xff]
  %v408 = vld [vmem:[%s1 + $0xc20] sm:$0xff]
  %v409 = vld [vmem:[%s1 + $0xc28] sm:$0xff]
  %v410 = vld [vmem:[%s1 + $0xc30] sm:$0xff]
  %v411 = vld [vmem:[%s1 + $0xc38] sm:$0xff]
  %v412 = vld [vmem:[%s1 + $0xc40] sm:$0xff]
  %v413 = vld [vmem:[%s1 + $0xc48] sm:$0xff]
  %v414 = vld [vmem:[%s1 + $0xc50] sm:$0xff]
  %v415 = vld [vmem:[%s1 + $0xc58] sm:$0xff]
  %v416 = vld [vmem:[%s1 + $0xc60] sm:$0xff]
  %v417 = vld [vmem:[%s1 + $0xc68] sm:$0xff]
  %v418 = vld [vmem:[%s1 + $0xc70] sm:$0xff]
  %v419 = vld [vmem:[%s1 + $0xc78] sm:$0xff]
  %v420 = vld [vmem:[%s1 + $0xc80] sm:$0xff]
  %v421 = vld [vmem:[%s1 + $0xc88] sm:$0xff]
  %v422 = vld [vmem:[%s1 + $0xc90] sm:$0xff]
  %v423 = vld [vmem:[%s1 + $0xc98] sm:$0xff]
  %v424 = vld [vmem:[%s1 + $0xca0] sm:$0xff]
  %v425 = vld [vmem:[%s1 + $0xca8] sm:$0xff]
  %v426 = vld [vmem:[%s1 + $0xcb0] sm:$0xff]
  %v427 = vld [vmem:[%s1 + $0xcb8] sm:$0xff]
  %v428 = vld [vmem:[%s1 + $0xcc0] sm:$0xff]
  %v429 = vld [vmem:[%s1 + $0xcc8] sm:$0xff]
  %v430 = vld [vmem:[%s1 + $0xcd0] sm:$0xff]
  %v431 = vld [vmem:[%s1 + $0xcd8] sm:$0xff]
  %v432 = vld [vmem:[%s1 + $0xce0] sm:$0xff]
  %v433 = vld [vmem:[%s1 + $0xce8] sm:$0xff]
  %v434 = vld [vmem:[%s1 + $0xcf0] sm:$0xff]
  %v435 = vld [vmem:[%s1 + $0xcf8] sm:$0xff]
  %v436 = vld [vmem:[%s1 + $0xd00] sm:$0xff]
  %v437 = vld [vmem:[%s1 + $0xd08] sm:$0xff]
  %v438 = vld [vmem:[%s1 + $0xd10] sm:$0xff]
  %v439 = vld [vmem:[%s1 + $0xd18] sm:$0xff]
  %v440 = vld [vmem:[%s1 + $0xd20] sm:$0xff]
  %v441 = vld [vmem:[%s1 + $0xd28] sm:$0xff]
  %v442 = vld [vmem:[%s1 + $0xd30] sm:$0xff]
  %v443 = vld [vmem:[%s1 + $0xd38] sm:$0xff]
  %v444 = vld [vmem:[%s1 + $0xd40] sm:$0xff]
  %v445 = vld [vmem:[%s1 + $0xd48] sm:$0xff]
  %v446 = vld [vmem:[%s1 + $0xd50] sm:$0xff]
  %v447 = vld [vmem:[%s1 + $0xd58] sm:$0xff]
  %v448 = vld [vmem:[%s1 + $0xd60] sm:$0xff]
  %v449 = vld [vmem:[%s1 + $0xd68] sm:$0xff]
  %v450 = vld [vmem:[%s1 + $0xd70] sm:$0xff]
  %v451 = vld [vmem:[%s1 + $0xd78] sm:$0xff]
  %v452 = vld [vmem:[%s1 + $0xd80] sm:$0xff]
  %v453 = vld [vmem:[%s1 + $0xd88] sm:$0xff]
  %v454 = vld [vmem:[%s1 + $0xd90] sm:$0xff]
  %v455 = vld [vmem:[%s1 + $0xd98] sm:$0xff]
  %v456 = vld [vmem:[%s1 + $0xda0] sm:$0xff]
  %v457 = vld [vmem:[%s1 + $0xda8] sm:$0xff]
  %v458 = vld [vmem:[%s1 + $0xdb0] sm:$0xff]
  %v459 = vld [vmem:[%s1 + $0xdb8] sm:$0xff]
  %v460 = vld [vmem:[%s1 + $0xdc0] sm:$0xff]
  %v461 = vld [vmem:[%s1 + $0xdc8] sm:$0xff]
  %v462 = vld [vmem:[%s1 + $0xdd0] sm:$0xff]
  %v463 = vld [vmem:[%s1 + $0xdd8] sm:$0xff]
  %v464 = vld [vmem:[%s1 + $0xde0] sm:$0xff]
  %v465 = vld [vmem:[%s1 + $0xde8] sm:$0xff]
  %v466 = vld [vmem:[%s1 + $0xdf0] sm:$0xff]
  %v467 = vld [vmem:[%s1 + $0xdf8] sm:$0xff]
  %v468 = vld [vmem:[%s1 + $0xe00] sm:$0xff]
  %v469 = vld [vmem:[%s1 + $0xe08] sm:$0xff]
  %v470 = vld [vmem:[%s1 + $0xe10] sm:$0xff]
  %v471 = vld [vmem:[%s1 + $0xe18] sm:$0xff]
  %v472 = vld [vmem:[%s1 + $0xe20] sm:$0xff]
  %v473 = vld [vmem:[%s1 + $0xe28] sm:$0xff]
  %v474 = vld [vmem:[%s1 + $0xe30] sm:$0xff]
  %v475 = vld [vmem:[%s1 + $0xe38] sm:$0xff]
  %v476 = vld [vmem:[%s1 + $0xe40] sm:$0xff]
  %v477 = vld [vmem:[%s1 + $0xe48] sm:$0xff]
  %v478 = vld [vmem:[%s1 + $0xe50] sm:$0xff]
  %v479 = vld [vmem:[%s1 + $0xe58] sm:$0xff]
  %v480 = vld [vmem:[%s1 + $0xe60] sm:$0xff]
  %v481 = vld [vmem:[%s1 + $0xe68] sm:$0xff]
  %v482 = vld [vmem:[%s1 + $0xe70] sm:$0xff]
  %v483 = vld [vmem:[%s1 + $0xe78] sm:$0xff]
  %v484 = vld [vmem:[%s1 + $0xe80] sm:$0xff]
  %v485 = vld [vmem:[%s1 + $0xe88] sm:$0xff]
  %v486 = vld [vmem:[%s1 + $0xe90] sm:$0xff]
  %v487 = vld [vmem:[%s1 + $0xe98] sm:$0xff]
  %v488 = vld [vmem:[%s1 + $0xea0] sm:$0xff]
  %v489 = vld [vmem:[%s1 + $0xea8] sm:$0xff]
  %v490 = vld [vmem:[%s1 + $0xeb0] sm:$0xff]
  %v491 = vld [vmem:[%s1 + $0xeb8] sm:$0xff]
  %v492 = vld [vmem:[%s1 + $0xec0] sm:$0xff]
  %v493 = vld [vmem:[%s1 + $0xec8] sm:$0xff]
  %v494 = vld [vmem:[%s1 + $0xed0] sm:$0xff]
  %v495 = vld [vmem:[%s1 + $0xed8] sm:$0xff]
  %v496 = vld [vmem:[%s1 + $0xee0] sm:$0xff]
  %v497 = vld [vmem:[%s1 + $0xee8] sm:$0xff]
  %v498 = vld [vmem:[%s1 + $0xef0] sm:$0xff]
  %v499 = vld [vmem:[%s1 + $0xef8] sm:$0xff]
  %v500 = vld [vmem:[%s1 + $0xf00] sm:$0xff]
  %v501 = vld [vmem:[%s1 + $0xf08] sm:$0xff]
  %v502 = vld [vmem:[%s1 + $0xf10] sm:$0xff]
  %v503 = vld [vmem:[%s1 + $0xf18] sm:$0xff]
  %v504 = vld [vmem:[%s1 + $0xf20] sm:$0xff]
  %v505 = vld [vmem:[%s1 + $0xf28] sm:$0xff]
  %v506 = vld [vmem:[%s1 + $0xf30] sm:$0xff]
  %v507 = vld [vmem:[%s1 + $0xf38] sm:$0xff]
  %v508 = vld [vmem:[%s1 + $0xf40] sm:$0xff]
  %v509 = vld [vmem:[%s1 + $0xf48] sm:$0xff]
  %v510 = vld [vmem:[%s1 + $0xf50] sm:$0xff]
  %v511 = vld [vmem:[%s1 + $0xf58] sm:$0xff]
  %v512 = vld [vmem:[%s1 + $0xf60] sm:$0xff]
  %v513 = vld [vmem:[%s1 + $0xf68] sm:$0xff]
  %v514 = vld [vmem:[%s1 + $0xf70] sm:$0xff]
  %v515 = vld [vmem:[%s1 + $0xf78] sm:$0xff]
  %v516 = vld [vmem:[%s1 + $0xf80] sm:$0xff]
  %v517 = vld [vmem:[%s1 + $0xf88] sm:$0xff]
  %v518 = vld [vmem:[%s1 + $0xf90] sm:$0xff]
  %v519 = vld [vmem:[%s1 + $0xf98] sm:$0xff]
  %v520 = vld [vmem:[%s1 + $0xfa0] sm:$0xff]
  %v521 = vld [vmem:[%s1 + $0xfa8] sm:$0xff]
  %v522 = vld [vmem:[%s1 + $0xfb0] sm:$0xff]
  %v523 = vld [vmem:[%s1 + $0xfb8] sm:$0xff]
  %v524 = vld [vmem:[%s1 + $0xfc0] sm:$0xff]
  %v525 = vld [vmem:[%s1 + $0xfc8] sm:$0xff]
  %v526 = vld [vmem:[%s1 + $0xfd0] sm:$0xff]
  %v527 = vld [vmem:[%s1 + $0xfd8] sm:$0xff]
  %v528 = vld [vmem:[%s1 + $0xfe0] sm:$0xff]
  %v529 = vld [vmem:[%s1 + $0xfe8] sm:$0xff]
  %v530 = vld [vmem:[%s1 + $0xff0] sm:$0xff]
  %v531 = vld [vmem:[%s1 + $0xff8] sm:$0xff]
  %v532 = vld [vmem:[%s1 + $0x1000] sm:$0xff]
  %v533 = vld [vmem:[%s1 + $0x1008] sm:$0xff]
  %v534 = vld [vmem:[%s1 + $0x1010] sm:$0xff]
  %v535 = vld [vmem:[%s1 + $0x1018] sm:$0xff]
  %v536 = vld [vmem:[%s1 + $0x1020] sm:$0xff]
  %v537 = vld [vmem:[%s1 + $0x1028] sm:$0xff]
  %v538 = vld [vmem:[%s1 + $0x1030] sm:$0xff]
  %v539 = vld [vmem:[%s1 + $0x1038] sm:$0xff]
  %v540 = vld [vmem:[%s1 + $0x1040] sm:$0xff]
  %v541 = vld [vmem:[%s1 + $0x1048] sm:$0xff]
  %v542 = vld [vmem:[%s1 + $0x1050] sm:$0xff]
  %v543 = vld [vmem:[%s1 + $0x1058] sm:$0xff]
  %v544 = vld [vmem:[%s1 + $0x1060] sm:$0xff]
  %v545 = vld [vmem:[%s1 + $0x1068] sm:$0xff]
  %v546 = vld [vmem:[%s1 + $0x1070] sm:$0xff]
  %v547 = vld [vmem:[%s1 + $0x1078] sm:$0xff]
  %v548 = vld [vmem:[%s1 + $0x1080] sm:$0xff]
  %v549 = vld [vmem:[%s1 + $0x1088] sm:$0xff]
  %v550 = vld [vmem:[%s1 + $0x1090] sm:$0xff]
  %v551 = vld [vmem:[%s1 + $0x1098] sm:$0xff]
  %v552 = vld [vmem:[%s1 + $0x10a0] sm:$0xff]
  %v553 = vld [vmem:[%s1 + $0x10a8] sm:$0xff]
  %v554 = vld [vmem:[%s1 + $0x10b0] sm:$0xff]
  %v555 = vld [vmem:[%s1 + $0x10b8] sm:$0xff]
  %v556 = vld [vmem:[%s1 + $0x10c0] sm:$0xff]
  %v557 = vld [vmem:[%s1 + $0x10c8] sm:$0xff]
  %v558 = vld [vmem:[%s1 + $0x10d0] sm:$0xff]
  %v559 = vld [vmem:[%s1 + $0x10d8] sm:$0xff]
  %v560 = vld [vmem:[%s1 + $0x10e0] sm:$0xff]
  %v561 = vld [vmem:[%s1 + $0x10e8] sm:$0xff]
  %v562 = vld [vmem:[%s1 + $0x10f0] sm:$0xff]
  %v563 = vld [vmem:[%s1 + $0x10f8] sm:$0xff]
  %v564 = vld [vmem:[%s1 + $0x1100] sm:$0xff]
  %v565 = vld [vmem:[%s1 + $0x1108] sm:$0xff]
  %v566 = vld [vmem:[%s1 + $0x1110] sm:$0xff]
  %v567 = vld [vmem:[%s1 + $0x1118] sm:$0xff]
  %v568 = vld [vmem:[%s1 + $0x1120] sm:$0xff]
  %v569 = vld [vmem:[%s1 + $0x1128] sm:$0xff]
  %v570 = vld [vmem:[%s1 + $0x1130] sm:$0xff]
  %v571 = vld [vmem:[%s1 + $0x1138] sm:$0xff]
  %v572 = vld [vmem:[%s1 + $0x1140] sm:$0xff]
  %v573 = vld [vmem:[%s1 + $0x1148] sm:$0xff]
  %v574 = vld [vmem:[%s1 + $0x1150] sm:$0xff]
  %v575 = vld [vmem:[%s1 + $0x1158] sm:$0xff]
  %v576 = vld [vmem:[%s1 + $0x1160] sm:$0xff]
  %v577 = vld [vmem:[%s1 + $0x1168] sm:$0xff]
  %v578 = vld [vmem:[%s1 + $0x1170] sm:$0xff]
  %v579 = vld [vmem:[%s1 + $0x1178] sm:$0xff]
  %v580 = vld [vmem:[%s1 + $0x1180] sm:$0xff]
  %v581 = vld [vmem:[%s1 + $0x1188] sm:$0xff]
  %v582 = vld [vmem:[%s1 + $0x1190] sm:$0xff]
  %v583 = vld [vmem:[%s1 + $0x1198] sm:$0xff]
  %v584 = vld [vmem:[%s1 + $0x11a0] sm:$0xff]
  %v585 = vld [vmem:[%s1 + $0x11a8] sm:$0xff]
  %v586 = vld [vmem:[%s1 + $0x11b0] sm:$0xff]
  %v587 = vld [vmem:[%s1 + $0x11b8] sm:$0xff]
  %v588 = vld [vmem:[%s1 + $0x11c0] sm:$0xff]
  %v589 = vld [vmem:[%s1 + $0x11c8] sm:$0xff]
  %v590 = vld [vmem:[%s1 + $0x11d0] sm:$0xff]
  %v591 = vld [vmem:[%s1 + $0x11d8] sm:$0xff]
  %v592 = vld [vmem:[%s1 + $0x11e0] sm:$0xff]
  %v593 = vld [vmem:[%s1 + $0x11e8] sm:$0xff]
  %v594 = vld [vmem:[%s1 + $0x11f0] sm:$0xff]
  %v595 = vld [vmem:[%s1 + $0x11f8] sm:$0xff]
  %v596 = vld [vmem:[%s1 + $0x1200] sm:$0xff]
  %v597 = vld [vmem:[%s1 + $0x1208] sm:$0xff]
  %v598 = vld [vmem:[%s1 + $0x1210] sm:$0xff]
  %v599 = vld [vmem:[%s1 + $0x1218] sm:$0xff]
  %v600 = vld [vmem:[%s1 + $0x1220] sm:$0xff]
  %v601 = vld [vmem:[%s1 + $0x1228] sm:$0xff]
  %v602 = vld [vmem:[%s1 + $0x1230] sm:$0xff]
  %v603 = vld [vmem:[%s1 + $0x1238] sm:$0xff]
  %v604 = vld [vmem:[%s1 + $0x1240] sm:$0xff]
  %v605 = vld [vmem:[%s1 + $0x1248] sm:$0xff]
  %v606 = vld [vmem:[%s1 + $0x1250] sm:$0xff]
  %v607 = vld [vmem:[%s1 + $0x1258] sm:$0xff]
  %v608 = vld [vmem:[%s1 + $0x1260] sm:$0xff]
  %v609 = vld [vmem:[%s1 + $0x1268] sm:$0xff]
  %v610 = vld [vmem:[%s1 + $0x1270] sm:$0xff]
  %v611 = vld [vmem:[%s1 + $0x1278] sm:$0xff]
  %v612 = vld [vmem:[%s1 + $0x1280] sm:$0xff]
  %v613 = vld [vmem:[%s1 + $0x1288] sm:$0xff]
  %v614 = vld [vmem:[%s1 + $0x1290] sm:$0xff]
  %v615 = vld [vmem:[%s1 + $0x1298] sm:$0xff]
  %v616 = vld [vmem:[%s1 + $0x12a0] sm:$0xff]
  %v617 = vld [vmem:[%s1 + $0x12a8] sm:$0xff]
  %v618 = vld [vmem:[%s1 + $0x12b0] sm:$0xff]
  %v619 = vld [vmem:[%s1 + $0x12b8] sm:$0xff]
  %v620 = vld [vmem:[%s1 + $0x12c0] sm:$0xff]
  %v621 = vld [vmem:[%s1 + $0x12c8] sm:$0xff]
  %v622 = vld [vmem:[%s1 + $0x12d0] sm:$0xff]
  %v623 = vld [vmem:[%s1 + $0x12d8] sm:$0xff]
  %v624 = vld [vmem:[%s1 + $0x12e0] sm:$0xff]
  %v625 = vld [vmem:[%s1 + $0x12e8] sm:$0xff]
  %v626 = vld [vmem:[%s1 + $0x12f0] sm:$0xff]
  %v627 = vld [vmem:[%s1 + $0x12f8] sm:$0xff]
  %v628 = vld [vmem:[%s1 + $0x1300] sm:$0xff]
  %v629 = vld [vmem:[%s1 + $0x1308] sm:$0xff]
  %v630 = vld [vmem:[%s1 + $0x1310] sm:$0xff]
  %v631 = vld [vmem:[%s1 + $0x1318] sm:$0xff]
  %v632 = vld [vmem:[%s1 + $0x1320] sm:$0xff]
  %v633 = vld [vmem:[%s1 + $0x1328] sm:$0xff]
  %v634 = vld [vmem:[%s1 + $0x1330] sm:$0xff]
  %v635 = vld [vmem:[%s1 + $0x1338] sm:$0xff]
  %v636 = vld [vmem:[%s1 + $0x1340] sm:$0xff]
  %v637 = vld [vmem:[%s1 + $0x1348] sm:$0xff]
  %v638 = vld [vmem:[%s1 + $0x1350] sm:$0xff]
  %v639 = vld [vmem:[%s1 + $0x1358] sm:$0xff]
  %v640 = vld [vmem:[%s1 + $0x1360] sm:$0xff]
  %v641 = vld [vmem:[%s1 + $0x1368] sm:$0xff]
  %v642 = vld [vmem:[%s1 + $0x1370] sm:$0xff]
  %v643 = vld [vmem:[%s1 + $0x1378] sm:$0xff]
  %v644 = vld [vmem:[%s1 + $0x1380] sm:$0xff]
  %v645 = vld [vmem:[%s1 + $0x1388] sm:$0xff]
  %v646 = vld [vmem:[%s1 + $0x1390] sm:$0xff]
  %v647 = vld [vmem:[%s1 + $0x1398] sm:$0xff]
  %v648 = vld [vmem:[%s1 + $0x13a0] sm:$0xff]
  %v649 = vld [vmem:[%s1 + $0x13a8] sm:$0xff]
  %v650 = vld [vmem:[%s1 + $0x13b0] sm:$0xff]
  %v651 = vld [vmem:[%s1 + $0x13b8] sm:$0xff]
  %v652 = vld [vmem:[%s1 + $0x13c0] sm:$0xff]
  %v653 = vld [vmem:[%s1 + $0x13c8] sm:$0xff]
  %v654 = vld [vmem:[%s1 + $0x13d0] sm:$0xff]
  %v655 = vld [vmem:[%s1 + $0x13d8] sm:$0xff]
  %v656 = vld [vmem:[%s1 + $0x13e0] sm:$0xff]
  %v657 = vld [vmem:[%s1 + $0x13e8] sm:$0xff]
  %v658 = vld [vmem:[%s1 + $0x13f0] sm:$0xff]
  %v659 = vld [vmem:[%s1 + $0x13f8] sm:$0xff]
  %v660 = vld [vmem:[%s1 + $0x1400] sm:$0xff]
  %v661 = vld [vmem:[%s1 + $0x1408] sm:$0xff]
  %v662 = vld [vmem:[%s1 + $0x1410] sm:$0xff]
  %v663 = vld [vmem:[%s1 + $0x1418] sm:$0xff]
  %v664 = vld [vmem:[%s1 + $0x1420] sm:$0xff]
  %v665 = vld [vmem:[%s1 + $0x1428] sm:$0xff]
  %v666 = vld [vmem:[%s1 + $0x1430] sm:$0xff]
  %v667 = vld [vmem:[%s1 + $0x1438] sm:$0xff]
  %v668 = vld [vmem:[%s1 + $0x1440] sm:$0xff]
  %v669 = vld [vmem:[%s1 + $0x1448] sm:$0xff]
  %v670 = vld [vmem:[%s1 + $0x1450] sm:$0xff]
  %v671 = vld [vmem:[%s1 + $0x1458] sm:$0xff]
  %v672 = vld [vmem:[%s1 + $0x1460] sm:$0xff]
  %v673 = vld [vmem:[%s1 + $0x1468] sm:$0xff]
  %v674 = vld [vmem:[%s1 + $0x1470] sm:$0xff]
  %v675 = vld [vmem:[%s1 + $0x1478] sm:$0xff]
  %v676 = vld [vmem:[%s1 + $0x1480] sm:$0xff]
  %v677 = vld [vmem:[%s1 + $0x1488] sm:$0xff]
  %v678 = vld [vmem:[%s1 + $0x1490] sm:$0xff]
  %v679 = vld [vmem:[%s1 + $0x1498] sm:$0xff]
  %v680 = vld [vmem:[%s1 + $0x14a0] sm:$0xff]
  %v681 = vld [vmem:[%s1 + $0x14a8] sm:$0xff]
  %v682 = vld [vmem:[%s1 + $0x14b0] sm:$0xff]
  %v683 = vld [vmem:[%s1 + $0x14b8] sm:$0xff]
  %v684 = vld [vmem:[%s1 + $0x14c0] sm:$0xff]
  %v685 = vld [vmem:[%s1 + $0x14c8] sm:$0xff]
  %v686 = vld [vmem:[%s1 + $0x14d0] sm:$0xff]
  %v687 = vld [vmem:[%s1 + $0x14d8] sm:$0xff]
  %v688 = vld [vmem:[%s1 + $0x14e0] sm:$0xff]
  %v689 = vld [vmem:[%s1 + $0x14e8] sm:$0xff]
  %v690 = vld [vmem:[%s1 + $0x14f0] sm:$0xff]
  %v691 = vld [vmem:[%s1 + $0x14f8] sm:$0xff]
  %v692 = vld [vmem:[%s1 + $0x1500] sm:$0xff]
  %v693 = vld [vmem:[%s1 + $0x1508] sm:$0xff]
  %v694 = vld [vmem:[%s1 + $0x1510] sm:$0xff]
  %v695 = vld [vmem:[%s1 + $0x1518] sm:$0xff]
  %v696 = vld [vmem:[%s1 + $0x1520] sm:$0xff]
  %v697 = vld [vmem:[%s1 + $0x1528] sm:$0xff]
  %v698 = vld [vmem:[%s1 + $0x1530] sm:$0xff]
  %v699 = vld [vmem:[%s1 + $0x1538] sm:$0xff]
  %v700 = vld [vmem:[%s1 + $0x1540] sm:$0xff]
  %v701 = vld [vmem:[%s1 + $0x1548] sm:$0xff]
  %v702 = vld [vmem:[%s1 + $0x1550] sm:$0xff]
  %v703 = vld [vmem:[%s1 + $0x1558] sm:$0xff]
  %v704 = vld [vmem:[%s1 + $0x1560] sm:$0xff]
  %v705 = vld [vmem:[%s1 + $0x1568] sm:$0xff]
  %v706 = vld [vmem:[%s1 + $0x1570] sm:$0xff]
  %v707 = vld [vmem:[%s1 + $0x1578] sm:$0xff]
  %v708 = vld [vmem:[%s1 + $0x1580] sm:$0xff]
  %v709 = vld [vmem:[%s1 + $0x1588] sm:$0xff]
  %v710 = vld [vmem:[%s1 + $0x1590] sm:$0xff]
  %v711 = vld [vmem:[%s1 + $0x1598] sm:$0xff]
  %v712 = vld [vmem:[%s1 + $0x15a0] sm:$0xff]
  %v713 = vld [vmem:[%s1 + $0x15a8] sm:$0xff]
  %v714 = vld [vmem:[%s1 + $0x15b0] sm:$0xff]
  %v715 = vld [vmem:[%s1 + $0x15b8] sm:$0xff]
  %v716 = vld [vmem:[%s1 + $0x15c0] sm:$0xff]
  %v717 = vld [vmem:[%s1 + $0x15c8] sm:$0xff]
  %v718 = vld [vmem:[%s1 + $0x15d0] sm:$0xff]
  %v719 = vld [vmem:[%s1 + $0x15d8] sm:$0xff]
  %v720 = vld [vmem:[%s1 + $0x15e0] sm:$0xff]
  %v721 = vld [vmem:[%s1 + $0x15e8] sm:$0xff]
  %v722 = vld [vmem:[%s1 + $0x15f0] sm:$0xff]
  %v723 = vld [vmem:[%s1 + $0x15f8] sm:$0xff]
  %v724 = vld [vmem:[%s1 + $0x1600] sm:$0xff]
  %v725 = vld [vmem:[%s1 + $0x1608] sm:$0xff]
  %v726 = vld [vmem:[%s1 + $0x1610] sm:$0xff]
  %v727 = vld [vmem:[%s1 + $0x1618] sm:$0xff]
  %v728 = vld [vmem:[%s1 + $0x1620] sm:$0xff]
  %v729 = vld [vmem:[%s1 + $0x1628] sm:$0xff]
  %v730 = vld [vmem:[%s1 + $0x1630] sm:$0xff]
  %v731 = vld [vmem:[%s1 + $0x1638] sm:$0xff]
  %v732 = vld [vmem:[%s1 + $0x1640] sm:$0xff]
  %v733 = vld [vmem:[%s1 + $0x1648] sm:$0xff]
  %v734 = vld [vmem:[%s1 + $0x1650] sm:$0xff]
  %v735 = vld [vmem:[%s1 + $0x1658] sm:$0xff]
  %v736 = vld [vmem:[%s1 + $0x1660] sm:$0xff]
  %v737 = vld [vmem:[%s1 + $0x1668] sm:$0xff]
  %v738 = vld [vmem:[%s1 + $0x1670] sm:$0xff]
  %v739 = vld [vmem:[%s1 + $0x1678] sm:$0xff]
  %v740 = vld [vmem:[%s1 + $0x1680] sm:$0xff]
  %v741 = vld [vmem:[%s1 + $0x1688] sm:$0xff]
  %v742 = vld [vmem:[%s1 + $0x1690] sm:$0xff]
  %v743 = vld [vmem:[%s1 + $0x1698] sm:$0xff]
  %v744 = vld [vmem:[%s1 + $0x16a0] sm:$0xff]
  %v745 = vld [vmem:[%s1 + $0x16a8] sm:$0xff]
  %v746 = vld [vmem:[%s1 + $0x16b0] sm:$0xff]
  %v747 = vld [vmem:[%s1 + $0x16b8] sm:$0xff]
  %v748 = vld [vmem:[%s1 + $0x16c0] sm:$0xff]
  %v749 = vld [vmem:[%s1 + $0x16c8] sm:$0xff]
  %v750 = vld [vmem:[%s1 + $0x16d0] sm:$0xff]
  %v751 = vld [vmem:[%s1 + $0x16d8] sm:$0xff]
  %v752 = vld [vmem:[%s1 + $0x16e0] sm:$0xff]
  %v753 = vld [vmem:[%s1 + $0x16e8] sm:$0xff]
  %v754 = vld [vmem:[%s1 + $0x16f0] sm:$0xff]
  %v755 = vld [vmem:[%s1 + $0x16f8] sm:$0xff]
  %v756 = vld [vmem:[%s1 + $0x1700] sm:$0xff]
  %v757 = vld [vmem:[%s1 + $0x1708] sm:$0xff]
  %v758 = vld [vmem:[%s1 + $0x1710] sm:$0xff]
  %v759 = vld [vmem:[%s1 + $0x1718] sm:$0xff]
  %v760 = vld [vmem:[%s1 + $0x1720] sm:$0xff]
  %v761 = vld [vmem:[%s1 + $0x1728] sm:$0xff]
  %v762 = vld [vmem:[%s1 + $0x1730] sm:$0xff]
  %v763 = vld [vmem:[%s1 + $0x1738] sm:$0xff]
  %v764 = vld [vmem:[%s1 + $0x1740] sm:$0xff]
  %v765 = vld [vmem:[%s1 + $0x1748] sm:$0xff]
  %v766 = vld [vmem:[%s1 + $0x1750] sm:$0xff]
  %v767 = vld [vmem:[%s1 + $0x1758] sm:$0xff]
  %v768 = vld [vmem:[%s1 + $0x1760] sm:$0xff]
  %v769 = vld [vmem:[%s1 + $0x1768] sm:$0xff]
  %v770 = vld [vmem:[%s1 + $0x1770] sm:$0xff]
  %v771 = vld [vmem:[%s1 + $0x1778] sm:$0xff]
  %v772 = vld [vmem:[%s1 + $0x1780] sm:$0xff]
  %v773 = vld [vmem:[%s1 + $0x1788] sm:$0xff]
  %v774 = vld [vmem:[%s1 + $0x1790] sm:$0xff]
  %v775 = vld [vmem:[%s1 + $0x1798] sm:$0xff]
  %v776 = vld [vmem:[%s1 + $0x17a0] sm:$0xff]
  %v777 = vld [vmem:[%s1 + $0x17a8] sm:$0xff]
  %v778 = vld [vmem:[%s1 + $0x17b0] sm:$0xff]
  %v779 = vld [vmem:[%s1 + $0x17b8] sm:$0xff]
  %v780 = vld [vmem:[%s1 + $0x17c0] sm:$0xff]
  %v781 = vld [vmem:[%s1 + $0x17c8] sm:$0xff]
  %v782 = vld [vmem:[%s1 + $0x17d0] sm:$0xff]
  %v783 = vld [vmem:[%s1 + $0x17d8] sm:$0xff]
  %v784 = vld [vmem:[%s1 + $0x17e0] sm:$0xff]
  %v785 = vld [vmem:[%s1 + $0x17e8] sm:$0xff]
  %v786 = vld [vmem:[%s1 + $0x17f0] sm:$0xff]
  %v787 = vld [vmem:[%s1 + $0x17f8] sm:$0xff]
  %v788 = vld [vmem:[%s1 + $0x1800] sm:$0xff]
  %v789 = vld [vmem:[%s1 + $0x1808] sm:$0xff]
  %v790 = vld [vmem:[%s1 + $0x1810] sm:$0xff]
  %v791 = vld [vmem:[%s1 + $0x1818] sm:$0xff]
  %v792 = vld [vmem:[%s1 + $0x1820] sm:$0xff]
  %v793 = vld [vmem:[%s1 + $0x1828] sm:$0xff]
  %v794 = vld [vmem:[%s1 + $0x1830] sm:$0xff]
  %v795 = vld [vmem:[%s1 + $0x1838] sm:$0xff]
  %v796 = vld [vmem:[%s1 + $0x1840] sm:$0xff]
  %v797 = vld [vmem:[%s1 + $0x1848] sm:$0xff]
  %v798 = vld [vmem:[%s1 + $0x1850] sm:$0xff]
  %v799 = vld [vmem:[%s1 + $0x1858] sm:$0xff]
  %v800 = vld [vmem:[%s1 + $0x1860] sm:$0xff]
  %v801 = vld [vmem:[%s1 + $0x1868] sm:$0xff]
  %v802 = vld [vmem:[%s1 + $0x1870] sm:$0xff]
  %v803 = vld [vmem:[%s1 + $0x1878] sm:$0xff]
  %v804 = vld [vmem:[%s1 + $0x1880] sm:$0xff]
  %v805 = vld [vmem:[%s1 + $0x1888] sm:$0xff]
  %v806 = vld [vmem:[%s1 + $0x1890] sm:$0xff]
  %v807 = vld [vmem:[%s1 + $0x1898] sm:$0xff]
  %v808 = vld [vmem:[%s1 + $0x18a0] sm:$0xff]
  %v809 = vld [vmem:[%s1 + $0x18a8] sm:$0xff]
  %v810 = vld [vmem:[%s1 + $0x18b0] sm:$0xff]
  %v811 = vld [vmem:[%s1 + $0x18b8] sm:$0xff]
  %v812 = vld [vmem:[%s1 + $0x18c0] sm:$0xff]
  %v813 = vld [vmem:[%s1 + $0x18c8] sm:$0xff]
  %v814 = vld [vmem:[%s1 + $0x18d0] sm:$0xff]
  %v815 = vld [vmem:[%s1 + $0x18d8] sm:$0xff]
  %v816 = vld [vmem:[%s1 + $0x18e0] sm:$0xff]
  %v817 = vld [vmem:[%s1 + $0x18e8] sm:$0xff]
  %v818 = vld [vmem:[%s1 + $0x18f0] sm:$0xff]
  %v819 = vld [vmem:[%s1 + $0x18f8] sm:$0xff]
  %v820 = vld [vmem:[%s1 + $0x1900] sm:$0xff]
  %v821 = vld [vmem:[%s1 + $0x1908] sm:$0xff]
  %v822 = vld [vmem:[%s1 + $0x1910] sm:$0xff]
  %v823 = vld [vmem:[%s1 + $0x1918] sm:$0xff]
  %v824 = vld [vmem:[%s1 + $0x1920] sm:$0xff]
  %v825 = vld [vmem:[%s1 + $0x1928] sm:$0xff]
  %v826 = vld [vmem:[%s1 + $0x1930] sm:$0xff]
  %v827 = vld [vmem:[%s1 + $0x1938] sm:$0xff]
  %v828 = vld [vmem:[%s1 + $0x1940] sm:$0xff]
  %v829 = vld [vmem:[%s1 + $0x1948] sm:$0xff]
  %v830 = vld [vmem:[%s1 + $0x1950] sm:$0xff]
  %v831 = vld [vmem:[%s1 + $0x1958] sm:$0xff]
  %v832 = vld [vmem:[%s1 + $0x1960] sm:$0xff]
  %v833 = vld [vmem:[%s1 + $0x1968] sm:$0xff]
  %v834 = vld [vmem:[%s1 + $0x1970] sm:$0xff]
  %v835 = vld [vmem:[%s1 + $0x1978] sm:$0xff]
  %v836 = vld [vmem:[%s1 + $0x1980] sm:$0xff]
  %v837 = vld [vmem:[%s1 + $0x1988] sm:$0xff]
  %v838 = vld [vmem:[%s1 + $0x1990] sm:$0xff]
  %v839 = vld [vmem:[%s1 + $0x1998] sm:$0xff]
  %v840 = vld [vmem:[%s1 + $0x19a0] sm:$0xff]
  %v841 = vld [vmem:[%s1 + $0x19a8] sm:$0xff]
  %v842 = vld [vmem:[%s1 + $0x19b0] sm:$0xff]
  %v843 = vld [vmem:[%s1 + $0x19b8] sm:$0xff]
  %v844 = vld [vmem:[%s1 + $0x19c0] sm:$0xff]
  %v845 = vld [vmem:[%s1 + $0x19c8] sm:$0xff]
  %v846 = vld [vmem:[%s1 + $0x19d0] sm:$0xff]
  %v847 = vld [vmem:[%s1 + $0x19d8] sm:$0xff]
  %v848 = vld [vmem:[%s1 + $0x19e0] sm:$0xff]
  %v849 = vld [vmem:[%s1 + $0x19e8] sm:$0xff]
  %v850 = vld [vmem:[%s1 + $0x19f0] sm:$0xff]
  %v851 = vld [vmem:[%s1 + $0x19f8] sm:$0xff]
  %v852 = vld [vmem:[%s1 + $0x1a00] sm:$0xff]
  %v853 = vld [vmem:[%s1 + $0x1a08] sm:$0xff]
  %v854 = vld [vmem:[%s1 + $0x1a10] sm:$0xff]
  %v855 = vld [vmem:[%s1 + $0x1a18] sm:$0xff]
  %v856 = vld [vmem:[%s1 + $0x1a20] sm:$0xff]
  %v857 = vld [vmem:[%s1 + $0x1a28] sm:$0xff]
  %v858 = vld [vmem:[%s1 + $0x1a30] sm:$0xff]
  %v859 = vld [vmem:[%s1 + $0x1a38] sm:$0xff]
  %v860 = vld [vmem:[%s1 + $0x1a40] sm:$0xff]
  %v861 = vld [vmem:[%s1 + $0x1a48] sm:$0xff]
  %v862 = vld [vmem:[%s1 + $0x1a50] sm:$0xff]
  %v863 = vld [vmem:[%s1 + $0x1a58] sm:$0xff]
  %v864 = vld [vmem:[%s1 + $0x1a60] sm:$0xff]
  %v865 = vld [vmem:[%s1 + $0x1a68] sm:$0xff]
  %v866 = vld [vmem:[%s1 + $0x1a70] sm:$0xff]
  %v867 = vld [vmem:[%s1 + $0x1a78] sm:$0xff]
  %v868 = vld [vmem:[%s1 + $0x1a80] sm:$0xff]
  %v869 = vld [vmem:[%s1 + $0x1a88] sm:$0xff]
  %v870 = vld [vmem:[%s1 + $0x1a90] sm:$0xff]
  %v871 = vld [vmem:[%s1 + $0x1a98] sm:$0xff]
  %v872 = vld [vmem:[%s1 + $0x1aa0] sm:$0xff]
  %v873 = vld [vmem:[%s1 + $0x1aa8] sm:$0xff]
  %v874 = vld [vmem:[%s1 + $0x1ab0] sm:$0xff]
  %v875 = vld [vmem:[%s1 + $0x1ab8] sm:$0xff]
  %v876 = vld [vmem:[%s1 + $0x1ac0] sm:$0xff]
  %v877 = vld [vmem:[%s1 + $0x1ac8] sm:$0xff]
  %v878 = vld [vmem:[%s1 + $0x1ad0] sm:$0xff]
  %v879 = vld [vmem:[%s1 + $0x1ad8] sm:$0xff]
  %v880 = vld [vmem:[%s1 + $0x1ae0] sm:$0xff]
  %v881 = vld [vmem:[%s1 + $0x1ae8] sm:$0xff]
  %v882 = vld [vmem:[%s1 + $0x1af0] sm:$0xff]
  %v883 = vld [vmem:[%s1 + $0x1af8] sm:$0xff]
  %v884 = vld [vmem:[%s1 + $0x1b00] sm:$0xff]
  %v885 = vld [vmem:[%s1 + $0x1b08] sm:$0xff]
  %v886 = vld [vmem:[%s1 + $0x1b10] sm:$0xff]
  %v887 = vld [vmem:[%s1 + $0x1b18] sm:$0xff]
  %v888 = vld [vmem:[%s1 + $0x1b20] sm:$0xff]
  %v889 = vld [vmem:[%s1 + $0x1b28] sm:$0xff]
  %v890 = vld [vmem:[%s1 + $0x1b30] sm:$0xff]
  %v891 = vld [vmem:[%s1 + $0x1b38] sm:$0xff]
  %v892 = vld [vmem:[%s1 + $0x1b40] sm:$0xff]
  %v893 = vld [vmem:[%s1 + $0x1b48] sm:$0xff]
  %v894 = vld [vmem:[%s1 + $0x1b50] sm:$0xff]
  %v895 = vld [vmem:[%s1 + $0x1b58] sm:$0xff]
  %v896 = vld [vmem:[%s1 + $0x1b60] sm:$0xff]
  %v897 = vld [vmem:[%s1 + $0x1b68] sm:$0xff]
  %v898 = vld [vmem:[%s1 + $0x1b70] sm:$0xff]
  %v899 = vld [vmem:[%s1 + $0x1b78] sm:$0xff]
  %v900 = vld [vmem:[%s1 + $0x1b80] sm:$0xff]
  %v901 = vld [vmem:[%s1 + $0x1b88] sm:$0xff]
  %v902 = vld [vmem:[%s1 + $0x1b90] sm:$0xff]
  %v903 = vld [vmem:[%s1 + $0x1b98] sm:$0xff]
  %v904 = vld [vmem:[%s1 + $0x1ba0] sm:$0xff]
  %v905 = vld [vmem:[%s1 + $0x1ba8] sm:$0xff]
  %v906 = vld [vmem:[%s1 + $0x1bb0] sm:$0xff]
  %v907 = vld [vmem:[%s1 + $0x1bb8] sm:$0xff]
  %v908 = vld [vmem:[%s1 + $0x1bc0] sm:$0xff]
  %v909 = vld [vmem:[%s1 + $0x1bc8] sm:$0xff]
  %v910 = vld [vmem:[%s1 + $0x1bd0] sm:$0xff]
  %v911 = vld [vmem:[%s1 + $0x1bd8] sm:$0xff]
  %v912 = vld [vmem:[%s1 + $0x1be0] sm:$0xff]
  %v913 = vld [vmem:[%s1 + $0x1be8] sm:$0xff]
  %v914 = vld [vmem:[%s1 + $0x1bf0] sm:$0xff]
  %v915 = vld [vmem:[%s1 + $0x1bf8] sm:$0xff]
  %v916 = vld [vmem:[%s1 + $0x1c00] sm:$0xff]
  %v917 = vld [vmem:[%s1 + $0x1c08] sm:$0xff]
  %v918 = vld [vmem:[%s1 + $0x1c10] sm:$0xff]
  %v919 = vld [vmem:[%s1 + $0x1c18] sm:$0xff]
  %v920 = vld [vmem:[%s1 + $0x1c20] sm:$0xff]
  %v921 = vld [vmem:[%s1 + $0x1c28] sm:$0xff]
  %v922 = vld [vmem:[%s1 + $0x1c30] sm:$0xff]
  %v923 = vld [vmem:[%s1 + $0x1c38] sm:$0xff]
  %v924 = vld [vmem:[%s1 + $0x1c40] sm:$0xff]
  %v925 = vld [vmem:[%s1 + $0x1c48] sm:$0xff]
  %v926 = vld [vmem:[%s1 + $0x1c50] sm:$0xff]
  %v927 = vld [vmem:[%s1 + $0x1c58] sm:$0xff]
  %v928 = vld [vmem:[%s1 + $0x1c60] sm:$0xff]
  %v929 = vld [vmem:[%s1 + $0x1c68] sm:$0xff]
  %v930 = vld [vmem:[%s1 + $0x1c70] sm:$0xff]
  %v931 = vld [vmem:[%s1 + $0x1c78] sm:$0xff]
  %v932 = vld [vmem:[%s1 + $0x1c80] sm:$0xff]
  %v933 = vld [vmem:[%s1 + $0x1c88] sm:$0xff]
  %v934 = vld [vmem:[%s1 + $0x1c90] sm:$0xff]
  %v935 = vld [vmem:[%s1 + $0x1c98] sm:$0xff]
  %v936 = vld [vmem:[%s1 + $0x1ca0] sm:$0xff]
  %v937 = vld [vmem:[%s1 + $0x1ca8] sm:$0xff]
  %v938 = vld [vmem:[%s1 + $0x1cb0] sm:$0xff]
  %v939 = vld [vmem:[%s1 + $0x1cb8] sm:$0xff]
  %v940 = vld [vmem:[%s1 + $0x1cc0] sm:$0xff]
  %v941 = vld [vmem:[%s1 + $0x1cc8] sm:$0xff]
  %v942 = vld [vmem:[%s1 + $0x1cd0] sm:$0xff]
  %v943 = vld [vmem:[%s1 + $0x1cd8] sm:$0xff]
  %v944 = vld [vmem:[%s1 + $0x1ce0] sm:$0xff]
  %v945 = vld [vmem:[%s1 + $0x1ce8] sm:$0xff]
  %v946 = vld [vmem:[%s1 + $0x1cf0] sm:$0xff]
  %v947 = vld [vmem:[%s1 + $0x1cf8] sm:$0xff]
  %v948 = vld [vmem:[%s1 + $0x1d00] sm:$0xff]
  %v949 = vld [vmem:[%s1 + $0x1d08] sm:$0xff]
  %v950 = vld [vmem:[%s1 + $0x1d10] sm:$0xff]
  %v951 = vld [vmem:[%s1 + $0x1d18] sm:$0xff]
  %v952 = vld [vmem:[%s1 + $0x1d20] sm:$0xff]
  %v953 = vld [vmem:[%s1 + $0x1d28] sm:$0xff]
  %v954 = vld [vmem:[%s1 + $0x1d30] sm:$0xff]
  %v955 = vld [vmem:[%s1 + $0x1d38] sm:$0xff]
  %v956 = vld [vmem:[%s1 + $0x1d40] sm:$0xff]
  %v957 = vld [vmem:[%s1 + $0x1d48] sm:$0xff]
  %v958 = vld [vmem:[%s1 + $0x1d50] sm:$0xff]
  %v959 = vld [vmem:[%s1 + $0x1d58] sm:$0xff]
  %v960 = vld [vmem:[%s1 + $0x1d60] sm:$0xff]
  %v961 = vld [vmem:[%s1 + $0x1d68] sm:$0xff]
  %v962 = vld [vmem:[%s1 + $0x1d70] sm:$0xff]
  %v963 = vld [vmem:[%s1 + $0x1d78] sm:$0xff]
  %v964 = vld [vmem:[%s1 + $0x1d80] sm:$0xff]
  %v965 = vld [vmem:[%s1 + $0x1d88] sm:$0xff]
  %v966 = vld [vmem:[%s1 + $0x1d90] sm:$0xff]
  %v967 = vld [vmem:[%s1 + $0x1d98] sm:$0xff]
  %v968 = vld [vmem:[%s1 + $0x1da0] sm:$0xff]
  %v969 = vld [vmem:[%s1 + $0x1da8] sm:$0xff]
  %v970 = vld [vmem:[%s1 + $0x1db0] sm:$0xff]
  %v971 = vld [vmem:[%s1 + $0x1db8] sm:$0xff]
  %v972 = vld [vmem:[%s1 + $0x1dc0] sm:$0xff]
  %v973 = vld [vmem:[%s1 + $0x1dc8] sm:$0xff]
  %v974 = vld [vmem:[%s1 + $0x1dd0] sm:$0xff]
  %v975 = vld [vmem:[%s1 + $0x1dd8] sm:$0xff]
  %v976 = vld [vmem:[%s1 + $0x1de0] sm:$0xff]
  %v977 = vld [vmem:[%s1 + $0x1de8] sm:$0xff]
  %v978 = vld [vmem:[%s1 + $0x1df0] sm:$0xff]
  %v979 = vld [vmem:[%s1 + $0x1df8] sm:$0xff]
  %v980 = vld [vmem:[%s1 + $0x1e00] sm:$0xff]
  %v981 = vld [vmem:[%s1 + $0x1e08] sm:$0xff]
  %v982 = vld [vmem:[%s1 + $0x1e10] sm:$0xff]
  %v983 = vld [vmem:[%s1 + $0x1e18] sm:$0xff]
  %v984 = vld [vmem:[%s1 + $0x1e20] sm:$0xff]
  %v985 = vld [vmem:[%s1 + $0x1e28] sm:$0xff]
  %v986 = vld [vmem:[%s1 + $0x1e30] sm:$0xff]
  %v987 = vld [vmem:[%s1 + $0x1e38] sm:$0xff]
  %v988 = vld [vmem:[%s1 + $0x1e40] sm:$0xff]
  %v989 = vld [vmem:[%s1 + $0x1e48] sm:$0xff]
  %v990 = vld [vmem:[%s1 + $0x1e50] sm:$0xff]
  %v991 = vld [vmem:[%s1 + $0x1e58] sm:$0xff]
  %v992 = vld [vmem:[%s1 + $0x1e60] sm:$0xff]
  %v993 = vld [vmem:[%s1 + $0x1e68] sm:$0xff]
  %v994 = vld [vmem:[%s1 + $0x1e70] sm:$0xff]
  %v995 = vld [vmem:[%s1 + $0x1e78] sm:$0xff]
  %v996 = vld [vmem:[%s1 + $0x1e80] sm:$0xff]
  %v997 = vld [vmem:[%s1 + $0x1e88] sm:$0xff]
  %v998 = vld [vmem:[%s1 + $0x1e90] sm:$0xff]
  %v999 = vld [vmem:[%s1 + $0x1e98] sm:$0xff]
  %v1000 = vld [vmem:[%s1 + $0x1ea0] sm:$0xff]
  %v1001 = vld [vmem:[%s1 + $0x1ea8] sm:$0xff]
  %v1002 = vld [vmem:[%s1 + $0x1eb0] sm:$0xff]
  %v1003 = vld [vmem:[%s1 + $0x1eb8] sm:$0xff]
  %v1004 = vld [vmem:[%s1 + $0x1ec0] sm:$0xff]
  %v1005 = vld [vmem:[%s1 + $0x1ec8] sm:$0xff]
  %v1006 = vld [vmem:[%s1 + $0x1ed0] sm:$0xff]
  %v1007 = vld [vmem:[%s1 + $0x1ed8] sm:$0xff]
  %v1008 = vld [vmem:[%s1 + $0x1ee0] sm:$0xff]
  %v1009 = vld [vmem:[%s1 + $0x1ee8] sm:$0xff]
  %v1010 = vld [vmem:[%s1 + $0x1ef0] sm:$0xff]
  %v1011 = vld [vmem:[%s1 + $0x1ef8] sm:$0xff]
  %v1012 = vld [vmem:[%s1 + $0x1f00] sm:$0xff]
  %v1013 = vld [vmem:[%s1 + $0x1f08] sm:$0xff]
  %v1014 = vld [vmem:[%s1 + $0x1f10] sm:$0xff]
  %v1015 = vld [vmem:[%s1 + $0x1f18] sm:$0xff]
  %v1016 = vld [vmem:[%s1 + $0x1f20] sm:$0xff]
  %v1017 = vld [vmem:[%s1 + $0x1f28] sm:$0xff]
  %v1018 = vld [vmem:[%s1 + $0x1f30] sm:$0xff]
  %v1019 = vld [vmem:[%s1 + $0x1f38] sm:$0xff]
  %v1020 = vld [vmem:[%s1 + $0x1f40] sm:$0xff]
  %v1021 = vld [vmem:[%s1 + $0x1f48] sm:$0xff]
  %v1022 = vld [vmem:[%s1 + $0x1f50] sm:$0xff]
  %v1023 = vld [vmem:[%s1 + $0x1f58] sm:$0xff]
  %v1024 = vld [vmem:[%s1 + $0x1f60] sm:$0xff]
  %v1025 = vld [vmem:[%s1 + $0x1f68] sm:$0xff]
  %v1026 = vld [vmem:[%s1 + $0x1f70] sm:$0xff]
  %v1027 = vld [vmem:[%s1 + $0x1f78] sm:$0xff]
  %v1028 = vld [vmem:[%s1 + $0x1f80] sm:$0xff]
  %v1029 = vld [vmem:[%s1 + $0x1f88] sm:$0xff]
  %v1030 = vld [vmem:[%s1 + $0x1f90] sm:$0xff]
  %v1031 = vld [vmem:[%s1 + $0x1f98] sm:$0xff]
  %v1032 = vld [vmem:[%s1 + $0x1fa0] sm:$0xff]
  %v1033 = vld [vmem:[%s1 + $0x1fa8] sm:$0xff]
  %v1034 = vld [vmem:[%s1 + $0x1fb0] sm:$0xff]
  %v1035 = vld [vmem:[%s1 + $0x1fb8] sm:$0xff]
  %v1036 = vld [vmem:[%s1 + $0x1fc0] sm:$0xff]
  %v1037 = vld [vmem:[%s1 + $0x1fc8] sm:$0xff]
  %v1038 = vld [vmem:[%s1 + $0x1fd0] sm:$0xff]
  %v1039 = vld [vmem:[%s1 + $0x1fd8] sm:$0xff]
  %v1040 = vld [vmem:[%s1 + $0x1fe0] sm:$0xff]
  %v1041 = vld [vmem:[%s1 + $0x1fe8] sm:$0xff]
  %v1042 = vld [vmem:[%s1 + $0x1ff0] sm:$0xff]
  %v1043 = vld [vmem:[%s1 + $0x1ff8] sm:$0xff]
  %v1044 = vld [vmem:[%s1 + $0x2000] sm:$0xff]
  %v1045 = vld [vmem:[%s1 + $0x2008] sm:$0xff]
  %v1046 = vld [vmem:[%s1 + $0x2010] sm:$0xff]
  %v1047 = vld [vmem:[%s1 + $0x2018] sm:$0xff]
  %v1048 = vld [vmem:[%s1 + $0x2020] sm:$0xff]
  %v1049 = vld [vmem:[%s1 + $0x2028] sm:$0xff]
  %v1050 = vld [vmem:[%s1 + $0x2030] sm:$0xff]
  %v1051 = vld [vmem:[%s1 + $0x2038] sm:$0xff]
  %v1052 = vld [vmem:[%s1 + $0x2040] sm:$0xff]
  %v1053 = vld [vmem:[%s1 + $0x2048] sm:$0xff]
  %v1054 = vld [vmem:[%s1 + $0x2050] sm:$0xff]
  %v1055 = vld [vmem:[%s1 + $0x2058] sm:$0xff]
  %v1056 = vld [vmem:[%s1 + $0x2060] sm:$0xff]
  %v1057 = vld [vmem:[%s1 + $0x2068] sm:$0xff]
  %v1058 = vld [vmem:[%s1 + $0x2070] sm:$0xff]
  %v1059 = vld [vmem:[%s1 + $0x2078] sm:$0xff]
  %v1060 = vld [vmem:[%s1 + $0x2080] sm:$0xff]
  %v1061 = vld [vmem:[%s1 + $0x2088] sm:$0xff]
  %v1062 = vld [vmem:[%s1 + $0x2090] sm:$0xff]
  %v1063 = vld [vmem:[%s1 + $0x2098] sm:$0xff]
  %v1064 = vld [vmem:[%s1 + $0x20a0] sm:$0xff]
  %v1065 = vld [vmem:[%s1 + $0x20a8] sm:$0xff]
  %v1066 = vld [vmem:[%s1 + $0x20b0] sm:$0xff]
  %v1067 = vld [vmem:[%s1 + $0x20b8] sm:$0xff]
  %v1068 = vld [vmem:[%s1 + $0x20c0] sm:$0xff]
  %v1069 = vld [vmem:[%s1 + $0x20c8] sm:$0xff]
  %v1070 = vld [vmem:[%s1 + $0x20d0] sm:$0xff]
  %v1071 = vld [vmem:[%s1 + $0x20d8] sm:$0xff]
  %v1072 = vld [vmem:[%s1 + $0x20e0] sm:$0xff]
  %v1073 = vld [vmem:[%s1 + $0x20e8] sm:$0xff]
  %v1074 = vld [vmem:[%s1 + $0x20f0] sm:$0xff]
  %v1075 = vld [vmem:[%s1 + $0x20f8] sm:$0xff]
  %v1076 = vld [vmem:[%s1 + $0x2100] sm:$0xff]
  %v1077 = vld [vmem:[%s1 + $0x2108] sm:$0xff]
  %v1078 = vld [vmem:[%s1 + $0x2110] sm:$0xff]
  %v1079 = vld [vmem:[%s1 + $0x2118] sm:$0xff]
  %v1080 = vld [vmem:[%s1 + $0x2120] sm:$0xff]
  %v1081 = vld [vmem:[%s1 + $0x2128] sm:$0xff]
  %v1082 = vld [vmem:[%s1 + $0x2130] sm:$0xff]
  %v1083 = vld [vmem:[%s1 + $0x2138] sm:$0xff]
  %v1084 = vld [vmem:[%s1 + $0x2140] sm:$0xff]
  %v1085 = vld [vmem:[%s1 + $0x2148] sm:$0xff]
  %v1086 = vld [vmem:[%s1 + $0x2150] sm:$0xff]
  %v1087 = vld [vmem:[%s1 + $0x2158] sm:$0xff]
  %v1088 = vld [vmem:[%s1 + $0x2160] sm:$0xff]
  %v1089 = vld [vmem:[%s1 + $0x2168] sm:$0xff]
  %v1090 = vld [vmem:[%s1 + $0x2170] sm:$0xff]
  %v1091 = vld [vmem:[%s1 + $0x2178] sm:$0xff]
  %v1092 = vld [vmem:[%s1 + $0x2180] sm:$0xff]
  %v1093 = vld [vmem:[%s1 + $0x2188] sm:$0xff]
  %v1094 = vld [vmem:[%s1 + $0x2190] sm:$0xff]
  %v1095 = vld [vmem:[%s1 + $0x2198] sm:$0xff]
  %v1096 = vld [vmem:[%s1 + $0x21a0] sm:$0xff]
  %v1097 = vld [vmem:[%s1 + $0x21a8] sm:$0xff]
  %v1098 = vld [vmem:[%s1 + $0x21b0] sm:$0xff]
  %v1099 = vld [vmem:[%s1 + $0x21b8] sm:$0xff]
  %v1100 = vld [vmem:[%s1 + $0x21c0] sm:$0xff]
  %v1101 = vld [vmem:[%s1 + $0x21c8] sm:$0xff]
  %v1102 = vld [vmem:[%s1 + $0x21d0] sm:$0xff]
  %v1103 = vld [vmem:[%s1 + $0x21d8] sm:$0xff]
  %v1104 = vld [vmem:[%s1 + $0x21e0] sm:$0xff]
  %v1105 = vld [vmem:[%s1 + $0x21e8] sm:$0xff]
  %v1106 = vld [vmem:[%s1 + $0x21f0] sm:$0xff]
  %v1107 = vld [vmem:[%s1 + $0x21f8] sm:$0xff]
  %v1108 = vld [vmem:[%s1 + $0x2200] sm:$0xff]
  %v1109 = vld [vmem:[%s1 + $0x2208] sm:$0xff]
  %v1110 = vld [vmem:[%s1 + $0x2210] sm:$0xff]
  %v1111 = vld [vmem:[%s1 + $0x2218] sm:$0xff]
  %v1112 = vld [vmem:[%s1 + $0x2220] sm:$0xff]
  %v1113 = vld [vmem:[%s1 + $0x2228] sm:$0xff]
  %v1114 = vld [vmem:[%s1 + $0x2230] sm:$0xff]
  %v1115 = vld [vmem:[%s1 + $0x2238] sm:$0xff]
  %v1116 = vld [vmem:[%s1 + $0x2240] sm:$0xff]
  %v1117 = vld [vmem:[%s1 + $0x2248] sm:$0xff]
  %v1118 = vld [vmem:[%s1 + $0x2250] sm:$0xff]
  %v1119 = vld [vmem:[%s1 + $0x2258] sm:$0xff]
  %v1120 = vld [vmem:[%s1 + $0x2260] sm:$0xff]
  %v1121 = vld [vmem:[%s1 + $0x2268] sm:$0xff]
  %v1122 = vld [vmem:[%s1 + $0x2270] sm:$0xff]
  %v1123 = vld [vmem:[%s1 + $0x2278] sm:$0xff]
  %v1124 = vld [vmem:[%s1 + $0x2280] sm:$0xff]
  %v1125 = vld [vmem:[%s1 + $0x2288] sm:$0xff]
  %v1126 = vld [vmem:[%s1 + $0x2290] sm:$0xff]
  %v1127 = vld [vmem:[%s1 + $0x2298] sm:$0xff]
  %v1128 = vld [vmem:[%s1 + $0x22a0] sm:$0xff]
  %v1129 = vld [vmem:[%s1 + $0x22a8] sm:$0xff]
  %v1130 = vld [vmem:[%s1 + $0x22b0] sm:$0xff]
  %v1131 = vld [vmem:[%s1 + $0x22b8] sm:$0xff]
  %v1132 = vld [vmem:[%s1 + $0x22c0] sm:$0xff]
  %v1133 = vld [vmem:[%s1 + $0x22c8] sm:$0xff]
  %v1134 = vld [vmem:[%s1 + $0x22d0] sm:$0xff]
  %v1135 = vld [vmem:[%s1 + $0x22d8] sm:$0xff]
  %v1136 = vld [vmem:[%s1 + $0x22e0] sm:$0xff]
  %v1137 = vld [vmem:[%s1 + $0x22e8] sm:$0xff]
  %v1138 = vld [vmem:[%s1 + $0x22f0] sm:$0xff]
  %v1139 = vld [vmem:[%s1 + $0x22f8] sm:$0xff]
  %v1140 = vld [vmem:[%s1 + $0x2300] sm:$0xff]
  %v1141 = vld [vmem:[%s1 + $0x2308] sm:$0xff]
  %v1142 = vld [vmem:[%s1 + $0x2310] sm:$0xff]
  %v1143 = vld [vmem:[%s1 + $0x2318] sm:$0xff]
  %v1144 = vld [vmem:[%s1 + $0x2320] sm:$0xff]
  %v1145 = vld [vmem:[%s1 + $0x2328] sm:$0xff]
  %v1146 = vld [vmem:[%s1 + $0x2330] sm:$0xff]
  %v1147 = vld [vmem:[%s1 + $0x2338] sm:$0xff]
  %v1148 = vld [vmem:[%s1 + $0x2340] sm:$0xff]
  %v1149 = vld [vmem:[%s1 + $0x2348] sm:$0xff]
  %v1150 = vld [vmem:[%s1 + $0x2350] sm:$0xff]
  %v1151 = vld [vmem:[%s1 + $0x2358] sm:$0xff]
  %v1152 = vld [vmem:[%s1 + $0x2360] sm:$0xff]
  %v1153 = vld [vmem:[%s1 + $0x2368] sm:$0xff]
  %v1154 = vld [vmem:[%s1 + $0x2370] sm:$0xff]
  %v1155 = vld [vmem:[%s1 + $0x2378] sm:$0xff]
  %v1156 = vld [vmem:[%s1 + $0x2380] sm:$0xff]
  %v1157 = vld [vmem:[%s1 + $0x2388] sm:$0xff]
  %v1158 = vld [vmem:[%s1 + $0x2390] sm:$0xff]
  %v1159 = vld [vmem:[%s1 + $0x2398] sm:$0xff]
  %v1160 = vld [vmem:[%s1 + $0x23a0] sm:$0xff]
  %v1161 = vld [vmem:[%s1 + $0x23a8] sm:$0xff]
  %v1162 = vld [vmem:[%s1 + $0x23b0] sm:$0xff]
  %v1163 = vld [vmem:[%s1 + $0x23b8] sm:$0xff]
  %v1164 = vld [vmem:[%s1 + $0x23c0] sm:$0xff]
  %v1165 = vld [vmem:[%s1 + $0x23c8] sm:$0xff]
  %v1166 = vld [vmem:[%s1 + $0x23d0] sm:$0xff]
  %v1167 = vld [vmem:[%s1 + $0x23d8] sm:$0xff]
  %v1168 = vld [vmem:[%s1 + $0x23e0] sm:$0xff]
  %v1169 = vld [vmem:[%s1 + $0x23e8] sm:$0xff]
  %v1170 = vld [vmem:[%s1 + $0x23f0] sm:$0xff]
  %v1171 = vld [vmem:[%s1 + $0x23f8] sm:$0xff]
  %v1172 = vld [vmem:[%s1 + $0x2400] sm:$0xff]
  %v1173 = vld [vmem:[%s1 + $0x2408] sm:$0xff]
  %v1174 = vld [vmem:[%s1 + $0x2410] sm:$0xff]
  %v1175 = vld [vmem:[%s1 + $0x2418] sm:$0xff]
  %v1176 = vld [vmem:[%s1 + $0x2420] sm:$0xff]
  %v1177 = vld [vmem:[%s1 + $0x2428] sm:$0xff]
  %v1178 = vld [vmem:[%s1 + $0x2430] sm:$0xff]
  %v1179 = vld [vmem:[%s1 + $0x2438] sm:$0xff]
  %v1180 = vld [vmem:[%s1 + $0x2440] sm:$0xff]
  %v1181 = vld [vmem:[%s1 + $0x2448] sm:$0xff]
  %v1182 = vld [vmem:[%s1 + $0x2450] sm:$0xff]
  %v1183 = vld [vmem:[%s1 + $0x2458] sm:$0xff]
  %v1184 = vld [vmem:[%s1 + $0x2460] sm:$0xff]
  %v1185 = vld [vmem:[%s1 + $0x2468] sm:$0xff]
  %v1186 = vld [vmem:[%s1 + $0x2470] sm:$0xff]
  %v1187 = vld [vmem:[%s1 + $0x2478] sm:$0xff]
  %v1188 = vld [vmem:[%s1 + $0x2480] sm:$0xff]
  %v1189 = vld [vmem:[%s1 + $0x2488] sm:$0xff]
  %v1190 = vld [vmem:[%s1 + $0x2490] sm:$0xff]
  %v1191 = vld [vmem:[%s1 + $0x2498] sm:$0xff]
  %v1192 = vld [vmem:[%s1 + $0x24a0] sm:$0xff]
  %v1193 = vld [vmem:[%s1 + $0x24a8] sm:$0xff]
  %v1194 = vld [vmem:[%s1 + $0x24b0] sm:$0xff]
  %v1195 = vld [vmem:[%s1 + $0x24b8] sm:$0xff]
  %v1196 = vld [vmem:[%s1 + $0x24c0] sm:$0xff]
  %v1197 = vld [vmem:[%s1 + $0x24c8] sm:$0xff]
  %v1198 = vld [vmem:[%s1 + $0x24d0] sm:$0xff]
  %v1199 = vld [vmem:[%s1 + $0x24d8] sm:$0xff]
  %v1200 = vld [vmem:[%s1 + $0x24e0] sm:$0xff]
  %v1201 = vld [vmem:[%s1 + $0x24e8] sm:$0xff]
  %v1202 = vld [vmem:[%s1 + $0x24f0] sm:$0xff]
  %v1203 = vld [vmem:[%s1 + $0x24f8] sm:$0xff]
  %v1204 = vld [vmem:[%s1 + $0x2500] sm:$0xff]
  %v1205 = vld [vmem:[%s1 + $0x2508] sm:$0xff]
  %v1206 = vld [vmem:[%s1 + $0x2510] sm:$0xff]
  %v1207 = vld [vmem:[%s1 + $0x2518] sm:$0xff]
  %v1208 = vld [vmem:[%s1 + $0x2520] sm:$0xff]
  %v1209 = vld [vmem:[%s1 + $0x2528] sm:$0xff]
  %v1210 = vld [vmem:[%s1 + $0x2530] sm:$0xff]
  %v1211 = vld [vmem:[%s1 + $0x2538] sm:$0xff]
  %v1212 = vld [vmem:[%s1 + $0x2540] sm:$0xff]
  %v1213 = vld [vmem:[%s1 + $0x2548] sm:$0xff]
  %v1214 = vld [vmem:[%s1 + $0x2550] sm:$0xff]
  %v1215 = vld [vmem:[%s1 + $0x2558] sm:$0xff]
  %v1216 = vld [vmem:[%s1 + $0x2560] sm:$0xff]
  %v1217 = vld [vmem:[%s1 + $0x2568] sm:$0xff]
  %v1218 = vld [vmem:[%s1 + $0x2570] sm:$0xff]
  %v1219 = vld [vmem:[%s1 + $0x2578] sm:$0xff]
  %v1220 = vld [vmem:[%s1 + $0x2580] sm:$0xff]
  %v1221 = vld [vmem:[%s1 + $0x2588] sm:$0xff]
  %v1222 = vld [vmem:[%s1 + $0x2590] sm:$0xff]
  %v1223 = vld [vmem:[%s1 + $0x2598] sm:$0xff]
  %v1224 = vld [vmem:[%s1 + $0x25a0] sm:$0xff]
  %v1225 = vld [vmem:[%s1 + $0x25a8] sm:$0xff]
  %v1226 = vld [vmem:[%s1 + $0x25b0] sm:$0xff]
  %v1227 = vld [vmem:[%s1 + $0x25b8] sm:$0xff]
  %v1228 = vld [vmem:[%s1 + $0x25c0] sm:$0xff]
  %v1229 = vld [vmem:[%s1 + $0x25c8] sm:$0xff]
  %v1230 = vld [vmem:[%s1 + $0x25d0] sm:$0xff]
  %v1231 = vld [vmem:[%s1 + $0x25d8] sm:$0xff]
  %v1232 = vld [vmem:[%s1 + $0x25e0] sm:$0xff]
  %v1233 = vld [vmem:[%s1 + $0x25e8] sm:$0xff]
  %v1234 = vld [vmem:[%s1 + $0x25f0] sm:$0xff]
  %v1235 = vld [vmem:[%s1 + $0x25f8] sm:$0xff]
  %v1236 = vld [vmem:[%s1 + $0x2600] sm:$0xff]
  %v1237 = vld [vmem:[%s1 + $0x2608] sm:$0xff]
  %v1238 = vld [vmem:[%s1 + $0x2610] sm:$0xff]
  %v1239 = vld [vmem:[%s1 + $0x2618] sm:$0xff]
  %v1240 = vld [vmem:[%s1 + $0x2620] sm:$0xff]
  %v1241 = vld [vmem:[%s1 + $0x2628] sm:$0xff]
  %v1242 = vld [vmem:[%s1 + $0x2630] sm:$0xff]
  %v1243 = vld [vmem:[%s1 + $0x2638] sm:$0xff]
  %v1244 = vld [vmem:[%s1 + $0x2640] sm:$0xff]
  %v1245 = vld [vmem:[%s1 + $0x2648] sm:$0xff]
  %v1246 = vld [vmem:[%s1 + $0x2650] sm:$0xff]
  %v1247 = vld [vmem:[%s1 + $0x2658] sm:$0xff]
  %v1248 = vld [vmem:[%s1 + $0x2660] sm:$0xff]
  %v1249 = vld [vmem:[%s1 + $0x2668] sm:$0xff]
  %v1250 = vld [vmem:[%s1 + $0x2670] sm:$0xff]
  %v1251 = vld [vmem:[%s1 + $0x2678] sm:$0xff]
  %v1252 = vld [vmem:[%s1 + $0x2680] sm:$0xff]
  %v1253 = vld [vmem:[%s1 + $0x2688] sm:$0xff]
  %v1254 = vld [vmem:[%s1 + $0x2690] sm:$0xff]
  %v1255 = vld [vmem:[%s1 + $0x2698] sm:$0xff]
  %v1256 = vld [vmem:[%s1 + $0x26a0] sm:$0xff]
  %v1257 = vld [vmem:[%s1 + $0x26a8] sm:$0xff]
  %v1258 = vld [vmem:[%s1 + $0x26b0] sm:$0xff]
  %v1259 = vld [vmem:[%s1 + $0x26b8] sm:$0xff]
  %v1260 = vld [vmem:[%s1 + $0x26c0] sm:$0xff]
  %v1261 = vld [vmem:[%s1 + $0x26c8] sm:$0xff]
  %v1262 = vld [vmem:[%s1 + $0x26d0] sm:$0xff]
  %v1263 = vld [vmem:[%s1 + $0x26d8] sm:$0xff]
  %v1264 = vld [vmem:[%s1 + $0x26e0] sm:$0xff]
  %v1265 = vld [vmem:[%s1 + $0x26e8] sm:$0xff]
  %v1266 = vld [vmem:[%s1 + $0x26f0] sm:$0xff]
  %v1267 = vld [vmem:[%s1 + $0x26f8] sm:$0xff]
  %v1268 = vld [vmem:[%s1 + $0x2700] sm:$0xff]
  %v1269 = vld [vmem:[%s1 + $0x2708] sm:$0xff]
  %v1270 = vld [vmem:[%s1 + $0x2710] sm:$0xff]
  %v1271 = vld [vmem:[%s1 + $0x2718] sm:$0xff]
  %v1272 = vld [vmem:[%s1 + $0x2720] sm:$0xff]
  %v1273 = vld [vmem:[%s1 + $0x2728] sm:$0xff]
  %v1274 = vld [vmem:[%s1 + $0x2730] sm:$0xff]
  %v1275 = vld [vmem:[%s1 + $0x2738] sm:$0xff]
  %v1276 = vld [vmem:[%s1 + $0x2740] sm:$0xff]
  %v1277 = vld [vmem:[%s1 + $0x2748] sm:$0xff]
  %v1278 = vld [vmem:[%s1 + $0x2750] sm:$0xff]
  %v1279 = vld [vmem:[%s1 + $0x2758] sm:$0xff]
  %v1280 = vld [vmem:[%s1 + $0x2760] sm:$0xff]
  %v1281 = vld [vmem:[%s1 + $0x2768] sm:$0xff]
  %v1282 = vld [vmem:[%s1 + $0x2770] sm:$0xff]
  %v1283 = vld [vmem:[%s1 + $0x2778] sm:$0xff]
  %v1284 = vld [vmem:[%s1 + $0x2780] sm:$0xff]
  %v1285 = vld [vmem:[%s1 + $0x2788] sm:$0xff]
  %v1286 = vld [vmem:[%s1 + $0x2790] sm:$0xff]
  %v1287 = vld [vmem:[%s1 + $0x2798] sm:$0xff]
  %v1288 = vld [vmem:[%s1 + $0x27a0] sm:$0xff]
  %v1289 = vld [vmem:[%s1 + $0x27a8] sm:$0xff]
  %v1290 = vld [vmem:[%s1 + $0x27b0] sm:$0xff]
  %v1291 = vld [vmem:[%s1 + $0x27b8] sm:$0xff]
  %v1292 = vld [vmem:[%s1 + $0x27c0] sm:$0xff]
  %v1293 = vld [vmem:[%s1 + $0x27c8] sm:$0xff]
  %v1294 = vld [vmem:[%s1 + $0x27d0] sm:$0xff]
  %v1295 = vld [vmem:[%s1 + $0x27d8] sm:$0xff]
  %v1296 = vld [vmem:[%s1 + $0x27e0] sm:$0xff]
  %v1297 = vld [vmem:[%s1 + $0x27e8] sm:$0xff]
  %v1298 = vld [vmem:[%s1 + $0x27f0] sm:$0xff]
  %v1299 = vld [vmem:[%s1 + $0x27f8] sm:$0xff]
  %v1300 = vld [vmem:[%s1 + $0x2800] sm:$0xff]
  %v1301 = vld [vmem:[%s1 + $0x2808] sm:$0xff]
  %v1302 = vld [vmem:[%s1 + $0x2810] sm:$0xff]
  %v1303 = vld [vmem:[%s1 + $0x2818] sm:$0xff]
  %v1304 = vld [vmem:[%s1 + $0x2820] sm:$0xff]
  %v1305 = vld [vmem:[%s1 + $0x2828] sm:$0xff]
  %v1306 = vld [vmem:[%s1 + $0x2830] sm:$0xff]
  %v1307 = vld [vmem:[%s1 + $0x2838] sm:$0xff]
  %v1308 = vld [vmem:[%s1 + $0x2840] sm:$0xff]
  %v1309 = vld [vmem:[%s1 + $0x2848] sm:$0xff]
  %v1310 = vld [vmem:[%s1 + $0x2850] sm:$0xff]
  %v1311 = vld [vmem:[%s1 + $0x2858] sm:$0xff]
  %v1312 = vld [vmem:[%s1 + $0x2860] sm:$0xff]
  %v1313 = vld [vmem:[%s1 + $0x2868] sm:$0xff]
  %v1314 = vld [vmem:[%s1 + $0x2870] sm:$0xff]
  %v1315 = vld [vmem:[%s1 + $0x2878] sm:$0xff]
  %v1316 = vld [vmem:[%s1 + $0x2880] sm:$0xff]
  %v1317 = vld [vmem:[%s1 + $0x2888] sm:$0xff]
  %v1318 = vld [vmem:[%s1 + $0x2890] sm:$0xff]
  %v1319 = vld [vmem:[%s1 + $0x2898] sm:$0xff]
  %v1320 = vld [vmem:[%s1 + $0x28a0] sm:$0xff]
  %v1321 = vld [vmem:[%s1 + $0x28a8] sm:$0xff]
  %v1322 = vld [vmem:[%s1 + $0x28b0] sm:$0xff]
  %v1323 = vld [vmem:[%s1 + $0x28b8] sm:$0xff]
  %v1324 = vld [vmem:[%s1 + $0x28c0] sm:$0xff]
  %v1325 = vld [vmem:[%s1 + $0x28c8] sm:$0xff]
  %v1326 = vld [vmem:[%s1 + $0x28d0] sm:$0xff]
  %v1327 = vld [vmem:[%s1 + $0x28d8] sm:$0xff]
  %v1328 = vld [vmem:[%s1 + $0x28e0] sm:$0xff]
  %v1329 = vld [vmem:[%s1 + $0x28e8] sm:$0xff]
  %v1330 = vld [vmem:[%s1 + $0x28f0] sm:$0xff]
  %v1331 = vld [vmem:[%s1 + $0x28f8] sm:$0xff]
  %v1332 = vld [vmem:[%s1 + $0x2900] sm:$0xff]
  %v1333 = vld [vmem:[%s1 + $0x2908] sm:$0xff]
  %v1334 = vld [vmem:[%s1 + $0x2910] sm:$0xff]
  %v1335 = vld [vmem:[%s1 + $0x2918] sm:$0xff]
  %v1336 = vld [vmem:[%s1 + $0x2920] sm:$0xff]
  %v1337 = vld [vmem:[%s1 + $0x2928] sm:$0xff]
  %v1338 = vld [vmem:[%s1 + $0x2930] sm:$0xff]
  %v1339 = vld [vmem:[%s1 + $0x2938] sm:$0xff]
  %v1340 = vld [vmem:[%s1 + $0x2940] sm:$0xff]
  %v1341 = vld [vmem:[%s1 + $0x2948] sm:$0xff]
  %v1342 = vld [vmem:[%s1 + $0x2950] sm:$0xff]
  %v1343 = vld [vmem:[%s1 + $0x2958] sm:$0xff]
  %v1344 = vld [vmem:[%s1 + $0x2960] sm:$0xff]
  %v1345 = vld [vmem:[%s1 + $0x2968] sm:$0xff]
  %v1346 = vld [vmem:[%s1 + $0x2970] sm:$0xff]
  %v1347 = vld [vmem:[%s1 + $0x2978] sm:$0xff]
  %v1348 = vld [vmem:[%s1 + $0x2980] sm:$0xff]
  %v1349 = vld [vmem:[%s1 + $0x2988] sm:$0xff]
  %v1350 = vld [vmem:[%s1 + $0x2990] sm:$0xff]
  %v1351 = vld [vmem:[%s1 + $0x2998] sm:$0xff]
  %v1352 = vld [vmem:[%s1 + $0x29a0] sm:$0xff]
  %v1353 = vld [vmem:[%s1 + $0x29a8] sm:$0xff]
  %v1354 = vld [vmem:[%s1 + $0x29b0] sm:$0xff]
  %v1355 = vld [vmem:[%s1 + $0x29b8] sm:$0xff]
  %v1356 = vld [vmem:[%s1 + $0x29c0] sm:$0xff]
  %v1357 = vld [vmem:[%s1 + $0x29c8] sm:$0xff]
  %v1358 = vld [vmem:[%s1 + $0x29d0] sm:$0xff]
  %v1359 = vld [vmem:[%s1 + $0x29d8] sm:$0xff]
  %v1360 = vld [vmem:[%s1 + $0x29e0] sm:$0xff]
  %v1361 = vld [vmem:[%s1 + $0x29e8] sm:$0xff]
  %v1362 = vld [vmem:[%s1 + $0x29f0] sm:$0xff]
  %v1363 = vld [vmem:[%s1 + $0x29f8] sm:$0xff]
  %v1364 = vld [vmem:[%s1 + $0x2a00] sm:$0xff]
  %v1365 = vld [vmem:[%s1 + $0x2a08] sm:$0xff]
  %v1366 = vld [vmem:[%s1 + $0x2a10] sm:$0xff]
  %v1367 = vld [vmem:[%s1 + $0x2a18] sm:$0xff]
  %v1368 = vld [vmem:[%s1 + $0x2a20] sm:$0xff]
  %v1369 = vld [vmem:[%s1 + $0x2a28] sm:$0xff]
  %v1370 = vld [vmem:[%s1 + $0x2a30] sm:$0xff]
  %v1371 = vld [vmem:[%s1 + $0x2a38] sm:$0xff]
  %v1372 = vld [vmem:[%s1 + $0x2a40] sm:$0xff]
  %v1373 = vld [vmem:[%s1 + $0x2a48] sm:$0xff]
  %v1374 = vld [vmem:[%s1 + $0x2a50] sm:$0xff]
  %v1375 = vld [vmem:[%s1 + $0x2a58] sm:$0xff]
  %v1376 = vld [vmem:[%s1 + $0x2a60] sm:$0xff]
  %v1377 = vld [vmem:[%s1 + $0x2a68] sm:$0xff]
  %v1378 = vld [vmem:[%s1 + $0x2a70] sm:$0xff]
  %v1379 = vld [vmem:[%s1 + $0x2a78] sm:$0xff]
  %v1380 = vld [vmem:[%s1 + $0x2a80] sm:$0xff]
  %v1381 = vld [vmem:[%s1 + $0x2a88] sm:$0xff]
  %v1382 = vld [vmem:[%s1 + $0x2a90] sm:$0xff]
  %v1383 = vld [vmem:[%s1 + $0x2a98] sm:$0xff]
  %v1384 = vld [vmem:[%s1 + $0x2aa0] sm:$0xff]
  %v1385 = vld [vmem:[%s1 + $0x2aa8] sm:$0xff]
  %v1386 = vld [vmem:[%s1 + $0x2ab0] sm:$0xff]
  %v1387 = vld [vmem:[%s1 + $0x2ab8] sm:$0xff]
  %v1388 = vld [vmem:[%s1 + $0x2ac0] sm:$0xff]
  %v1389 = vld [vmem:[%s1 + $0x2ac8] sm:$0xff]
  %v1390 = vld [vmem:[%s1 + $0x2ad0] sm:$0xff]
  %v1391 = vld [vmem:[%s1 + $0x2ad8] sm:$0xff]
  %v1392 = vld [vmem:[%s1 + $0x2ae0] sm:$0xff]
  %v1393 = vld [vmem:[%s1 + $0x2ae8] sm:$0xff]
  %v1394 = vld [vmem:[%s1 + $0x2af0] sm:$0xff]
  %v1395 = vld [vmem:[%s1 + $0x2af8] sm:$0xff]
  %v1396 = vld [vmem:[%s1 + $0x2b00] sm:$0xff]
  %v1397 = vld [vmem:[%s1 + $0x2b08] sm:$0xff]
  %v1398 = vld [vmem:[%s1 + $0x2b10] sm:$0xff]
  %v1399 = vld [vmem:[%s1 + $0x2b18] sm:$0xff]
  %v1400 = vld [vmem:[%s1 + $0x2b20] sm:$0xff]
  %v1401 = vld [vmem:[%s1 + $0x2b28] sm:$0xff]
  %v1402 = vld [vmem:[%s1 + $0x2b30] sm:$0xff]
  %v1403 = vld [vmem:[%s1 + $0x2b38] sm:$0xff]
  %v1404 = vld [vmem:[%s1 + $0x2b40] sm:$0xff]
  %v1405 = vld [vmem:[%s1 + $0x2b48] sm:$0xff]
  %v1406 = vld [vmem:[%s1 + $0x2b50] sm:$0xff]
  %v1407 = vld [vmem:[%s1 + $0x2b58] sm:$0xff]
  %v1408 = vld [vmem:[%s1 + $0x2b60] sm:$0xff]
  %v1409 = vld [vmem:[%s1 + $0x2b68] sm:$0xff]
  %v1410 = vld [vmem:[%s1 + $0x2b70] sm:$0xff]
  %v1411 = vld [vmem:[%s1 + $0x2b78] sm:$0xff]
  %v1412 = vld [vmem:[%s1 + $0x2b80] sm:$0xff]
  %v1413 = vld [vmem:[%s1 + $0x2b88] sm:$0xff]
  %v1414 = vld [vmem:[%s1 + $0x2b90] sm:$0xff]
  %v1415 = vld [vmem:[%s1 + $0x2b98] sm:$0xff]
  %v1416 = vld [vmem:[%s1 + $0x2ba0] sm:$0xff]
  %v1417 = vld [vmem:[%s1 + $0x2ba8] sm:$0xff]
  %v1418 = vld [vmem:[%s1 + $0x2bb0] sm:$0xff]
  %v1419 = vld [vmem:[%s1 + $0x2bb8] sm:$0xff]
  %v1420 = vld [vmem:[%s1 + $0x2bc0] sm:$0xff]
  %v1421 = vld [vmem:[%s1 + $0x2bc8] sm:$0xff]
  %v1422 = vld [vmem:[%s1 + $0x2bd0] sm:$0xff]
  %v1423 = vld [vmem:[%s1 + $0x2bd8] sm:$0xff]
  %v1424 = vld [vmem:[%s1 + $0x2be0] sm:$0xff]
  %v1425 = vld [vmem:[%s1 + $0x2be8] sm:$0xff]
  %v1426 = vld [vmem:[%s1 + $0x2bf0] sm:$0xff]
  %v1427 = vld [vmem:[%s1 + $0x2bf8] sm:$0xff]
  %v1428 = vld [vmem:[%s1 + $0x2c00] sm:$0xff]
  %v1429 = vld [vmem:[%s1 + $0x2c08] sm:$0xff]
  %v1430 = vld [vmem:[%s1 + $0x2c10] sm:$0xff]
  %v1431 = vld [vmem:[%s1 + $0x2c18] sm:$0xff]
  %v1432 = vld [vmem:[%s1 + $0x2c20] sm:$0xff]
  %v1433 = vld [vmem:[%s1 + $0x2c28] sm:$0xff]
  %v1434 = vld [vmem:[%s1 + $0x2c30] sm:$0xff]
  %v1435 = vld [vmem:[%s1 + $0x2c38] sm:$0xff]
  %v1436 = vld [vmem:[%s1 + $0x2c40] sm:$0xff]
  %v1437 = vld [vmem:[%s1 + $0x2c48] sm:$0xff]
  %v1438 = vld [vmem:[%s1 + $0x2c50] sm:$0xff]
  %v1439 = vld [vmem:[%s1 + $0x2c58] sm:$0xff]
  %v1440 = vld [vmem:[%s1 + $0x2c60] sm:$0xff]
  %v1441 = vld [vmem:[%s1 + $0x2c68] sm:$0xff]
  %v1442 = vld [vmem:[%s1 + $0x2c70] sm:$0xff]
  %v1443 = vld [vmem:[%s1 + $0x2c78] sm:$0xff]
  %v1444 = vld [vmem:[%s1 + $0x2c80] sm:$0xff]
  %v1445 = vld [vmem:[%s1 + $0x2c88] sm:$0xff]
  %v1446 = vld [vmem:[%s1 + $0x2c90] sm:$0xff]
  %v1447 = vld [vmem:[%s1 + $0x2c98] sm:$0xff]
  %v1448 = vld [vmem:[%s1 + $0x2ca0] sm:$0xff]
  %v1449 = vld [vmem:[%s1 + $0x2ca8] sm:$0xff]
  %v1450 = vld [vmem:[%s1 + $0x2cb0] sm:$0xff]
  %v1451 = vld [vmem:[%s1 + $0x2cb8] sm:$0xff]
  %v1452 = vld [vmem:[%s1 + $0x2cc0] sm:$0xff]
  %v1453 = vld [vmem:[%s1 + $0x2cc8] sm:$0xff]
  %v1454 = vld [vmem:[%s1 + $0x2cd0] sm:$0xff]
  %v1455 = vld [vmem:[%s1 + $0x2cd8] sm:$0xff]
  %v1456 = vld [vmem:[%s1 + $0x2ce0] sm:$0xff]
  %v1457 = vld [vmem:[%s1 + $0x2ce8] sm:$0xff]
  %v1458 = vld [vmem:[%s1 + $0x2cf0] sm:$0xff]
  %v1459 = vld [vmem:[%s1 + $0x2cf8] sm:$0xff]
  %v1460 = vld [vmem:[%s1 + $0x2d00] sm:$0xff]
  %v1461 = vld [vmem:[%s1 + $0x2d08] sm:$0xff]
  %v1462 = vld [vmem:[%s1 + $0x2d10] sm:$0xff]
  %v1463 = vld [vmem:[%s1 + $0x2d18] sm:$0xff]
  %v1464 = vld [vmem:[%s1 + $0x2d20] sm:$0xff]
  %v1465 = vld [vmem:[%s1 + $0x2d28] sm:$0xff]
  %v1466 = vld [vmem:[%s1 + $0x2d30] sm:$0xff]
  %v1467 = vld [vmem:[%s1 + $0x2d38] sm:$0xff]
  %v1468 = vld [vmem:[%s1 + $0x2d40] sm:$0xff]
  %v1469 = vld [vmem:[%s1 + $0x2d48] sm:$0xff]
  %v1470 = vld [vmem:[%s1 + $0x2d50] sm:$0xff]
  %v1471 = vld [vmem:[%s1 + $0x2d58] sm:$0xff]
  %v1472 = vld [vmem:[%s1 + $0x2d60] sm:$0xff]
  %v1473 = vld [vmem:[%s1 + $0x2d68] sm:$0xff]
  %v1474 = vld [vmem:[%s1 + $0x2d70] sm:$0xff]
  %v1475 = vld [vmem:[%s1 + $0x2d78] sm:$0xff]
  %v1476 = vld [vmem:[%s1 + $0x2d80] sm:$0xff]
  %v1477 = vld [vmem:[%s1 + $0x2d88] sm:$0xff]
  %v1478 = vld [vmem:[%s1 + $0x2d90] sm:$0xff]
  %v1479 = vld [vmem:[%s1 + $0x2d98] sm:$0xff]
  %v1480 = vld [vmem:[%s1 + $0x2da0] sm:$0xff]
  %v1481 = vld [vmem:[%s1 + $0x2da8] sm:$0xff]
  %v1482 = vld [vmem:[%s1 + $0x2db0] sm:$0xff]
  %v1483 = vld [vmem:[%s1 + $0x2db8] sm:$0xff]
  %v1484 = vld [vmem:[%s1 + $0x2dc0] sm:$0xff]
  %v1485 = vld [vmem:[%s1 + $0x2dc8] sm:$0xff]
  %v1486 = vld [vmem:[%s1 + $0x2dd0] sm:$0xff]
  %v1487 = vld [vmem:[%s1 + $0x2dd8] sm:$0xff]
  %v1488 = vld [vmem:[%s1 + $0x2de0] sm:$0xff]
  %v1489 = vld [vmem:[%s1 + $0x2de8] sm:$0xff]
  %v1490 = vld [vmem:[%s1 + $0x2df0] sm:$0xff]
  %v1491 = vld [vmem:[%s1 + $0x2df8] sm:$0xff]
  %v1492 = vld [vmem:[%s1 + $0x2e00] sm:$0xff]
  %v1493 = vld [vmem:[%s1 + $0x2e08] sm:$0xff]
  %v1494 = vld [vmem:[%s1 + $0x2e10] sm:$0xff]
  %v1495 = vld [vmem:[%s1 + $0x2e18] sm:$0xff]
  %v1496 = vld [vmem:[%s1 + $0x2e20] sm:$0xff]
  %v1497 = vld [vmem:[%s1 + $0x2e28] sm:$0xff]
  %v1498 = vld [vmem:[%s1 + $0x2e30] sm:$0xff]
  %v1499 = vld [vmem:[%s1 + $0x2e38] sm:$0xff]
  %v1500 = vld [vmem:[%s1 + $0x2e40] sm:$0xff]
  %v1501 = vld [vmem:[%s1 + $0x2e48] sm:$0xff]
  %v1502 = vld [vmem:[%s1 + $0x2e50] sm:$0xff]
  %v1503 = vld [vmem:[%s1 + $0x2e58] sm:$0xff]
  %v1504 = vld [vmem:[%s1 + $0x2e60] sm:$0xff]
  %v1505 = vld [vmem:[%s1 + $0x2e68] sm:$0xff]
  %v1506 = vld [vmem:[%s1 + $0x2e70] sm:$0xff]
  %v1507 = vld [vmem:[%s1 + $0x2e78] sm:$0xff]
  %v1508 = vld [vmem:[%s1 + $0x2e80] sm:$0xff]
  %v1509 = vld [vmem:[%s1 + $0x2e88] sm:$0xff]
  %v1510 = vld [vmem:[%s1 + $0x2e90] sm:$0xff]
  %v1511 = vld [vmem:[%s1 + $0x2e98] sm:$0xff]
  %v1512 = vld [vmem:[%s1 + $0x2ea0] sm:$0xff]
  %v1513 = vld [vmem:[%s1 + $0x2ea8] sm:$0xff]
  %v1514 = vld [vmem:[%s1 + $0x2eb0] sm:$0xff]
  %v1515 = vld [vmem:[%s1 + $0x2eb8] sm:$0xff]
  %v1516 = vld [vmem:[%s1 + $0x2ec0] sm:$0xff]
  %v1517 = vld [vmem:[%s1 + $0x2ec8] sm:$0xff]
  %v1518 = vld [vmem:[%s1 + $0x2ed0] sm:$0xff]
  %v1519 = vld [vmem:[%s1 + $0x2ed8] sm:$0xff]
  %v1520 = vld [vmem:[%s1 + $0x2ee0] sm:$0xff]
  %v1521 = vld [vmem:[%s1 + $0x2ee8] sm:$0xff]
  %v1522 = vld [vmem:[%s1 + $0x2ef0] sm:$0xff]
  %v1523 = vld [vmem:[%s1 + $0x2ef8] sm:$0xff]
  %v1524 = vld [vmem:[%s1 + $0x2f00] sm:$0xff]
  %v1525 = vld [vmem:[%s1 + $0x2f08] sm:$0xff]
  %v1526 = vld [vmem:[%s1 + $0x2f10] sm:$0xff]
  %v1527 = vld [vmem:[%s1 + $0x2f18] sm:$0xff]
  %v1528 = vld [vmem:[%s1 + $0x2f20] sm:$0xff]
  %v1529 = vld [vmem:[%s1 + $0x2f28] sm:$0xff]
  %v1530 = vld [vmem:[%s1 + $0x2f30] sm:$0xff]
  %v1531 = vld [vmem:[%s1 + $0x2f38] sm:$0xff]
  %v1532 = vld [vmem:[%s1 + $0x2f40] sm:$0xff]
  %v1533 = vld [vmem:[%s1 + $0x2f48] sm:$0xff]
  %v1534 = vld [vmem:[%s1 + $0x2f50] sm:$0xff]
  %v1535 = vld [vmem:[%s1 + $0x2f58] sm:$0xff]
  %v1536 = vld [vmem:[%s1 + $0x2f60] sm:$0xff]
  %v1537 = vld [vmem:[%s1 + $0x2f68] sm:$0xff]
  %v1538 = vld [vmem:[%s1 + $0x2f70] sm:$0xff]
  %v1539 = vld [vmem:[%s1 + $0x2f78] sm:$0xff]
  %v1540 = vld [vmem:[%s1 + $0x2f80] sm:$0xff]
  %v1541 = vld [vmem:[%s1 + $0x2f88] sm:$0xff]
  %v1542 = vld [vmem:[%s1 + $0x2f90] sm:$0xff]
  %v1543 = vld [vmem:[%s1 + $0x2f98] sm:$0xff]
  %v1544 = vld [vmem:[%s1 + $0x2fa0] sm:$0xff]
  %v1545 = vld [vmem:[%s1 + $0x2fa8] sm:$0xff]
  %v1546 = vld [vmem:[%s1 + $0x2fb0] sm:$0xff]
  %v1547 = vld [vmem:[%s1 + $0x2fb8] sm:$0xff]
  %v1548 = vld [vmem:[%s1 + $0x2fc0] sm:$0xff]
  %v1549 = vld [vmem:[%s1 + $0x2fc8] sm:$0xff]
  %v1550 = vld [vmem:[%s1 + $0x2fd0] sm:$0xff]
  %v1551 = vld [vmem:[%s1 + $0x2fd8] sm:$0xff]
  %v1552 = vld [vmem:[%s1 + $0x2fe0] sm:$0xff]
  %v1553 = vld [vmem:[%s1 + $0x2fe8] sm:$0xff]
  %v1554 = vld [vmem:[%s1 + $0x2ff0] sm:$0xff]
  %v1555 = vld [vmem:[%s1 + $0x2ff8] sm:$0xff]
  %v1556 = vld [vmem:[%s1 + $0x3000] sm:$0xff]
  %v1557 = vld [vmem:[%s1 + $0x3008] sm:$0xff]
  %v1558 = vld [vmem:[%s1 + $0x3010] sm:$0xff]
  %v1559 = vld [vmem:[%s1 + $0x3018] sm:$0xff]
  %v1560 = vld [vmem:[%s1 + $0x3020] sm:$0xff]
  %v1561 = vld [vmem:[%s1 + $0x3028] sm:$0xff]
  %v1562 = vld [vmem:[%s1 + $0x3030] sm:$0xff]
  %v1563 = vld [vmem:[%s1 + $0x3038] sm:$0xff]
  %v1564 = vld [vmem:[%s1 + $0x3040] sm:$0xff]
  %v1565 = vld [vmem:[%s1 + $0x3048] sm:$0xff]
  %v1566 = vld [vmem:[%s1 + $0x3050] sm:$0xff]
  %v1567 = vld [vmem:[%s1 + $0x3058] sm:$0xff]
  %v1568 = vld [vmem:[%s1 + $0x3060] sm:$0xff]
  %v1569 = vld [vmem:[%s1 + $0x3068] sm:$0xff]
  %v1570 = vld [vmem:[%s1 + $0x3070] sm:$0xff]
  %v1571 = vld [vmem:[%s1 + $0x3078] sm:$0xff]
  %v1572 = vld [vmem:[%s1 + $0x3080] sm:$0xff]
  %v1573 = vld [vmem:[%s1 + $0x3088] sm:$0xff]
  %v1574 = vld [vmem:[%s1 + $0x3090] sm:$0xff]
  %v1575 = vld [vmem:[%s1 + $0x3098] sm:$0xff]
  %v1576 = vld [vmem:[%s1 + $0x30a0] sm:$0xff]
  %v1577 = vld [vmem:[%s1 + $0x30a8] sm:$0xff]
  %v1578 = vld [vmem:[%s1 + $0x30b0] sm:$0xff]
  %v1579 = vld [vmem:[%s1 + $0x30b8] sm:$0xff]
  %v1580 = vld [vmem:[%s1 + $0x30c0] sm:$0xff]
  %v1581 = vld [vmem:[%s1 + $0x30c8] sm:$0xff]
  %v1582 = vld [vmem:[%s1 + $0x30d0] sm:$0xff]
  %v1583 = vld [vmem:[%s1 + $0x30d8] sm:$0xff]
  %v1584 = vld [vmem:[%s1 + $0x30e0] sm:$0xff]
  %v1585 = vld [vmem:[%s1 + $0x30e8] sm:$0xff]
  %v1586 = vld [vmem:[%s1 + $0x30f0] sm:$0xff]
  %v1587 = vld [vmem:[%s1 + $0x30f8] sm:$0xff]
  %v1588 = vld [vmem:[%s1 + $0x3100] sm:$0xff]
  %v1589 = vld [vmem:[%s1 + $0x3108] sm:$0xff]
  %v1590 = vld [vmem:[%s1 + $0x3110] sm:$0xff]
  %v1591 = vld [vmem:[%s1 + $0x3118] sm:$0xff]
  %v1592 = vld [vmem:[%s1 + $0x3120] sm:$0xff]
  %v1593 = vld [vmem:[%s1 + $0x3128] sm:$0xff]
  %v1594 = vld [vmem:[%s1 + $0x3130] sm:$0xff]
  %v1595 = vld [vmem:[%s1 + $0x3138] sm:$0xff]
  %v1596 = vld [vmem:[%s1 + $0x3140] sm:$0xff]
  %v1597 = vld [vmem:[%s1 + $0x3148] sm:$0xff]
  %v1598 = vld [vmem:[%s1 + $0x3150] sm:$0xff]
  %v1599 = vld [vmem:[%s1 + $0x3158] sm:$0xff]
  %v1600 = vld [vmem:[%s1 + $0x3160] sm:$0xff]
  %v1601 = vld [vmem:[%s1 + $0x3168] sm:$0xff]
  %v1602 = vld [vmem:[%s1 + $0x3170] sm:$0xff]
  %v1603 = vld [vmem:[%s1 + $0x3178] sm:$0xff]
  %v1604 = vld [vmem:[%s1 + $0x3180] sm:$0xff]
  %v1605 = vld [vmem:[%s1 + $0x3188] sm:$0xff]
  %v1606 = vld [vmem:[%s1 + $0x3190] sm:$0xff]
  %v1607 = vld [vmem:[%s1 + $0x3198] sm:$0xff]
  %v1608 = vld [vmem:[%s1 + $0x31a0] sm:$0xff]
  %v1609 = vld [vmem:[%s1 + $0x31a8] sm:$0xff]
  %v1610 = vld [vmem:[%s1 + $0x31b0] sm:$0xff]
  %v1611 = vld [vmem:[%s1 + $0x31b8] sm:$0xff]
  %v1612 = vld [vmem:[%s1 + $0x31c0] sm:$0xff]
  %v1613 = vld [vmem:[%s1 + $0x31c8] sm:$0xff]
  %v1614 = vld [vmem:[%s1 + $0x31d0] sm:$0xff]
  %v1615 = vld [vmem:[%s1 + $0x31d8] sm:$0xff]
  %v1616 = vld [vmem:[%s1 + $0x31e0] sm:$0xff]
  %v1617 = vld [vmem:[%s1 + $0x31e8] sm:$0xff]
  %v1618 = vld [vmem:[%s1 + $0x31f0] sm:$0xff]
  %v1619 = vld [vmem:[%s1 + $0x31f8] sm:$0xff]
  %v1620 = vld [vmem:[%s0] sm:$0xff]
  %v1621 = vld [vmem:[%s0 + $0x8] sm:$0xff]
  %v1622 = vld [vmem:[%s0 + $0x10] sm:$0xff]
  %v1623 = vld [vmem:[%s0 + $0x18] sm:$0xff]
  %v1624 = vld [vmem:[%s0 + $0x20] sm:$0xff]
  %v1625 = vld [vmem:[%s0 + $0x28] sm:$0xff]
  %v1626 = vld [vmem:[%s0 + $0x30] sm:$0xff]
  %v1627 = vld [vmem:[%s0 + $0x38] sm:$0xff]
  %v1628 = vld [vmem:[%s0 + $0x40] sm:$0xff]
  %v1629 = vld [vmem:[%s0 + $0x48] sm:$0xff]
  %v1630 = vld [vmem:[%s0 + $0x50] sm:$0xff]
  %v1631 = vld [vmem:[%s0 + $0x58] sm:$0xff]
  %v1632 = vld [vmem:[%s0 + $0x60] sm:$0xff]
  %v1633 = vld [vmem:[%s0 + $0x68] sm:$0xff]
  %v1634 = vld [vmem:[%s0 + $0x70] sm:$0xff]
  %v1635 = vld [vmem:[%s0 + $0x78] sm:$0xff]
  %v1636 = vld [vmem:[%s0 + $0x80] sm:$0xff]
  %v1637 = vld [vmem:[%s0 + $0x88] sm:$0xff]
  %v1638 = vld [vmem:[%s0 + $0x90] sm:$0xff]
  %v1639 = vld [vmem:[%s0 + $0x98] sm:$0xff]
  %v1640 = vld [vmem:[%s0 + $0xa0] sm:$0xff]
  %v1641 = vld [vmem:[%s0 + $0xa8] sm:$0xff]
  %v1642 = vld [vmem:[%s0 + $0xb0] sm:$0xff]
  %v1643 = vld [vmem:[%s0 + $0xb8] sm:$0xff]
  %v1644 = vld [vmem:[%s0 + $0xc0] sm:$0xff]
  %v1645 = vld [vmem:[%s0 + $0xc8] sm:$0xff]
  %v1646 = vld [vmem:[%s0 + $0xd0] sm:$0xff]
  %v1647 = vld [vmem:[%s0 + $0xd8] sm:$0xff]
  %v1648 = vld [vmem:[%s0 + $0xe0] sm:$0xff]
  %v1649 = vld [vmem:[%s0 + $0xe8] sm:$0xff]
  %v1650 = vld [vmem:[%s0 + $0xf0] sm:$0xff]
  %v1651 = vld [vmem:[%s0 + $0xf8] sm:$0xff]
  %v1652 = vld [vmem:[%s0 + $0x100] sm:$0xff]
  %v1653 = vld [vmem:[%s0 + $0x108] sm:$0xff]
  %v1654 = vld [vmem:[%s0 + $0x110] sm:$0xff]
  %v1655 = vld [vmem:[%s0 + $0x118] sm:$0xff]
  %v1656 = vld [vmem:[%s0 + $0x120] sm:$0xff]
  %v1657 = vld [vmem:[%s0 + $0x128] sm:$0xff]
  %v1658 = vld [vmem:[%s0 + $0x130] sm:$0xff]
  %v1659 = vld [vmem:[%s0 + $0x138] sm:$0xff]
  %v1660 = vld [vmem:[%s0 + $0x140] sm:$0xff]
  %v1661 = vld [vmem:[%s0 + $0x148] sm:$0xff]
  %v1662 = vld [vmem:[%s0 + $0x150] sm:$0xff]
  %v1663 = vld [vmem:[%s0 + $0x158] sm:$0xff]
  %v1664 = vld [vmem:[%s0 + $0x160] sm:$0xff]
  %v1665 = vld [vmem:[%s0 + $0x168] sm:$0xff]
  %v1666 = vld [vmem:[%s0 + $0x170] sm:$0xff]
  %v1667 = vld [vmem:[%s0 + $0x178] sm:$0xff]
  %v1668 = vld [vmem:[%s0 + $0x180] sm:$0xff]
  %v1669 = vld [vmem:[%s0 + $0x188] sm:$0xff]
  %v1670 = vld [vmem:[%s0 + $0x190] sm:$0xff]
  %v1671 = vld [vmem:[%s0 + $0x198] sm:$0xff]
  %v1672 = vld [vmem:[%s0 + $0x1a0] sm:$0xff]
  %v1673 = vld [vmem:[%s0 + $0x1a8] sm:$0xff]
  %v1674 = vld [vmem:[%s0 + $0x1b0] sm:$0xff]
  %v1675 = vld [vmem:[%s0 + $0x1b8] sm:$0xff]
  %v1676 = vld [vmem:[%s0 + $0x1c0] sm:$0xff]
  %v1677 = vld [vmem:[%s0 + $0x1c8] sm:$0xff]
  %v1678 = vld [vmem:[%s0 + $0x1d0] sm:$0xff]
  %v1679 = vld [vmem:[%s0 + $0x1d8] sm:$0xff]
  %v1680 = vld [vmem:[%s0 + $0x1e0] sm:$0xff]
  %v1681 = vld [vmem:[%s0 + $0x1e8] sm:$0xff]
  %v1682 = vld [vmem:[%s0 + $0x1f0] sm:$0xff]
  %v1683 = vld [vmem:[%s0 + $0x1f8] sm:$0xff]
  %v1684 = vld [vmem:[%s0 + $0x200] sm:$0xff]
  %v1685 = vld [vmem:[%s0 + $0x208] sm:$0xff]
  %v1686 = vld [vmem:[%s0 + $0x210] sm:$0xff]
  %v1687 = vld [vmem:[%s0 + $0x218] sm:$0xff]
  %v1688 = vld [vmem:[%s0 + $0x220] sm:$0xff]
  %v1689 = vld [vmem:[%s0 + $0x228] sm:$0xff]
  %v1690 = vld [vmem:[%s0 + $0x230] sm:$0xff]
  %v1691 = vld [vmem:[%s0 + $0x238] sm:$0xff]
  %v1692 = vld [vmem:[%s0 + $0x240] sm:$0xff]
  %v1693 = vld [vmem:[%s0 + $0x248] sm:$0xff]
  %v1694 = vld [vmem:[%s0 + $0x250] sm:$0xff]
  %v1695 = vld [vmem:[%s0 + $0x258] sm:$0xff]
  %v1696 = vld [vmem:[%s0 + $0x260] sm:$0xff]
  %v1697 = vld [vmem:[%s0 + $0x268] sm:$0xff]
  %v1698 = vld [vmem:[%s0 + $0x270] sm:$0xff]
  %v1699 = vld [vmem:[%s0 + $0x278] sm:$0xff]
  %v1700 = vld [vmem:[%s0 + $0x280] sm:$0xff]
  %v1701 = vld [vmem:[%s0 + $0x288] sm:$0xff]
  %v1702 = vld [vmem:[%s0 + $0x290] sm:$0xff]
  %v1703 = vld [vmem:[%s0 + $0x298] sm:$0xff]
  %v1704 = vld [vmem:[%s0 + $0x2a0] sm:$0xff]
  %v1705 = vld [vmem:[%s0 + $0x2a8] sm:$0xff]
  %v1706 = vld [vmem:[%s0 + $0x2b0] sm:$0xff]
  %v1707 = vld [vmem:[%s0 + $0x2b8] sm:$0xff]
  %v1708 = vld [vmem:[%s0 + $0x2c0] sm:$0xff]
  %v1709 = vld [vmem:[%s0 + $0x2c8] sm:$0xff]
  %v1710 = vld [vmem:[%s0 + $0x2d0] sm:$0xff]
  %v1711 = vld [vmem:[%s0 + $0x2d8] sm:$0xff]
  %v1712 = vld [vmem:[%s0 + $0x2e0] sm:$0xff]
  %v1713 = vld [vmem:[%s0 + $0x2e8] sm:$0xff]
  %v1714 = vld [vmem:[%s0 + $0x2f0] sm:$0xff]
  %v1715 = vld [vmem:[%s0 + $0x2f8] sm:$0xff]
  %v1716 = vld [vmem:[%s0 + $0x300] sm:$0xff]
  %v1717 = vld [vmem:[%s0 + $0x308] sm:$0xff]
  %v1718 = vld [vmem:[%s0 + $0x310] sm:$0xff]
  %v1719 = vld [vmem:[%s0 + $0x318] sm:$0xff]
  %v1720 = vld [vmem:[%s0 + $0x320] sm:$0xff]
  %v1721 = vld [vmem:[%s0 + $0x328] sm:$0xff]
  %v1722 = vld [vmem:[%s0 + $0x330] sm:$0xff]
  %v1723 = vld [vmem:[%s0 + $0x338] sm:$0xff]
  %v1724 = vld [vmem:[%s0 + $0x340] sm:$0xff]
  %v1725 = vld [vmem:[%s0 + $0x348] sm:$0xff]
  %v1726 = vld [vmem:[%s0 + $0x350] sm:$0xff]
  %v1727 = vld [vmem:[%s0 + $0x358] sm:$0xff]
  %v1728 = vld [vmem:[%s0 + $0x360] sm:$0xff]
  %v1729 = vld [vmem:[%s0 + $0x368] sm:$0xff]
  %v1730 = vld [vmem:[%s0 + $0x370] sm:$0xff]
  %v1731 = vld [vmem:[%s0 + $0x378] sm:$0xff]
  %v1732 = vld [vmem:[%s0 + $0x380] sm:$0xff]
  %v1733 = vld [vmem:[%s0 + $0x388] sm:$0xff]
  %v1734 = vld [vmem:[%s0 + $0x390] sm:$0xff]
  %v1735 = vld [vmem:[%s0 + $0x398] sm:$0xff]
  %v1736 = vld [vmem:[%s0 + $0x3a0] sm:$0xff]
  %v1737 = vld [vmem:[%s0 + $0x3a8] sm:$0xff]
  %v1738 = vld [vmem:[%s0 + $0x3b0] sm:$0xff]
  %v1739 = vld [vmem:[%s0 + $0x3b8] sm:$0xff]
  %v1740 = vld [vmem:[%s0 + $0x3c0] sm:$0xff]
  %v1741 = vld [vmem:[%s0 + $0x3c8] sm:$0xff]
  %v1742 = vld [vmem:[%s0 + $0x3d0] sm:$0xff]
  %v1743 = vld [vmem:[%s0 + $0x3d8] sm:$0xff]
  %v1744 = vld [vmem:[%s0 + $0x3e0] sm:$0xff]
  %v1745 = vld [vmem:[%s0 + $0x3e8] sm:$0xff]
  %v1746 = vld [vmem:[%s0 + $0x3f0] sm:$0xff]
  %v1747 = vld [vmem:[%s0 + $0x3f8] sm:$0xff]
  %v1748 = vld [vmem:[%s0 + $0x400] sm:$0xff]
  %v1749 = vld [vmem:[%s0 + $0x408] sm:$0xff]
  %v1750 = vld [vmem:[%s0 + $0x410] sm:$0xff]
  %v1751 = vld [vmem:[%s0 + $0x418] sm:$0xff]
  %v1752 = vld [vmem:[%s0 + $0x420] sm:$0xff]
  %v1753 = vld [vmem:[%s0 + $0x428] sm:$0xff]
  %v1754 = vld [vmem:[%s0 + $0x430] sm:$0xff]
  %v1755 = vld [vmem:[%s0 + $0x438] sm:$0xff]
  %v1756 = vld [vmem:[%s0 + $0x440] sm:$0xff]
  %v1757 = vld [vmem:[%s0 + $0x448] sm:$0xff]
  %v1758 = vld [vmem:[%s0 + $0x450] sm:$0xff]
  %v1759 = vld [vmem:[%s0 + $0x458] sm:$0xff]
  %v1760 = vld [vmem:[%s0 + $0x460] sm:$0xff]
  %v1761 = vld [vmem:[%s0 + $0x468] sm:$0xff]
  %v1762 = vld [vmem:[%s0 + $0x470] sm:$0xff]
  %v1763 = vld [vmem:[%s0 + $0x478] sm:$0xff]
  %v1764 = vld [vmem:[%s0 + $0x480] sm:$0xff]
  %v1765 = vld [vmem:[%s0 + $0x488] sm:$0xff]
  %v1766 = vld [vmem:[%s0 + $0x490] sm:$0xff]
  %v1767 = vld [vmem:[%s0 + $0x498] sm:$0xff]
  %v1768 = vld [vmem:[%s0 + $0x4a0] sm:$0xff]
  %v1769 = vld [vmem:[%s0 + $0x4a8] sm:$0xff]
  %v1770 = vld [vmem:[%s0 + $0x4b0] sm:$0xff]
  %v1771 = vld [vmem:[%s0 + $0x4b8] sm:$0xff]
  %v1772 = vld [vmem:[%s0 + $0x4c0] sm:$0xff]
  %v1773 = vld [vmem:[%s0 + $0x4c8] sm:$0xff]
  %v1774 = vld [vmem:[%s0 + $0x4d0] sm:$0xff]
  %v1775 = vld [vmem:[%s0 + $0x4d8] sm:$0xff]
  %v1776 = vld [vmem:[%s0 + $0x4e0] sm:$0xff]
  %v1777 = vld [vmem:[%s0 + $0x4e8] sm:$0xff]
  %v1778 = vld [vmem:[%s0 + $0x4f0] sm:$0xff]
  %v1779 = vld [vmem:[%s0 + $0x4f8] sm:$0xff]
  %v1780 = vld [vmem:[%s0 + $0x500] sm:$0xff]
  %v1781 = vld [vmem:[%s0 + $0x508] sm:$0xff]
  %v1782 = vld [vmem:[%s0 + $0x510] sm:$0xff]
  %v1783 = vld [vmem:[%s0 + $0x518] sm:$0xff]
  %v1784 = vld [vmem:[%s0 + $0x520] sm:$0xff]
  %v1785 = vld [vmem:[%s0 + $0x528] sm:$0xff]
  %v1786 = vld [vmem:[%s0 + $0x530] sm:$0xff]
  %v1787 = vld [vmem:[%s0 + $0x538] sm:$0xff]
  %v1788 = vld [vmem:[%s0 + $0x540] sm:$0xff]
  %v1789 = vld [vmem:[%s0 + $0x548] sm:$0xff]
  %v1790 = vld [vmem:[%s0 + $0x550] sm:$0xff]
  %v1791 = vld [vmem:[%s0 + $0x558] sm:$0xff]
  %v1792 = vld [vmem:[%s0 + $0x560] sm:$0xff]
  %v1793 = vld [vmem:[%s0 + $0x568] sm:$0xff]
  %v1794 = vld [vmem:[%s0 + $0x570] sm:$0xff]
  %v1795 = vld [vmem:[%s0 + $0x578] sm:$0xff]
  %v1796 = vld [vmem:[%s0 + $0x580] sm:$0xff]
  %v1797 = vld [vmem:[%s0 + $0x588] sm:$0xff]
  %v1798 = vld [vmem:[%s0 + $0x590] sm:$0xff]
  %v1799 = vld [vmem:[%s0 + $0x598] sm:$0xff]
  %v1800 = vld [vmem:[%s0 + $0x5a0] sm:$0xff]
  %v1801 = vld [vmem:[%s0 + $0x5a8] sm:$0xff]
  %v1802 = vld [vmem:[%s0 + $0x5b0] sm:$0xff]
  %v1803 = vld [vmem:[%s0 + $0x5b8] sm:$0xff]
  %v1804 = vld [vmem:[%s0 + $0x5c0] sm:$0xff]
  %v1805 = vld [vmem:[%s0 + $0x5c8] sm:$0xff]
  %v1806 = vld [vmem:[%s0 + $0x5d0] sm:$0xff]
  %v1807 = vld [vmem:[%s0 + $0x5d8] sm:$0xff]
  %v1808 = vld [vmem:[%s0 + $0x5e0] sm:$0xff]
  %v1809 = vld [vmem:[%s0 + $0x5e8] sm:$0xff]
  %v1810 = vld [vmem:[%s0 + $0x5f0] sm:$0xff]
  %v1811 = vld [vmem:[%s0 + $0x5f8] sm:$0xff]
  %v1812 = vld [vmem:[%s0 + $0x600] sm:$0xff]
  %v1813 = vld [vmem:[%s0 + $0x608] sm:$0xff]
  %v1814 = vld [vmem:[%s0 + $0x610] sm:$0xff]
  %v1815 = vld [vmem:[%s0 + $0x618] sm:$0xff]
  %v1816 = vld [vmem:[%s0 + $0x620] sm:$0xff]
  %v1817 = vld [vmem:[%s0 + $0x628] sm:$0xff]
  %v1818 = vld [vmem:[%s0 + $0x630] sm:$0xff]
  %v1819 = vld [vmem:[%s0 + $0x638] sm:$0xff]
  %v1820 = vld [vmem:[%s0 + $0x640] sm:$0xff]
  %v1821 = vld [vmem:[%s0 + $0x648] sm:$0xff]
  %v1822 = vld [vmem:[%s0 + $0x650] sm:$0xff]
  %v1823 = vld [vmem:[%s0 + $0x658] sm:$0xff]
  %v1824 = vld [vmem:[%s0 + $0x660] sm:$0xff]
  %v1825 = vld [vmem:[%s0 + $0x668] sm:$0xff]
  %v1826 = vld [vmem:[%s0 + $0x670] sm:$0xff]
  %v1827 = vld [vmem:[%s0 + $0x678] sm:$0xff]
  %v1828 = vld [vmem:[%s0 + $0x680] sm:$0xff]
  %v1829 = vld [vmem:[%s0 + $0x688] sm:$0xff]
  %v1830 = vld [vmem:[%s0 + $0x690] sm:$0xff]
  %v1831 = vld [vmem:[%s0 + $0x698] sm:$0xff]
  %v1832 = vld [vmem:[%s0 + $0x6a0] sm:$0xff]
  %v1833 = vld [vmem:[%s0 + $0x6a8] sm:$0xff]
  %v1834 = vld [vmem:[%s0 + $0x6b0] sm:$0xff]
  %v1835 = vld [vmem:[%s0 + $0x6b8] sm:$0xff]
  %v1836 = vld [vmem:[%s0 + $0x6c0] sm:$0xff]
  %v1837 = vld [vmem:[%s0 + $0x6c8] sm:$0xff]
  %v1838 = vld [vmem:[%s0 + $0x6d0] sm:$0xff]
  %v1839 = vld [vmem:[%s0 + $0x6d8] sm:$0xff]
  %v1840 = vld [vmem:[%s0 + $0x6e0] sm:$0xff]
  %v1841 = vld [vmem:[%s0 + $0x6e8] sm:$0xff]
  %v1842 = vld [vmem:[%s0 + $0x6f0] sm:$0xff]
  %v1843 = vld [vmem:[%s0 + $0x6f8] sm:$0xff]
  %v1844 = vld [vmem:[%s0 + $0x700] sm:$0xff]
  %v1845 = vld [vmem:[%s0 + $0x708] sm:$0xff]
  %v1846 = vld [vmem:[%s0 + $0x710] sm:$0xff]
  %v1847 = vld [vmem:[%s0 + $0x718] sm:$0xff]
  %v1848 = vld [vmem:[%s0 + $0x720] sm:$0xff]
  %v1849 = vld [vmem:[%s0 + $0x728] sm:$0xff]
  %v1850 = vld [vmem:[%s0 + $0x730] sm:$0xff]
  %v1851 = vld [vmem:[%s0 + $0x738] sm:$0xff]
  %v1852 = vld [vmem:[%s0 + $0x740] sm:$0xff]
  %v1853 = vld [vmem:[%s0 + $0x748] sm:$0xff]
  %v1854 = vld [vmem:[%s0 + $0x750] sm:$0xff]
  %v1855 = vld [vmem:[%s0 + $0x758] sm:$0xff]
  %v1856 = vld [vmem:[%s0 + $0x760] sm:$0xff]
  %v1857 = vld [vmem:[%s0 + $0x768] sm:$0xff]
  %v1858 = vld [vmem:[%s0 + $0x770] sm:$0xff]
  %v1859 = vld [vmem:[%s0 + $0x778] sm:$0xff]
  %v1860 = vld [vmem:[%s0 + $0x780] sm:$0xff]
  %v1861 = vld [vmem:[%s0 + $0x788] sm:$0xff]
  %v1862 = vld [vmem:[%s0 + $0x790] sm:$0xff]
  %v1863 = vld [vmem:[%s0 + $0x798] sm:$0xff]
  %v1864 = vld [vmem:[%s0 + $0x7a0] sm:$0xff]
  %v1865 = vld [vmem:[%s0 + $0x7a8] sm:$0xff]
  %v1866 = vld [vmem:[%s0 + $0x7b0] sm:$0xff]
  %v1867 = vld [vmem:[%s0 + $0x7b8] sm:$0xff]
  %v1868 = vld [vmem:[%s0 + $0x7c0] sm:$0xff]
  %v1869 = vld [vmem:[%s0 + $0x7c8] sm:$0xff]
  %v1870 = vld [vmem:[%s0 + $0x7d0] sm:$0xff]
  %v1871 = vld [vmem:[%s0 + $0x7d8] sm:$0xff]
  %v1872 = vld [vmem:[%s0 + $0x7e0] sm:$0xff]
  %v1873 = vld [vmem:[%s0 + $0x7e8] sm:$0xff]
  %v1874 = vld [vmem:[%s0 + $0x7f0] sm:$0xff]
  %v1875 = vld [vmem:[%s0 + $0x7f8] sm:$0xff]
  %v1876 = vld [vmem:[%s0 + $0x800] sm:$0xff]
  %v1877 = vld [vmem:[%s0 + $0x808] sm:$0xff]
  %v1878 = vld [vmem:[%s0 + $0x810] sm:$0xff]
  %v1879 = vld [vmem:[%s0 + $0x818] sm:$0xff]
  %v1880 = vld [vmem:[%s0 + $0x820] sm:$0xff]
  %v1881 = vld [vmem:[%s0 + $0x828] sm:$0xff]
  %v1882 = vld [vmem:[%s0 + $0x830] sm:$0xff]
  %v1883 = vld [vmem:[%s0 + $0x838] sm:$0xff]
  %v1884 = vld [vmem:[%s0 + $0x840] sm:$0xff]
  %v1885 = vld [vmem:[%s0 + $0x848] sm:$0xff]
  %v1886 = vld [vmem:[%s0 + $0x850] sm:$0xff]
  %v1887 = vld [vmem:[%s0 + $0x858] sm:$0xff]
  %v1888 = vld [vmem:[%s0 + $0x860] sm:$0xff]
  %v1889 = vld [vmem:[%s0 + $0x868] sm:$0xff]
  %v1890 = vld [vmem:[%s0 + $0x870] sm:$0xff]
  %v1891 = vld [vmem:[%s0 + $0x878] sm:$0xff]
  %v1892 = vld [vmem:[%s0 + $0x880] sm:$0xff]
  %v1893 = vld [vmem:[%s0 + $0x888] sm:$0xff]
  %v1894 = vld [vmem:[%s0 + $0x890] sm:$0xff]
  %v1895 = vld [vmem:[%s0 + $0x898] sm:$0xff]
  %v1896 = vld [vmem:[%s0 + $0x8a0] sm:$0xff]
  %v1897 = vld [vmem:[%s0 + $0x8a8] sm:$0xff]
  %v1898 = vld [vmem:[%s0 + $0x8b0] sm:$0xff]
  %v1899 = vld [vmem:[%s0 + $0x8b8] sm:$0xff]
  %v1900 = vld [vmem:[%s0 + $0x8c0] sm:$0xff]
  %v1901 = vld [vmem:[%s0 + $0x8c8] sm:$0xff]
  %v1902 = vld [vmem:[%s0 + $0x8d0] sm:$0xff]
  %v1903 = vld [vmem:[%s0 + $0x8d8] sm:$0xff]
  %v1904 = vld [vmem:[%s0 + $0x8e0] sm:$0xff]
  %v1905 = vld [vmem:[%s0 + $0x8e8] sm:$0xff]
  %v1906 = vld [vmem:[%s0 + $0x8f0] sm:$0xff]
  %v1907 = vld [vmem:[%s0 + $0x8f8] sm:$0xff]
  %v1908 = vld [vmem:[%s0 + $0x900] sm:$0xff]
  %v1909 = vld [vmem:[%s0 + $0x908] sm:$0xff]
  %v1910 = vld [vmem:[%s0 + $0x910] sm:$0xff]
  %v1911 = vld [vmem:[%s0 + $0x918] sm:$0xff]
  %v1912 = vld [vmem:[%s0 + $0x920] sm:$0xff]
  %v1913 = vld [vmem:[%s0 + $0x928] sm:$0xff]
  %v1914 = vld [vmem:[%s0 + $0x930] sm:$0xff]
  %v1915 = vld [vmem:[%s0 + $0x938] sm:$0xff]
  %v1916 = vld [vmem:[%s0 + $0x940] sm:$0xff]
  %v1917 = vld [vmem:[%s0 + $0x948] sm:$0xff]
  %v1918 = vld [vmem:[%s0 + $0x950] sm:$0xff]
  %v1919 = vld [vmem:[%s0 + $0x958] sm:$0xff]
  %v1920 = vld [vmem:[%s0 + $0x960] sm:$0xff]
  %v1921 = vld [vmem:[%s0 + $0x968] sm:$0xff]
  %v1922 = vld [vmem:[%s0 + $0x970] sm:$0xff]
  %v1923 = vld [vmem:[%s0 + $0x978] sm:$0xff]
  %v1924 = vld [vmem:[%s0 + $0x980] sm:$0xff]
  %v1925 = vld [vmem:[%s0 + $0x988] sm:$0xff]
  %v1926 = vld [vmem:[%s0 + $0x990] sm:$0xff]
  %v1927 = vld [vmem:[%s0 + $0x998] sm:$0xff]
  %v1928 = vld [vmem:[%s0 + $0x9a0] sm:$0xff]
  %v1929 = vld [vmem:[%s0 + $0x9a8] sm:$0xff]
  %v1930 = vld [vmem:[%s0 + $0x9b0] sm:$0xff]
  %v1931 = vld [vmem:[%s0 + $0x9b8] sm:$0xff]
  %v1932 = vld [vmem:[%s0 + $0x9c0] sm:$0xff]
  %v1933 = vld [vmem:[%s0 + $0x9c8] sm:$0xff]
  %v1934 = vld [vmem:[%s0 + $0x9d0] sm:$0xff]
  %v1935 = vld [vmem:[%s0 + $0x9d8] sm:$0xff]
  %v1936 = vld [vmem:[%s0 + $0x9e0] sm:$0xff]
  %v1937 = vld [vmem:[%s0 + $0x9e8] sm:$0xff]
  %v1938 = vld [vmem:[%s0 + $0x9f0] sm:$0xff]
  %v1939 = vld [vmem:[%s0 + $0x9f8] sm:$0xff]
  %v1940 = vld [vmem:[%s0 + $0xa00] sm:$0xff]
  %v1941 = vld [vmem:[%s0 + $0xa08] sm:$0xff]
  %v1942 = vld [vmem:[%s0 + $0xa10] sm:$0xff]
  %v1943 = vld [vmem:[%s0 + $0xa18] sm:$0xff]
  %v1944 = vld [vmem:[%s0 + $0xa20] sm:$0xff]
  %v1945 = vld [vmem:[%s0 + $0xa28] sm:$0xff]
  %v1946 = vld [vmem:[%s0 + $0xa30] sm:$0xff]
  %v1947 = vld [vmem:[%s0 + $0xa38] sm:$0xff]
  %v1948 = vld [vmem:[%s0 + $0xa40] sm:$0xff]
  %v1949 = vld [vmem:[%s0 + $0xa48] sm:$0xff]
  %v1950 = vld [vmem:[%s0 + $0xa50] sm:$0xff]
  %v1951 = vld [vmem:[%s0 + $0xa58] sm:$0xff]
  %v1952 = vld [vmem:[%s0 + $0xa60] sm:$0xff]
  %v1953 = vld [vmem:[%s0 + $0xa68] sm:$0xff]
  %v1954 = vld [vmem:[%s0 + $0xa70] sm:$0xff]
  %v1955 = vld [vmem:[%s0 + $0xa78] sm:$0xff]
  %v1956 = vld [vmem:[%s0 + $0xa80] sm:$0xff]
  %v1957 = vld [vmem:[%s0 + $0xa88] sm:$0xff]
  %v1958 = vld [vmem:[%s0 + $0xa90] sm:$0xff]
  %v1959 = vld [vmem:[%s0 + $0xa98] sm:$0xff]
  %v1960 = vld [vmem:[%s0 + $0xaa0] sm:$0xff]
  %v1961 = vld [vmem:[%s0 + $0xaa8] sm:$0xff]
  %v1962 = vld [vmem:[%s0 + $0xab0] sm:$0xff]
  %v1963 = vld [vmem:[%s0 + $0xab8] sm:$0xff]
  %v1964 = vld [vmem:[%s0 + $0xac0] sm:$0xff]
  %v1965 = vld [vmem:[%s0 + $0xac8] sm:$0xff]
  %v1966 = vld [vmem:[%s0 + $0xad0] sm:$0xff]
  %v1967 = vld [vmem:[%s0 + $0xad8] sm:$0xff]
  %v1968 = vld [vmem:[%s0 + $0xae0] sm:$0xff]
  %v1969 = vld [vmem:[%s0 + $0xae8] sm:$0xff]
  %v1970 = vld [vmem:[%s0 + $0xaf0] sm:$0xff]
  %v1971 = vld [vmem:[%s0 + $0xaf8] sm:$0xff]
  %v1972 = vld [vmem:[%s0 + $0xb00] sm:$0xff]
  %v1973 = vld [vmem:[%s0 + $0xb08] sm:$0xff]
  %v1974 = vld [vmem:[%s0 + $0xb10] sm:$0xff]
  %v1975 = vld [vmem:[%s0 + $0xb18] sm:$0xff]
  %v1976 = vld [vmem:[%s0 + $0xb20] sm:$0xff]
  %v1977 = vld [vmem:[%s0 + $0xb28] sm:$0xff]
  %v1978 = vld [vmem:[%s0 + $0xb30] sm:$0xff]
  %v1979 = vld [vmem:[%s0 + $0xb38] sm:$0xff]
  %v1980 = vld [vmem:[%s0 + $0xb40] sm:$0xff]
  %v1981 = vld [vmem:[%s0 + $0xb48] sm:$0xff]
  %v1982 = vld [vmem:[%s0 + $0xb50] sm:$0xff]
  %v1983 = vld [vmem:[%s0 + $0xb58] sm:$0xff]
  %v1984 = vld [vmem:[%s0 + $0xb60] sm:$0xff]
  %v1985 = vld [vmem:[%s0 + $0xb68] sm:$0xff]
  %v1986 = vld [vmem:[%s0 + $0xb70] sm:$0xff]
  %v1987 = vld [vmem:[%s0 + $0xb78] sm:$0xff]
  %v1988 = vld [vmem:[%s0 + $0xb80] sm:$0xff]
  %v1989 = vld [vmem:[%s0 + $0xb88] sm:$0xff]
  %v1990 = vld [vmem:[%s0 + $0xb90] sm:$0xff]
  %v1991 = vld [vmem:[%s0 + $0xb98] sm:$0xff]
  %v1992 = vld [vmem:[%s0 + $0xba0] sm:$0xff]
  %v1993 = vld [vmem:[%s0 + $0xba8] sm:$0xff]
  %v1994 = vld [vmem:[%s0 + $0xbb0] sm:$0xff]
  %v1995 = vld [vmem:[%s0 + $0xbb8] sm:$0xff]
  %v1996 = vld [vmem:[%s0 + $0xbc0] sm:$0xff]
  %v1997 = vld [vmem:[%s0 + $0xbc8] sm:$0xff]
  %v1998 = vld [vmem:[%s0 + $0xbd0] sm:$0xff]
  %v1999 = vld [vmem:[%s0 + $0xbd8] sm:$0xff]
  %v2000 = vld [vmem:[%s0 + $0xbe0] sm:$0xff]
  %v2001 = vld [vmem:[%s0 + $0xbe8] sm:$0xff]
  %v2002 = vld [vmem:[%s0 + $0xbf0] sm:$0xff]
  %v2003 = vld [vmem:[%s0 + $0xbf8] sm:$0xff]
  %v2004 = vld [vmem:[%s0 + $0xc00] sm:$0xff]
  %v2005 = vld [vmem:[%s0 + $0xc08] sm:$0xff]
  %v2006 = vld [vmem:[%s0 + $0xc10] sm:$0xff]
  %v2007 = vld [vmem:[%s0 + $0xc18] sm:$0xff]
  %v2008 = vld [vmem:[%s0 + $0xc20] sm:$0xff]
  %v2009 = vld [vmem:[%s0 + $0xc28] sm:$0xff]
  %v2010 = vld [vmem:[%s0 + $0xc30] sm:$0xff]
  %v2011 = vld [vmem:[%s0 + $0xc38] sm:$0xff]
  %v2012 = vld [vmem:[%s0 + $0xc40] sm:$0xff]
  %v2013 = vld [vmem:[%s0 + $0xc48] sm:$0xff]
  %v2014 = vld [vmem:[%s0 + $0xc50] sm:$0xff]
  %v2015 = vld [vmem:[%s0 + $0xc58] sm:$0xff]
  %v2016 = vld [vmem:[%s0 + $0xc60] sm:$0xff]
  %v2017 = vld [vmem:[%s0 + $0xc68] sm:$0xff]
  %v2018 = vld [vmem:[%s0 + $0xc70] sm:$0xff]
  %v2019 = vld [vmem:[%s0 + $0xc78] sm:$0xff]
  %v2020 = vld [vmem:[%s2] sm:$0xff]
  %v2021 = vld [vmem:[%s2 + $0x8] sm:$0xff]
  %v2022 = vld [vmem:[%s2 + $0x10] sm:$0xff]
  %v2023 = vld [vmem:[%s2 + $0x18] sm:$0xff]
  %v2024 = vld [vmem:[%s2 + $0x20] sm:$0xff]
  %v2025 = vld [vmem:[%s2 + $0x28] sm:$0xff]
  %v2026 = vld [vmem:[%s2 + $0x30] sm:$0xff]
  %v2027 = vld [vmem:[%s2 + $0x38] sm:$0xff]
  %v2028 = vld [vmem:[%s2 + $0x40] sm:$0xff]
  %v2029 = vld [vmem:[%s2 + $0x48] sm:$0xff]
  %v2030 = vld [vmem:[%s2 + $0x50] sm:$0xff]
  %v2031 = vld [vmem:[%s2 + $0x58] sm:$0xff]
  %v2032 = vld [vmem:[%s2 + $0x60] sm:$0xff]
  %v2033 = vld [vmem:[%s2 + $0x68] sm:$0xff]
  %v2034 = vld [vmem:[%s2 + $0x70] sm:$0xff]
  %v2035 = vld [vmem:[%s2 + $0x78] sm:$0xff]
  %v2036 = vld [vmem:[%s2 + $0x80] sm:$0xff]
  %v2037 = vld [vmem:[%s2 + $0x88] sm:$0xff]
  %v2038 = vld [vmem:[%s2 + $0x90] sm:$0xff]
  %v2039 = vld [vmem:[%s2 + $0x98] sm:$0xff]
  %v2040 = vld [vmem:[%s2 + $0xa0] sm:$0xff]
  %v2041 = vld [vmem:[%s2 + $0xa8] sm:$0xff]
  %v2042 = vld [vmem:[%s2 + $0xb0] sm:$0xff]
  %v2043 = vld [vmem:[%s2 + $0xb8] sm:$0xff]
  %v2044 = vld [vmem:[%s2 + $0xc0] sm:$0xff]
  %v2045 = vld [vmem:[%s2 + $0xc8] sm:$0xff]
  %v2046 = vld [vmem:[%s2 + $0xd0] sm:$0xff]
  %v2047 = vld [vmem:[%s2 + $0xd8] sm:$0xff]
  %v2048 = vld [vmem:[%s2 + $0xe0] sm:$0xff]
  %v2049 = vld [vmem:[%s2 + $0xe8] sm:$0xff]
  %v2050 = vld [vmem:[%s2 + $0xf0] sm:$0xff]
  %v2051 = vld [vmem:[%s2 + $0xf8] sm:$0xff]
  %v2052 = vld [vmem:[%s2 + $0x100] sm:$0xff]
  %v2053 = vld [vmem:[%s2 + $0x108] sm:$0xff]
  %v2054 = vld [vmem:[%s2 + $0x110] sm:$0xff]
  %v2055 = vld [vmem:[%s2 + $0x118] sm:$0xff]
  %v2056 = vld [vmem:[%s2 + $0x120] sm:$0xff]
  %v2057 = vld [vmem:[%s2 + $0x128] sm:$0xff]
  %v2058 = vld [vmem:[%s2 + $0x130] sm:$0xff]
  %v2059 = vld [vmem:[%s2 + $0x138] sm:$0xff]
  %v2060 = vld [vmem:[%s2 + $0x140] sm:$0xff]
  %v2061 = vld [vmem:[%s2 + $0x148] sm:$0xff]
  %v2062 = vld [vmem:[%s2 + $0x150] sm:$0xff]
  %v2063 = vld [vmem:[%s2 + $0x158] sm:$0xff]
  %v2064 = vld [vmem:[%s2 + $0x160] sm:$0xff]
  %v2065 = vld [vmem:[%s2 + $0x168] sm:$0xff]
  %v2066 = vld [vmem:[%s2 + $0x170] sm:$0xff]
  %v2067 = vld [vmem:[%s2 + $0x178] sm:$0xff]
  %v2068 = vld [vmem:[%s2 + $0x180] sm:$0xff]
  %v2069 = vld [vmem:[%s2 + $0x188] sm:$0xff]
  %v2070 = vld [vmem:[%s2 + $0x190] sm:$0xff]
  %v2071 = vld [vmem:[%s2 + $0x198] sm:$0xff]
  %v2072 = vld [vmem:[%s2 + $0x1a0] sm:$0xff]
  %v2073 = vld [vmem:[%s2 + $0x1a8] sm:$0xff]
  %v2074 = vld [vmem:[%s2 + $0x1b0] sm:$0xff]
  %v2075 = vld [vmem:[%s2 + $0x1b8] sm:$0xff]
  %v2076 = vld [vmem:[%s2 + $0x1c0] sm:$0xff]
  %v2077 = vld [vmem:[%s2 + $0x1c8] sm:$0xff]
  %v2078 = vld [vmem:[%s2 + $0x1d0] sm:$0xff]
  %v2079 = vld [vmem:[%s2 + $0x1d8] sm:$0xff]
  %v2080 = vld [vmem:[%s2 + $0x1e0] sm:$0xff]
  %v2081 = vld [vmem:[%s2 + $0x1e8] sm:$0xff]
  %v2082 = vld [vmem:[%s2 + $0x1f0] sm:$0xff]
  %v2083 = vld [vmem:[%s2 + $0x1f8] sm:$0xff]
  %2085 = vset.pattern.permute.xlu0 0
  %2086 = vperm.xlu0 %2085, %v2020
  %v2087 = vpop.permute.xlu0 %2086
  %2090 = vset.pattern.permute.xlu0 0
  %2091 = vperm.xlu0 %2090, %v2021
  %v2092 = vpop.permute.xlu0 %2091
  %2095 = vset.pattern.permute.xlu0 0
  %2096 = vperm.xlu0 %2095, %v2022
  %v2097 = vpop.permute.xlu0 %2096
  %2100 = vset.pattern.permute.xlu0 0
  %2101 = vperm.xlu0 %2100, %v2023
  %v2102 = vpop.permute.xlu0 %2101
  %2105 = vset.pattern.permute.xlu0 0
  %2106 = vperm.xlu0 %2105, %v2024
  %v2107 = vpop.permute.xlu0 %2106
  %2110 = vset.pattern.permute.xlu0 0
  %2111 = vperm.xlu0 %2110, %v2025
  %v2112 = vpop.permute.xlu0 %2111
  %2115 = vset.pattern.permute.xlu0 0
  %2116 = vperm.xlu0 %2115, %v2026
  %v2117 = vpop.permute.xlu0 %2116
  %2120 = vset.pattern.permute.xlu0 0
  %2121 = vperm.xlu0 %2120, %v2027
  %v2122 = vpop.permute.xlu0 %2121
  %2125 = vset.pattern.permute.xlu0 0
  %2126 = vperm.xlu0 %2125, %v2028
  %v2127 = vpop.permute.xlu0 %2126
  %2130 = vset.pattern.permute.xlu0 0
  %2131 = vperm.xlu0 %2130, %v2029
  %v2132 = vpop.permute.xlu0 %2131
  %2135 = vset.pattern.permute.xlu0 0
  %2136 = vperm.xlu0 %2135, %v2030
  %v2137 = vpop.permute.xlu0 %2136
  %2140 = vset.pattern.permute.xlu0 0
  %2141 = vperm.xlu0 %2140, %v2031
  %v2142 = vpop.permute.xlu0 %2141
  %2145 = vset.pattern.permute.xlu0 0
  %2146 = vperm.xlu0 %2145, %v2032
  %v2147 = vpop.permute.xlu0 %2146
  %2150 = vset.pattern.permute.xlu0 0
  %2151 = vperm.xlu0 %2150, %v2033
  %v2152 = vpop.permute.xlu0 %2151
  %2155 = vset.pattern.permute.xlu0 0
  %2156 = vperm.xlu0 %2155, %v2034
  %v2157 = vpop.permute.xlu0 %2156
  %2160 = vset.pattern.permute.xlu0 0
  %2161 = vperm.xlu0 %2160, %v2035
  %v2162 = vpop.permute.xlu0 %2161
  %2165 = vset.pattern.permute.xlu0 0
  %2166 = vperm.xlu0 %2165, %v2036
  %v2167 = vpop.permute.xlu0 %2166
  %2170 = vset.pattern.permute.xlu0 0
  %2171 = vperm.xlu0 %2170, %v2037
  %v2172 = vpop.permute.xlu0 %2171
  %2175 = vset.pattern.permute.xlu0 0
  %2176 = vperm.xlu0 %2175, %v2038
  %v2177 = vpop.permute.xlu0 %2176
  %2180 = vset.pattern.permute.xlu0 0
  %2181 = vperm.xlu0 %2180, %v2039
  %v2182 = vpop.permute.xlu0 %2181
  %2185 = vset.pattern.permute.xlu0 0
  %2186 = vperm.xlu0 %2185, %v2040
  %v2187 = vpop.permute.xlu0 %2186
  %2190 = vset.pattern.permute.xlu0 0
  %2191 = vperm.xlu0 %2190, %v2041
  %v2192 = vpop.permute.xlu0 %2191
  %2195 = vset.pattern.permute.xlu0 0
  %2196 = vperm.xlu0 %2195, %v2042
  %v2197 = vpop.permute.xlu0 %2196
  %2200 = vset.pattern.permute.xlu0 0
  %2201 = vperm.xlu0 %2200, %v2043
  %v2202 = vpop.permute.xlu0 %2201
  %2205 = vset.pattern.permute.xlu0 0
  %2206 = vperm.xlu0 %2205, %v2044
  %v2207 = vpop.permute.xlu0 %2206
  %2210 = vset.pattern.permute.xlu0 0
  %2211 = vperm.xlu0 %2210, %v2045
  %v2212 = vpop.permute.xlu0 %2211
  %2215 = vset.pattern.permute.xlu0 0
  %2216 = vperm.xlu0 %2215, %v2046
  %v2217 = vpop.permute.xlu0 %2216
  %2220 = vset.pattern.permute.xlu0 0
  %2221 = vperm.xlu0 %2220, %v2047
  %v2222 = vpop.permute.xlu0 %2221
  %2225 = vset.pattern.permute.xlu0 0
  %2226 = vperm.xlu0 %2225, %v2048
  %v2227 = vpop.permute.xlu0 %2226
  %2230 = vset.pattern.permute.xlu0 0
  %2231 = vperm.xlu0 %2230, %v2049
  %v2232 = vpop.permute.xlu0 %2231
  %2235 = vset.pattern.permute.xlu0 0
  %2236 = vperm.xlu0 %2235, %v2050
  %v2237 = vpop.permute.xlu0 %2236
  %2240 = vset.pattern.permute.xlu0 0
  %2241 = vperm.xlu0 %2240, %v2051
  %v2242 = vpop.permute.xlu0 %2241
  %2245 = vset.pattern.permute.xlu0 0
  %2246 = vperm.xlu0 %2245, %v2052
  %v2247 = vpop.permute.xlu0 %2246
  %2250 = vset.pattern.permute.xlu0 0
  %2251 = vperm.xlu0 %2250, %v2053
  %v2252 = vpop.permute.xlu0 %2251
  %2255 = vset.pattern.permute.xlu0 0
  %2256 = vperm.xlu0 %2255, %v2054
  %v2257 = vpop.permute.xlu0 %2256
  %2260 = vset.pattern.permute.xlu0 0
  %2261 = vperm.xlu0 %2260, %v2055
  %v2262 = vpop.permute.xlu0 %2261
  %2265 = vset.pattern.permute.xlu0 0
  %2266 = vperm.xlu0 %2265, %v2056
  %v2267 = vpop.permute.xlu0 %2266
  %2270 = vset.pattern.permute.xlu0 0
  %2271 = vperm.xlu0 %2270, %v2057
  %v2272 = vpop.permute.xlu0 %2271
  %2275 = vset.pattern.permute.xlu0 0
  %2276 = vperm.xlu0 %2275, %v2058
  %v2277 = vpop.permute.xlu0 %2276
  %2280 = vset.pattern.permute.xlu0 0
  %2281 = vperm.xlu0 %2280, %v2059
  %v2282 = vpop.permute.xlu0 %2281
  %2285 = vset.pattern.permute.xlu0 0
  %2286 = vperm.xlu0 %2285, %v2060
  %v2287 = vpop.permute.xlu0 %2286
  %2290 = vset.pattern.permute.xlu0 0
  %2291 = vperm.xlu0 %2290, %v2061
  %v2292 = vpop.permute.xlu0 %2291
  %2295 = vset.pattern.permute.xlu0 0
  %2296 = vperm.xlu0 %2295, %v2062
  %v2297 = vpop.permute.xlu0 %2296
  %2300 = vset.pattern.permute.xlu0 0
  %2301 = vperm.xlu0 %2300, %v2063
  %v2302 = vpop.permute.xlu0 %2301
  %2305 = vset.pattern.permute.xlu0 0
  %2306 = vperm.xlu0 %2305, %v2064
  %v2307 = vpop.permute.xlu0 %2306
  %2310 = vset.pattern.permute.xlu0 0
  %2311 = vperm.xlu0 %2310, %v2065
  %v2312 = vpop.permute.xlu0 %2311
  %2315 = vset.pattern.permute.xlu0 0
  %2316 = vperm.xlu0 %2315, %v2066
  %v2317 = vpop.permute.xlu0 %2316
  %2320 = vset.pattern.permute.xlu0 0
  %2321 = vperm.xlu0 %2320, %v2067
  %v2322 = vpop.permute.xlu0 %2321
  %2325 = vset.pattern.permute.xlu0 0
  %2326 = vperm.xlu0 %2325, %v2068
  %v2327 = vpop.permute.xlu0 %2326
  %2330 = vset.pattern.permute.xlu0 0
  %2331 = vperm.xlu0 %2330, %v2069
  %v2332 = vpop.permute.xlu0 %2331
  %2335 = vset.pattern.permute.xlu0 0
  %2336 = vperm.xlu0 %2335, %v2070
  %v2337 = vpop.permute.xlu0 %2336
  %2340 = vset.pattern.permute.xlu0 0
  %2341 = vperm.xlu0 %2340, %v2071
  %v2342 = vpop.permute.xlu0 %2341
  %2345 = vset.pattern.permute.xlu0 0
  %2346 = vperm.xlu0 %2345, %v2072
  %v2347 = vpop.permute.xlu0 %2346
  %2350 = vset.pattern.permute.xlu0 0
  %2351 = vperm.xlu0 %2350, %v2073
  %v2352 = vpop.permute.xlu0 %2351
  %2355 = vset.pattern.permute.xlu0 0
  %2356 = vperm.xlu0 %2355, %v2074
  %v2357 = vpop.permute.xlu0 %2356
  %2360 = vset.pattern.permute.xlu0 0
  %2361 = vperm.xlu0 %2360, %v2075
  %v2362 = vpop.permute.xlu0 %2361
  %2365 = vset.pattern.permute.xlu0 0
  %2366 = vperm.xlu0 %2365, %v2076
  %v2367 = vpop.permute.xlu0 %2366
  %2370 = vset.pattern.permute.xlu0 0
  %2371 = vperm.xlu0 %2370, %v2077
  %v2372 = vpop.permute.xlu0 %2371
  %2375 = vset.pattern.permute.xlu0 0
  %2376 = vperm.xlu0 %2375, %v2078
  %v2377 = vpop.permute.xlu0 %2376
  %2380 = vset.pattern.permute.xlu0 0
  %2381 = vperm.xlu0 %2380, %v2079
  %v2382 = vpop.permute.xlu0 %2381
  %2385 = vset.pattern.permute.xlu0 0
  %2386 = vperm.xlu0 %2385, %v2080
  %v2387 = vpop.permute.xlu0 %2386
  %2390 = vset.pattern.permute.xlu0 0
  %2391 = vperm.xlu0 %2390, %v2081
  %v2392 = vpop.permute.xlu0 %2391
  %2395 = vset.pattern.permute.xlu0 0
  %2396 = vperm.xlu0 %2395, %v2082
  %v2397 = vpop.permute.xlu0 %2396
  %2400 = vset.pattern.permute.xlu0 0
  %2401 = vperm.xlu0 %2400, %v2083
  %v2402 = vpop.permute.xlu0 %2401
  %2404 = vmatprep.subr.mxu0 0.0
  %2405 = vmatpush1.msra.mxu0 %v1620
  %2406 = vmatprep.subr.mxu0 0.0
  %2407 = vmatpush1.msra.mxu0 %v1621
  %2408 = vmatprep.subr.mxu0 0.0
  %2409 = vmatpush1.msra.mxu0 %v1622
  %2410 = vmatprep.subr.mxu0 0.0
  %2411 = vmatpush1.msra.mxu0 %v1623
  %2412 = vmatprep.subr.mxu0 0.0
  %2413 = vmatpush1.msra.mxu0 %v1624
  %2414 = vmatprep.subr.mxu0 0.0
  %2415 = vmatpush1.msra.mxu0 %v1625
  %2416 = vmatprep.subr.mxu0 0.0
  %2417 = vmatpush1.msra.mxu0 %v1626
  %2418 = vmatprep.subr.mxu0 0.0
  %2419 = vmatpush1.msra.mxu0 %v1627
  %2420 = vmatprep.subr.mxu0 0.0
  %2421 = vmatpush1.msra.mxu0 %v1628
  %2422 = vmatprep.subr.mxu0 0.0
  %2423 = vmatpush1.msra.mxu0 %v1629
  %2424 = vmatprep.subr.mxu0 0.0
  %2425 = vmatpush1.msra.mxu0 %v1630
  %2426 = vmatprep.subr.mxu0 0.0
  %2427 = vmatpush1.msra.mxu0 %v1631
  %2428 = vmatprep.subr.mxu0 0.0
  %2429 = vmatpush1.msra.mxu0 %v1632
  %2430 = vmatprep.subr.mxu0 0.0
  %2431 = vmatpush1.msra.mxu0 %v1633
  %2432 = vmatprep.subr.mxu0 0.0
  %2433 = vmatpush1.msra.mxu0 %v1634
  %2434 = vmatprep.subr.mxu0 0.0
  %2435 = vmatpush1.msra.mxu0 %v1635
  %2436 = vmatprep.subr.mxu0 0.0
  %2437 = vmatpush1.msra.mxu0 %v1636
  %2438 = vmatprep.subr.mxu0 0.0
  %2439 = vmatpush1.msra.mxu0 %v1637
  %2440 = vmatprep.subr.mxu0 0.0
  %2441 = vmatpush1.msra.mxu0 %v1638
  %2442 = vmatprep.subr.mxu0 0.0
  %2443 = vmatpush1.msra.mxu0 %v1639
  %2444 = vmatprep.subr.mxu0 0.0
  %2445 = vmatpush1.msra.mxu0 %v1640
  %2446 = vmatprep.subr.mxu0 0.0
  %2447 = vmatpush1.msra.mxu0 %v1641
  %2448 = vmatprep.subr.mxu0 0.0
  %2449 = vmatpush1.msra.mxu0 %v1642
  %2450 = vmatprep.subr.mxu0 0.0
  %2451 = vmatpush1.msra.mxu0 %v1643
  %2452 = vmatprep.subr.mxu0 0.0
  %2453 = vmatpush1.msra.mxu0 %v1644
  %2454 = vmatprep.subr.mxu0 0.0
  %2455 = vmatpush1.msra.mxu0 %v1645
  %2456 = vmatprep.subr.mxu0 0.0
  %2457 = vmatpush1.msra.mxu0 %v1646
  %2458 = vmatprep.subr.mxu0 0.0
  %2459 = vmatpush1.msra.mxu0 %v1647
  %2460 = vmatprep.subr.mxu0 0.0
  %2461 = vmatpush1.msra.mxu0 %v1648
  %2462 = vmatprep.subr.mxu0 0.0
  %2463 = vmatpush1.msra.mxu0 %v1649
  %2464 = vmatprep.subr.mxu0 0.0
  %2465 = vmatpush1.msra.mxu0 %v1650
  %2466 = vmatprep.subr.mxu0 0.0
  %2467 = vmatpush1.msra.mxu0 %v1651
  %2468 = vmatprep.mubr.f32.mxu0 %v21
  %2469 = vmatmul.mubr.f32.gmra.mrb[0].mxu0 %v20
  %v2470 = vpop.f32.mrb[0].mxu0
  %v2471 = vadd.f32 %v2087, %v2470
  %v2472 = vpop.f32.mrb[0].mxu0
  %2473 = vmatprep.mubr.f32.mxu0 %v46
  %2474 = vmatmul.mubr.f32.gmra.mrb[0].mxu0 %v45
  %v2475 = vpop.f32.mrb[0].mxu0
  %v2476 = vadd.f32 %v2092, %v2475
  %v2477 = vpop.f32.mrb[0].mxu0
  %2478 = vmatprep.mubr.f32.mxu0 %v71
  %2479 = vmatmul.mubr.f32.gmra.mrb[0].mxu0 %v70
  %v2480 = vpop.f32.mrb[0].mxu0
  %v2481 = vadd.f32 %v2097, %v2480
  %v2482 = vpop.f32.mrb[0].mxu0
  %2483 = vmatprep.mubr.f32.mxu0 %v96
  %2484 = vmatmul.mubr.f32.gmra.mrb[0].mxu0 %v95
  %v2485 = vpop.f32.mrb[0].mxu0
  %v2486 = vadd.f32 %v2102, %v2485
  %v2487 = vpop.f32.mrb[0].mxu0
  %2488 = vmatprep.mubr.f32.mxu0 %v121
  %2489 = vmatmul.mubr.f32.gmra.mrb[0].mxu0 %v120
  %v2490 = vpop.f32.mrb[0].mxu0
  %v2491 = vadd.f32 %v2107, %v2490
  %v2492 = vpop.f32.mrb[0].mxu0
  %2493 = vmatprep.mubr.f32.mxu0 %v146
  %2494 = vmatmul.mubr.f32.gmra.mrb[0].mxu0 %v145
  %v2495 = vpop.f32.mrb[0].mxu0
  %v2496 = vadd.f32 %v2112, %v2495
  %v2497 = vpop.f32.mrb[0].mxu0
  %2498 = vmatprep.mubr.f32.mxu0 %v171
  %2499 = vmatmul.mubr.f32.gmra.mrb[0].mxu0 %v170
  %v2500 = vpop.f32.mrb[0].mxu0
  %v2501 = vadd.f32 %v2117, %v2500
  %v2502 = vpop.f32.mrb[0].mxu0
  %2503 = vmatprep.mubr.f32.mxu0 %v196
  %2504 = vmatmul.mubr.f32.gmra.mrb[0].mxu0 %v195
  %v2505 = vpop.f32.mrb[0].mxu0
  %v2506 = vadd.f32 %v2122, %v2505
  %v2507 = vpop.f32.mrb[0].mxu0
  %2508 = vmatprep.mubr.f32.mxu0 %v221
  %2509 = vmatmul.mubr.f32.gmra.mrb[0].mxu0 %v220
  %v2510 = vpop.f32.mrb[0].mxu0
  %v2511 = vadd.f32 %v2127, %v2510
  %v2512 = vpop.f32.mrb[0].mxu0
  %2513 = vmatprep.mubr.f32.mxu0 %v246
  %2514 = vmatmul.mubr.f32.gmra.mrb[0].mxu0 %v245
  %v2515 = vpop.f32.mrb[0].mxu0
  %v2516 = vadd.f32 %v2132, %v2515
  %v2517 = vpop.f32.mrb[0].mxu0
  %2518 = vmatprep.mubr.f32.mxu0 %v271
  %2519 = vmatmul.mubr.f32.gmra.mrb[0].mxu0 %v270
  %v2520 = vpop.f32.mrb[0].mxu0
  %v2521 = vadd.f32 %v2137, %v2520
  %v2522 = vpop.f32.mrb[0].mxu0
  %2523 = vmatprep.mubr.f32.mxu0 %v296
  %2524 = vmatmul.mubr.f32.gmra.mrb[0].mxu0 %v295
  %v2525 = vpop.f32.mrb[0].mxu0
  %v2526 = vadd.f32 %v2142, %v2525
  %v2527 = vpop.f32.mrb[0].mxu0
  %2528 = vmatprep.mubr.f32.mxu0 %v321
  %2529 = vmatmul.mubr.f32.gmra.mrb[0].mxu0 %v320
  %v2530 = vpop.f32.mrb[0].mxu0
  %v2531 = vadd.f32 %v2147, %v2530
  %v2532 = vpop.f32.mrb[0].mxu0
  %2533 = vmatprep.mubr.f32.mxu0 %v346
  %2534 = vmatmul.mubr.f32.gmra.mrb[0].mxu0 %v345
  %v2535 = vpop.f32.mrb[0].mxu0
  %v2536 = vadd.f32 %v2152, %v2535
  %v2537 = vpop.f32.mrb[0].mxu0
  %2538 = vmatprep.mubr.f32.mxu0 %v371
  %2539 = vmatmul.mubr.f32.gmra.mrb[0].mxu0 %v370
  %v2540 = vpop.f32.mrb[0].mxu0
  %v2541 = vadd.f32 %v2157, %v2540
  %v2542 = vpop.f32.mrb[0].mxu0
  %2543 = vmatprep.mubr.f32.mxu0 %v396
  %2544 = vmatmul.mubr.f32.gmra.mrb[0].mxu0 %v395
  %v2545 = vpop.f32.mrb[0].mxu0
  %v2546 = vadd.f32 %v2162, %v2545
  %v2547 = vpop.f32.mrb[0].mxu0
  %2548 = vmatprep.mubr.f32.mxu0 %v421
  %2549 = vmatmul.mubr.f32.gmra.mrb[0].mxu0 %v420
  %v2550 = vpop.f32.mrb[0].mxu0
  %v2551 = vadd.f32 %v2167, %v2550
  %v2552 = vpop.f32.mrb[0].mxu0
  %2553 = vmatprep.mubr.f32.mxu0 %v446
  %2554 = vmatmul.mubr.f32.gmra.mrb[0].mxu0 %v445
  %v2555 = vpop.f32.mrb[0].mxu0
  %v2556 = vadd.f32 %v2172, %v2555
  %v2557 = vpop.f32.mrb[0].mxu0
  %2558 = vmatprep.mubr.f32.mxu0 %v471
  %2559 = vmatmul.mubr.f32.gmra.mrb[0].mxu0 %v470
  %v2560 = vpop.f32.mrb[0].mxu0
  %v2561 = vadd.f32 %v2177, %v2560
  %v2562 = vpop.f32.mrb[0].mxu0
  %2563 = vmatprep.mubr.f32.mxu0 %v496
  %2564 = vmatmul.mubr.f32.gmra.mrb[0].mxu0 %v495
  %v2565 = vpop.f32.mrb[0].mxu0
  %v2566 = vadd.f32 %v2182, %v2565
  %v2567 = vpop.f32.mrb[0].mxu0
  %2568 = vmatprep.mubr.f32.mxu0 %v521
  %2569 = vmatmul.mubr.f32.gmra.mrb[0].mxu0 %v520
  %v2570 = vpop.f32.mrb[0].mxu0
  %v2571 = vadd.f32 %v2187, %v2570
  %v2572 = vpop.f32.mrb[0].mxu0
  %2573 = vmatprep.mubr.f32.mxu0 %v546
  %2574 = vmatmul.mubr.f32.gmra.mrb[0].mxu0 %v545
  %v2575 = vpop.f32.mrb[0].mxu0
  %v2576 = vadd.f32 %v2192, %v2575
  %v2577 = vpop.f32.mrb[0].mxu0
  %2578 = vmatprep.mubr.f32.mxu0 %v571
  %2579 = vmatmul.mubr.f32.gmra.mrb[0].mxu0 %v570
  %v2580 = vpop.f32.mrb[0].mxu0
  %v2581 = vadd.f32 %v2197, %v2580
  %v2582 = vpop.f32.mrb[0].mxu0
  %2583 = vmatprep.mubr.f32.mxu0 %v596
  %2584 = vmatmul.mubr.f32.gmra.mrb[0].mxu0 %v595
  %v2585 = vpop.f32.mrb[0].mxu0
  %v2586 = vadd.f32 %v2202, %v2585
  %v2587 = vpop.f32.mrb[0].mxu0
  %2588 = vmatprep.mubr.f32.mxu0 %v621
  %2589 = vmatmul.mubr.f32.gmra.mrb[0].mxu0 %v620
  %v2590 = vpop.f32.mrb[0].mxu0
  %v2591 = vadd.f32 %v2207, %v2590
  %v2592 = vpop.f32.mrb[0].mxu0
  %2593 = vmatprep.mubr.f32.mxu0 %v646
  %2594 = vmatmul.mubr.f32.gmra.mrb[0].mxu0 %v645
  %v2595 = vpop.f32.mrb[0].mxu0
  %v2596 = vadd.f32 %v2212, %v2595
  %v2597 = vpop.f32.mrb[0].mxu0
  %2598 = vmatprep.mubr.f32.mxu0 %v671
  %2599 = vmatmul.mubr.f32.gmra.mrb[0].mxu0 %v670
  %v2600 = vpop.f32.mrb[0].mxu0
  %v2601 = vadd.f32 %v2217, %v2600
  %v2602 = vpop.f32.mrb[0].mxu0
  %2603 = vmatprep.mubr.f32.mxu0 %v696
  %2604 = vmatmul.mubr.f32.gmra.mrb[0].mxu0 %v695
  %v2605 = vpop.f32.mrb[0].mxu0
  %v2606 = vadd.f32 %v2222, %v2605
  %v2607 = vpop.f32.mrb[0].mxu0
  %2608 = vmatprep.mubr.f32.mxu0 %v721
  %2609 = vmatmul.mubr.f32.gmra.mrb[0].mxu0 %v720
  %v2610 = vpop.f32.mrb[0].mxu0
  %v2611 = vadd.f32 %v2227, %v2610
  %v2612 = vpop.f32.mrb[0].mxu0
  %2613 = vmatprep.mubr.f32.mxu0 %v746
  %2614 = vmatmul.mubr.f32.gmra.mrb[0].mxu0 %v745
  %v2615 = vpop.f32.mrb[0].mxu0
  %v2616 = vadd.f32 %v2232, %v2615
  %v2617 = vpop.f32.mrb[0].mxu0
  %2618 = vmatprep.mubr.f32.mxu0 %v771
  %2619 = vmatmul.mubr.f32.gmra.mrb[0].mxu0 %v770
  %v2620 = vpop.f32.mrb[0].mxu0
  %v2621 = vadd.f32 %v2237, %v2620
  %v2622 = vpop.f32.mrb[0].mxu0
  %2623 = vmatprep.mubr.f32.mxu0 %v796
  %2624 = vmatmul.mubr.f32.gmra.mrb[0].mxu0 %v795
  %v2625 = vpop.f32.mrb[0].mxu0
  %v2626 = vadd.f32 %v2242, %v2625
  %v2627 = vpop.f32.mrb[0].mxu0
  %2628 = vmatprep.mubr.f32.mxu0 %v821
  %2629 = vmatmul.mubr.f32.gmra.mrb[0].mxu0 %v820
  %v2630 = vpop.f32.mrb[0].mxu0
  %v2631 = vadd.f32 %v2247, %v2630
  %v2632 = vpop.f32.mrb[0].mxu0
  %2633 = vmatprep.mubr.f32.mxu0 %v846
  %2634 = vmatmul.mubr.f32.gmra.mrb[0].mxu0 %v845
  %v2635 = vpop.f32.mrb[0].mxu0
  %v2636 = vadd.f32 %v2252, %v2635
  %v2637 = vpop.f32.mrb[0].mxu0
  %2638 = vmatprep.mubr.f32.mxu0 %v871
  %2639 = vmatmul.mubr.f32.gmra.mrb[0].mxu0 %v870
  %v2640 = vpop.f32.mrb[0].mxu0
  %v2641 = vadd.f32 %v2257, %v2640
  %v2642 = vpop.f32.mrb[0].mxu0
  %2643 = vmatprep.mubr.f32.mxu0 %v896
  %2644 = vmatmul.mubr.f32.gmra.mrb[0].mxu0 %v895
  %v2645 = vpop.f32.mrb[0].mxu0
  %v2646 = vadd.f32 %v2262, %v2645
  %v2647 = vpop.f32.mrb[0].mxu0
  %2648 = vmatprep.mubr.f32.mxu0 %v921
  %2649 = vmatmul.mubr.f32.gmra.mrb[0].mxu0 %v920
  %v2650 = vpop.f32.mrb[0].mxu0
  %v2651 = vadd.f32 %v2267, %v2650
  %v2652 = vpop.f32.mrb[0].mxu0
  %2653 = vmatprep.mubr.f32.mxu0 %v946
  %2654 = vmatmul.mubr.f32.gmra.mrb[0].mxu0 %v945
  %v2655 = vpop.f32.mrb[0].mxu0
  %v2656 = vadd.f32 %v2272, %v2655
  %v2657 = vpop.f32.mrb[0].mxu0
  %2658 = vmatprep.mubr.f32.mxu0 %v971
  %2659 = vmatmul.mubr.f32.gmra.mrb[0].mxu0 %v970
  %v2660 = vpop.f32.mrb[0].mxu0
  %v2661 = vadd.f32 %v2277, %v2660
  %v2662 = vpop.f32.mrb[0].mxu0
  %2663 = vmatprep.mubr.f32.mxu0 %v996
  %2664 = vmatmul.mubr.f32.gmra.mrb[0].mxu0 %v995
  %v2665 = vpop.f32.mrb[0].mxu0
  %v2666 = vadd.f32 %v2282, %v2665
  %v2667 = vpop.f32.mrb[0].mxu0
  %2668 = vmatprep.mubr.f32.mxu0 %v1021
  %2669 = vmatmul.mubr.f32.gmra.mrb[0].mxu0 %v1020
  %v2670 = vpop.f32.mrb[0].mxu0
  %v2671 = vadd.f32 %v2287, %v2670
  %v2672 = vpop.f32.mrb[0].mxu0
  %2673 = vmatprep.mubr.f32.mxu0 %v1046
  %2674 = vmatmul.mubr.f32.gmra.mrb[0].mxu0 %v1045
  %v2675 = vpop.f32.mrb[0].mxu0
  %v2676 = vadd.f32 %v2292, %v2675
  %v2677 = vpop.f32.mrb[0].mxu0
  %2678 = vmatprep.mubr.f32.mxu0 %v1071
  %2679 = vmatmul.mubr.f32.gmra.mrb[0].mxu0 %v1070
  %v2680 = vpop.f32.mrb[0].mxu0
  %v2681 = vadd.f32 %v2297, %v2680
  %v2682 = vpop.f32.mrb[0].mxu0
  %2683 = vmatprep.mubr.f32.mxu0 %v1096
  %2684 = vmatmul.mubr.f32.gmra.mrb[0].mxu0 %v1095
  %v2685 = vpop.f32.mrb[0].mxu0
  %v2686 = vadd.f32 %v2302, %v2685
  %v2687 = vpop.f32.mrb[0].mxu0
  %2688 = vmatprep.mubr.f32.mxu0 %v1121
  %2689 = vmatmul.mubr.f32.gmra.mrb[0].mxu0 %v1120
  %v2690 = vpop.f32.mrb[0].mxu0
  %v2691 = vadd.f32 %v2307, %v2690
  %v2692 = vpop.f32.mrb[0].mxu0
  %2693 = vmatprep.mubr.f32.mxu0 %v1146
  %2694 = vmatmul.mubr.f32.gmra.mrb[0].mxu0 %v1145
  %v2695 = vpop.f32.mrb[0].mxu0
  %v2696 = vadd.f32 %v2312, %v2695
  %v2697 = vpop.f32.mrb[0].mxu0
  %2698 = vmatprep.mubr.f32.mxu0 %v1171
  %2699 = vmatmul.mubr.f32.gmra.mrb[0].mxu0 %v1170
  %v2700 = vpop.f32.mrb[0].mxu0
  %v2701 = vadd.f32 %v2317, %v2700
  %v2702 = vpop.f32.mrb[0].mxu0
  %2703 = vmatprep.mubr.f32.mxu0 %v1196
  %2704 = vmatmul.mubr.f32.gmra.mrb[0].mxu0 %v1195
  %v2705 = vpop.f32.mrb[0].mxu0
  %v2706 = vadd.f32 %v2322, %v2705
  %v2707 = vpop.f32.mrb[0].mxu0
  %2708 = vmatprep.mubr.f32.mxu0 %v1221
  %2709 = vmatmul.mubr.f32.gmra.mrb[0].mxu0 %v1220
  %v2710 = vpop.f32.mrb[0].mxu0
  %v2711 = vadd.f32 %v2327, %v2710
  %v2712 = vpop.f32.mrb[0].mxu0
  %2713 = vmatprep.mubr.f32.mxu0 %v1246
  %2714 = vmatmul.mubr.f32.gmra.mrb[0].mxu0 %v1245
  %v2715 = vpop.f32.mrb[0].mxu0
  %v2716 = vadd.f32 %v2332, %v2715
  %v2717 = vpop.f32.mrb[0].mxu0
  %2718 = vmatprep.mubr.f32.mxu0 %v1271
  %2719 = vmatmul.mubr.f32.gmra.mrb[0].mxu0 %v1270
  %v2720 = vpop.f32.mrb[0].mxu0
  %v2721 = vadd.f32 %v2337, %v2720
  %v2722 = vpop.f32.mrb[0].mxu0
  %2723 = vmatprep.mubr.f32.mxu0 %v1296
  %2724 = vmatmul.mubr.f32.gmra.mrb[0].mxu0 %v1295
  %v2725 = vpop.f32.mrb[0].mxu0
  %v2726 = vadd.f32 %v2342, %v2725
  %v2727 = vpop.f32.mrb[0].mxu0
  %2728 = vmatprep.mubr.f32.mxu0 %v1321
  %2729 = vmatmul.mubr.f32.gmra.mrb[0].mxu0 %v1320
  %v2730 = vpop.f32.mrb[0].mxu0
  %v2731 = vadd.f32 %v2347, %v2730
  %v2732 = vpop.f32.mrb[0].mxu0
  %2733 = vmatprep.mubr.f32.mxu0 %v1346
  %2734 = vmatmul.mubr.f32.gmra.mrb[0].mxu0 %v1345
  %v2735 = vpop.f32.mrb[0].mxu0
  %v2736 = vadd.f32 %v2352, %v2735
  %v2737 = vpop.f32.mrb[0].mxu0
  %2738 = vmatprep.mubr.f32.mxu0 %v1371
  %2739 = vmatmul.mubr.f32.gmra.mrb[0].mxu0 %v1370
  %v2740 = vpop.f32.mrb[0].mxu0
  %v2741 = vadd.f32 %v2357, %v2740
  %v2742 = vpop.f32.mrb[0].mxu0
  %2743 = vmatprep.mubr.f32.mxu0 %v1396
  %2744 = vmatmul.mubr.f32.gmra.mrb[0].mxu0 %v1395
  %v2745 = vpop.f32.mrb[0].mxu0
  %v2746 = vadd.f32 %v2362, %v2745
  %v2747 = vpop.f32.mrb[0].mxu0
  %2748 = vmatprep.mubr.f32.mxu0 %v1421
  %2749 = vmatmul.mubr.f32.gmra.mrb[0].mxu0 %v1420
  %v2750 = vpop.f32.mrb[0].mxu0
  %v2751 = vadd.f32 %v2367, %v2750
  %v2752 = vpop.f32.mrb[0].mxu0
  %2753 = vmatprep.mubr.f32.mxu0 %v1446
  %2754 = vmatmul.mubr.f32.gmra.mrb[0].mxu0 %v1445
  %v2755 = vpop.f32.mrb[0].mxu0
  %v2756 = vadd.f32 %v2372, %v2755
  %v2757 = vpop.f32.mrb[0].mxu0
  %2758 = vmatprep.mubr.f32.mxu0 %v1471
  %2759 = vmatmul.mubr.f32.gmra.mrb[0].mxu0 %v1470
  %v2760 = vpop.f32.mrb[0].mxu0
  %v2761 = vadd.f32 %v2377, %v2760
  %v2762 = vpop.f32.mrb[0].mxu0
  %2763 = vmatprep.mubr.f32.mxu0 %v1496
  %2764 = vmatmul.mubr.f32.gmra.mrb[0].mxu0 %v1495
  %v2765 = vpop.f32.mrb[0].mxu0
  %v2766 = vadd.f32 %v2382, %v2765
  %v2767 = vpop.f32.mrb[0].mxu0
  %2768 = vmatprep.mubr.f32.mxu0 %v1521
  %2769 = vmatmul.mubr.f32.gmra.mrb[0].mxu0 %v1520
  %v2770 = vpop.f32.mrb[0].mxu0
  %v2771 = vadd.f32 %v2387, %v2770
  %v2772 = vpop.f32.mrb[0].mxu0
  %2773 = vmatprep.mubr.f32.mxu0 %v1546
  %2774 = vmatmul.mubr.f32.gmra.mrb[0].mxu0 %v1545
  %v2775 = vpop.f32.mrb[0].mxu0
  %v2776 = vadd.f32 %v2392, %v2775
  %v2777 = vpop.f32.mrb[0].mxu0
  %2778 = vmatprep.mubr.f32.mxu0 %v1571
  %2779 = vmatmul.mubr.f32.gmra.mrb[0].mxu0 %v1570
  %v2780 = vpop.f32.mrb[0].mxu0
  %v2781 = vadd.f32 %v2397, %v2780
  %v2782 = vpop.f32.mrb[0].mxu0
  %2783 = vmatprep.mubr.f32.mxu0 %v1596
  %2784 = vmatmul.mubr.f32.gmra.mrb[0].mxu0 %v1595
  %v2785 = vpop.f32.mrb[0].mxu0
  %v2786 = vadd.f32 %v2402, %v2785
  %v2787 = vpop.f32.mrb[0].mxu0
  %2788 = vdwg.mxu0
  %2789 = vmatprep.subr.mxu0 0.0
  %2790 = vmatpush1.msra.mxu0 %v1652
  %2791 = vmatprep.subr.mxu0 0.0
  %2792 = vmatpush1.msra.mxu0 %v1653
  %2793 = vmatprep.subr.mxu0 0.0
  %2794 = vmatpush1.msra.mxu0 %v1654
  %2795 = vmatprep.subr.mxu0 0.0
  %2796 = vmatpush1.msra.mxu0 %v1655
  %2797 = vmatprep.subr.mxu0 0.0
  %2798 = vmatpush1.msra.mxu0 %v1656
  %2799 = vmatprep.subr.mxu0 0.0
  %2800 = vmatpush1.msra.mxu0 %v1657
  %2801 = vmatprep.subr.mxu0 0.0
  %2802 = vmatpush1.msra.mxu0 %v1658
  %2803 = vmatprep.subr.mxu0 0.0
  %2804 = vmatpush1.msra.mxu0 %v1659
  %2805 = vmatprep.subr.mxu0 0.0
  %2806 = vmatpush1.msra.mxu0 %v1660
  %2807 = vmatprep.subr.mxu0 0.0
  %2808 = vmatpush1.msra.mxu0 %v1661
  %2809 = vmatprep.subr.mxu0 0.0
  %2810 = vmatpush1.msra.mxu0 %v1662
  %2811 = vmatprep.subr.mxu0 0.0
  %2812 = vmatpush1.msra.mxu0 %v1663
  %2813 = vmatprep.subr.mxu0 0.0
  %2814 = vmatpush1.msra.mxu0 %v1664
  %2815 = vmatprep.subr.mxu0 0.0
  %2816 = vmatpush1.msra.mxu0 %v1665
  %2817 = vmatprep.subr.mxu0 0.0
  %2818 = vmatpush1.msra.mxu0 %v1666
  %2819 = vmatprep.subr.mxu0 0.0
  %2820 = vmatpush1.msra.mxu0 %v1667
  %2821 = vmatprep.subr.mxu0 0.0
  %2822 = vmatpush1.msra.mxu0 %v1668
  %2823 = vmatprep.subr.mxu0 0.0
  %2824 = vmatpush1.msra.mxu0 %v1669
  %2825 = vmatprep.subr.mxu0 0.0
  %2826 = vmatpush1.msra.mxu0 %v1670
  %2827 = vmatprep.subr.mxu0 0.0
  %2828 = vmatpush1.msra.mxu0 %v1671
  %2829 = vmatprep.subr.mxu0 0.0
  %2830 = vmatpush1.msra.mxu0 %v1672
  %2831 = vmatprep.subr.mxu0 0.0
  %2832 = vmatpush1.msra.mxu0 %v1673
  %2833 = vmatprep.subr.mxu0 0.0
  %2834 = vmatpush1.msra.mxu0 %v1674
  %2835 = vmatprep.subr.mxu0 0.0
  %2836 = vmatpush1.msra.mxu0 %v1675
  %2837 = vmatprep.subr.mxu0 0.0
  %2838 = vmatpush1.msra.mxu0 %v1676
  %2839 = vmatprep.subr.mxu0 0.0
  %2840 = vmatpush1.msra.mxu0 %v1677
  %2841 = vmatprep.subr.mxu0 0.0
  %2842 = vmatpush1.msra.mxu0 %v1678
  %2843 = vmatprep.subr.mxu0 0.0
  %2844 = vmatpush1.msra.mxu0 %v1679
  %2845 = vmatprep.subr.mxu0 0.0
  %2846 = vmatpush1.msra.mxu0 %v1680
  %2847 = vmatprep.subr.mxu0 0.0
  %2848 = vmatpush1.msra.mxu0 %v1681
  %2849 = vmatprep.subr.mxu0 0.0
  %2850 = vmatpush1.msra.mxu0 %v1682
  %2851 = vmatprep.subr.mxu0 0.0
  %2852 = vmatpush1.msra.mxu0 %v1683
  %2853 = vmatprep.mubr.f32.mxu0 %v23
  %2854 = vmatmul.mubr.f32.gmra.mrb[0].mxu0 %v22
  %v2855 = vpop.f32.mrb[0].mxu0
  %v2856 = vadd.f32 %v2471, %v2855
  %v2857 = vpop.f32.mrb[0].mxu0
  %2858 = vmatprep.mubr.f32.mxu0 %v48
  %2859 = vmatmul.mubr.f32.gmra.mrb[0].mxu0 %v47
  %v2860 = vpop.f32.mrb[0].mxu0
  %v2861 = vadd.f32 %v2476, %v2860
  %v2862 = vpop.f32.mrb[0].mxu0
  %2863 = vmatprep.mubr.f32.mxu0 %v73
  %2864 = vmatmul.mubr.f32.gmra.mrb[0].mxu0 %v72
  %v2865 = vpop.f32.mrb[0].mxu0
  %v2866 = vadd.f32 %v2481, %v2865
  %v2867 = vpop.f32.mrb[0].mxu0
  %2868 = vmatprep.mubr.f32.mxu0 %v98
  %2869 = vmatmul.mubr.f32.gmra.mrb[0].mxu0 %v97
  %v2870 = vpop.f32.mrb[0].mxu0
  %v2871 = vadd.f32 %v2486, %v2870
  %v2872 = vpop.f32.mrb[0].mxu0
  %2873 = vmatprep.mubr.f32.mxu0 %v123
  %2874 = vmatmul.mubr.f32.gmra.mrb[0].mxu0 %v122
  %v2875 = vpop.f32.mrb[0].mxu0
  %v2876 = vadd.f32 %v2491, %v2875
  %v2877 = vpop.f32.mrb[0].mxu0
  %2878 = vmatprep.mubr.f32.mxu0 %v148
  %2879 = vmatmul.mubr.f32.gmra.mrb[0].mxu0 %v147
  %v2880 = vpop.f32.mrb[0].mxu0
  %v2881 = vadd.f32 %v2496, %v2880
  %v2882 = vpop.f32.mrb[0].mxu0
  %2883 = vmatprep.mubr.f32.mxu0 %v173
  %2884 = vmatmul.mubr.f32.gmra.mrb[0].mxu0 %v172
  %v2885 = vpop.f32.mrb[0].mxu0
  %v2886 = vadd.f32 %v2501, %v2885
  %v2887 = vpop.f32.mrb[0].mxu0
  %2888 = vmatprep.mubr.f32.mxu0 %v198
  %2889 = vmatmul.mubr.f32.gmra.mrb[0].mxu0 %v197
  %v2890 = vpop.f32.mrb[0].mxu0
  %v2891 = vadd.f32 %v2506, %v2890
  %v2892 = vpop.f32.mrb[0].mxu0
  %2893 = vmatprep.mubr.f32.mxu0 %v223
  %2894 = vmatmul.mubr.f32.gmra.mrb[0].mxu0 %v222
  %v2895 = vpop.f32.mrb[0].mxu0
  %v2896 = vadd.f32 %v2511, %v2895
  %v2897 = vpop.f32.mrb[0].mxu0
  %2898 = vmatprep.mubr.f32.mxu0 %v248
  %2899 = vmatmul.mubr.f32.gmra.mrb[0].mxu0 %v247
  %v2900 = vpop.f32.mrb[0].mxu0
  %v2901 = vadd.f32 %v2516, %v2900
  %v2902 = vpop.f32.mrb[0].mxu0
  %2903 = vmatprep.mubr.f32.mxu0 %v273
  %2904 = vmatmul.mubr.f32.gmra.mrb[0].mxu0 %v272
  %v2905 = vpop.f32.mrb[0].mxu0
  %v2906 = vadd.f32 %v2521, %v2905
  %v2907 = vpop.f32.mrb[0].mxu0
  %2908 = vmatprep.mubr.f32.mxu0 %v298
  %2909 = vmatmul.mubr.f32.gmra.mrb[0].mxu0 %v297
  %v2910 = vpop.f32.mrb[0].mxu0
  %v2911 = vadd.f32 %v2526, %v2910
  %v2912 = vpop.f32.mrb[0].mxu0
  %2913 = vmatprep.mubr.f32.mxu0 %v323
  %2914 = vmatmul.mubr.f32.gmra.mrb[0].mxu0 %v322
  %v2915 = vpop.f32.mrb[0].mxu0
  %v2916 = vadd.f32 %v2531, %v2915
  %v2917 = vpop.f32.mrb[0].mxu0
  %2918 = vmatprep.mubr.f32.mxu0 %v348
  %2919 = vmatmul.mubr.f32.gmra.mrb[0].mxu0 %v347
  %v2920 = vpop.f32.mrb[0].mxu0
  %v2921 = vadd.f32 %v2536, %v2920
  %v2922 = vpop.f32.mrb[0].mxu0
  %2923 = vmatprep.mubr.f32.mxu0 %v373
  %2924 = vmatmul.mubr.f32.gmra.mrb[0].mxu0 %v372
  %v2925 = vpop.f32.mrb[0].mxu0
  %v2926 = vadd.f32 %v2541, %v2925
  %v2927 = vpop.f32.mrb[0].mxu0
  %2928 = vmatprep.mubr.f32.mxu0 %v398
  %2929 = vmatmul.mubr.f32.gmra.mrb[0].mxu0 %v397
  %v2930 = vpop.f32.mrb[0].mxu0
  %v2931 = vadd.f32 %v2546, %v2930
  %v2932 = vpop.f32.mrb[0].mxu0
  %2933 = vmatprep.mubr.f32.mxu0 %v423
  %2934 = vmatmul.mubr.f32.gmra.mrb[0].mxu0 %v422
  %v2935 = vpop.f32.mrb[0].mxu0
  %v2936 = vadd.f32 %v2551, %v2935
  %v2937 = vpop.f32.mrb[0].mxu0
  %2938 = vmatprep.mubr.f32.mxu0 %v448
  %2939 = vmatmul.mubr.f32.gmra.mrb[0].mxu0 %v447
  %v2940 = vpop.f32.mrb[0].mxu0
  %v2941 = vadd.f32 %v2556, %v2940
  %v2942 = vpop.f32.mrb[0].mxu0
  %2943 = vmatprep.mubr.f32.mxu0 %v473
  %2944 = vmatmul.mubr.f32.gmra.mrb[0].mxu0 %v472
  %v2945 = vpop.f32.mrb[0].mxu0
  %v2946 = vadd.f32 %v2561, %v2945
  %v2947 = vpop.f32.mrb[0].mxu0
  %2948 = vmatprep.mubr.f32.mxu0 %v498
  %2949 = vmatmul.mubr.f32.gmra.mrb[0].mxu0 %v497
  %v2950 = vpop.f32.mrb[0].mxu0
  %v2951 = vadd.f32 %v2566, %v2950
  %v2952 = vpop.f32.mrb[0].mxu0
  %2953 = vmatprep.mubr.f32.mxu0 %v523
  %2954 = vmatmul.mubr.f32.gmra.mrb[0].mxu0 %v522
  %v2955 = vpop.f32.mrb[0].mxu0
  %v2956 = vadd.f32 %v2571, %v2955
  %v2957 = vpop.f32.mrb[0].mxu0
  %2958 = vmatprep.mubr.f32.mxu0 %v548
  %2959 = vmatmul.mubr.f32.gmra.mrb[0].mxu0 %v547
  %v2960 = vpop.f32.mrb[0].mxu0
  %v2961 = vadd.f32 %v2576, %v2960
  %v2962 = vpop.f32.mrb[0].mxu0
  %2963 = vmatprep.mubr.f32.mxu0 %v573
  %2964 = vmatmul.mubr.f32.gmra.mrb[0].mxu0 %v572
  %v2965 = vpop.f32.mrb[0].mxu0
  %v2966 = vadd.f32 %v2581, %v2965
  %v2967 = vpop.f32.mrb[0].mxu0
  %2968 = vmatprep.mubr.f32.mxu0 %v598
  %2969 = vmatmul.mubr.f32.gmra.mrb[0].mxu0 %v597
  %v2970 = vpop.f32.mrb[0].mxu0
  %v2971 = vadd.f32 %v2586, %v2970
  %v2972 = vpop.f32.mrb[0].mxu0
  %2973 = vmatprep.mubr.f32.mxu0 %v623
  %2974 = vmatmul.mubr.f32.gmra.mrb[0].mxu0 %v622
  %v2975 = vpop.f32.mrb[0].mxu0
  %v2976 = vadd.f32 %v2591, %v2975
  %v2977 = vpop.f32.mrb[0].mxu0
  %2978 = vmatprep.mubr.f32.mxu0 %v648
  %2979 = vmatmul.mubr.f32.gmra.mrb[0].mxu0 %v647
  %v2980 = vpop.f32.mrb[0].mxu0
  %v2981 = vadd.f32 %v2596, %v2980
  %v2982 = vpop.f32.mrb[0].mxu0
  %2983 = vmatprep.mubr.f32.mxu0 %v673
  %2984 = vmatmul.mubr.f32.gmra.mrb[0].mxu0 %v672
  %v2985 = vpop.f32.mrb[0].mxu0
  %v2986 = vadd.f32 %v2601, %v2985
  %v2987 = vpop.f32.mrb[0].mxu0
  %2988 = vmatprep.mubr.f32.mxu0 %v698
  %2989 = vmatmul.mubr.f32.gmra.mrb[0].mxu0 %v697
  %v2990 = vpop.f32.mrb[0].mxu0
  %v2991 = vadd.f32 %v2606, %v2990
  %v2992 = vpop.f32.mrb[0].mxu0
  %2993 = vmatprep.mubr.f32.mxu0 %v723
  %2994 = vmatmul.mubr.f32.gmra.mrb[0].mxu0 %v722
  %v2995 = vpop.f32.mrb[0].mxu0
  %v2996 = vadd.f32 %v2611, %v2995
  %v2997 = vpop.f32.mrb[0].mxu0
  %2998 = vmatprep.mubr.f32.mxu0 %v748
  %2999 = vmatmul.mubr.f32.gmra.mrb[0].mxu0 %v747
  %v3000 = vpop.f32.mrb[0].mxu0
  %v3001 = vadd.f32 %v2616, %v3000
  %v3002 = vpop.f32.mrb[0].mxu0
  %3003 = vmatprep.mubr.f32.mxu0 %v773
  %3004 = vmatmul.mubr.f32.gmra.mrb[0].mxu0 %v772
  %v3005 = vpop.f32.mrb[0].mxu0
  %v3006 = vadd.f32 %v2621, %v3005
  %v3007 = vpop.f32.mrb[0].mxu0
  %3008 = vmatprep.mubr.f32.mxu0 %v798
  %3009 = vmatmul.mubr.f32.gmra.mrb[0].mxu0 %v797
  %v3010 = vpop.f32.mrb[0].mxu0
  %v3011 = vadd.f32 %v2626, %v3010
  %v3012 = vpop.f32.mrb[0].mxu0
  %3013 = vmatprep.mubr.f32.mxu0 %v823
  %3014 = vmatmul.mubr.f32.gmra.mrb[0].mxu0 %v822
  %v3015 = vpop.f32.mrb[0].mxu0
  %v3016 = vadd.f32 %v2631, %v3015
  %v3017 = vpop.f32.mrb[0].mxu0
  %3018 = vmatprep.mubr.f32.mxu0 %v848
  %3019 = vmatmul.mubr.f32.gmra.mrb[0].mxu0 %v847
  %v3020 = vpop.f32.mrb[0].mxu0
  %v3021 = vadd.f32 %v2636, %v3020
  %v3022 = vpop.f32.mrb[0].mxu0
  %3023 = vmatprep.mubr.f32.mxu0 %v873
  %3024 = vmatmul.mubr.f32.gmra.mrb[0].mxu0 %v872
  %v3025 = vpop.f32.mrb[0].mxu0
  %v3026 = vadd.f32 %v2641, %v3025
  %v3027 = vpop.f32.mrb[0].mxu0
  %3028 = vmatprep.mubr.f32.mxu0 %v898
  %3029 = vmatmul.mubr.f32.gmra.mrb[0].mxu0 %v897
  %v3030 = vpop.f32.mrb[0].mxu0
  %v3031 = vadd.f32 %v2646, %v3030
  %v3032 = vpop.f32.mrb[0].mxu0
  %3033 = vmatprep.mubr.f32.mxu0 %v923
  %3034 = vmatmul.mubr.f32.gmra.mrb[0].mxu0 %v922
  %v3035 = vpop.f32.mrb[0].mxu0
  %v3036 = vadd.f32 %v2651, %v3035
  %v3037 = vpop.f32.mrb[0].mxu0
  %3038 = vmatprep.mubr.f32.mxu0 %v948
  %3039 = vmatmul.mubr.f32.gmra.mrb[0].mxu0 %v947
  %v3040 = vpop.f32.mrb[0].mxu0
  %v3041 = vadd.f32 %v2656, %v3040
  %v3042 = vpop.f32.mrb[0].mxu0
  %3043 = vmatprep.mubr.f32.mxu0 %v973
  %3044 = vmatmul.mubr.f32.gmra.mrb[0].mxu0 %v972
  %v3045 = vpop.f32.mrb[0].mxu0
  %v3046 = vadd.f32 %v2661, %v3045
  %v3047 = vpop.f32.mrb[0].mxu0
  %3048 = vmatprep.mubr.f32.mxu0 %v998
  %3049 = vmatmul.mubr.f32.gmra.mrb[0].mxu0 %v997
  %v3050 = vpop.f32.mrb[0].mxu0
  %v3051 = vadd.f32 %v2666, %v3050
  %v3052 = vpop.f32.mrb[0].mxu0
  %3053 = vmatprep.mubr.f32.mxu0 %v1023
  %3054 = vmatmul.mubr.f32.gmra.mrb[0].mxu0 %v1022
  %v3055 = vpop.f32.mrb[0].mxu0
  %v3056 = vadd.f32 %v2671, %v3055
  %v3057 = vpop.f32.mrb[0].mxu0
  %3058 = vmatprep.mubr.f32.mxu0 %v1048
  %3059 = vmatmul.mubr.f32.gmra.mrb[0].mxu0 %v1047
  %v3060 = vpop.f32.mrb[0].mxu0
  %v3061 = vadd.f32 %v2676, %v3060
  %v3062 = vpop.f32.mrb[0].mxu0
  %3063 = vmatprep.mubr.f32.mxu0 %v1073
  %3064 = vmatmul.mubr.f32.gmra.mrb[0].mxu0 %v1072
  %v3065 = vpop.f32.mrb[0].mxu0
  %v3066 = vadd.f32 %v2681, %v3065
  %v3067 = vpop.f32.mrb[0].mxu0
  %3068 = vmatprep.mubr.f32.mxu0 %v1098
  %3069 = vmatmul.mubr.f32.gmra.mrb[0].mxu0 %v1097
  %v3070 = vpop.f32.mrb[0].mxu0
  %v3071 = vadd.f32 %v2686, %v3070
  %v3072 = vpop.f32.mrb[0].mxu0
  %3073 = vmatprep.mubr.f32.mxu0 %v1123
  %3074 = vmatmul.mubr.f32.gmra.mrb[0].mxu0 %v1122
  %v3075 = vpop.f32.mrb[0].mxu0
  %v3076 = vadd.f32 %v2691, %v3075
  %v3077 = vpop.f32.mrb[0].mxu0
  %3078 = vmatprep.mubr.f32.mxu0 %v1148
  %3079 = vmatmul.mubr.f32.gmra.mrb[0].mxu0 %v1147
  %v3080 = vpop.f32.mrb[0].mxu0
  %v3081 = vadd.f32 %v2696, %v3080
  %v3082 = vpop.f32.mrb[0].mxu0
  %3083 = vmatprep.mubr.f32.mxu0 %v1173
  %3084 = vmatmul.mubr.f32.gmra.mrb[0].mxu0 %v1172
  %v3085 = vpop.f32.mrb[0].mxu0
  %v3086 = vadd.f32 %v2701, %v3085
  %v3087 = vpop.f32.mrb[0].mxu0
  %3088 = vmatprep.mubr.f32.mxu0 %v1198
  %3089 = vmatmul.mubr.f32.gmra.mrb[0].mxu0 %v1197
  %v3090 = vpop.f32.mrb[0].mxu0
  %v3091 = vadd.f32 %v2706, %v3090
  %v3092 = vpop.f32.mrb[0].mxu0
  %3093 = vmatprep.mubr.f32.mxu0 %v1223
  %3094 = vmatmul.mubr.f32.gmra.mrb[0].mxu0 %v1222
  %v3095 = vpop.f32.mrb[0].mxu0
  %v3096 = vadd.f32 %v2711, %v3095
  %v3097 = vpop.f32.mrb[0].mxu0
  %3098 = vmatprep.mubr.f32.mxu0 %v1248
  %3099 = vmatmul.mubr.f32.gmra.mrb[0].mxu0 %v1247
  %v3100 = vpop.f32.mrb[0].mxu0
  %v3101 = vadd.f32 %v2716, %v3100
  %v3102 = vpop.f32.mrb[0].mxu0
  %3103 = vmatprep.mubr.f32.mxu0 %v1273
  %3104 = vmatmul.mubr.f32.gmra.mrb[0].mxu0 %v1272
  %v3105 = vpop.f32.mrb[0].mxu0
  %v3106 = vadd.f32 %v2721, %v3105
  %v3107 = vpop.f32.mrb[0].mxu0
  %3108 = vmatprep.mubr.f32.mxu0 %v1298
  %3109 = vmatmul.mubr.f32.gmra.mrb[0].mxu0 %v1297
  %v3110 = vpop.f32.mrb[0].mxu0
  %v3111 = vadd.f32 %v2726, %v3110
  %v3112 = vpop.f32.mrb[0].mxu0
  %3113 = vmatprep.mubr.f32.mxu0 %v1323
  %3114 = vmatmul.mubr.f32.gmra.mrb[0].mxu0 %v1322
  %v3115 = vpop.f32.mrb[0].mxu0
  %v3116 = vadd.f32 %v2731, %v3115
  %v3117 = vpop.f32.mrb[0].mxu0
  %3118 = vmatprep.mubr.f32.mxu0 %v1348
  %3119 = vmatmul.mubr.f32.gmra.mrb[0].mxu0 %v1347
  %v3120 = vpop.f32.mrb[0].mxu0
  %v3121 = vadd.f32 %v2736, %v3120
  %v3122 = vpop.f32.mrb[0].mxu0
  %3123 = vmatprep.mubr.f32.mxu0 %v1373
  %3124 = vmatmul.mubr.f32.gmra.mrb[0].mxu0 %v1372
  %v3125 = vpop.f32.mrb[0].mxu0
  %v3126 = vadd.f32 %v2741, %v3125
  %v3127 = vpop.f32.mrb[0].mxu0
  %3128 = vmatprep.mubr.f32.mxu0 %v1398
  %3129 = vmatmul.mubr.f32.gmra.mrb[0].mxu0 %v1397
  %v3130 = vpop.f32.mrb[0].mxu0
  %v3131 = vadd.f32 %v2746, %v3130
  %v3132 = vpop.f32.mrb[0].mxu0
  %3133 = vmatprep.mubr.f32.mxu0 %v1423
  %3134 = vmatmul.mubr.f32.gmra.mrb[0].mxu0 %v1422
  %v3135 = vpop.f32.mrb[0].mxu0
  %v3136 = vadd.f32 %v2751, %v3135
  %v3137 = vpop.f32.mrb[0].mxu0
  %3138 = vmatprep.mubr.f32.mxu0 %v1448
  %3139 = vmatmul.mubr.f32.gmra.mrb[0].mxu0 %v1447
  %v3140 = vpop.f32.mrb[0].mxu0
  %v3141 = vadd.f32 %v2756, %v3140
  %v3142 = vpop.f32.mrb[0].mxu0
  %3143 = vmatprep.mubr.f32.mxu0 %v1473
  %3144 = vmatmul.mubr.f32.gmra.mrb[0].mxu0 %v1472
  %v3145 = vpop.f32.mrb[0].mxu0
  %v3146 = vadd.f32 %v2761, %v3145
  %v3147 = vpop.f32.mrb[0].mxu0
  %3148 = vmatprep.mubr.f32.mxu0 %v1498
  %3149 = vmatmul.mubr.f32.gmra.mrb[0].mxu0 %v1497
  %v3150 = vpop.f32.mrb[0].mxu0
  %v3151 = vadd.f32 %v2766, %v3150
  %v3152 = vpop.f32.mrb[0].mxu0
  %3153 = vmatprep.mubr.f32.mxu0 %v1523
  %3154 = vmatmul.mubr.f32.gmra.mrb[0].mxu0 %v1522
  %v3155 = vpop.f32.mrb[0].mxu0
  %v3156 = vadd.f32 %v2771, %v3155
  %v3157 = vpop.f32.mrb[0].mxu0
  %3158 = vmatprep.mubr.f32.mxu0 %v1548
  %3159 = vmatmul.mubr.f32.gmra.mrb[0].mxu0 %v1547
  %v3160 = vpop.f32.mrb[0].mxu0
  %v3161 = vadd.f32 %v2776, %v3160
  %v3162 = vpop.f32.mrb[0].mxu0
  %3163 = vmatprep.mubr.f32.mxu0 %v1573
  %3164 = vmatmul.mubr.f32.gmra.mrb[0].mxu0 %v1572
  %v3165 = vpop.f32.mrb[0].mxu0
  %v3166 = vadd.f32 %v2781, %v3165
  %v3167 = vpop.f32.mrb[0].mxu0
  %3168 = vmatprep.mubr.f32.mxu0 %v1598
  %3169 = vmatmul.mubr.f32.gmra.mrb[0].mxu0 %v1597
  %v3170 = vpop.f32.mrb[0].mxu0
  %v3171 = vadd.f32 %v2786, %v3170
  %v3172 = vpop.f32.mrb[0].mxu0
  %3173 = vdwg.mxu0
  %3174 = vmatprep.subr.mxu0 0.0
  %3175 = vmatpush1.msra.mxu0 %v1684
  %3176 = vmatprep.subr.mxu0 0.0
  %3177 = vmatpush1.msra.mxu0 %v1685
  %3178 = vmatprep.subr.mxu0 0.0
  %3179 = vmatpush1.msra.mxu0 %v1686
  %3180 = vmatprep.subr.mxu0 0.0
  %3181 = vmatpush1.msra.mxu0 %v1687
  %3182 = vmatprep.subr.mxu0 0.0
  %3183 = vmatpush1.msra.mxu0 %v1688
  %3184 = vmatprep.subr.mxu0 0.0
  %3185 = vmatpush1.msra.mxu0 %v1689
  %3186 = vmatprep.subr.mxu0 0.0
  %3187 = vmatpush1.msra.mxu0 %v1690
  %3188 = vmatprep.subr.mxu0 0.0
  %3189 = vmatpush1.msra.mxu0 %v1691
  %3190 = vmatprep.subr.mxu0 0.0
  %3191 = vmatpush1.msra.mxu0 %v1692
  %3192 = vmatprep.subr.mxu0 0.0
  %3193 = vmatpush1.msra.mxu0 %v1693
  %3194 = vmatprep.subr.mxu0 0.0
  %3195 = vmatpush1.msra.mxu0 %v1694
  %3196 = vmatprep.subr.mxu0 0.0
  %3197 = vmatpush1.msra.mxu0 %v1695
  %3198 = vmatprep.subr.mxu0 0.0
  %3199 = vmatpush1.msra.mxu0 %v1696
  %3200 = vmatprep.subr.mxu0 0.0
  %3201 = vmatpush1.msra.mxu0 %v1697
  %3202 = vmatprep.subr.mxu0 0.0
  %3203 = vmatpush1.msra.mxu0 %v1698
  %3204 = vmatprep.subr.mxu0 0.0
  %3205 = vmatpush1.msra.mxu0 %v1699
  %3206 = vmatprep.subr.mxu0 0.0
  %3207 = vmatpush1.msra.mxu0 %v1700
  %3208 = vmatprep.subr.mxu0 0.0
  %3209 = vmatpush1.msra.mxu0 %v1701
  %3210 = vmatprep.subr.mxu0 0.0
  %3211 = vmatpush1.msra.mxu0 %v1702
  %3212 = vmatprep.subr.mxu0 0.0
  %3213 = vmatpush1.msra.mxu0 %v1703
  %3214 = vmatprep.subr.mxu0 0.0
  %3215 = vmatpush1.msra.mxu0 %v1704
  %3216 = vmatprep.subr.mxu0 0.0
  %3217 = vmatpush1.msra.mxu0 %v1705
  %3218 = vmatprep.subr.mxu0 0.0
  %3219 = vmatpush1.msra.mxu0 %v1706
  %3220 = vmatprep.subr.mxu0 0.0
  %3221 = vmatpush1.msra.mxu0 %v1707
  %3222 = vmatprep.subr.mxu0 0.0
  %3223 = vmatpush1.msra.mxu0 %v1708
  %3224 = vmatprep.subr.mxu0 0.0
  %3225 = vmatpush1.msra.mxu0 %v1709
  %3226 = vmatprep.subr.mxu0 0.0
  %3227 = vmatpush1.msra.mxu0 %v1710
  %3228 = vmatprep.subr.mxu0 0.0
  %3229 = vmatpush1.msra.mxu0 %v1711
  %3230 = vmatprep.subr.mxu0 0.0
  %3231 = vmatpush1.msra.mxu0 %v1712
  %3232 = vmatprep.subr.mxu0 0.0
  %3233 = vmatpush1.msra.mxu0 %v1713
  %3234 = vmatprep.subr.mxu0 0.0
  %3235 = vmatpush1.msra.mxu0 %v1714
  %3236 = vmatprep.subr.mxu0 0.0
  %3237 = vmatpush1.msra.mxu0 %v1715
  %3238 = vmatprep.mubr.f32.mxu0 %v25
  %3239 = vmatmul.mubr.f32.gmra.mrb[0].mxu0 %v24
  %v3240 = vpop.f32.mrb[0].mxu0
  %v3241 = vadd.f32 %v2856, %v3240
  %v3242 = vpop.f32.mrb[0].mxu0
  %3243 = vmatprep.mubr.f32.mxu0 %v50
  %3244 = vmatmul.mubr.f32.gmra.mrb[0].mxu0 %v49
  %v3245 = vpop.f32.mrb[0].mxu0
  %v3246 = vadd.f32 %v2861, %v3245
  %v3247 = vpop.f32.mrb[0].mxu0
  %3248 = vmatprep.mubr.f32.mxu0 %v75
  %3249 = vmatmul.mubr.f32.gmra.mrb[0].mxu0 %v74
  %v3250 = vpop.f32.mrb[0].mxu0
  %v3251 = vadd.f32 %v2866, %v3250
  %v3252 = vpop.f32.mrb[0].mxu0
  %3253 = vmatprep.mubr.f32.mxu0 %v100
  %3254 = vmatmul.mubr.f32.gmra.mrb[0].mxu0 %v99
  %v3255 = vpop.f32.mrb[0].mxu0
  %v3256 = vadd.f32 %v2871, %v3255
  %v3257 = vpop.f32.mrb[0].mxu0
  %3258 = vmatprep.mubr.f32.mxu0 %v125
  %3259 = vmatmul.mubr.f32.gmra.mrb[0].mxu0 %v124
  %v3260 = vpop.f32.mrb[0].mxu0
  %v3261 = vadd.f32 %v2876, %v3260
  %v3262 = vpop.f32.mrb[0].mxu0
  %3263 = vmatprep.mubr.f32.mxu0 %v150
  %3264 = vmatmul.mubr.f32.gmra.mrb[0].mxu0 %v149
  %v3265 = vpop.f32.mrb[0].mxu0
  %v3266 = vadd.f32 %v2881, %v3265
  %v3267 = vpop.f32.mrb[0].mxu0
  %3268 = vmatprep.mubr.f32.mxu0 %v175
  %3269 = vmatmul.mubr.f32.gmra.mrb[0].mxu0 %v174
  %v3270 = vpop.f32.mrb[0].mxu0
  %v3271 = vadd.f32 %v2886, %v3270
  %v3272 = vpop.f32.mrb[0].mxu0
  %3273 = vmatprep.mubr.f32.mxu0 %v200
  %3274 = vmatmul.mubr.f32.gmra.mrb[0].mxu0 %v199
  %v3275 = vpop.f32.mrb[0].mxu0
  %v3276 = vadd.f32 %v2891, %v3275
  %v3277 = vpop.f32.mrb[0].mxu0
  %3278 = vmatprep.mubr.f32.mxu0 %v225
  %3279 = vmatmul.mubr.f32.gmra.mrb[0].mxu0 %v224
  %v3280 = vpop.f32.mrb[0].mxu0
  %v3281 = vadd.f32 %v2896, %v3280
  %v3282 = vpop.f32.mrb[0].mxu0
  %3283 = vmatprep.mubr.f32.mxu0 %v250
  %3284 = vmatmul.mubr.f32.gmra.mrb[0].mxu0 %v249
  %v3285 = vpop.f32.mrb[0].mxu0
  %v3286 = vadd.f32 %v2901, %v3285
  %v3287 = vpop.f32.mrb[0].mxu0
  %3288 = vmatprep.mubr.f32.mxu0 %v275
  %3289 = vmatmul.mubr.f32.gmra.mrb[0].mxu0 %v274
  %v3290 = vpop.f32.mrb[0].mxu0
  %v3291 = vadd.f32 %v2906, %v3290
  %v3292 = vpop.f32.mrb[0].mxu0
  %3293 = vmatprep.mubr.f32.mxu0 %v300
  %3294 = vmatmul.mubr.f32.gmra.mrb[0].mxu0 %v299
  %v3295 = vpop.f32.mrb[0].mxu0
  %v3296 = vadd.f32 %v2911, %v3295
  %v3297 = vpop.f32.mrb[0].mxu0
  %3298 = vmatprep.mubr.f32.mxu0 %v325
  %3299 = vmatmul.mubr.f32.gmra.mrb[0].mxu0 %v324
  %v3300 = vpop.f32.mrb[0].mxu0
  %v3301 = vadd.f32 %v2916, %v3300
  %v3302 = vpop.f32.mrb[0].mxu0
  %3303 = vmatprep.mubr.f32.mxu0 %v350
  %3304 = vmatmul.mubr.f32.gmra.mrb[0].mxu0 %v349
  %v3305 = vpop.f32.mrb[0].mxu0
  %v3306 = vadd.f32 %v2921, %v3305
  %v3307 = vpop.f32.mrb[0].mxu0
  %3308 = vmatprep.mubr.f32.mxu0 %v375
  %3309 = vmatmul.mubr.f32.gmra.mrb[0].mxu0 %v374
  %v3310 = vpop.f32.mrb[0].mxu0
  %v3311 = vadd.f32 %v2926, %v3310
  %v3312 = vpop.f32.mrb[0].mxu0
  %3313 = vmatprep.mubr.f32.mxu0 %v400
  %3314 = vmatmul.mubr.f32.gmra.mrb[0].mxu0 %v399
  %v3315 = vpop.f32.mrb[0].mxu0
  %v3316 = vadd.f32 %v2931, %v3315
  %v3317 = vpop.f32.mrb[0].mxu0
  %3318 = vmatprep.mubr.f32.mxu0 %v425
  %3319 = vmatmul.mubr.f32.gmra.mrb[0].mxu0 %v424
  %v3320 = vpop.f32.mrb[0].mxu0
  %v3321 = vadd.f32 %v2936, %v3320
  %v3322 = vpop.f32.mrb[0].mxu0
  %3323 = vmatprep.mubr.f32.mxu0 %v450
  %3324 = vmatmul.mubr.f32.gmra.mrb[0].mxu0 %v449
  %v3325 = vpop.f32.mrb[0].mxu0
  %v3326 = vadd.f32 %v2941, %v3325
  %v3327 = vpop.f32.mrb[0].mxu0
  %3328 = vmatprep.mubr.f32.mxu0 %v475
  %3329 = vmatmul.mubr.f32.gmra.mrb[0].mxu0 %v474
  %v3330 = vpop.f32.mrb[0].mxu0
  %v3331 = vadd.f32 %v2946, %v3330
  %v3332 = vpop.f32.mrb[0].mxu0
  %3333 = vmatprep.mubr.f32.mxu0 %v500
  %3334 = vmatmul.mubr.f32.gmra.mrb[0].mxu0 %v499
  %v3335 = vpop.f32.mrb[0].mxu0
  %v3336 = vadd.f32 %v2951, %v3335
  %v3337 = vpop.f32.mrb[0].mxu0
  %3338 = vmatprep.mubr.f32.mxu0 %v525
  %3339 = vmatmul.mubr.f32.gmra.mrb[0].mxu0 %v524
  %v3340 = vpop.f32.mrb[0].mxu0
  %v3341 = vadd.f32 %v2956, %v3340
  %v3342 = vpop.f32.mrb[0].mxu0
  %3343 = vmatprep.mubr.f32.mxu0 %v550
  %3344 = vmatmul.mubr.f32.gmra.mrb[0].mxu0 %v549
  %v3345 = vpop.f32.mrb[0].mxu0
  %v3346 = vadd.f32 %v2961, %v3345
  %v3347 = vpop.f32.mrb[0].mxu0
  %3348 = vmatprep.mubr.f32.mxu0 %v575
  %3349 = vmatmul.mubr.f32.gmra.mrb[0].mxu0 %v574
  %v3350 = vpop.f32.mrb[0].mxu0
  %v3351 = vadd.f32 %v2966, %v3350
  %v3352 = vpop.f32.mrb[0].mxu0
  %3353 = vmatprep.mubr.f32.mxu0 %v600
  %3354 = vmatmul.mubr.f32.gmra.mrb[0].mxu0 %v599
  %v3355 = vpop.f32.mrb[0].mxu0
  %v3356 = vadd.f32 %v2971, %v3355
  %v3357 = vpop.f32.mrb[0].mxu0
  %3358 = vmatprep.mubr.f32.mxu0 %v625
  %3359 = vmatmul.mubr.f32.gmra.mrb[0].mxu0 %v624
  %v3360 = vpop.f32.mrb[0].mxu0
  %v3361 = vadd.f32 %v2976, %v3360
  %v3362 = vpop.f32.mrb[0].mxu0
  %3363 = vmatprep.mubr.f32.mxu0 %v650
  %3364 = vmatmul.mubr.f32.gmra.mrb[0].mxu0 %v649
  %v3365 = vpop.f32.mrb[0].mxu0
  %v3366 = vadd.f32 %v2981, %v3365
  %v3367 = vpop.f32.mrb[0].mxu0
  %3368 = vmatprep.mubr.f32.mxu0 %v675
  %3369 = vmatmul.mubr.f32.gmra.mrb[0].mxu0 %v674
  %v3370 = vpop.f32.mrb[0].mxu0
  %v3371 = vadd.f32 %v2986, %v3370
  %v3372 = vpop.f32.mrb[0].mxu0
  %3373 = vmatprep.mubr.f32.mxu0 %v700
  %3374 = vmatmul.mubr.f32.gmra.mrb[0].mxu0 %v699
  %v3375 = vpop.f32.mrb[0].mxu0
  %v3376 = vadd.f32 %v2991, %v3375
  %v3377 = vpop.f32.mrb[0].mxu0
  %3378 = vmatprep.mubr.f32.mxu0 %v725
  %3379 = vmatmul.mubr.f32.gmra.mrb[0].mxu0 %v724
  %v3380 = vpop.f32.mrb[0].mxu0
  %v3381 = vadd.f32 %v2996, %v3380
  %v3382 = vpop.f32.mrb[0].mxu0
  %3383 = vmatprep.mubr.f32.mxu0 %v750
  %3384 = vmatmul.mubr.f32.gmra.mrb[0].mxu0 %v749
  %v3385 = vpop.f32.mrb[0].mxu0
  %v3386 = vadd.f32 %v3001, %v3385
  %v3387 = vpop.f32.mrb[0].mxu0
  %3388 = vmatprep.mubr.f32.mxu0 %v775
  %3389 = vmatmul.mubr.f32.gmra.mrb[0].mxu0 %v774
  %v3390 = vpop.f32.mrb[0].mxu0
  %v3391 = vadd.f32 %v3006, %v3390
  %v3392 = vpop.f32.mrb[0].mxu0
  %3393 = vmatprep.mubr.f32.mxu0 %v800
  %3394 = vmatmul.mubr.f32.gmra.mrb[0].mxu0 %v799
  %v3395 = vpop.f32.mrb[0].mxu0
  %v3396 = vadd.f32 %v3011, %v3395
  %v3397 = vpop.f32.mrb[0].mxu0
  %3398 = vmatprep.mubr.f32.mxu0 %v825
  %3399 = vmatmul.mubr.f32.gmra.mrb[0].mxu0 %v824
  %v3400 = vpop.f32.mrb[0].mxu0
  %v3401 = vadd.f32 %v3016, %v3400
  %v3402 = vpop.f32.mrb[0].mxu0
  %3403 = vmatprep.mubr.f32.mxu0 %v850
  %3404 = vmatmul.mubr.f32.gmra.mrb[0].mxu0 %v849
  %v3405 = vpop.f32.mrb[0].mxu0
  %v3406 = vadd.f32 %v3021, %v3405
  %v3407 = vpop.f32.mrb[0].mxu0
  %3408 = vmatprep.mubr.f32.mxu0 %v875
  %3409 = vmatmul.mubr.f32.gmra.mrb[0].mxu0 %v874
  %v3410 = vpop.f32.mrb[0].mxu0
  %v3411 = vadd.f32 %v3026, %v3410
  %v3412 = vpop.f32.mrb[0].mxu0
  %3413 = vmatprep.mubr.f32.mxu0 %v900
  %3414 = vmatmul.mubr.f32.gmra.mrb[0].mxu0 %v899
  %v3415 = vpop.f32.mrb[0].mxu0
  %v3416 = vadd.f32 %v3031, %v3415
  %v3417 = vpop.f32.mrb[0].mxu0
  %3418 = vmatprep.mubr.f32.mxu0 %v925
  %3419 = vmatmul.mubr.f32.gmra.mrb[0].mxu0 %v924
  %v3420 = vpop.f32.mrb[0].mxu0
  %v3421 = vadd.f32 %v3036, %v3420
  %v3422 = vpop.f32.mrb[0].mxu0
  %3423 = vmatprep.mubr.f32.mxu0 %v950
  %3424 = vmatmul.mubr.f32.gmra.mrb[0].mxu0 %v949
  %v3425 = vpop.f32.mrb[0].mxu0
  %v3426 = vadd.f32 %v3041, %v3425
  %v3427 = vpop.f32.mrb[0].mxu0
  %3428 = vmatprep.mubr.f32.mxu0 %v975
  %3429 = vmatmul.mubr.f32.gmra.mrb[0].mxu0 %v974
  %v3430 = vpop.f32.mrb[0].mxu0
  %v3431 = vadd.f32 %v3046, %v3430
  %v3432 = vpop.f32.mrb[0].mxu0
  %3433 = vmatprep.mubr.f32.mxu0 %v1000
  %3434 = vmatmul.mubr.f32.gmra.mrb[0].mxu0 %v999
  %v3435 = vpop.f32.mrb[0].mxu0
  %v3436 = vadd.f32 %v3051, %v3435
  %v3437 = vpop.f32.mrb[0].mxu0
  %3438 = vmatprep.mubr.f32.mxu0 %v1025
  %3439 = vmatmul.mubr.f32.gmra.mrb[0].mxu0 %v1024
  %v3440 = vpop.f32.mrb[0].mxu0
  %v3441 = vadd.f32 %v3056, %v3440
  %v3442 = vpop.f32.mrb[0].mxu0
  %3443 = vmatprep.mubr.f32.mxu0 %v1050
  %3444 = vmatmul.mubr.f32.gmra.mrb[0].mxu0 %v1049
  %v3445 = vpop.f32.mrb[0].mxu0
  %v3446 = vadd.f32 %v3061, %v3445
  %v3447 = vpop.f32.mrb[0].mxu0
  %3448 = vmatprep.mubr.f32.mxu0 %v1075
  %3449 = vmatmul.mubr.f32.gmra.mrb[0].mxu0 %v1074
  %v3450 = vpop.f32.mrb[0].mxu0
  %v3451 = vadd.f32 %v3066, %v3450
  %v3452 = vpop.f32.mrb[0].mxu0
  %3453 = vmatprep.mubr.f32.mxu0 %v1100
  %3454 = vmatmul.mubr.f32.gmra.mrb[0].mxu0 %v1099
  %v3455 = vpop.f32.mrb[0].mxu0
  %v3456 = vadd.f32 %v3071, %v3455
  %v3457 = vpop.f32.mrb[0].mxu0
  %3458 = vmatprep.mubr.f32.mxu0 %v1125
  %3459 = vmatmul.mubr.f32.gmra.mrb[0].mxu0 %v1124
  %v3460 = vpop.f32.mrb[0].mxu0
  %v3461 = vadd.f32 %v3076, %v3460
  %v3462 = vpop.f32.mrb[0].mxu0
  %3463 = vmatprep.mubr.f32.mxu0 %v1150
  %3464 = vmatmul.mubr.f32.gmra.mrb[0].mxu0 %v1149
  %v3465 = vpop.f32.mrb[0].mxu0
  %v3466 = vadd.f32 %v3081, %v3465
  %v3467 = vpop.f32.mrb[0].mxu0
  %3468 = vmatprep.mubr.f32.mxu0 %v1175
  %3469 = vmatmul.mubr.f32.gmra.mrb[0].mxu0 %v1174
  %v3470 = vpop.f32.mrb[0].mxu0
  %v3471 = vadd.f32 %v3086, %v3470
  %v3472 = vpop.f32.mrb[0].mxu0
  %3473 = vmatprep.mubr.f32.mxu0 %v1200
  %3474 = vmatmul.mubr.f32.gmra.mrb[0].mxu0 %v1199
  %v3475 = vpop.f32.mrb[0].mxu0
  %v3476 = vadd.f32 %v3091, %v3475
  %v3477 = vpop.f32.mrb[0].mxu0
  %3478 = vmatprep.mubr.f32.mxu0 %v1225
  %3479 = vmatmul.mubr.f32.gmra.mrb[0].mxu0 %v1224
  %v3480 = vpop.f32.mrb[0].mxu0
  %v3481 = vadd.f32 %v3096, %v3480
  %v3482 = vpop.f32.mrb[0].mxu0
  %3483 = vmatprep.mubr.f32.mxu0 %v1250
  %3484 = vmatmul.mubr.f32.gmra.mrb[0].mxu0 %v1249
  %v3485 = vpop.f32.mrb[0].mxu0
  %v3486 = vadd.f32 %v3101, %v3485
  %v3487 = vpop.f32.mrb[0].mxu0
  %3488 = vmatprep.mubr.f32.mxu0 %v1275
  %3489 = vmatmul.mubr.f32.gmra.mrb[0].mxu0 %v1274
  %v3490 = vpop.f32.mrb[0].mxu0
  %v3491 = vadd.f32 %v3106, %v3490
  %v3492 = vpop.f32.mrb[0].mxu0
  %3493 = vmatprep.mubr.f32.mxu0 %v1300
  %3494 = vmatmul.mubr.f32.gmra.mrb[0].mxu0 %v1299
  %v3495 = vpop.f32.mrb[0].mxu0
  %v3496 = vadd.f32 %v3111, %v3495
  %v3497 = vpop.f32.mrb[0].mxu0
  %3498 = vmatprep.mubr.f32.mxu0 %v1325
  %3499 = vmatmul.mubr.f32.gmra.mrb[0].mxu0 %v1324
  %v3500 = vpop.f32.mrb[0].mxu0
  %v3501 = vadd.f32 %v3116, %v3500
  %v3502 = vpop.f32.mrb[0].mxu0
  %3503 = vmatprep.mubr.f32.mxu0 %v1350
  %3504 = vmatmul.mubr.f32.gmra.mrb[0].mxu0 %v1349
  %v3505 = vpop.f32.mrb[0].mxu0
  %v3506 = vadd.f32 %v3121, %v3505
  %v3507 = vpop.f32.mrb[0].mxu0
  %3508 = vmatprep.mubr.f32.mxu0 %v1375
  %3509 = vmatmul.mubr.f32.gmra.mrb[0].mxu0 %v1374
  %v3510 = vpop.f32.mrb[0].mxu0
  %v3511 = vadd.f32 %v3126, %v3510
  %v3512 = vpop.f32.mrb[0].mxu0
  %3513 = vmatprep.mubr.f32.mxu0 %v1400
  %3514 = vmatmul.mubr.f32.gmra.mrb[0].mxu0 %v1399
  %v3515 = vpop.f32.mrb[0].mxu0
  %v3516 = vadd.f32 %v3131, %v3515
  %v3517 = vpop.f32.mrb[0].mxu0
  %3518 = vmatprep.mubr.f32.mxu0 %v1425
  %3519 = vmatmul.mubr.f32.gmra.mrb[0].mxu0 %v1424
  %v3520 = vpop.f32.mrb[0].mxu0
  %v3521 = vadd.f32 %v3136, %v3520
  %v3522 = vpop.f32.mrb[0].mxu0
  %3523 = vmatprep.mubr.f32.mxu0 %v1450
  %3524 = vmatmul.mubr.f32.gmra.mrb[0].mxu0 %v1449
  %v3525 = vpop.f32.mrb[0].mxu0
  %v3526 = vadd.f32 %v3141, %v3525
  %v3527 = vpop.f32.mrb[0].mxu0
  %3528 = vmatprep.mubr.f32.mxu0 %v1475
  %3529 = vmatmul.mubr.f32.gmra.mrb[0].mxu0 %v1474
  %v3530 = vpop.f32.mrb[0].mxu0
  %v3531 = vadd.f32 %v3146, %v3530
  %v3532 = vpop.f32.mrb[0].mxu0
  %3533 = vmatprep.mubr.f32.mxu0 %v1500
  %3534 = vmatmul.mubr.f32.gmra.mrb[0].mxu0 %v1499
  %v3535 = vpop.f32.mrb[0].mxu0
  %v3536 = vadd.f32 %v3151, %v3535
  %v3537 = vpop.f32.mrb[0].mxu0
  %3538 = vmatprep.mubr.f32.mxu0 %v1525
  %3539 = vmatmul.mubr.f32.gmra.mrb[0].mxu0 %v1524
  %v3540 = vpop.f32.mrb[0].mxu0
  %v3541 = vadd.f32 %v3156, %v3540
  %v3542 = vpop.f32.mrb[0].mxu0
  %3543 = vmatprep.mubr.f32.mxu0 %v1550
  %3544 = vmatmul.mubr.f32.gmra.mrb[0].mxu0 %v1549
  %v3545 = vpop.f32.mrb[0].mxu0
  %v3546 = vadd.f32 %v3161, %v3545
  %v3547 = vpop.f32.mrb[0].mxu0
  %3548 = vmatprep.mubr.f32.mxu0 %v1575
  %3549 = vmatmul.mubr.f32.gmra.mrb[0].mxu0 %v1574
  %v3550 = vpop.f32.mrb[0].mxu0
  %v3551 = vadd.f32 %v3166, %v3550
  %v3552 = vpop.f32.mrb[0].mxu0
  %3553 = vmatprep.mubr.f32.mxu0 %v1600
  %3554 = vmatmul.mubr.f32.gmra.mrb[0].mxu0 %v1599
  %v3555 = vpop.f32.mrb[0].mxu0
  %v3556 = vadd.f32 %v3171, %v3555
  %v3557 = vpop.f32.mrb[0].mxu0
  %3558 = vdwg.mxu0
  %3559 = vmatprep.subr.mxu0 0.0
  %3560 = vmatpush1.msra.mxu0 %v1716
  %3561 = vmatprep.subr.mxu0 0.0
  %3562 = vmatpush1.msra.mxu0 %v1717
  %3563 = vmatprep.subr.mxu0 0.0
  %3564 = vmatpush1.msra.mxu0 %v1718
  %3565 = vmatprep.subr.mxu0 0.0
  %3566 = vmatpush1.msra.mxu0 %v1719
  %3567 = vmatprep.subr.mxu0 0.0
  %3568 = vmatpush1.msra.mxu0 %v1720
  %3569 = vmatprep.subr.mxu0 0.0
  %3570 = vmatpush1.msra.mxu0 %v1721
  %3571 = vmatprep.subr.mxu0 0.0
  %3572 = vmatpush1.msra.mxu0 %v1722
  %3573 = vmatprep.subr.mxu0 0.0
  %3574 = vmatpush1.msra.mxu0 %v1723
  %3575 = vmatprep.subr.mxu0 0.0
  %3576 = vmatpush1.msra.mxu0 %v1724
  %3577 = vmatprep.subr.mxu0 0.0
  %3578 = vmatpush1.msra.mxu0 %v1725
  %3579 = vmatprep.subr.mxu0 0.0
  %3580 = vmatpush1.msra.mxu0 %v1726
  %3581 = vmatprep.subr.mxu0 0.0
  %3582 = vmatpush1.msra.mxu0 %v1727
  %3583 = vmatprep.subr.mxu0 0.0
  %3584 = vmatpush1.msra.mxu0 %v1728
  %3585 = vmatprep.subr.mxu0 0.0
  %3586 = vmatpush1.msra.mxu0 %v1729
  %3587 = vmatprep.subr.mxu0 0.0
  %3588 = vmatpush1.msra.mxu0 %v1730
  %3589 = vmatprep.subr.mxu0 0.0
  %3590 = vmatpush1.msra.mxu0 %v1731
  %3591 = vmatprep.subr.mxu0 0.0
  %3592 = vmatpush1.msra.mxu0 %v1732
  %3593 = vmatprep.subr.mxu0 0.0
  %3594 = vmatpush1.msra.mxu0 %v1733
  %3595 = vmatprep.subr.mxu0 0.0
  %3596 = vmatpush1.msra.mxu0 %v1734
  %3597 = vmatprep.subr.mxu0 0.0
  %3598 = vmatpush1.msra.mxu0 %v1735
  %3599 = vmatprep.subr.mxu0 0.0
  %3600 = vmatpush1.msra.mxu0 %v1736
  %3601 = vmatprep.subr.mxu0 0.0
  %3602 = vmatpush1.msra.mxu0 %v1737
  %3603 = vmatprep.subr.mxu0 0.0
  %3604 = vmatpush1.msra.mxu0 %v1738
  %3605 = vmatprep.subr.mxu0 0.0
  %3606 = vmatpush1.msra.mxu0 %v1739
  %3607 = vmatprep.subr.mxu0 0.0
  %3608 = vmatpush1.msra.mxu0 %v1740
  %3609 = vmatprep.subr.mxu0 0.0
  %3610 = vmatpush1.msra.mxu0 %v1741
  %3611 = vmatprep.subr.mxu0 0.0
  %3612 = vmatpush1.msra.mxu0 %v1742
  %3613 = vmatprep.subr.mxu0 0.0
  %3614 = vmatpush1.msra.mxu0 %v1743
  %3615 = vmatprep.subr.mxu0 0.0
  %3616 = vmatpush1.msra.mxu0 %v1744
  %3617 = vmatprep.subr.mxu0 0.0
  %3618 = vmatpush1.msra.mxu0 %v1745
  %3619 = vmatprep.subr.mxu0 0.0
  %3620 = vmatpush1.msra.mxu0 %v1746
  %3621 = vmatprep.subr.mxu0 0.0
  %3622 = vmatpush1.msra.mxu0 %v1747
  %3623 = vmatprep.mubr.f32.mxu0 %v27
  %3624 = vmatmul.mubr.f32.gmra.mrb[0].mxu0 %v26
  %v3625 = vpop.f32.mrb[0].mxu0
  %v3626 = vadd.f32 %v3241, %v3625
  %v3627 = vpop.f32.mrb[0].mxu0
  %3628 = vmatprep.mubr.f32.mxu0 %v52
  %3629 = vmatmul.mubr.f32.gmra.mrb[0].mxu0 %v51
  %v3630 = vpop.f32.mrb[0].mxu0
  %v3631 = vadd.f32 %v3246, %v3630
  %v3632 = vpop.f32.mrb[0].mxu0
  %3633 = vmatprep.mubr.f32.mxu0 %v77
  %3634 = vmatmul.mubr.f32.gmra.mrb[0].mxu0 %v76
  %v3635 = vpop.f32.mrb[0].mxu0
  %v3636 = vadd.f32 %v3251, %v3635
  %v3637 = vpop.f32.mrb[0].mxu0
  %3638 = vmatprep.mubr.f32.mxu0 %v102
  %3639 = vmatmul.mubr.f32.gmra.mrb[0].mxu0 %v101
  %v3640 = vpop.f32.mrb[0].mxu0
  %v3641 = vadd.f32 %v3256, %v3640
  %v3642 = vpop.f32.mrb[0].mxu0
  %3643 = vmatprep.mubr.f32.mxu0 %v127
  %3644 = vmatmul.mubr.f32.gmra.mrb[0].mxu0 %v126
  %v3645 = vpop.f32.mrb[0].mxu0
  %v3646 = vadd.f32 %v3261, %v3645
  %v3647 = vpop.f32.mrb[0].mxu0
  %3648 = vmatprep.mubr.f32.mxu0 %v152
  %3649 = vmatmul.mubr.f32.gmra.mrb[0].mxu0 %v151
  %v3650 = vpop.f32.mrb[0].mxu0
  %v3651 = vadd.f32 %v3266, %v3650
  %v3652 = vpop.f32.mrb[0].mxu0
  %3653 = vmatprep.mubr.f32.mxu0 %v177
  %3654 = vmatmul.mubr.f32.gmra.mrb[0].mxu0 %v176
  %v3655 = vpop.f32.mrb[0].mxu0
  %v3656 = vadd.f32 %v3271, %v3655
  %v3657 = vpop.f32.mrb[0].mxu0
  %3658 = vmatprep.mubr.f32.mxu0 %v202
  %3659 = vmatmul.mubr.f32.gmra.mrb[0].mxu0 %v201
  %v3660 = vpop.f32.mrb[0].mxu0
  %v3661 = vadd.f32 %v3276, %v3660
  %v3662 = vpop.f32.mrb[0].mxu0
  %3663 = vmatprep.mubr.f32.mxu0 %v227
  %3664 = vmatmul.mubr.f32.gmra.mrb[0].mxu0 %v226
  %v3665 = vpop.f32.mrb[0].mxu0
  %v3666 = vadd.f32 %v3281, %v3665
  %v3667 = vpop.f32.mrb[0].mxu0
  %3668 = vmatprep.mubr.f32.mxu0 %v252
  %3669 = vmatmul.mubr.f32.gmra.mrb[0].mxu0 %v251
  %v3670 = vpop.f32.mrb[0].mxu0
  %v3671 = vadd.f32 %v3286, %v3670
  %v3672 = vpop.f32.mrb[0].mxu0
  %3673 = vmatprep.mubr.f32.mxu0 %v277
  %3674 = vmatmul.mubr.f32.gmra.mrb[0].mxu0 %v276
  %v3675 = vpop.f32.mrb[0].mxu0
  %v3676 = vadd.f32 %v3291, %v3675
  %v3677 = vpop.f32.mrb[0].mxu0
  %3678 = vmatprep.mubr.f32.mxu0 %v302
  %3679 = vmatmul.mubr.f32.gmra.mrb[0].mxu0 %v301
  %v3680 = vpop.f32.mrb[0].mxu0
  %v3681 = vadd.f32 %v3296, %v3680
  %v3682 = vpop.f32.mrb[0].mxu0
  %3683 = vmatprep.mubr.f32.mxu0 %v327
  %3684 = vmatmul.mubr.f32.gmra.mrb[0].mxu0 %v326
  %v3685 = vpop.f32.mrb[0].mxu0
  %v3686 = vadd.f32 %v3301, %v3685
  %v3687 = vpop.f32.mrb[0].mxu0
  %3688 = vmatprep.mubr.f32.mxu0 %v352
  %3689 = vmatmul.mubr.f32.gmra.mrb[0].mxu0 %v351
  %v3690 = vpop.f32.mrb[0].mxu0
  %v3691 = vadd.f32 %v3306, %v3690
  %v3692 = vpop.f32.mrb[0].mxu0
  %3693 = vmatprep.mubr.f32.mxu0 %v377
  %3694 = vmatmul.mubr.f32.gmra.mrb[0].mxu0 %v376
  %v3695 = vpop.f32.mrb[0].mxu0
  %v3696 = vadd.f32 %v3311, %v3695
  %v3697 = vpop.f32.mrb[0].mxu0
  %3698 = vmatprep.mubr.f32.mxu0 %v402
  %3699 = vmatmul.mubr.f32.gmra.mrb[0].mxu0 %v401
  %v3700 = vpop.f32.mrb[0].mxu0
  %v3701 = vadd.f32 %v3316, %v3700
  %v3702 = vpop.f32.mrb[0].mxu0
  %3703 = vmatprep.mubr.f32.mxu0 %v427
  %3704 = vmatmul.mubr.f32.gmra.mrb[0].mxu0 %v426
  %v3705 = vpop.f32.mrb[0].mxu0
  %v3706 = vadd.f32 %v3321, %v3705
  %v3707 = vpop.f32.mrb[0].mxu0
  %3708 = vmatprep.mubr.f32.mxu0 %v452
  %3709 = vmatmul.mubr.f32.gmra.mrb[0].mxu0 %v451
  %v3710 = vpop.f32.mrb[0].mxu0
  %v3711 = vadd.f32 %v3326, %v3710
  %v3712 = vpop.f32.mrb[0].mxu0
  %3713 = vmatprep.mubr.f32.mxu0 %v477
  %3714 = vmatmul.mubr.f32.gmra.mrb[0].mxu0 %v476
  %v3715 = vpop.f32.mrb[0].mxu0
  %v3716 = vadd.f32 %v3331, %v3715
  %v3717 = vpop.f32.mrb[0].mxu0
  %3718 = vmatprep.mubr.f32.mxu0 %v502
  %3719 = vmatmul.mubr.f32.gmra.mrb[0].mxu0 %v501
  %v3720 = vpop.f32.mrb[0].mxu0
  %v3721 = vadd.f32 %v3336, %v3720
  %v3722 = vpop.f32.mrb[0].mxu0
  %3723 = vmatprep.mubr.f32.mxu0 %v527
  %3724 = vmatmul.mubr.f32.gmra.mrb[0].mxu0 %v526
  %v3725 = vpop.f32.mrb[0].mxu0
  %v3726 = vadd.f32 %v3341, %v3725
  %v3727 = vpop.f32.mrb[0].mxu0
  %3728 = vmatprep.mubr.f32.mxu0 %v552
  %3729 = vmatmul.mubr.f32.gmra.mrb[0].mxu0 %v551
  %v3730 = vpop.f32.mrb[0].mxu0
  %v3731 = vadd.f32 %v3346, %v3730
  %v3732 = vpop.f32.mrb[0].mxu0
  %3733 = vmatprep.mubr.f32.mxu0 %v577
  %3734 = vmatmul.mubr.f32.gmra.mrb[0].mxu0 %v576
  %v3735 = vpop.f32.mrb[0].mxu0
  %v3736 = vadd.f32 %v3351, %v3735
  %v3737 = vpop.f32.mrb[0].mxu0
  %3738 = vmatprep.mubr.f32.mxu0 %v602
  %3739 = vmatmul.mubr.f32.gmra.mrb[0].mxu0 %v601
  %v3740 = vpop.f32.mrb[0].mxu0
  %v3741 = vadd.f32 %v3356, %v3740
  %v3742 = vpop.f32.mrb[0].mxu0
  %3743 = vmatprep.mubr.f32.mxu0 %v627
  %3744 = vmatmul.mubr.f32.gmra.mrb[0].mxu0 %v626
  %v3745 = vpop.f32.mrb[0].mxu0
  %v3746 = vadd.f32 %v3361, %v3745
  %v3747 = vpop.f32.mrb[0].mxu0
  %3748 = vmatprep.mubr.f32.mxu0 %v652
  %3749 = vmatmul.mubr.f32.gmra.mrb[0].mxu0 %v651
  %v3750 = vpop.f32.mrb[0].mxu0
  %v3751 = vadd.f32 %v3366, %v3750
  %v3752 = vpop.f32.mrb[0].mxu0
  %3753 = vmatprep.mubr.f32.mxu0 %v677
  %3754 = vmatmul.mubr.f32.gmra.mrb[0].mxu0 %v676
  %v3755 = vpop.f32.mrb[0].mxu0
  %v3756 = vadd.f32 %v3371, %v3755
  %v3757 = vpop.f32.mrb[0].mxu0
  %3758 = vmatprep.mubr.f32.mxu0 %v702
  %3759 = vmatmul.mubr.f32.gmra.mrb[0].mxu0 %v701
  %v3760 = vpop.f32.mrb[0].mxu0
  %v3761 = vadd.f32 %v3376, %v3760
  %v3762 = vpop.f32.mrb[0].mxu0
  %3763 = vmatprep.mubr.f32.mxu0 %v727
  %3764 = vmatmul.mubr.f32.gmra.mrb[0].mxu0 %v726
  %v3765 = vpop.f32.mrb[0].mxu0
  %v3766 = vadd.f32 %v3381, %v3765
  %v3767 = vpop.f32.mrb[0].mxu0
  %3768 = vmatprep.mubr.f32.mxu0 %v752
  %3769 = vmatmul.mubr.f32.gmra.mrb[0].mxu0 %v751
  %v3770 = vpop.f32.mrb[0].mxu0
  %v3771 = vadd.f32 %v3386, %v3770
  %v3772 = vpop.f32.mrb[0].mxu0
  %3773 = vmatprep.mubr.f32.mxu0 %v777
  %3774 = vmatmul.mubr.f32.gmra.mrb[0].mxu0 %v776
  %v3775 = vpop.f32.mrb[0].mxu0
  %v3776 = vadd.f32 %v3391, %v3775
  %v3777 = vpop.f32.mrb[0].mxu0
  %3778 = vmatprep.mubr.f32.mxu0 %v802
  %3779 = vmatmul.mubr.f32.gmra.mrb[0].mxu0 %v801
  %v3780 = vpop.f32.mrb[0].mxu0
  %v3781 = vadd.f32 %v3396, %v3780
  %v3782 = vpop.f32.mrb[0].mxu0
  %3783 = vmatprep.mubr.f32.mxu0 %v827
  %3784 = vmatmul.mubr.f32.gmra.mrb[0].mxu0 %v826
  %v3785 = vpop.f32.mrb[0].mxu0
  %v3786 = vadd.f32 %v3401, %v3785
  %v3787 = vpop.f32.mrb[0].mxu0
  %3788 = vmatprep.mubr.f32.mxu0 %v852
  %3789 = vmatmul.mubr.f32.gmra.mrb[0].mxu0 %v851
  %v3790 = vpop.f32.mrb[0].mxu0
  %v3791 = vadd.f32 %v3406, %v3790
  %v3792 = vpop.f32.mrb[0].mxu0
  %3793 = vmatprep.mubr.f32.mxu0 %v877
  %3794 = vmatmul.mubr.f32.gmra.mrb[0].mxu0 %v876
  %v3795 = vpop.f32.mrb[0].mxu0
  %v3796 = vadd.f32 %v3411, %v3795
  %v3797 = vpop.f32.mrb[0].mxu0
  %3798 = vmatprep.mubr.f32.mxu0 %v902
  %3799 = vmatmul.mubr.f32.gmra.mrb[0].mxu0 %v901
  %v3800 = vpop.f32.mrb[0].mxu0
  %v3801 = vadd.f32 %v3416, %v3800
  %v3802 = vpop.f32.mrb[0].mxu0
  %3803 = vmatprep.mubr.f32.mxu0 %v927
  %3804 = vmatmul.mubr.f32.gmra.mrb[0].mxu0 %v926
  %v3805 = vpop.f32.mrb[0].mxu0
  %v3806 = vadd.f32 %v3421, %v3805
  %v3807 = vpop.f32.mrb[0].mxu0
  %3808 = vmatprep.mubr.f32.mxu0 %v952
  %3809 = vmatmul.mubr.f32.gmra.mrb[0].mxu0 %v951
  %v3810 = vpop.f32.mrb[0].mxu0
  %v3811 = vadd.f32 %v3426, %v3810
  %v3812 = vpop.f32.mrb[0].mxu0
  %3813 = vmatprep.mubr.f32.mxu0 %v977
  %3814 = vmatmul.mubr.f32.gmra.mrb[0].mxu0 %v976
  %v3815 = vpop.f32.mrb[0].mxu0
  %v3816 = vadd.f32 %v3431, %v3815
  %v3817 = vpop.f32.mrb[0].mxu0
  %3818 = vmatprep.mubr.f32.mxu0 %v1002
  %3819 = vmatmul.mubr.f32.gmra.mrb[0].mxu0 %v1001
  %v3820 = vpop.f32.mrb[0].mxu0
  %v3821 = vadd.f32 %v3436, %v3820
  %v3822 = vpop.f32.mrb[0].mxu0
  %3823 = vmatprep.mubr.f32.mxu0 %v1027
  %3824 = vmatmul.mubr.f32.gmra.mrb[0].mxu0 %v1026
  %v3825 = vpop.f32.mrb[0].mxu0
  %v3826 = vadd.f32 %v3441, %v3825
  %v3827 = vpop.f32.mrb[0].mxu0
  %3828 = vmatprep.mubr.f32.mxu0 %v1052
  %3829 = vmatmul.mubr.f32.gmra.mrb[0].mxu0 %v1051
  %v3830 = vpop.f32.mrb[0].mxu0
  %v3831 = vadd.f32 %v3446, %v3830
  %v3832 = vpop.f32.mrb[0].mxu0
  %3833 = vmatprep.mubr.f32.mxu0 %v1077
  %3834 = vmatmul.mubr.f32.gmra.mrb[0].mxu0 %v1076
  %v3835 = vpop.f32.mrb[0].mxu0
  %v3836 = vadd.f32 %v3451, %v3835
  %v3837 = vpop.f32.mrb[0].mxu0
  %3838 = vmatprep.mubr.f32.mxu0 %v1102
  %3839 = vmatmul.mubr.f32.gmra.mrb[0].mxu0 %v1101
  %v3840 = vpop.f32.mrb[0].mxu0
  %v3841 = vadd.f32 %v3456, %v3840
  %v3842 = vpop.f32.mrb[0].mxu0
  %3843 = vmatprep.mubr.f32.mxu0 %v1127
  %3844 = vmatmul.mubr.f32.gmra.mrb[0].mxu0 %v1126
  %v3845 = vpop.f32.mrb[0].mxu0
  %v3846 = vadd.f32 %v3461, %v3845
  %v3847 = vpop.f32.mrb[0].mxu0
  %3848 = vmatprep.mubr.f32.mxu0 %v1152
  %3849 = vmatmul.mubr.f32.gmra.mrb[0].mxu0 %v1151
  %v3850 = vpop.f32.mrb[0].mxu0
  %v3851 = vadd.f32 %v3466, %v3850
  %v3852 = vpop.f32.mrb[0].mxu0
  %3853 = vmatprep.mubr.f32.mxu0 %v1177
  %3854 = vmatmul.mubr.f32.gmra.mrb[0].mxu0 %v1176
  %v3855 = vpop.f32.mrb[0].mxu0
  %v3856 = vadd.f32 %v3471, %v3855
  %v3857 = vpop.f32.mrb[0].mxu0
  %3858 = vmatprep.mubr.f32.mxu0 %v1202
  %3859 = vmatmul.mubr.f32.gmra.mrb[0].mxu0 %v1201
  %v3860 = vpop.f32.mrb[0].mxu0
  %v3861 = vadd.f32 %v3476, %v3860
  %v3862 = vpop.f32.mrb[0].mxu0
  %3863 = vmatprep.mubr.f32.mxu0 %v1227
  %3864 = vmatmul.mubr.f32.gmra.mrb[0].mxu0 %v1226
  %v3865 = vpop.f32.mrb[0].mxu0
  %v3866 = vadd.f32 %v3481, %v3865
  %v3867 = vpop.f32.mrb[0].mxu0
  %3868 = vmatprep.mubr.f32.mxu0 %v1252
  %3869 = vmatmul.mubr.f32.gmra.mrb[0].mxu0 %v1251
  %v3870 = vpop.f32.mrb[0].mxu0
  %v3871 = vadd.f32 %v3486, %v3870
  %v3872 = vpop.f32.mrb[0].mxu0
  %3873 = vmatprep.mubr.f32.mxu0 %v1277
  %3874 = vmatmul.mubr.f32.gmra.mrb[0].mxu0 %v1276
  %v3875 = vpop.f32.mrb[0].mxu0
  %v3876 = vadd.f32 %v3491, %v3875
  %v3877 = vpop.f32.mrb[0].mxu0
  %3878 = vmatprep.mubr.f32.mxu0 %v1302
  %3879 = vmatmul.mubr.f32.gmra.mrb[0].mxu0 %v1301
  %v3880 = vpop.f32.mrb[0].mxu0
  %v3881 = vadd.f32 %v3496, %v3880
  %v3882 = vpop.f32.mrb[0].mxu0
  %3883 = vmatprep.mubr.f32.mxu0 %v1327
  %3884 = vmatmul.mubr.f32.gmra.mrb[0].mxu0 %v1326
  %v3885 = vpop.f32.mrb[0].mxu0
  %v3886 = vadd.f32 %v3501, %v3885
  %v3887 = vpop.f32.mrb[0].mxu0
  %3888 = vmatprep.mubr.f32.mxu0 %v1352
  %3889 = vmatmul.mubr.f32.gmra.mrb[0].mxu0 %v1351
  %v3890 = vpop.f32.mrb[0].mxu0
  %v3891 = vadd.f32 %v3506, %v3890
  %v3892 = vpop.f32.mrb[0].mxu0
  %3893 = vmatprep.mubr.f32.mxu0 %v1377
  %3894 = vmatmul.mubr.f32.gmra.mrb[0].mxu0 %v1376
  %v3895 = vpop.f32.mrb[0].mxu0
  %v3896 = vadd.f32 %v3511, %v3895
  %v3897 = vpop.f32.mrb[0].mxu0
  %3898 = vmatprep.mubr.f32.mxu0 %v1402
  %3899 = vmatmul.mubr.f32.gmra.mrb[0].mxu0 %v1401
  %v3900 = vpop.f32.mrb[0].mxu0
  %v3901 = vadd.f32 %v3516, %v3900
  %v3902 = vpop.f32.mrb[0].mxu0
  %3903 = vmatprep.mubr.f32.mxu0 %v1427
  %3904 = vmatmul.mubr.f32.gmra.mrb[0].mxu0 %v1426
  %v3905 = vpop.f32.mrb[0].mxu0
  %v3906 = vadd.f32 %v3521, %v3905
  %v3907 = vpop.f32.mrb[0].mxu0
  %3908 = vmatprep.mubr.f32.mxu0 %v1452
  %3909 = vmatmul.mubr.f32.gmra.mrb[0].mxu0 %v1451
  %v3910 = vpop.f32.mrb[0].mxu0
  %v3911 = vadd.f32 %v3526, %v3910
  %v3912 = vpop.f32.mrb[0].mxu0
  %3913 = vmatprep.mubr.f32.mxu0 %v1477
  %3914 = vmatmul.mubr.f32.gmra.mrb[0].mxu0 %v1476
  %v3915 = vpop.f32.mrb[0].mxu0
  %v3916 = vadd.f32 %v3531, %v3915
  %v3917 = vpop.f32.mrb[0].mxu0
  %3918 = vmatprep.mubr.f32.mxu0 %v1502
  %3919 = vmatmul.mubr.f32.gmra.mrb[0].mxu0 %v1501
  %v3920 = vpop.f32.mrb[0].mxu0
  %v3921 = vadd.f32 %v3536, %v3920
  %v3922 = vpop.f32.mrb[0].mxu0
  %3923 = vmatprep.mubr.f32.mxu0 %v1527
  %3924 = vmatmul.mubr.f32.gmra.mrb[0].mxu0 %v1526
  %v3925 = vpop.f32.mrb[0].mxu0
  %v3926 = vadd.f32 %v3541, %v3925
  %v3927 = vpop.f32.mrb[0].mxu0
  %3928 = vmatprep.mubr.f32.mxu0 %v1552
  %3929 = vmatmul.mubr.f32.gmra.mrb[0].mxu0 %v1551
  %v3930 = vpop.f32.mrb[0].mxu0
  %v3931 = vadd.f32 %v3546, %v3930
  %v3932 = vpop.f32.mrb[0].mxu0
  %3933 = vmatprep.mubr.f32.mxu0 %v1577
  %3934 = vmatmul.mubr.f32.gmra.mrb[0].mxu0 %v1576
  %v3935 = vpop.f32.mrb[0].mxu0
  %v3936 = vadd.f32 %v3551, %v3935
  %v3937 = vpop.f32.mrb[0].mxu0
  %3938 = vmatprep.mubr.f32.mxu0 %v1602
  %3939 = vmatmul.mubr.f32.gmra.mrb[0].mxu0 %v1601
  %v3940 = vpop.f32.mrb[0].mxu0
  %v3941 = vadd.f32 %v3556, %v3940
  %v3942 = vpop.f32.mrb[0].mxu0
  %3943 = vdwg.mxu0
  %3944 = vmatprep.subr.mxu0 0.0
  %3945 = vmatpush1.msra.mxu0 %v1748
  %3946 = vmatprep.subr.mxu0 0.0
  %3947 = vmatpush1.msra.mxu0 %v1749
  %3948 = vmatprep.subr.mxu0 0.0
  %3949 = vmatpush1.msra.mxu0 %v1750
  %3950 = vmatprep.subr.mxu0 0.0
  %3951 = vmatpush1.msra.mxu0 %v1751
  %3952 = vmatprep.subr.mxu0 0.0
  %3953 = vmatpush1.msra.mxu0 %v1752
  %3954 = vmatprep.subr.mxu0 0.0
  %3955 = vmatpush1.msra.mxu0 %v1753
  %3956 = vmatprep.subr.mxu0 0.0
  %3957 = vmatpush1.msra.mxu0 %v1754
  %3958 = vmatprep.subr.mxu0 0.0
  %3959 = vmatpush1.msra.mxu0 %v1755
  %3960 = vmatprep.subr.mxu0 0.0
  %3961 = vmatpush1.msra.mxu0 %v1756
  %3962 = vmatprep.subr.mxu0 0.0
  %3963 = vmatpush1.msra.mxu0 %v1757
  %3964 = vmatprep.subr.mxu0 0.0
  %3965 = vmatpush1.msra.mxu0 %v1758
  %3966 = vmatprep.subr.mxu0 0.0
  %3967 = vmatpush1.msra.mxu0 %v1759
  %3968 = vmatprep.subr.mxu0 0.0
  %3969 = vmatpush1.msra.mxu0 %v1760
  %3970 = vmatprep.subr.mxu0 0.0
  %3971 = vmatpush1.msra.mxu0 %v1761
  %3972 = vmatprep.subr.mxu0 0.0
  %3973 = vmatpush1.msra.mxu0 %v1762
  %3974 = vmatprep.subr.mxu0 0.0
  %3975 = vmatpush1.msra.mxu0 %v1763
  %3976 = vmatprep.subr.mxu0 0.0
  %3977 = vmatpush1.msra.mxu0 %v1764
  %3978 = vmatprep.subr.mxu0 0.0
  %3979 = vmatpush1.msra.mxu0 %v1765
  %3980 = vmatprep.subr.mxu0 0.0
  %3981 = vmatpush1.msra.mxu0 %v1766
  %3982 = vmatprep.subr.mxu0 0.0
  %3983 = vmatpush1.msra.mxu0 %v1767
  %3984 = vmatprep.subr.mxu0 0.0
  %3985 = vmatpush1.msra.mxu0 %v1768
  %3986 = vmatprep.subr.mxu0 0.0
  %3987 = vmatpush1.msra.mxu0 %v1769
  %3988 = vmatprep.subr.mxu0 0.0
  %3989 = vmatpush1.msra.mxu0 %v1770
  %3990 = vmatprep.subr.mxu0 0.0
  %3991 = vmatpush1.msra.mxu0 %v1771
  %3992 = vmatprep.subr.mxu0 0.0
  %3993 = vmatpush1.msra.mxu0 %v1772
  %3994 = vmatprep.subr.mxu0 0.0
  %3995 = vmatpush1.msra.mxu0 %v1773
  %3996 = vmatprep.subr.mxu0 0.0
  %3997 = vmatpush1.msra.mxu0 %v1774
  %3998 = vmatprep.subr.mxu0 0.0
  %3999 = vmatpush1.msra.mxu0 %v1775
  %4000 = vmatprep.subr.mxu0 0.0
  %4001 = vmatpush1.msra.mxu0 %v1776
  %4002 = vmatprep.subr.mxu0 0.0
  %4003 = vmatpush1.msra.mxu0 %v1777
  %4004 = vmatprep.subr.mxu0 0.0
  %4005 = vmatpush1.msra.mxu0 %v1778
  %4006 = vmatprep.subr.mxu0 0.0
  %4007 = vmatpush1.msra.mxu0 %v1779
  %4008 = vmatprep.mubr.f32.mxu0 %v29
  %4009 = vmatmul.mubr.f32.gmra.mrb[0].mxu0 %v28
  %v4010 = vpop.f32.mrb[0].mxu0
  %v4011 = vadd.f32 %v3626, %v4010
  %v4012 = vpop.f32.mrb[0].mxu0
  %4013 = vmatprep.mubr.f32.mxu0 %v54
  %4014 = vmatmul.mubr.f32.gmra.mrb[0].mxu0 %v53
  %v4015 = vpop.f32.mrb[0].mxu0
  %v4016 = vadd.f32 %v3631, %v4015
  %v4017 = vpop.f32.mrb[0].mxu0
  %4018 = vmatprep.mubr.f32.mxu0 %v79
  %4019 = vmatmul.mubr.f32.gmra.mrb[0].mxu0 %v78
  %v4020 = vpop.f32.mrb[0].mxu0
  %v4021 = vadd.f32 %v3636, %v4020
  %v4022 = vpop.f32.mrb[0].mxu0
  %4023 = vmatprep.mubr.f32.mxu0 %v104
  %4024 = vmatmul.mubr.f32.gmra.mrb[0].mxu0 %v103
  %v4025 = vpop.f32.mrb[0].mxu0
  %v4026 = vadd.f32 %v3641, %v4025
  %v4027 = vpop.f32.mrb[0].mxu0
  %4028 = vmatprep.mubr.f32.mxu0 %v129
  %4029 = vmatmul.mubr.f32.gmra.mrb[0].mxu0 %v128
  %v4030 = vpop.f32.mrb[0].mxu0
  %v4031 = vadd.f32 %v3646, %v4030
  %v4032 = vpop.f32.mrb[0].mxu0
  %4033 = vmatprep.mubr.f32.mxu0 %v154
  %4034 = vmatmul.mubr.f32.gmra.mrb[0].mxu0 %v153
  %v4035 = vpop.f32.mrb[0].mxu0
  %v4036 = vadd.f32 %v3651, %v4035
  %v4037 = vpop.f32.mrb[0].mxu0
  %4038 = vmatprep.mubr.f32.mxu0 %v179
  %4039 = vmatmul.mubr.f32.gmra.mrb[0].mxu0 %v178
  %v4040 = vpop.f32.mrb[0].mxu0
  %v4041 = vadd.f32 %v3656, %v4040
  %v4042 = vpop.f32.mrb[0].mxu0
  %4043 = vmatprep.mubr.f32.mxu0 %v204
  %4044 = vmatmul.mubr.f32.gmra.mrb[0].mxu0 %v203
  %v4045 = vpop.f32.mrb[0].mxu0
  %v4046 = vadd.f32 %v3661, %v4045
  %v4047 = vpop.f32.mrb[0].mxu0
  %4048 = vmatprep.mubr.f32.mxu0 %v229
  %4049 = vmatmul.mubr.f32.gmra.mrb[0].mxu0 %v228
  %v4050 = vpop.f32.mrb[0].mxu0
  %v4051 = vadd.f32 %v3666, %v4050
  %v4052 = vpop.f32.mrb[0].mxu0
  %4053 = vmatprep.mubr.f32.mxu0 %v254
  %4054 = vmatmul.mubr.f32.gmra.mrb[0].mxu0 %v253
  %v4055 = vpop.f32.mrb[0].mxu0
  %v4056 = vadd.f32 %v3671, %v4055
  %v4057 = vpop.f32.mrb[0].mxu0
  %4058 = vmatprep.mubr.f32.mxu0 %v279
  %4059 = vmatmul.mubr.f32.gmra.mrb[0].mxu0 %v278
  %v4060 = vpop.f32.mrb[0].mxu0
  %v4061 = vadd.f32 %v3676, %v4060
  %v4062 = vpop.f32.mrb[0].mxu0
  %4063 = vmatprep.mubr.f32.mxu0 %v304
  %4064 = vmatmul.mubr.f32.gmra.mrb[0].mxu0 %v303
  %v4065 = vpop.f32.mrb[0].mxu0
  %v4066 = vadd.f32 %v3681, %v4065
  %v4067 = vpop.f32.mrb[0].mxu0
  %4068 = vmatprep.mubr.f32.mxu0 %v329
  %4069 = vmatmul.mubr.f32.gmra.mrb[0].mxu0 %v328
  %v4070 = vpop.f32.mrb[0].mxu0
  %v4071 = vadd.f32 %v3686, %v4070
  %v4072 = vpop.f32.mrb[0].mxu0
  %4073 = vmatprep.mubr.f32.mxu0 %v354
  %4074 = vmatmul.mubr.f32.gmra.mrb[0].mxu0 %v353
  %v4075 = vpop.f32.mrb[0].mxu0
  %v4076 = vadd.f32 %v3691, %v4075
  %v4077 = vpop.f32.mrb[0].mxu0
  %4078 = vmatprep.mubr.f32.mxu0 %v379
  %4079 = vmatmul.mubr.f32.gmra.mrb[0].mxu0 %v378
  %v4080 = vpop.f32.mrb[0].mxu0
  %v4081 = vadd.f32 %v3696, %v4080
  %v4082 = vpop.f32.mrb[0].mxu0
  %4083 = vmatprep.mubr.f32.mxu0 %v404
  %4084 = vmatmul.mubr.f32.gmra.mrb[0].mxu0 %v403
  %v4085 = vpop.f32.mrb[0].mxu0
  %v4086 = vadd.f32 %v3701, %v4085
  %v4087 = vpop.f32.mrb[0].mxu0
  %4088 = vmatprep.mubr.f32.mxu0 %v429
  %4089 = vmatmul.mubr.f32.gmra.mrb[0].mxu0 %v428
  %v4090 = vpop.f32.mrb[0].mxu0
  %v4091 = vadd.f32 %v3706, %v4090
  %v4092 = vpop.f32.mrb[0].mxu0
  %4093 = vmatprep.mubr.f32.mxu0 %v454
  %4094 = vmatmul.mubr.f32.gmra.mrb[0].mxu0 %v453
  %v4095 = vpop.f32.mrb[0].mxu0
  %v4096 = vadd.f32 %v3711, %v4095
  %v4097 = vpop.f32.mrb[0].mxu0
  %4098 = vmatprep.mubr.f32.mxu0 %v479
  %4099 = vmatmul.mubr.f32.gmra.mrb[0].mxu0 %v478
  %v4100 = vpop.f32.mrb[0].mxu0
  %v4101 = vadd.f32 %v3716, %v4100
  %v4102 = vpop.f32.mrb[0].mxu0
  %4103 = vmatprep.mubr.f32.mxu0 %v504
  %4104 = vmatmul.mubr.f32.gmra.mrb[0].mxu0 %v503
  %v4105 = vpop.f32.mrb[0].mxu0
  %v4106 = vadd.f32 %v3721, %v4105
  %v4107 = vpop.f32.mrb[0].mxu0
  %4108 = vmatprep.mubr.f32.mxu0 %v529
  %4109 = vmatmul.mubr.f32.gmra.mrb[0].mxu0 %v528
  %v4110 = vpop.f32.mrb[0].mxu0
  %v4111 = vadd.f32 %v3726, %v4110
  %v4112 = vpop.f32.mrb[0].mxu0
  %4113 = vmatprep.mubr.f32.mxu0 %v554
  %4114 = vmatmul.mubr.f32.gmra.mrb[0].mxu0 %v553
  %v4115 = vpop.f32.mrb[0].mxu0
  %v4116 = vadd.f32 %v3731, %v4115
  %v4117 = vpop.f32.mrb[0].mxu0
  %4118 = vmatprep.mubr.f32.mxu0 %v579
  %4119 = vmatmul.mubr.f32.gmra.mrb[0].mxu0 %v578
  %v4120 = vpop.f32.mrb[0].mxu0
  %v4121 = vadd.f32 %v3736, %v4120
  %v4122 = vpop.f32.mrb[0].mxu0
  %4123 = vmatprep.mubr.f32.mxu0 %v604
  %4124 = vmatmul.mubr.f32.gmra.mrb[0].mxu0 %v603
  %v4125 = vpop.f32.mrb[0].mxu0
  %v4126 = vadd.f32 %v3741, %v4125
  %v4127 = vpop.f32.mrb[0].mxu0
  %4128 = vmatprep.mubr.f32.mxu0 %v629
  %4129 = vmatmul.mubr.f32.gmra.mrb[0].mxu0 %v628
  %v4130 = vpop.f32.mrb[0].mxu0
  %v4131 = vadd.f32 %v3746, %v4130
  %v4132 = vpop.f32.mrb[0].mxu0
  %4133 = vmatprep.mubr.f32.mxu0 %v654
  %4134 = vmatmul.mubr.f32.gmra.mrb[0].mxu0 %v653
  %v4135 = vpop.f32.mrb[0].mxu0
  %v4136 = vadd.f32 %v3751, %v4135
  %v4137 = vpop.f32.mrb[0].mxu0
  %4138 = vmatprep.mubr.f32.mxu0 %v679
  %4139 = vmatmul.mubr.f32.gmra.mrb[0].mxu0 %v678
  %v4140 = vpop.f32.mrb[0].mxu0
  %v4141 = vadd.f32 %v3756, %v4140
  %v4142 = vpop.f32.mrb[0].mxu0
  %4143 = vmatprep.mubr.f32.mxu0 %v704
  %4144 = vmatmul.mubr.f32.gmra.mrb[0].mxu0 %v703
  %v4145 = vpop.f32.mrb[0].mxu0
  %v4146 = vadd.f32 %v3761, %v4145
  %v4147 = vpop.f32.mrb[0].mxu0
  %4148 = vmatprep.mubr.f32.mxu0 %v729
  %4149 = vmatmul.mubr.f32.gmra.mrb[0].mxu0 %v728
  %v4150 = vpop.f32.mrb[0].mxu0
  %v4151 = vadd.f32 %v3766, %v4150
  %v4152 = vpop.f32.mrb[0].mxu0
  %4153 = vmatprep.mubr.f32.mxu0 %v754
  %4154 = vmatmul.mubr.f32.gmra.mrb[0].mxu0 %v753
  %v4155 = vpop.f32.mrb[0].mxu0
  %v4156 = vadd.f32 %v3771, %v4155
  %v4157 = vpop.f32.mrb[0].mxu0
  %4158 = vmatprep.mubr.f32.mxu0 %v779
  %4159 = vmatmul.mubr.f32.gmra.mrb[0].mxu0 %v778
  %v4160 = vpop.f32.mrb[0].mxu0
  %v4161 = vadd.f32 %v3776, %v4160
  %v4162 = vpop.f32.mrb[0].mxu0
  %4163 = vmatprep.mubr.f32.mxu0 %v804
  %4164 = vmatmul.mubr.f32.gmra.mrb[0].mxu0 %v803
  %v4165 = vpop.f32.mrb[0].mxu0
  %v4166 = vadd.f32 %v3781, %v4165
  %v4167 = vpop.f32.mrb[0].mxu0
  %4168 = vmatprep.mubr.f32.mxu0 %v829
  %4169 = vmatmul.mubr.f32.gmra.mrb[0].mxu0 %v828
  %v4170 = vpop.f32.mrb[0].mxu0
  %v4171 = vadd.f32 %v3786, %v4170
  %v4172 = vpop.f32.mrb[0].mxu0
  %4173 = vmatprep.mubr.f32.mxu0 %v854
  %4174 = vmatmul.mubr.f32.gmra.mrb[0].mxu0 %v853
  %v4175 = vpop.f32.mrb[0].mxu0
  %v4176 = vadd.f32 %v3791, %v4175
  %v4177 = vpop.f32.mrb[0].mxu0
  %4178 = vmatprep.mubr.f32.mxu0 %v879
  %4179 = vmatmul.mubr.f32.gmra.mrb[0].mxu0 %v878
  %v4180 = vpop.f32.mrb[0].mxu0
  %v4181 = vadd.f32 %v3796, %v4180
  %v4182 = vpop.f32.mrb[0].mxu0
  %4183 = vmatprep.mubr.f32.mxu0 %v904
  %4184 = vmatmul.mubr.f32.gmra.mrb[0].mxu0 %v903
  %v4185 = vpop.f32.mrb[0].mxu0
  %v4186 = vadd.f32 %v3801, %v4185
  %v4187 = vpop.f32.mrb[0].mxu0
  %4188 = vmatprep.mubr.f32.mxu0 %v929
  %4189 = vmatmul.mubr.f32.gmra.mrb[0].mxu0 %v928
  %v4190 = vpop.f32.mrb[0].mxu0
  %v4191 = vadd.f32 %v3806, %v4190
  %v4192 = vpop.f32.mrb[0].mxu0
  %4193 = vmatprep.mubr.f32.mxu0 %v954
  %4194 = vmatmul.mubr.f32.gmra.mrb[0].mxu0 %v953
  %v4195 = vpop.f32.mrb[0].mxu0
  %v4196 = vadd.f32 %v3811, %v4195
  %v4197 = vpop.f32.mrb[0].mxu0
  %4198 = vmatprep.mubr.f32.mxu0 %v979
  %4199 = vmatmul.mubr.f32.gmra.mrb[0].mxu0 %v978
  %v4200 = vpop.f32.mrb[0].mxu0
  %v4201 = vadd.f32 %v3816, %v4200
  %v4202 = vpop.f32.mrb[0].mxu0
  %4203 = vmatprep.mubr.f32.mxu0 %v1004
  %4204 = vmatmul.mubr.f32.gmra.mrb[0].mxu0 %v1003
  %v4205 = vpop.f32.mrb[0].mxu0
  %v4206 = vadd.f32 %v3821, %v4205
  %v4207 = vpop.f32.mrb[0].mxu0
  %4208 = vmatprep.mubr.f32.mxu0 %v1029
  %4209 = vmatmul.mubr.f32.gmra.mrb[0].mxu0 %v1028
  %v4210 = vpop.f32.mrb[0].mxu0
  %v4211 = vadd.f32 %v3826, %v4210
  %v4212 = vpop.f32.mrb[0].mxu0
  %4213 = vmatprep.mubr.f32.mxu0 %v1054
  %4214 = vmatmul.mubr.f32.gmra.mrb[0].mxu0 %v1053
  %v4215 = vpop.f32.mrb[0].mxu0
  %v4216 = vadd.f32 %v3831, %v4215
  %v4217 = vpop.f32.mrb[0].mxu0
  %4218 = vmatprep.mubr.f32.mxu0 %v1079
  %4219 = vmatmul.mubr.f32.gmra.mrb[0].mxu0 %v1078
  %v4220 = vpop.f32.mrb[0].mxu0
  %v4221 = vadd.f32 %v3836, %v4220
  %v4222 = vpop.f32.mrb[0].mxu0
  %4223 = vmatprep.mubr.f32.mxu0 %v1104
  %4224 = vmatmul.mubr.f32.gmra.mrb[0].mxu0 %v1103
  %v4225 = vpop.f32.mrb[0].mxu0
  %v4226 = vadd.f32 %v3841, %v4225
  %v4227 = vpop.f32.mrb[0].mxu0
  %4228 = vmatprep.mubr.f32.mxu0 %v1129
  %4229 = vmatmul.mubr.f32.gmra.mrb[0].mxu0 %v1128
  %v4230 = vpop.f32.mrb[0].mxu0
  %v4231 = vadd.f32 %v3846, %v4230
  %v4232 = vpop.f32.mrb[0].mxu0
  %4233 = vmatprep.mubr.f32.mxu0 %v1154
  %4234 = vmatmul.mubr.f32.gmra.mrb[0].mxu0 %v1153
  %v4235 = vpop.f32.mrb[0].mxu0
  %v4236 = vadd.f32 %v3851, %v4235
  %v4237 = vpop.f32.mrb[0].mxu0
  %4238 = vmatprep.mubr.f32.mxu0 %v1179
  %4239 = vmatmul.mubr.f32.gmra.mrb[0].mxu0 %v1178
  %v4240 = vpop.f32.mrb[0].mxu0
  %v4241 = vadd.f32 %v3856, %v4240
  %v4242 = vpop.f32.mrb[0].mxu0
  %4243 = vmatprep.mubr.f32.mxu0 %v1204
  %4244 = vmatmul.mubr.f32.gmra.mrb[0].mxu0 %v1203
  %v4245 = vpop.f32.mrb[0].mxu0
  %v4246 = vadd.f32 %v3861, %v4245
  %v4247 = vpop.f32.mrb[0].mxu0
  %4248 = vmatprep.mubr.f32.mxu0 %v1229
  %4249 = vmatmul.mubr.f32.gmra.mrb[0].mxu0 %v1228
  %v4250 = vpop.f32.mrb[0].mxu0
  %v4251 = vadd.f32 %v3866, %v4250
  %v4252 = vpop.f32.mrb[0].mxu0
  %4253 = vmatprep.mubr.f32.mxu0 %v1254
  %4254 = vmatmul.mubr.f32.gmra.mrb[0].mxu0 %v1253
  %v4255 = vpop.f32.mrb[0].mxu0
  %v4256 = vadd.f32 %v3871, %v4255
  %v4257 = vpop.f32.mrb[0].mxu0
  %4258 = vmatprep.mubr.f32.mxu0 %v1279
  %4259 = vmatmul.mubr.f32.gmra.mrb[0].mxu0 %v1278
  %v4260 = vpop.f32.mrb[0].mxu0
  %v4261 = vadd.f32 %v3876, %v4260
  %v4262 = vpop.f32.mrb[0].mxu0
  %4263 = vmatprep.mubr.f32.mxu0 %v1304
  %4264 = vmatmul.mubr.f32.gmra.mrb[0].mxu0 %v1303
  %v4265 = vpop.f32.mrb[0].mxu0
  %v4266 = vadd.f32 %v3881, %v4265
  %v4267 = vpop.f32.mrb[0].mxu0
  %4268 = vmatprep.mubr.f32.mxu0 %v1329
  %4269 = vmatmul.mubr.f32.gmra.mrb[0].mxu0 %v1328
  %v4270 = vpop.f32.mrb[0].mxu0
  %v4271 = vadd.f32 %v3886, %v4270
  %v4272 = vpop.f32.mrb[0].mxu0
  %4273 = vmatprep.mubr.f32.mxu0 %v1354
  %4274 = vmatmul.mubr.f32.gmra.mrb[0].mxu0 %v1353
  %v4275 = vpop.f32.mrb[0].mxu0
  %v4276 = vadd.f32 %v3891, %v4275
  %v4277 = vpop.f32.mrb[0].mxu0
  %4278 = vmatprep.mubr.f32.mxu0 %v1379
  %4279 = vmatmul.mubr.f32.gmra.mrb[0].mxu0 %v1378
  %v4280 = vpop.f32.mrb[0].mxu0
  %v4281 = vadd.f32 %v3896, %v4280
  %v4282 = vpop.f32.mrb[0].mxu0
  %4283 = vmatprep.mubr.f32.mxu0 %v1404
  %4284 = vmatmul.mubr.f32.gmra.mrb[0].mxu0 %v1403
  %v4285 = vpop.f32.mrb[0].mxu0
  %v4286 = vadd.f32 %v3901, %v4285
  %v4287 = vpop.f32.mrb[0].mxu0
  %4288 = vmatprep.mubr.f32.mxu0 %v1429
  %4289 = vmatmul.mubr.f32.gmra.mrb[0].mxu0 %v1428
  %v4290 = vpop.f32.mrb[0].mxu0
  %v4291 = vadd.f32 %v3906, %v4290
  %v4292 = vpop.f32.mrb[0].mxu0
  %4293 = vmatprep.mubr.f32.mxu0 %v1454
  %4294 = vmatmul.mubr.f32.gmra.mrb[0].mxu0 %v1453
  %v4295 = vpop.f32.mrb[0].mxu0
  %v4296 = vadd.f32 %v3911, %v4295
  %v4297 = vpop.f32.mrb[0].mxu0
  %4298 = vmatprep.mubr.f32.mxu0 %v1479
  %4299 = vmatmul.mubr.f32.gmra.mrb[0].mxu0 %v1478
  %v4300 = vpop.f32.mrb[0].mxu0
  %v4301 = vadd.f32 %v3916, %v4300
  %v4302 = vpop.f32.mrb[0].mxu0
  %4303 = vmatprep.mubr.f32.mxu0 %v1504
  %4304 = vmatmul.mubr.f32.gmra.mrb[0].mxu0 %v1503
  %v4305 = vpop.f32.mrb[0].mxu0
  %v4306 = vadd.f32 %v3921, %v4305
  %v4307 = vpop.f32.mrb[0].mxu0
  %4308 = vmatprep.mubr.f32.mxu0 %v1529
  %4309 = vmatmul.mubr.f32.gmra.mrb[0].mxu0 %v1528
  %v4310 = vpop.f32.mrb[0].mxu0
  %v4311 = vadd.f32 %v3926, %v4310
  %v4312 = vpop.f32.mrb[0].mxu0
  %4313 = vmatprep.mubr.f32.mxu0 %v1554
  %4314 = vmatmul.mubr.f32.gmra.mrb[0].mxu0 %v1553
  %v4315 = vpop.f32.mrb[0].mxu0
  %v4316 = vadd.f32 %v3931, %v4315
  %v4317 = vpop.f32.mrb[0].mxu0
  %4318 = vmatprep.mubr.f32.mxu0 %v1579
  %4319 = vmatmul.mubr.f32.gmra.mrb[0].mxu0 %v1578
  %v4320 = vpop.f32.mrb[0].mxu0
  %v4321 = vadd.f32 %v3936, %v4320
  %v4322 = vpop.f32.mrb[0].mxu0
  %4323 = vmatprep.mubr.f32.mxu0 %v1604
  %4324 = vmatmul.mubr.f32.gmra.mrb[0].mxu0 %v1603
  %v4325 = vpop.f32.mrb[0].mxu0
  %v4326 = vadd.f32 %v3941, %v4325
  %v4327 = vpop.f32.mrb[0].mxu0
  %4328 = vdwg.mxu0
  %4329 = vmatprep.subr.mxu0 0.0
  %4330 = vmatpush1.msra.mxu0 %v1780
  %4331 = vmatprep.subr.mxu0 0.0
  %4332 = vmatpush1.msra.mxu0 %v1781
  %4333 = vmatprep.subr.mxu0 0.0
  %4334 = vmatpush1.msra.mxu0 %v1782
  %4335 = vmatprep.subr.mxu0 0.0
  %4336 = vmatpush1.msra.mxu0 %v1783
  %4337 = vmatprep.subr.mxu0 0.0
  %4338 = vmatpush1.msra.mxu0 %v1784
  %4339 = vmatprep.subr.mxu0 0.0
  %4340 = vmatpush1.msra.mxu0 %v1785
  %4341 = vmatprep.subr.mxu0 0.0
  %4342 = vmatpush1.msra.mxu0 %v1786
  %4343 = vmatprep.subr.mxu0 0.0
  %4344 = vmatpush1.msra.mxu0 %v1787
  %4345 = vmatprep.subr.mxu0 0.0
  %4346 = vmatpush1.msra.mxu0 %v1788
  %4347 = vmatprep.subr.mxu0 0.0
  %4348 = vmatpush1.msra.mxu0 %v1789
  %4349 = vmatprep.subr.mxu0 0.0
  %4350 = vmatpush1.msra.mxu0 %v1790
  %4351 = vmatprep.subr.mxu0 0.0
  %4352 = vmatpush1.msra.mxu0 %v1791
  %4353 = vmatprep.subr.mxu0 0.0
  %4354 = vmatpush1.msra.mxu0 %v1792
  %4355 = vmatprep.subr.mxu0 0.0
  %4356 = vmatpush1.msra.mxu0 %v1793
  %4357 = vmatprep.subr.mxu0 0.0
  %4358 = vmatpush1.msra.mxu0 %v1794
  %4359 = vmatprep.subr.mxu0 0.0
  %4360 = vmatpush1.msra.mxu0 %v1795
  %4361 = vmatprep.subr.mxu0 0.0
  %4362 = vmatpush1.msra.mxu0 %v1796
  %4363 = vmatprep.subr.mxu0 0.0
  %4364 = vmatpush1.msra.mxu0 %v1797
  %4365 = vmatprep.subr.mxu0 0.0
  %4366 = vmatpush1.msra.mxu0 %v1798
  %4367 = vmatprep.subr.mxu0 0.0
  %4368 = vmatpush1.msra.mxu0 %v1799
  %4369 = vmatprep.subr.mxu0 0.0
  %4370 = vmatpush1.msra.mxu0 %v1800
  %4371 = vmatprep.subr.mxu0 0.0
  %4372 = vmatpush1.msra.mxu0 %v1801
  %4373 = vmatprep.subr.mxu0 0.0
  %4374 = vmatpush1.msra.mxu0 %v1802
  %4375 = vmatprep.subr.mxu0 0.0
  %4376 = vmatpush1.msra.mxu0 %v1803
  %4377 = vmatprep.subr.mxu0 0.0
  %4378 = vmatpush1.msra.mxu0 %v1804
  %4379 = vmatprep.subr.mxu0 0.0
  %4380 = vmatpush1.msra.mxu0 %v1805
  %4381 = vmatprep.subr.mxu0 0.0
  %4382 = vmatpush1.msra.mxu0 %v1806
  %4383 = vmatprep.subr.mxu0 0.0
  %4384 = vmatpush1.msra.mxu0 %v1807
  %4385 = vmatprep.subr.mxu0 0.0
  %4386 = vmatpush1.msra.mxu0 %v1808
  %4387 = vmatprep.subr.mxu0 0.0
  %4388 = vmatpush1.msra.mxu0 %v1809
  %4389 = vmatprep.subr.mxu0 0.0
  %4390 = vmatpush1.msra.mxu0 %v1810
  %4391 = vmatprep.subr.mxu0 0.0
  %4392 = vmatpush1.msra.mxu0 %v1811
  %4393 = vmatprep.mubr.f32.mxu0 %v31
  %4394 = vmatmul.mubr.f32.gmra.mrb[0].mxu0 %v30
  %v4395 = vpop.f32.mrb[0].mxu0
  %v4396 = vadd.f32 %v4011, %v4395
  %v4397 = vpop.f32.mrb[0].mxu0
  %4398 = vmatprep.mubr.f32.mxu0 %v56
  %4399 = vmatmul.mubr.f32.gmra.mrb[0].mxu0 %v55
  %v4400 = vpop.f32.mrb[0].mxu0
  %v4401 = vadd.f32 %v4016, %v4400
  %v4402 = vpop.f32.mrb[0].mxu0
  %4403 = vmatprep.mubr.f32.mxu0 %v81
  %4404 = vmatmul.mubr.f32.gmra.mrb[0].mxu0 %v80
  %v4405 = vpop.f32.mrb[0].mxu0
  %v4406 = vadd.f32 %v4021, %v4405
  %v4407 = vpop.f32.mrb[0].mxu0
  %4408 = vmatprep.mubr.f32.mxu0 %v106
  %4409 = vmatmul.mubr.f32.gmra.mrb[0].mxu0 %v105
  %v4410 = vpop.f32.mrb[0].mxu0
  %v4411 = vadd.f32 %v4026, %v4410
  %v4412 = vpop.f32.mrb[0].mxu0
  %4413 = vmatprep.mubr.f32.mxu0 %v131
  %4414 = vmatmul.mubr.f32.gmra.mrb[0].mxu0 %v130
  %v4415 = vpop.f32.mrb[0].mxu0
  %v4416 = vadd.f32 %v4031, %v4415
  %v4417 = vpop.f32.mrb[0].mxu0
  %4418 = vmatprep.mubr.f32.mxu0 %v156
  %4419 = vmatmul.mubr.f32.gmra.mrb[0].mxu0 %v155
  %v4420 = vpop.f32.mrb[0].mxu0
  %v4421 = vadd.f32 %v4036, %v4420
  %v4422 = vpop.f32.mrb[0].mxu0
  %4423 = vmatprep.mubr.f32.mxu0 %v181
  %4424 = vmatmul.mubr.f32.gmra.mrb[0].mxu0 %v180
  %v4425 = vpop.f32.mrb[0].mxu0
  %v4426 = vadd.f32 %v4041, %v4425
  %v4427 = vpop.f32.mrb[0].mxu0
  %4428 = vmatprep.mubr.f32.mxu0 %v206
  %4429 = vmatmul.mubr.f32.gmra.mrb[0].mxu0 %v205
  %v4430 = vpop.f32.mrb[0].mxu0
  %v4431 = vadd.f32 %v4046, %v4430
  %v4432 = vpop.f32.mrb[0].mxu0
  %4433 = vmatprep.mubr.f32.mxu0 %v231
  %4434 = vmatmul.mubr.f32.gmra.mrb[0].mxu0 %v230
  %v4435 = vpop.f32.mrb[0].mxu0
  %v4436 = vadd.f32 %v4051, %v4435
  %v4437 = vpop.f32.mrb[0].mxu0
  %4438 = vmatprep.mubr.f32.mxu0 %v256
  %4439 = vmatmul.mubr.f32.gmra.mrb[0].mxu0 %v255
  %v4440 = vpop.f32.mrb[0].mxu0
  %v4441 = vadd.f32 %v4056, %v4440
  %v4442 = vpop.f32.mrb[0].mxu0
  %4443 = vmatprep.mubr.f32.mxu0 %v281
  %4444 = vmatmul.mubr.f32.gmra.mrb[0].mxu0 %v280
  %v4445 = vpop.f32.mrb[0].mxu0
  %v4446 = vadd.f32 %v4061, %v4445
  %v4447 = vpop.f32.mrb[0].mxu0
  %4448 = vmatprep.mubr.f32.mxu0 %v306
  %4449 = vmatmul.mubr.f32.gmra.mrb[0].mxu0 %v305
  %v4450 = vpop.f32.mrb[0].mxu0
  %v4451 = vadd.f32 %v4066, %v4450
  %v4452 = vpop.f32.mrb[0].mxu0
  %4453 = vmatprep.mubr.f32.mxu0 %v331
  %4454 = vmatmul.mubr.f32.gmra.mrb[0].mxu0 %v330
  %v4455 = vpop.f32.mrb[0].mxu0
  %v4456 = vadd.f32 %v4071, %v4455
  %v4457 = vpop.f32.mrb[0].mxu0
  %4458 = vmatprep.mubr.f32.mxu0 %v356
  %4459 = vmatmul.mubr.f32.gmra.mrb[0].mxu0 %v355
  %v4460 = vpop.f32.mrb[0].mxu0
  %v4461 = vadd.f32 %v4076, %v4460
  %v4462 = vpop.f32.mrb[0].mxu0
  %4463 = vmatprep.mubr.f32.mxu0 %v381
  %4464 = vmatmul.mubr.f32.gmra.mrb[0].mxu0 %v380
  %v4465 = vpop.f32.mrb[0].mxu0
  %v4466 = vadd.f32 %v4081, %v4465
  %v4467 = vpop.f32.mrb[0].mxu0
  %4468 = vmatprep.mubr.f32.mxu0 %v406
  %4469 = vmatmul.mubr.f32.gmra.mrb[0].mxu0 %v405
  %v4470 = vpop.f32.mrb[0].mxu0
  %v4471 = vadd.f32 %v4086, %v4470
  %v4472 = vpop.f32.mrb[0].mxu0
  %4473 = vmatprep.mubr.f32.mxu0 %v431
  %4474 = vmatmul.mubr.f32.gmra.mrb[0].mxu0 %v430
  %v4475 = vpop.f32.mrb[0].mxu0
  %v4476 = vadd.f32 %v4091, %v4475
  %v4477 = vpop.f32.mrb[0].mxu0
  %4478 = vmatprep.mubr.f32.mxu0 %v456
  %4479 = vmatmul.mubr.f32.gmra.mrb[0].mxu0 %v455
  %v4480 = vpop.f32.mrb[0].mxu0
  %v4481 = vadd.f32 %v4096, %v4480
  %v4482 = vpop.f32.mrb[0].mxu0
  %4483 = vmatprep.mubr.f32.mxu0 %v481
  %4484 = vmatmul.mubr.f32.gmra.mrb[0].mxu0 %v480
  %v4485 = vpop.f32.mrb[0].mxu0
  %v4486 = vadd.f32 %v4101, %v4485
  %v4487 = vpop.f32.mrb[0].mxu0
  %4488 = vmatprep.mubr.f32.mxu0 %v506
  %4489 = vmatmul.mubr.f32.gmra.mrb[0].mxu0 %v505
  %v4490 = vpop.f32.mrb[0].mxu0
  %v4491 = vadd.f32 %v4106, %v4490
  %v4492 = vpop.f32.mrb[0].mxu0
  %4493 = vmatprep.mubr.f32.mxu0 %v531
  %4494 = vmatmul.mubr.f32.gmra.mrb[0].mxu0 %v530
  %v4495 = vpop.f32.mrb[0].mxu0
  %v4496 = vadd.f32 %v4111, %v4495
  %v4497 = vpop.f32.mrb[0].mxu0
  %4498 = vmatprep.mubr.f32.mxu0 %v556
  %4499 = vmatmul.mubr.f32.gmra.mrb[0].mxu0 %v555
  %v4500 = vpop.f32.mrb[0].mxu0
  %v4501 = vadd.f32 %v4116, %v4500
  %v4502 = vpop.f32.mrb[0].mxu0
  %4503 = vmatprep.mubr.f32.mxu0 %v581
  %4504 = vmatmul.mubr.f32.gmra.mrb[0].mxu0 %v580
  %v4505 = vpop.f32.mrb[0].mxu0
  %v4506 = vadd.f32 %v4121, %v4505
  %v4507 = vpop.f32.mrb[0].mxu0
  %4508 = vmatprep.mubr.f32.mxu0 %v606
  %4509 = vmatmul.mubr.f32.gmra.mrb[0].mxu0 %v605
  %v4510 = vpop.f32.mrb[0].mxu0
  %v4511 = vadd.f32 %v4126, %v4510
  %v4512 = vpop.f32.mrb[0].mxu0
  %4513 = vmatprep.mubr.f32.mxu0 %v631
  %4514 = vmatmul.mubr.f32.gmra.mrb[0].mxu0 %v630
  %v4515 = vpop.f32.mrb[0].mxu0
  %v4516 = vadd.f32 %v4131, %v4515
  %v4517 = vpop.f32.mrb[0].mxu0
  %4518 = vmatprep.mubr.f32.mxu0 %v656
  %4519 = vmatmul.mubr.f32.gmra.mrb[0].mxu0 %v655
  %v4520 = vpop.f32.mrb[0].mxu0
  %v4521 = vadd.f32 %v4136, %v4520
  %v4522 = vpop.f32.mrb[0].mxu0
  %4523 = vmatprep.mubr.f32.mxu0 %v681
  %4524 = vmatmul.mubr.f32.gmra.mrb[0].mxu0 %v680
  %v4525 = vpop.f32.mrb[0].mxu0
  %v4526 = vadd.f32 %v4141, %v4525
  %v4527 = vpop.f32.mrb[0].mxu0
  %4528 = vmatprep.mubr.f32.mxu0 %v706
  %4529 = vmatmul.mubr.f32.gmra.mrb[0].mxu0 %v705
  %v4530 = vpop.f32.mrb[0].mxu0
  %v4531 = vadd.f32 %v4146, %v4530
  %v4532 = vpop.f32.mrb[0].mxu0
  %4533 = vmatprep.mubr.f32.mxu0 %v731
  %4534 = vmatmul.mubr.f32.gmra.mrb[0].mxu0 %v730
  %v4535 = vpop.f32.mrb[0].mxu0
  %v4536 = vadd.f32 %v4151, %v4535
  %v4537 = vpop.f32.mrb[0].mxu0
  %4538 = vmatprep.mubr.f32.mxu0 %v756
  %4539 = vmatmul.mubr.f32.gmra.mrb[0].mxu0 %v755
  %v4540 = vpop.f32.mrb[0].mxu0
  %v4541 = vadd.f32 %v4156, %v4540
  %v4542 = vpop.f32.mrb[0].mxu0
  %4543 = vmatprep.mubr.f32.mxu0 %v781
  %4544 = vmatmul.mubr.f32.gmra.mrb[0].mxu0 %v780
  %v4545 = vpop.f32.mrb[0].mxu0
  %v4546 = vadd.f32 %v4161, %v4545
  %v4547 = vpop.f32.mrb[0].mxu0
  %4548 = vmatprep.mubr.f32.mxu0 %v806
  %4549 = vmatmul.mubr.f32.gmra.mrb[0].mxu0 %v805
  %v4550 = vpop.f32.mrb[0].mxu0
  %v4551 = vadd.f32 %v4166, %v4550
  %v4552 = vpop.f32.mrb[0].mxu0
  %4553 = vmatprep.mubr.f32.mxu0 %v831
  %4554 = vmatmul.mubr.f32.gmra.mrb[0].mxu0 %v830
  %v4555 = vpop.f32.mrb[0].mxu0
  %v4556 = vadd.f32 %v4171, %v4555
  %v4557 = vpop.f32.mrb[0].mxu0
  %4558 = vmatprep.mubr.f32.mxu0 %v856
  %4559 = vmatmul.mubr.f32.gmra.mrb[0].mxu0 %v855
  %v4560 = vpop.f32.mrb[0].mxu0
  %v4561 = vadd.f32 %v4176, %v4560
  %v4562 = vpop.f32.mrb[0].mxu0
  %4563 = vmatprep.mubr.f32.mxu0 %v881
  %4564 = vmatmul.mubr.f32.gmra.mrb[0].mxu0 %v880
  %v4565 = vpop.f32.mrb[0].mxu0
  %v4566 = vadd.f32 %v4181, %v4565
  %v4567 = vpop.f32.mrb[0].mxu0
  %4568 = vmatprep.mubr.f32.mxu0 %v906
  %4569 = vmatmul.mubr.f32.gmra.mrb[0].mxu0 %v905
  %v4570 = vpop.f32.mrb[0].mxu0
  %v4571 = vadd.f32 %v4186, %v4570
  %v4572 = vpop.f32.mrb[0].mxu0
  %4573 = vmatprep.mubr.f32.mxu0 %v931
  %4574 = vmatmul.mubr.f32.gmra.mrb[0].mxu0 %v930
  %v4575 = vpop.f32.mrb[0].mxu0
  %v4576 = vadd.f32 %v4191, %v4575
  %v4577 = vpop.f32.mrb[0].mxu0
  %4578 = vmatprep.mubr.f32.mxu0 %v956
  %4579 = vmatmul.mubr.f32.gmra.mrb[0].mxu0 %v955
  %v4580 = vpop.f32.mrb[0].mxu0
  %v4581 = vadd.f32 %v4196, %v4580
  %v4582 = vpop.f32.mrb[0].mxu0
  %4583 = vmatprep.mubr.f32.mxu0 %v981
  %4584 = vmatmul.mubr.f32.gmra.mrb[0].mxu0 %v980
  %v4585 = vpop.f32.mrb[0].mxu0
  %v4586 = vadd.f32 %v4201, %v4585
  %v4587 = vpop.f32.mrb[0].mxu0
  %4588 = vmatprep.mubr.f32.mxu0 %v1006
  %4589 = vmatmul.mubr.f32.gmra.mrb[0].mxu0 %v1005
  %v4590 = vpop.f32.mrb[0].mxu0
  %v4591 = vadd.f32 %v4206, %v4590
  %v4592 = vpop.f32.mrb[0].mxu0
  %4593 = vmatprep.mubr.f32.mxu0 %v1031
  %4594 = vmatmul.mubr.f32.gmra.mrb[0].mxu0 %v1030
  %v4595 = vpop.f32.mrb[0].mxu0
  %v4596 = vadd.f32 %v4211, %v4595
  %v4597 = vpop.f32.mrb[0].mxu0
  %4598 = vmatprep.mubr.f32.mxu0 %v1056
  %4599 = vmatmul.mubr.f32.gmra.mrb[0].mxu0 %v1055
  %v4600 = vpop.f32.mrb[0].mxu0
  %v4601 = vadd.f32 %v4216, %v4600
  %v4602 = vpop.f32.mrb[0].mxu0
  %4603 = vmatprep.mubr.f32.mxu0 %v1081
  %4604 = vmatmul.mubr.f32.gmra.mrb[0].mxu0 %v1080
  %v4605 = vpop.f32.mrb[0].mxu0
  %v4606 = vadd.f32 %v4221, %v4605
  %v4607 = vpop.f32.mrb[0].mxu0
  %4608 = vmatprep.mubr.f32.mxu0 %v1106
  %4609 = vmatmul.mubr.f32.gmra.mrb[0].mxu0 %v1105
  %v4610 = vpop.f32.mrb[0].mxu0
  %v4611 = vadd.f32 %v4226, %v4610
  %v4612 = vpop.f32.mrb[0].mxu0
  %4613 = vmatprep.mubr.f32.mxu0 %v1131
  %4614 = vmatmul.mubr.f32.gmra.mrb[0].mxu0 %v1130
  %v4615 = vpop.f32.mrb[0].mxu0
  %v4616 = vadd.f32 %v4231, %v4615
  %v4617 = vpop.f32.mrb[0].mxu0
  %4618 = vmatprep.mubr.f32.mxu0 %v1156
  %4619 = vmatmul.mubr.f32.gmra.mrb[0].mxu0 %v1155
  %v4620 = vpop.f32.mrb[0].mxu0
  %v4621 = vadd.f32 %v4236, %v4620
  %v4622 = vpop.f32.mrb[0].mxu0
  %4623 = vmatprep.mubr.f32.mxu0 %v1181
  %4624 = vmatmul.mubr.f32.gmra.mrb[0].mxu0 %v1180
  %v4625 = vpop.f32.mrb[0].mxu0
  %v4626 = vadd.f32 %v4241, %v4625
  %v4627 = vpop.f32.mrb[0].mxu0
  %4628 = vmatprep.mubr.f32.mxu0 %v1206
  %4629 = vmatmul.mubr.f32.gmra.mrb[0].mxu0 %v1205
  %v4630 = vpop.f32.mrb[0].mxu0
  %v4631 = vadd.f32 %v4246, %v4630
  %v4632 = vpop.f32.mrb[0].mxu0
  %4633 = vmatprep.mubr.f32.mxu0 %v1231
  %4634 = vmatmul.mubr.f32.gmra.mrb[0].mxu0 %v1230
  %v4635 = vpop.f32.mrb[0].mxu0
  %v4636 = vadd.f32 %v4251, %v4635
  %v4637 = vpop.f32.mrb[0].mxu0
  %4638 = vmatprep.mubr.f32.mxu0 %v1256
  %4639 = vmatmul.mubr.f32.gmra.mrb[0].mxu0 %v1255
  %v4640 = vpop.f32.mrb[0].mxu0
  %v4641 = vadd.f32 %v4256, %v4640
  %v4642 = vpop.f32.mrb[0].mxu0
  %4643 = vmatprep.mubr.f32.mxu0 %v1281
  %4644 = vmatmul.mubr.f32.gmra.mrb[0].mxu0 %v1280
  %v4645 = vpop.f32.mrb[0].mxu0
  %v4646 = vadd.f32 %v4261, %v4645
  %v4647 = vpop.f32.mrb[0].mxu0
  %4648 = vmatprep.mubr.f32.mxu0 %v1306
  %4649 = vmatmul.mubr.f32.gmra.mrb[0].mxu0 %v1305
  %v4650 = vpop.f32.mrb[0].mxu0
  %v4651 = vadd.f32 %v4266, %v4650
  %v4652 = vpop.f32.mrb[0].mxu0
  %4653 = vmatprep.mubr.f32.mxu0 %v1331
  %4654 = vmatmul.mubr.f32.gmra.mrb[0].mxu0 %v1330
  %v4655 = vpop.f32.mrb[0].mxu0
  %v4656 = vadd.f32 %v4271, %v4655
  %v4657 = vpop.f32.mrb[0].mxu0
  %4658 = vmatprep.mubr.f32.mxu0 %v1356
  %4659 = vmatmul.mubr.f32.gmra.mrb[0].mxu0 %v1355
  %v4660 = vpop.f32.mrb[0].mxu0
  %v4661 = vadd.f32 %v4276, %v4660
  %v4662 = vpop.f32.mrb[0].mxu0
  %4663 = vmatprep.mubr.f32.mxu0 %v1381
  %4664 = vmatmul.mubr.f32.gmra.mrb[0].mxu0 %v1380
  %v4665 = vpop.f32.mrb[0].mxu0
  %v4666 = vadd.f32 %v4281, %v4665
  %v4667 = vpop.f32.mrb[0].mxu0
  %4668 = vmatprep.mubr.f32.mxu0 %v1406
  %4669 = vmatmul.mubr.f32.gmra.mrb[0].mxu0 %v1405
  %v4670 = vpop.f32.mrb[0].mxu0
  %v4671 = vadd.f32 %v4286, %v4670
  %v4672 = vpop.f32.mrb[0].mxu0
  %4673 = vmatprep.mubr.f32.mxu0 %v1431
  %4674 = vmatmul.mubr.f32.gmra.mrb[0].mxu0 %v1430
  %v4675 = vpop.f32.mrb[0].mxu0
  %v4676 = vadd.f32 %v4291, %v4675
  %v4677 = vpop.f32.mrb[0].mxu0
  %4678 = vmatprep.mubr.f32.mxu0 %v1456
  %4679 = vmatmul.mubr.f32.gmra.mrb[0].mxu0 %v1455
  %v4680 = vpop.f32.mrb[0].mxu0
  %v4681 = vadd.f32 %v4296, %v4680
  %v4682 = vpop.f32.mrb[0].mxu0
  %4683 = vmatprep.mubr.f32.mxu0 %v1481
  %4684 = vmatmul.mubr.f32.gmra.mrb[0].mxu0 %v1480
  %v4685 = vpop.f32.mrb[0].mxu0
  %v4686 = vadd.f32 %v4301, %v4685
  %v4687 = vpop.f32.mrb[0].mxu0
  %4688 = vmatprep.mubr.f32.mxu0 %v1506
  %4689 = vmatmul.mubr.f32.gmra.mrb[0].mxu0 %v1505
  %v4690 = vpop.f32.mrb[0].mxu0
  %v4691 = vadd.f32 %v4306, %v4690
  %v4692 = vpop.f32.mrb[0].mxu0
  %4693 = vmatprep.mubr.f32.mxu0 %v1531
  %4694 = vmatmul.mubr.f32.gmra.mrb[0].mxu0 %v1530
  %v4695 = vpop.f32.mrb[0].mxu0
  %v4696 = vadd.f32 %v4311, %v4695
  %v4697 = vpop.f32.mrb[0].mxu0
  %4698 = vmatprep.mubr.f32.mxu0 %v1556
  %4699 = vmatmul.mubr.f32.gmra.mrb[0].mxu0 %v1555
  %v4700 = vpop.f32.mrb[0].mxu0
  %v4701 = vadd.f32 %v4316, %v4700
  %v4702 = vpop.f32.mrb[0].mxu0
  %4703 = vmatprep.mubr.f32.mxu0 %v1581
  %4704 = vmatmul.mubr.f32.gmra.mrb[0].mxu0 %v1580
  %v4705 = vpop.f32.mrb[0].mxu0
  %v4706 = vadd.f32 %v4321, %v4705
  %v4707 = vpop.f32.mrb[0].mxu0
  %4708 = vmatprep.mubr.f32.mxu0 %v1606
  %4709 = vmatmul.mubr.f32.gmra.mrb[0].mxu0 %v1605
  %v4710 = vpop.f32.mrb[0].mxu0
  %v4711 = vadd.f32 %v4326, %v4710
  %v4712 = vpop.f32.mrb[0].mxu0
  %4713 = vdwg.mxu0
  %4714 = vmatprep.subr.mxu0 0.0
  %4715 = vmatpush1.msra.mxu0 %v1812
  %4716 = vmatprep.subr.mxu0 0.0
  %4717 = vmatpush1.msra.mxu0 %v1813
  %4718 = vmatprep.subr.mxu0 0.0
  %4719 = vmatpush1.msra.mxu0 %v1814
  %4720 = vmatprep.subr.mxu0 0.0
  %4721 = vmatpush1.msra.mxu0 %v1815
  %4722 = vmatprep.subr.mxu0 0.0
  %4723 = vmatpush1.msra.mxu0 %v1816
  %4724 = vmatprep.subr.mxu0 0.0
  %4725 = vmatpush1.msra.mxu0 %v1817
  %4726 = vmatprep.subr.mxu0 0.0
  %4727 = vmatpush1.msra.mxu0 %v1818
  %4728 = vmatprep.subr.mxu0 0.0
  %4729 = vmatpush1.msra.mxu0 %v1819
  %4730 = vmatprep.subr.mxu0 0.0
  %4731 = vmatpush1.msra.mxu0 %v1820
  %4732 = vmatprep.subr.mxu0 0.0
  %4733 = vmatpush1.msra.mxu0 %v1821
  %4734 = vmatprep.subr.mxu0 0.0
  %4735 = vmatpush1.msra.mxu0 %v1822
  %4736 = vmatprep.subr.mxu0 0.0
  %4737 = vmatpush1.msra.mxu0 %v1823
  %4738 = vmatprep.subr.mxu0 0.0
  %4739 = vmatpush1.msra.mxu0 %v1824
  %4740 = vmatprep.subr.mxu0 0.0
  %4741 = vmatpush1.msra.mxu0 %v1825
  %4742 = vmatprep.subr.mxu0 0.0
  %4743 = vmatpush1.msra.mxu0 %v1826
  %4744 = vmatprep.subr.mxu0 0.0
  %4745 = vmatpush1.msra.mxu0 %v1827
  %4746 = vmatprep.subr.mxu0 0.0
  %4747 = vmatpush1.msra.mxu0 %v1828
  %4748 = vmatprep.subr.mxu0 0.0
  %4749 = vmatpush1.msra.mxu0 %v1829
  %4750 = vmatprep.subr.mxu0 0.0
  %4751 = vmatpush1.msra.mxu0 %v1830
  %4752 = vmatprep.subr.mxu0 0.0
  %4753 = vmatpush1.msra.mxu0 %v1831
  %4754 = vmatprep.subr.mxu0 0.0
  %4755 = vmatpush1.msra.mxu0 %v1832
  %4756 = vmatprep.subr.mxu0 0.0
  %4757 = vmatpush1.msra.mxu0 %v1833
  %4758 = vmatprep.subr.mxu0 0.0
  %4759 = vmatpush1.msra.mxu0 %v1834
  %4760 = vmatprep.subr.mxu0 0.0
  %4761 = vmatpush1.msra.mxu0 %v1835
  %4762 = vmatprep.subr.mxu0 0.0
  %4763 = vmatpush1.msra.mxu0 %v1836
  %4764 = vmatprep.subr.mxu0 0.0
  %4765 = vmatpush1.msra.mxu0 %v1837
  %4766 = vmatprep.subr.mxu0 0.0
  %4767 = vmatpush1.msra.mxu0 %v1838
  %4768 = vmatprep.subr.mxu0 0.0
  %4769 = vmatpush1.msra.mxu0 %v1839
  %4770 = vmatprep.subr.mxu0 0.0
  %4771 = vmatpush1.msra.mxu0 %v1840
  %4772 = vmatprep.subr.mxu0 0.0
  %4773 = vmatpush1.msra.mxu0 %v1841
  %4774 = vmatprep.subr.mxu0 0.0
  %4775 = vmatpush1.msra.mxu0 %v1842
  %4776 = vmatprep.subr.mxu0 0.0
  %4777 = vmatpush1.msra.mxu0 %v1843
  %4778 = vmatprep.mubr.f32.mxu0 %v33
  %4779 = vmatmul.mubr.f32.gmra.mrb[0].mxu0 %v32
  %v4780 = vpop.f32.mrb[0].mxu0
  %v4781 = vadd.f32 %v4396, %v4780
  %v4782 = vpop.f32.mrb[0].mxu0
  %4783 = vmatprep.mubr.f32.mxu0 %v58
  %4784 = vmatmul.mubr.f32.gmra.mrb[0].mxu0 %v57
  %v4785 = vpop.f32.mrb[0].mxu0
  %v4786 = vadd.f32 %v4401, %v4785
  %v4787 = vpop.f32.mrb[0].mxu0
  %4788 = vmatprep.mubr.f32.mxu0 %v83
  %4789 = vmatmul.mubr.f32.gmra.mrb[0].mxu0 %v82
  %v4790 = vpop.f32.mrb[0].mxu0
  %v4791 = vadd.f32 %v4406, %v4790
  %v4792 = vpop.f32.mrb[0].mxu0
  %4793 = vmatprep.mubr.f32.mxu0 %v108
  %4794 = vmatmul.mubr.f32.gmra.mrb[0].mxu0 %v107
  %v4795 = vpop.f32.mrb[0].mxu0
  %v4796 = vadd.f32 %v4411, %v4795
  %v4797 = vpop.f32.mrb[0].mxu0
  %4798 = vmatprep.mubr.f32.mxu0 %v133
  %4799 = vmatmul.mubr.f32.gmra.mrb[0].mxu0 %v132
  %v4800 = vpop.f32.mrb[0].mxu0
  %v4801 = vadd.f32 %v4416, %v4800
  %v4802 = vpop.f32.mrb[0].mxu0
  %4803 = vmatprep.mubr.f32.mxu0 %v158
  %4804 = vmatmul.mubr.f32.gmra.mrb[0].mxu0 %v157
  %v4805 = vpop.f32.mrb[0].mxu0
  %v4806 = vadd.f32 %v4421, %v4805
  %v4807 = vpop.f32.mrb[0].mxu0
  %4808 = vmatprep.mubr.f32.mxu0 %v183
  %4809 = vmatmul.mubr.f32.gmra.mrb[0].mxu0 %v182
  %v4810 = vpop.f32.mrb[0].mxu0
  %v4811 = vadd.f32 %v4426, %v4810
  %v4812 = vpop.f32.mrb[0].mxu0
  %4813 = vmatprep.mubr.f32.mxu0 %v208
  %4814 = vmatmul.mubr.f32.gmra.mrb[0].mxu0 %v207
  %v4815 = vpop.f32.mrb[0].mxu0
  %v4816 = vadd.f32 %v4431, %v4815
  %v4817 = vpop.f32.mrb[0].mxu0
  %4818 = vmatprep.mubr.f32.mxu0 %v233
  %4819 = vmatmul.mubr.f32.gmra.mrb[0].mxu0 %v232
  %v4820 = vpop.f32.mrb[0].mxu0
  %v4821 = vadd.f32 %v4436, %v4820
  %v4822 = vpop.f32.mrb[0].mxu0
  %4823 = vmatprep.mubr.f32.mxu0 %v258
  %4824 = vmatmul.mubr.f32.gmra.mrb[0].mxu0 %v257
  %v4825 = vpop.f32.mrb[0].mxu0
  %v4826 = vadd.f32 %v4441, %v4825
  %v4827 = vpop.f32.mrb[0].mxu0
  %4828 = vmatprep.mubr.f32.mxu0 %v283
  %4829 = vmatmul.mubr.f32.gmra.mrb[0].mxu0 %v282
  %v4830 = vpop.f32.mrb[0].mxu0
  %v4831 = vadd.f32 %v4446, %v4830
  %v4832 = vpop.f32.mrb[0].mxu0
  %4833 = vmatprep.mubr.f32.mxu0 %v308
  %4834 = vmatmul.mubr.f32.gmra.mrb[0].mxu0 %v307
  %v4835 = vpop.f32.mrb[0].mxu0
  %v4836 = vadd.f32 %v4451, %v4835
  %v4837 = vpop.f32.mrb[0].mxu0
  %4838 = vmatprep.mubr.f32.mxu0 %v333
  %4839 = vmatmul.mubr.f32.gmra.mrb[0].mxu0 %v332
  %v4840 = vpop.f32.mrb[0].mxu0
  %v4841 = vadd.f32 %v4456, %v4840
  %v4842 = vpop.f32.mrb[0].mxu0
  %4843 = vmatprep.mubr.f32.mxu0 %v358
  %4844 = vmatmul.mubr.f32.gmra.mrb[0].mxu0 %v357
  %v4845 = vpop.f32.mrb[0].mxu0
  %v4846 = vadd.f32 %v4461, %v4845
  %v4847 = vpop.f32.mrb[0].mxu0
  %4848 = vmatprep.mubr.f32.mxu0 %v383
  %4849 = vmatmul.mubr.f32.gmra.mrb[0].mxu0 %v382
  %v4850 = vpop.f32.mrb[0].mxu0
  %v4851 = vadd.f32 %v4466, %v4850
  %v4852 = vpop.f32.mrb[0].mxu0
  %4853 = vmatprep.mubr.f32.mxu0 %v408
  %4854 = vmatmul.mubr.f32.gmra.mrb[0].mxu0 %v407
  %v4855 = vpop.f32.mrb[0].mxu0
  %v4856 = vadd.f32 %v4471, %v4855
  %v4857 = vpop.f32.mrb[0].mxu0
  %4858 = vmatprep.mubr.f32.mxu0 %v433
  %4859 = vmatmul.mubr.f32.gmra.mrb[0].mxu0 %v432
  %v4860 = vpop.f32.mrb[0].mxu0
  %v4861 = vadd.f32 %v4476, %v4860
  %v4862 = vpop.f32.mrb[0].mxu0
  %4863 = vmatprep.mubr.f32.mxu0 %v458
  %4864 = vmatmul.mubr.f32.gmra.mrb[0].mxu0 %v457
  %v4865 = vpop.f32.mrb[0].mxu0
  %v4866 = vadd.f32 %v4481, %v4865
  %v4867 = vpop.f32.mrb[0].mxu0
  %4868 = vmatprep.mubr.f32.mxu0 %v483
  %4869 = vmatmul.mubr.f32.gmra.mrb[0].mxu0 %v482
  %v4870 = vpop.f32.mrb[0].mxu0
  %v4871 = vadd.f32 %v4486, %v4870
  %v4872 = vpop.f32.mrb[0].mxu0
  %4873 = vmatprep.mubr.f32.mxu0 %v508
  %4874 = vmatmul.mubr.f32.gmra.mrb[0].mxu0 %v507
  %v4875 = vpop.f32.mrb[0].mxu0
  %v4876 = vadd.f32 %v4491, %v4875
  %v4877 = vpop.f32.mrb[0].mxu0
  %4878 = vmatprep.mubr.f32.mxu0 %v533
  %4879 = vmatmul.mubr.f32.gmra.mrb[0].mxu0 %v532
  %v4880 = vpop.f32.mrb[0].mxu0
  %v4881 = vadd.f32 %v4496, %v4880
  %v4882 = vpop.f32.mrb[0].mxu0
  %4883 = vmatprep.mubr.f32.mxu0 %v558
  %4884 = vmatmul.mubr.f32.gmra.mrb[0].mxu0 %v557
  %v4885 = vpop.f32.mrb[0].mxu0
  %v4886 = vadd.f32 %v4501, %v4885
  %v4887 = vpop.f32.mrb[0].mxu0
  %4888 = vmatprep.mubr.f32.mxu0 %v583
  %4889 = vmatmul.mubr.f32.gmra.mrb[0].mxu0 %v582
  %v4890 = vpop.f32.mrb[0].mxu0
  %v4891 = vadd.f32 %v4506, %v4890
  %v4892 = vpop.f32.mrb[0].mxu0
  %4893 = vmatprep.mubr.f32.mxu0 %v608
  %4894 = vmatmul.mubr.f32.gmra.mrb[0].mxu0 %v607
  %v4895 = vpop.f32.mrb[0].mxu0
  %v4896 = vadd.f32 %v4511, %v4895
  %v4897 = vpop.f32.mrb[0].mxu0
  %4898 = vmatprep.mubr.f32.mxu0 %v633
  %4899 = vmatmul.mubr.f32.gmra.mrb[0].mxu0 %v632
  %v4900 = vpop.f32.mrb[0].mxu0
  %v4901 = vadd.f32 %v4516, %v4900
  %v4902 = vpop.f32.mrb[0].mxu0
  %4903 = vmatprep.mubr.f32.mxu0 %v658
  %4904 = vmatmul.mubr.f32.gmra.mrb[0].mxu0 %v657
  %v4905 = vpop.f32.mrb[0].mxu0
  %v4906 = vadd.f32 %v4521, %v4905
  %v4907 = vpop.f32.mrb[0].mxu0
  %4908 = vmatprep.mubr.f32.mxu0 %v683
  %4909 = vmatmul.mubr.f32.gmra.mrb[0].mxu0 %v682
  %v4910 = vpop.f32.mrb[0].mxu0
  %v4911 = vadd.f32 %v4526, %v4910
  %v4912 = vpop.f32.mrb[0].mxu0
  %4913 = vmatprep.mubr.f32.mxu0 %v708
  %4914 = vmatmul.mubr.f32.gmra.mrb[0].mxu0 %v707
  %v4915 = vpop.f32.mrb[0].mxu0
  %v4916 = vadd.f32 %v4531, %v4915
  %v4917 = vpop.f32.mrb[0].mxu0
  %4918 = vmatprep.mubr.f32.mxu0 %v733
  %4919 = vmatmul.mubr.f32.gmra.mrb[0].mxu0 %v732
  %v4920 = vpop.f32.mrb[0].mxu0
  %v4921 = vadd.f32 %v4536, %v4920
  %v4922 = vpop.f32.mrb[0].mxu0
  %4923 = vmatprep.mubr.f32.mxu0 %v758
  %4924 = vmatmul.mubr.f32.gmra.mrb[0].mxu0 %v757
  %v4925 = vpop.f32.mrb[0].mxu0
  %v4926 = vadd.f32 %v4541, %v4925
  %v4927 = vpop.f32.mrb[0].mxu0
  %4928 = vmatprep.mubr.f32.mxu0 %v783
  %4929 = vmatmul.mubr.f32.gmra.mrb[0].mxu0 %v782
  %v4930 = vpop.f32.mrb[0].mxu0
  %v4931 = vadd.f32 %v4546, %v4930
  %v4932 = vpop.f32.mrb[0].mxu0
  %4933 = vmatprep.mubr.f32.mxu0 %v808
  %4934 = vmatmul.mubr.f32.gmra.mrb[0].mxu0 %v807
  %v4935 = vpop.f32.mrb[0].mxu0
  %v4936 = vadd.f32 %v4551, %v4935
  %v4937 = vpop.f32.mrb[0].mxu0
  %4938 = vmatprep.mubr.f32.mxu0 %v833
  %4939 = vmatmul.mubr.f32.gmra.mrb[0].mxu0 %v832
  %v4940 = vpop.f32.mrb[0].mxu0
  %v4941 = vadd.f32 %v4556, %v4940
  %v4942 = vpop.f32.mrb[0].mxu0
  %4943 = vmatprep.mubr.f32.mxu0 %v858
  %4944 = vmatmul.mubr.f32.gmra.mrb[0].mxu0 %v857
  %v4945 = vpop.f32.mrb[0].mxu0
  %v4946 = vadd.f32 %v4561, %v4945
  %v4947 = vpop.f32.mrb[0].mxu0
  %4948 = vmatprep.mubr.f32.mxu0 %v883
  %4949 = vmatmul.mubr.f32.gmra.mrb[0].mxu0 %v882
  %v4950 = vpop.f32.mrb[0].mxu0
  %v4951 = vadd.f32 %v4566, %v4950
  %v4952 = vpop.f32.mrb[0].mxu0
  %4953 = vmatprep.mubr.f32.mxu0 %v908
  %4954 = vmatmul.mubr.f32.gmra.mrb[0].mxu0 %v907
  %v4955 = vpop.f32.mrb[0].mxu0
  %v4956 = vadd.f32 %v4571, %v4955
  %v4957 = vpop.f32.mrb[0].mxu0
  %4958 = vmatprep.mubr.f32.mxu0 %v933
  %4959 = vmatmul.mubr.f32.gmra.mrb[0].mxu0 %v932
  %v4960 = vpop.f32.mrb[0].mxu0
  %v4961 = vadd.f32 %v4576, %v4960
  %v4962 = vpop.f32.mrb[0].mxu0
  %4963 = vmatprep.mubr.f32.mxu0 %v958
  %4964 = vmatmul.mubr.f32.gmra.mrb[0].mxu0 %v957
  %v4965 = vpop.f32.mrb[0].mxu0
  %v4966 = vadd.f32 %v4581, %v4965
  %v4967 = vpop.f32.mrb[0].mxu0
  %4968 = vmatprep.mubr.f32.mxu0 %v983
  %4969 = vmatmul.mubr.f32.gmra.mrb[0].mxu0 %v982
  %v4970 = vpop.f32.mrb[0].mxu0
  %v4971 = vadd.f32 %v4586, %v4970
  %v4972 = vpop.f32.mrb[0].mxu0
  %4973 = vmatprep.mubr.f32.mxu0 %v1008
  %4974 = vmatmul.mubr.f32.gmra.mrb[0].mxu0 %v1007
  %v4975 = vpop.f32.mrb[0].mxu0
  %v4976 = vadd.f32 %v4591, %v4975
  %v4977 = vpop.f32.mrb[0].mxu0
  %4978 = vmatprep.mubr.f32.mxu0 %v1033
  %4979 = vmatmul.mubr.f32.gmra.mrb[0].mxu0 %v1032
  %v4980 = vpop.f32.mrb[0].mxu0
  %v4981 = vadd.f32 %v4596, %v4980
  %v4982 = vpop.f32.mrb[0].mxu0
  %4983 = vmatprep.mubr.f32.mxu0 %v1058
  %4984 = vmatmul.mubr.f32.gmra.mrb[0].mxu0 %v1057
  %v4985 = vpop.f32.mrb[0].mxu0
  %v4986 = vadd.f32 %v4601, %v4985
  %v4987 = vpop.f32.mrb[0].mxu0
  %4988 = vmatprep.mubr.f32.mxu0 %v1083
  %4989 = vmatmul.mubr.f32.gmra.mrb[0].mxu0 %v1082
  %v4990 = vpop.f32.mrb[0].mxu0
  %v4991 = vadd.f32 %v4606, %v4990
  %v4992 = vpop.f32.mrb[0].mxu0
  %4993 = vmatprep.mubr.f32.mxu0 %v1108
  %4994 = vmatmul.mubr.f32.gmra.mrb[0].mxu0 %v1107
  %v4995 = vpop.f32.mrb[0].mxu0
  %v4996 = vadd.f32 %v4611, %v4995
  %v4997 = vpop.f32.mrb[0].mxu0
  %4998 = vmatprep.mubr.f32.mxu0 %v1133
  %4999 = vmatmul.mubr.f32.gmra.mrb[0].mxu0 %v1132
  %v5000 = vpop.f32.mrb[0].mxu0
  %v5001 = vadd.f32 %v4616, %v5000
  %v5002 = vpop.f32.mrb[0].mxu0
  %5003 = vmatprep.mubr.f32.mxu0 %v1158
  %5004 = vmatmul.mubr.f32.gmra.mrb[0].mxu0 %v1157
  %v5005 = vpop.f32.mrb[0].mxu0
  %v5006 = vadd.f32 %v4621, %v5005
  %v5007 = vpop.f32.mrb[0].mxu0
  %5008 = vmatprep.mubr.f32.mxu0 %v1183
  %5009 = vmatmul.mubr.f32.gmra.mrb[0].mxu0 %v1182
  %v5010 = vpop.f32.mrb[0].mxu0
  %v5011 = vadd.f32 %v4626, %v5010
  %v5012 = vpop.f32.mrb[0].mxu0
  %5013 = vmatprep.mubr.f32.mxu0 %v1208
  %5014 = vmatmul.mubr.f32.gmra.mrb[0].mxu0 %v1207
  %v5015 = vpop.f32.mrb[0].mxu0
  %v5016 = vadd.f32 %v4631, %v5015
  %v5017 = vpop.f32.mrb[0].mxu0
  %5018 = vmatprep.mubr.f32.mxu0 %v1233
  %5019 = vmatmul.mubr.f32.gmra.mrb[0].mxu0 %v1232
  %v5020 = vpop.f32.mrb[0].mxu0
  %v5021 = vadd.f32 %v4636, %v5020
  %v5022 = vpop.f32.mrb[0].mxu0
  %5023 = vmatprep.mubr.f32.mxu0 %v1258
  %5024 = vmatmul.mubr.f32.gmra.mrb[0].mxu0 %v1257
  %v5025 = vpop.f32.mrb[0].mxu0
  %v5026 = vadd.f32 %v4641, %v5025
  %v5027 = vpop.f32.mrb[0].mxu0
  %5028 = vmatprep.mubr.f32.mxu0 %v1283
  %5029 = vmatmul.mubr.f32.gmra.mrb[0].mxu0 %v1282
  %v5030 = vpop.f32.mrb[0].mxu0
  %v5031 = vadd.f32 %v4646, %v5030
  %v5032 = vpop.f32.mrb[0].mxu0
  %5033 = vmatprep.mubr.f32.mxu0 %v1308
  %5034 = vmatmul.mubr.f32.gmra.mrb[0].mxu0 %v1307
  %v5035 = vpop.f32.mrb[0].mxu0
  %v5036 = vadd.f32 %v4651, %v5035
  %v5037 = vpop.f32.mrb[0].mxu0
  %5038 = vmatprep.mubr.f32.mxu0 %v1333
  %5039 = vmatmul.mubr.f32.gmra.mrb[0].mxu0 %v1332
  %v5040 = vpop.f32.mrb[0].mxu0
  %v5041 = vadd.f32 %v4656, %v5040
  %v5042 = vpop.f32.mrb[0].mxu0
  %5043 = vmatprep.mubr.f32.mxu0 %v1358
  %5044 = vmatmul.mubr.f32.gmra.mrb[0].mxu0 %v1357
  %v5045 = vpop.f32.mrb[0].mxu0
  %v5046 = vadd.f32 %v4661, %v5045
  %v5047 = vpop.f32.mrb[0].mxu0
  %5048 = vmatprep.mubr.f32.mxu0 %v1383
  %5049 = vmatmul.mubr.f32.gmra.mrb[0].mxu0 %v1382
  %v5050 = vpop.f32.mrb[0].mxu0
  %v5051 = vadd.f32 %v4666, %v5050
  %v5052 = vpop.f32.mrb[0].mxu0
  %5053 = vmatprep.mubr.f32.mxu0 %v1408
  %5054 = vmatmul.mubr.f32.gmra.mrb[0].mxu0 %v1407
  %v5055 = vpop.f32.mrb[0].mxu0
  %v5056 = vadd.f32 %v4671, %v5055
  %v5057 = vpop.f32.mrb[0].mxu0
  %5058 = vmatprep.mubr.f32.mxu0 %v1433
  %5059 = vmatmul.mubr.f32.gmra.mrb[0].mxu0 %v1432
  %v5060 = vpop.f32.mrb[0].mxu0
  %v5061 = vadd.f32 %v4676, %v5060
  %v5062 = vpop.f32.mrb[0].mxu0
  %5063 = vmatprep.mubr.f32.mxu0 %v1458
  %5064 = vmatmul.mubr.f32.gmra.mrb[0].mxu0 %v1457
  %v5065 = vpop.f32.mrb[0].mxu0
  %v5066 = vadd.f32 %v4681, %v5065
  %v5067 = vpop.f32.mrb[0].mxu0
  %5068 = vmatprep.mubr.f32.mxu0 %v1483
  %5069 = vmatmul.mubr.f32.gmra.mrb[0].mxu0 %v1482
  %v5070 = vpop.f32.mrb[0].mxu0
  %v5071 = vadd.f32 %v4686, %v5070
  %v5072 = vpop.f32.mrb[0].mxu0
  %5073 = vmatprep.mubr.f32.mxu0 %v1508
  %5074 = vmatmul.mubr.f32.gmra.mrb[0].mxu0 %v1507
  %v5075 = vpop.f32.mrb[0].mxu0
  %v5076 = vadd.f32 %v4691, %v5075
  %v5077 = vpop.f32.mrb[0].mxu0
  %5078 = vmatprep.mubr.f32.mxu0 %v1533
  %5079 = vmatmul.mubr.f32.gmra.mrb[0].mxu0 %v1532
  %v5080 = vpop.f32.mrb[0].mxu0
  %v5081 = vadd.f32 %v4696, %v5080
  %v5082 = vpop.f32.mrb[0].mxu0
  %5083 = vmatprep.mubr.f32.mxu0 %v1558
  %5084 = vmatmul.mubr.f32.gmra.mrb[0].mxu0 %v1557
  %v5085 = vpop.f32.mrb[0].mxu0
  %v5086 = vadd.f32 %v4701, %v5085
  %v5087 = vpop.f32.mrb[0].mxu0
  %5088 = vmatprep.mubr.f32.mxu0 %v1583
  %5089 = vmatmul.mubr.f32.gmra.mrb[0].mxu0 %v1582
  %v5090 = vpop.f32.mrb[0].mxu0
  %v5091 = vadd.f32 %v4706, %v5090
  %v5092 = vpop.f32.mrb[0].mxu0
  %5093 = vmatprep.mubr.f32.mxu0 %v1608
  %5094 = vmatmul.mubr.f32.gmra.mrb[0].mxu0 %v1607
  %v5095 = vpop.f32.mrb[0].mxu0
  %v5096 = vadd.f32 %v4711, %v5095
  %v5097 = vpop.f32.mrb[0].mxu0
  %5098 = vdwg.mxu0
  %5099 = vmatprep.subr.mxu0 0.0
  %5100 = vmatpush1.msra.mxu0 %v1844
  %5101 = vmatprep.subr.mxu0 0.0
  %5102 = vmatpush1.msra.mxu0 %v1845
  %5103 = vmatprep.subr.mxu0 0.0
  %5104 = vmatpush1.msra.mxu0 %v1846
  %5105 = vmatprep.subr.mxu0 0.0
  %5106 = vmatpush1.msra.mxu0 %v1847
  %5107 = vmatprep.subr.mxu0 0.0
  %5108 = vmatpush1.msra.mxu0 %v1848
  %5109 = vmatprep.subr.mxu0 0.0
  %5110 = vmatpush1.msra.mxu0 %v1849
  %5111 = vmatprep.subr.mxu0 0.0
  %5112 = vmatpush1.msra.mxu0 %v1850
  %5113 = vmatprep.subr.mxu0 0.0
  %5114 = vmatpush1.msra.mxu0 %v1851
  %5115 = vmatprep.subr.mxu0 0.0
  %5116 = vmatpush1.msra.mxu0 %v1852
  %5117 = vmatprep.subr.mxu0 0.0
  %5118 = vmatpush1.msra.mxu0 %v1853
  %5119 = vmatprep.subr.mxu0 0.0
  %5120 = vmatpush1.msra.mxu0 %v1854
  %5121 = vmatprep.subr.mxu0 0.0
  %5122 = vmatpush1.msra.mxu0 %v1855
  %5123 = vmatprep.subr.mxu0 0.0
  %5124 = vmatpush1.msra.mxu0 %v1856
  %5125 = vmatprep.subr.mxu0 0.0
  %5126 = vmatpush1.msra.mxu0 %v1857
  %5127 = vmatprep.subr.mxu0 0.0
  %5128 = vmatpush1.msra.mxu0 %v1858
  %5129 = vmatprep.subr.mxu0 0.0
  %5130 = vmatpush1.msra.mxu0 %v1859
  %5131 = vmatprep.subr.mxu0 0.0
  %5132 = vmatpush1.msra.mxu0 %v1860
  %5133 = vmatprep.subr.mxu0 0.0
  %5134 = vmatpush1.msra.mxu0 %v1861
  %5135 = vmatprep.subr.mxu0 0.0
  %5136 = vmatpush1.msra.mxu0 %v1862
  %5137 = vmatprep.subr.mxu0 0.0
  %5138 = vmatpush1.msra.mxu0 %v1863
  %5139 = vmatprep.subr.mxu0 0.0
  %5140 = vmatpush1.msra.mxu0 %v1864
  %5141 = vmatprep.subr.mxu0 0.0
  %5142 = vmatpush1.msra.mxu0 %v1865
  %5143 = vmatprep.subr.mxu0 0.0
  %5144 = vmatpush1.msra.mxu0 %v1866
  %5145 = vmatprep.subr.mxu0 0.0
  %5146 = vmatpush1.msra.mxu0 %v1867
  %5147 = vmatprep.subr.mxu0 0.0
  %5148 = vmatpush1.msra.mxu0 %v1868
  %5149 = vmatprep.subr.mxu0 0.0
  %5150 = vmatpush1.msra.mxu0 %v1869
  %5151 = vmatprep.subr.mxu0 0.0
  %5152 = vmatpush1.msra.mxu0 %v1870
  %5153 = vmatprep.subr.mxu0 0.0
  %5154 = vmatpush1.msra.mxu0 %v1871
  %5155 = vmatprep.subr.mxu0 0.0
  %5156 = vmatpush1.msra.mxu0 %v1872
  %5157 = vmatprep.subr.mxu0 0.0
  %5158 = vmatpush1.msra.mxu0 %v1873
  %5159 = vmatprep.subr.mxu0 0.0
  %5160 = vmatpush1.msra.mxu0 %v1874
  %5161 = vmatprep.subr.mxu0 0.0
  %5162 = vmatpush1.msra.mxu0 %v1875
  %5163 = vmatprep.mubr.f32.mxu0 %v35
  %5164 = vmatmul.mubr.f32.gmra.mrb[0].mxu0 %v34
  %v5165 = vpop.f32.mrb[0].mxu0
  %v5166 = vadd.f32 %v4781, %v5165
  %v5167 = vpop.f32.mrb[0].mxu0
  %5168 = vmatprep.mubr.f32.mxu0 %v60
  %5169 = vmatmul.mubr.f32.gmra.mrb[0].mxu0 %v59
  %v5170 = vpop.f32.mrb[0].mxu0
  %v5171 = vadd.f32 %v4786, %v5170
  %v5172 = vpop.f32.mrb[0].mxu0
  %5173 = vmatprep.mubr.f32.mxu0 %v85
  %5174 = vmatmul.mubr.f32.gmra.mrb[0].mxu0 %v84
  %v5175 = vpop.f32.mrb[0].mxu0
  %v5176 = vadd.f32 %v4791, %v5175
  %v5177 = vpop.f32.mrb[0].mxu0
  %5178 = vmatprep.mubr.f32.mxu0 %v110
  %5179 = vmatmul.mubr.f32.gmra.mrb[0].mxu0 %v109
  %v5180 = vpop.f32.mrb[0].mxu0
  %v5181 = vadd.f32 %v4796, %v5180
  %v5182 = vpop.f32.mrb[0].mxu0
  %5183 = vmatprep.mubr.f32.mxu0 %v135
  %5184 = vmatmul.mubr.f32.gmra.mrb[0].mxu0 %v134
  %v5185 = vpop.f32.mrb[0].mxu0
  %v5186 = vadd.f32 %v4801, %v5185
  %v5187 = vpop.f32.mrb[0].mxu0
  %5188 = vmatprep.mubr.f32.mxu0 %v160
  %5189 = vmatmul.mubr.f32.gmra.mrb[0].mxu0 %v159
  %v5190 = vpop.f32.mrb[0].mxu0
  %v5191 = vadd.f32 %v4806, %v5190
  %v5192 = vpop.f32.mrb[0].mxu0
  %5193 = vmatprep.mubr.f32.mxu0 %v185
  %5194 = vmatmul.mubr.f32.gmra.mrb[0].mxu0 %v184
  %v5195 = vpop.f32.mrb[0].mxu0
  %v5196 = vadd.f32 %v4811, %v5195
  %v5197 = vpop.f32.mrb[0].mxu0
  %5198 = vmatprep.mubr.f32.mxu0 %v210
  %5199 = vmatmul.mubr.f32.gmra.mrb[0].mxu0 %v209
  %v5200 = vpop.f32.mrb[0].mxu0
  %v5201 = vadd.f32 %v4816, %v5200
  %v5202 = vpop.f32.mrb[0].mxu0
  %5203 = vmatprep.mubr.f32.mxu0 %v235
  %5204 = vmatmul.mubr.f32.gmra.mrb[0].mxu0 %v234
  %v5205 = vpop.f32.mrb[0].mxu0
  %v5206 = vadd.f32 %v4821, %v5205
  %v5207 = vpop.f32.mrb[0].mxu0
  %5208 = vmatprep.mubr.f32.mxu0 %v260
  %5209 = vmatmul.mubr.f32.gmra.mrb[0].mxu0 %v259
  %v5210 = vpop.f32.mrb[0].mxu0
  %v5211 = vadd.f32 %v4826, %v5210
  %v5212 = vpop.f32.mrb[0].mxu0
  %5213 = vmatprep.mubr.f32.mxu0 %v285
  %5214 = vmatmul.mubr.f32.gmra.mrb[0].mxu0 %v284
  %v5215 = vpop.f32.mrb[0].mxu0
  %v5216 = vadd.f32 %v4831, %v5215
  %v5217 = vpop.f32.mrb[0].mxu0
  %5218 = vmatprep.mubr.f32.mxu0 %v310
  %5219 = vmatmul.mubr.f32.gmra.mrb[0].mxu0 %v309
  %v5220 = vpop.f32.mrb[0].mxu0
  %v5221 = vadd.f32 %v4836, %v5220
  %v5222 = vpop.f32.mrb[0].mxu0
  %5223 = vmatprep.mubr.f32.mxu0 %v335
  %5224 = vmatmul.mubr.f32.gmra.mrb[0].mxu0 %v334
  %v5225 = vpop.f32.mrb[0].mxu0
  %v5226 = vadd.f32 %v4841, %v5225
  %v5227 = vpop.f32.mrb[0].mxu0
  %5228 = vmatprep.mubr.f32.mxu0 %v360
  %5229 = vmatmul.mubr.f32.gmra.mrb[0].mxu0 %v359
  %v5230 = vpop.f32.mrb[0].mxu0
  %v5231 = vadd.f32 %v4846, %v5230
  %v5232 = vpop.f32.mrb[0].mxu0
  %5233 = vmatprep.mubr.f32.mxu0 %v385
  %5234 = vmatmul.mubr.f32.gmra.mrb[0].mxu0 %v384
  %v5235 = vpop.f32.mrb[0].mxu0
  %v5236 = vadd.f32 %v4851, %v5235
  %v5237 = vpop.f32.mrb[0].mxu0
  %5238 = vmatprep.mubr.f32.mxu0 %v410
  %5239 = vmatmul.mubr.f32.gmra.mrb[0].mxu0 %v409
  %v5240 = vpop.f32.mrb[0].mxu0
  %v5241 = vadd.f32 %v4856, %v5240
  %v5242 = vpop.f32.mrb[0].mxu0
  %5243 = vmatprep.mubr.f32.mxu0 %v435
  %5244 = vmatmul.mubr.f32.gmra.mrb[0].mxu0 %v434
  %v5245 = vpop.f32.mrb[0].mxu0
  %v5246 = vadd.f32 %v4861, %v5245
  %v5247 = vpop.f32.mrb[0].mxu0
  %5248 = vmatprep.mubr.f32.mxu0 %v460
  %5249 = vmatmul.mubr.f32.gmra.mrb[0].mxu0 %v459
  %v5250 = vpop.f32.mrb[0].mxu0
  %v5251 = vadd.f32 %v4866, %v5250
  %v5252 = vpop.f32.mrb[0].mxu0
  %5253 = vmatprep.mubr.f32.mxu0 %v485
  %5254 = vmatmul.mubr.f32.gmra.mrb[0].mxu0 %v484
  %v5255 = vpop.f32.mrb[0].mxu0
  %v5256 = vadd.f32 %v4871, %v5255
  %v5257 = vpop.f32.mrb[0].mxu0
  %5258 = vmatprep.mubr.f32.mxu0 %v510
  %5259 = vmatmul.mubr.f32.gmra.mrb[0].mxu0 %v509
  %v5260 = vpop.f32.mrb[0].mxu0
  %v5261 = vadd.f32 %v4876, %v5260
  %v5262 = vpop.f32.mrb[0].mxu0
  %5263 = vmatprep.mubr.f32.mxu0 %v535
  %5264 = vmatmul.mubr.f32.gmra.mrb[0].mxu0 %v534
  %v5265 = vpop.f32.mrb[0].mxu0
  %v5266 = vadd.f32 %v4881, %v5265
  %v5267 = vpop.f32.mrb[0].mxu0
  %5268 = vmatprep.mubr.f32.mxu0 %v560
  %5269 = vmatmul.mubr.f32.gmra.mrb[0].mxu0 %v559
  %v5270 = vpop.f32.mrb[0].mxu0
  %v5271 = vadd.f32 %v4886, %v5270
  %v5272 = vpop.f32.mrb[0].mxu0
  %5273 = vmatprep.mubr.f32.mxu0 %v585
  %5274 = vmatmul.mubr.f32.gmra.mrb[0].mxu0 %v584
  %v5275 = vpop.f32.mrb[0].mxu0
  %v5276 = vadd.f32 %v4891, %v5275
  %v5277 = vpop.f32.mrb[0].mxu0
  %5278 = vmatprep.mubr.f32.mxu0 %v610
  %5279 = vmatmul.mubr.f32.gmra.mrb[0].mxu0 %v609
  %v5280 = vpop.f32.mrb[0].mxu0
  %v5281 = vadd.f32 %v4896, %v5280
  %v5282 = vpop.f32.mrb[0].mxu0
  %5283 = vmatprep.mubr.f32.mxu0 %v635
  %5284 = vmatmul.mubr.f32.gmra.mrb[0].mxu0 %v634
  %v5285 = vpop.f32.mrb[0].mxu0
  %v5286 = vadd.f32 %v4901, %v5285
  %v5287 = vpop.f32.mrb[0].mxu0
  %5288 = vmatprep.mubr.f32.mxu0 %v660
  %5289 = vmatmul.mubr.f32.gmra.mrb[0].mxu0 %v659
  %v5290 = vpop.f32.mrb[0].mxu0
  %v5291 = vadd.f32 %v4906, %v5290
  %v5292 = vpop.f32.mrb[0].mxu0
  %5293 = vmatprep.mubr.f32.mxu0 %v685
  %5294 = vmatmul.mubr.f32.gmra.mrb[0].mxu0 %v684
  %v5295 = vpop.f32.mrb[0].mxu0
  %v5296 = vadd.f32 %v4911, %v5295
  %v5297 = vpop.f32.mrb[0].mxu0
  %5298 = vmatprep.mubr.f32.mxu0 %v710
  %5299 = vmatmul.mubr.f32.gmra.mrb[0].mxu0 %v709
  %v5300 = vpop.f32.mrb[0].mxu0
  %v5301 = vadd.f32 %v4916, %v5300
  %v5302 = vpop.f32.mrb[0].mxu0
  %5303 = vmatprep.mubr.f32.mxu0 %v735
  %5304 = vmatmul.mubr.f32.gmra.mrb[0].mxu0 %v734
  %v5305 = vpop.f32.mrb[0].mxu0
  %v5306 = vadd.f32 %v4921, %v5305
  %v5307 = vpop.f32.mrb[0].mxu0
  %5308 = vmatprep.mubr.f32.mxu0 %v760
  %5309 = vmatmul.mubr.f32.gmra.mrb[0].mxu0 %v759
  %v5310 = vpop.f32.mrb[0].mxu0
  %v5311 = vadd.f32 %v4926, %v5310
  %v5312 = vpop.f32.mrb[0].mxu0
  %5313 = vmatprep.mubr.f32.mxu0 %v785
  %5314 = vmatmul.mubr.f32.gmra.mrb[0].mxu0 %v784
  %v5315 = vpop.f32.mrb[0].mxu0
  %v5316 = vadd.f32 %v4931, %v5315
  %v5317 = vpop.f32.mrb[0].mxu0
  %5318 = vmatprep.mubr.f32.mxu0 %v810
  %5319 = vmatmul.mubr.f32.gmra.mrb[0].mxu0 %v809
  %v5320 = vpop.f32.mrb[0].mxu0
  %v5321 = vadd.f32 %v4936, %v5320
  %v5322 = vpop.f32.mrb[0].mxu0
  %5323 = vmatprep.mubr.f32.mxu0 %v835
  %5324 = vmatmul.mubr.f32.gmra.mrb[0].mxu0 %v834
  %v5325 = vpop.f32.mrb[0].mxu0
  %v5326 = vadd.f32 %v4941, %v5325
  %v5327 = vpop.f32.mrb[0].mxu0
  %5328 = vmatprep.mubr.f32.mxu0 %v860
  %5329 = vmatmul.mubr.f32.gmra.mrb[0].mxu0 %v859
  %v5330 = vpop.f32.mrb[0].mxu0
  %v5331 = vadd.f32 %v4946, %v5330
  %v5332 = vpop.f32.mrb[0].mxu0
  %5333 = vmatprep.mubr.f32.mxu0 %v885
  %5334 = vmatmul.mubr.f32.gmra.mrb[0].mxu0 %v884
  %v5335 = vpop.f32.mrb[0].mxu0
  %v5336 = vadd.f32 %v4951, %v5335
  %v5337 = vpop.f32.mrb[0].mxu0
  %5338 = vmatprep.mubr.f32.mxu0 %v910
  %5339 = vmatmul.mubr.f32.gmra.mrb[0].mxu0 %v909
  %v5340 = vpop.f32.mrb[0].mxu0
  %v5341 = vadd.f32 %v4956, %v5340
  %v5342 = vpop.f32.mrb[0].mxu0
  %5343 = vmatprep.mubr.f32.mxu0 %v935
  %5344 = vmatmul.mubr.f32.gmra.mrb[0].mxu0 %v934
  %v5345 = vpop.f32.mrb[0].mxu0
  %v5346 = vadd.f32 %v4961, %v5345
  %v5347 = vpop.f32.mrb[0].mxu0
  %5348 = vmatprep.mubr.f32.mxu0 %v960
  %5349 = vmatmul.mubr.f32.gmra.mrb[0].mxu0 %v959
  %v5350 = vpop.f32.mrb[0].mxu0
  %v5351 = vadd.f32 %v4966, %v5350
  %v5352 = vpop.f32.mrb[0].mxu0
  %5353 = vmatprep.mubr.f32.mxu0 %v985
  %5354 = vmatmul.mubr.f32.gmra.mrb[0].mxu0 %v984
  %v5355 = vpop.f32.mrb[0].mxu0
  %v5356 = vadd.f32 %v4971, %v5355
  %v5357 = vpop.f32.mrb[0].mxu0
  %5358 = vmatprep.mubr.f32.mxu0 %v1010
  %5359 = vmatmul.mubr.f32.gmra.mrb[0].mxu0 %v1009
  %v5360 = vpop.f32.mrb[0].mxu0
  %v5361 = vadd.f32 %v4976, %v5360
  %v5362 = vpop.f32.mrb[0].mxu0
  %5363 = vmatprep.mubr.f32.mxu0 %v1035
  %5364 = vmatmul.mubr.f32.gmra.mrb[0].mxu0 %v1034
  %v5365 = vpop.f32.mrb[0].mxu0
  %v5366 = vadd.f32 %v4981, %v5365
  %v5367 = vpop.f32.mrb[0].mxu0
  %5368 = vmatprep.mubr.f32.mxu0 %v1060
  %5369 = vmatmul.mubr.f32.gmra.mrb[0].mxu0 %v1059
  %v5370 = vpop.f32.mrb[0].mxu0
  %v5371 = vadd.f32 %v4986, %v5370
  %v5372 = vpop.f32.mrb[0].mxu0
  %5373 = vmatprep.mubr.f32.mxu0 %v1085
  %5374 = vmatmul.mubr.f32.gmra.mrb[0].mxu0 %v1084
  %v5375 = vpop.f32.mrb[0].mxu0
  %v5376 = vadd.f32 %v4991, %v5375
  %v5377 = vpop.f32.mrb[0].mxu0
  %5378 = vmatprep.mubr.f32.mxu0 %v1110
  %5379 = vmatmul.mubr.f32.gmra.mrb[0].mxu0 %v1109
  %v5380 = vpop.f32.mrb[0].mxu0
  %v5381 = vadd.f32 %v4996, %v5380
  %v5382 = vpop.f32.mrb[0].mxu0
  %5383 = vmatprep.mubr.f32.mxu0 %v1135
  %5384 = vmatmul.mubr.f32.gmra.mrb[0].mxu0 %v1134
  %v5385 = vpop.f32.mrb[0].mxu0
  %v5386 = vadd.f32 %v5001, %v5385
  %v5387 = vpop.f32.mrb[0].mxu0
  %5388 = vmatprep.mubr.f32.mxu0 %v1160
  %5389 = vmatmul.mubr.f32.gmra.mrb[0].mxu0 %v1159
  %v5390 = vpop.f32.mrb[0].mxu0
  %v5391 = vadd.f32 %v5006, %v5390
  %v5392 = vpop.f32.mrb[0].mxu0
  %5393 = vmatprep.mubr.f32.mxu0 %v1185
  %5394 = vmatmul.mubr.f32.gmra.mrb[0].mxu0 %v1184
  %v5395 = vpop.f32.mrb[0].mxu0
  %v5396 = vadd.f32 %v5011, %v5395
  %v5397 = vpop.f32.mrb[0].mxu0
  %5398 = vmatprep.mubr.f32.mxu0 %v1210
  %5399 = vmatmul.mubr.f32.gmra.mrb[0].mxu0 %v1209
  %v5400 = vpop.f32.mrb[0].mxu0
  %v5401 = vadd.f32 %v5016, %v5400
  %v5402 = vpop.f32.mrb[0].mxu0
  %5403 = vmatprep.mubr.f32.mxu0 %v1235
  %5404 = vmatmul.mubr.f32.gmra.mrb[0].mxu0 %v1234
  %v5405 = vpop.f32.mrb[0].mxu0
  %v5406 = vadd.f32 %v5021, %v5405
  %v5407 = vpop.f32.mrb[0].mxu0
  %5408 = vmatprep.mubr.f32.mxu0 %v1260
  %5409 = vmatmul.mubr.f32.gmra.mrb[0].mxu0 %v1259
  %v5410 = vpop.f32.mrb[0].mxu0
  %v5411 = vadd.f32 %v5026, %v5410
  %v5412 = vpop.f32.mrb[0].mxu0
  %5413 = vmatprep.mubr.f32.mxu0 %v1285
  %5414 = vmatmul.mubr.f32.gmra.mrb[0].mxu0 %v1284
  %v5415 = vpop.f32.mrb[0].mxu0
  %v5416 = vadd.f32 %v5031, %v5415
  %v5417 = vpop.f32.mrb[0].mxu0
  %5418 = vmatprep.mubr.f32.mxu0 %v1310
  %5419 = vmatmul.mubr.f32.gmra.mrb[0].mxu0 %v1309
  %v5420 = vpop.f32.mrb[0].mxu0
  %v5421 = vadd.f32 %v5036, %v5420
  %v5422 = vpop.f32.mrb[0].mxu0
  %5423 = vmatprep.mubr.f32.mxu0 %v1335
  %5424 = vmatmul.mubr.f32.gmra.mrb[0].mxu0 %v1334
  %v5425 = vpop.f32.mrb[0].mxu0
  %v5426 = vadd.f32 %v5041, %v5425
  %v5427 = vpop.f32.mrb[0].mxu0
  %5428 = vmatprep.mubr.f32.mxu0 %v1360
  %5429 = vmatmul.mubr.f32.gmra.mrb[0].mxu0 %v1359
  %v5430 = vpop.f32.mrb[0].mxu0
  %v5431 = vadd.f32 %v5046, %v5430
  %v5432 = vpop.f32.mrb[0].mxu0
  %5433 = vmatprep.mubr.f32.mxu0 %v1385
  %5434 = vmatmul.mubr.f32.gmra.mrb[0].mxu0 %v1384
  %v5435 = vpop.f32.mrb[0].mxu0
  %v5436 = vadd.f32 %v5051, %v5435
  %v5437 = vpop.f32.mrb[0].mxu0
  %5438 = vmatprep.mubr.f32.mxu0 %v1410
  %5439 = vmatmul.mubr.f32.gmra.mrb[0].mxu0 %v1409
  %v5440 = vpop.f32.mrb[0].mxu0
  %v5441 = vadd.f32 %v5056, %v5440
  %v5442 = vpop.f32.mrb[0].mxu0
  %5443 = vmatprep.mubr.f32.mxu0 %v1435
  %5444 = vmatmul.mubr.f32.gmra.mrb[0].mxu0 %v1434
  %v5445 = vpop.f32.mrb[0].mxu0
  %v5446 = vadd.f32 %v5061, %v5445
  %v5447 = vpop.f32.mrb[0].mxu0
  %5448 = vmatprep.mubr.f32.mxu0 %v1460
  %5449 = vmatmul.mubr.f32.gmra.mrb[0].mxu0 %v1459
  %v5450 = vpop.f32.mrb[0].mxu0
  %v5451 = vadd.f32 %v5066, %v5450
  %v5452 = vpop.f32.mrb[0].mxu0
  %5453 = vmatprep.mubr.f32.mxu0 %v1485
  %5454 = vmatmul.mubr.f32.gmra.mrb[0].mxu0 %v1484
  %v5455 = vpop.f32.mrb[0].mxu0
  %v5456 = vadd.f32 %v5071, %v5455
  %v5457 = vpop.f32.mrb[0].mxu0
  %5458 = vmatprep.mubr.f32.mxu0 %v1510
  %5459 = vmatmul.mubr.f32.gmra.mrb[0].mxu0 %v1509
  %v5460 = vpop.f32.mrb[0].mxu0
  %v5461 = vadd.f32 %v5076, %v5460
  %v5462 = vpop.f32.mrb[0].mxu0
  %5463 = vmatprep.mubr.f32.mxu0 %v1535
  %5464 = vmatmul.mubr.f32.gmra.mrb[0].mxu0 %v1534
  %v5465 = vpop.f32.mrb[0].mxu0
  %v5466 = vadd.f32 %v5081, %v5465
  %v5467 = vpop.f32.mrb[0].mxu0
  %5468 = vmatprep.mubr.f32.mxu0 %v1560
  %5469 = vmatmul.mubr.f32.gmra.mrb[0].mxu0 %v1559
  %v5470 = vpop.f32.mrb[0].mxu0
  %v5471 = vadd.f32 %v5086, %v5470
  %v5472 = vpop.f32.mrb[0].mxu0
  %5473 = vmatprep.mubr.f32.mxu0 %v1585
  %5474 = vmatmul.mubr.f32.gmra.mrb[0].mxu0 %v1584
  %v5475 = vpop.f32.mrb[0].mxu0
  %v5476 = vadd.f32 %v5091, %v5475
  %v5477 = vpop.f32.mrb[0].mxu0
  %5478 = vmatprep.mubr.f32.mxu0 %v1610
  %5479 = vmatmul.mubr.f32.gmra.mrb[0].mxu0 %v1609
  %v5480 = vpop.f32.mrb[0].mxu0
  %v5481 = vadd.f32 %v5096, %v5480
  %v5482 = vpop.f32.mrb[0].mxu0
  %5483 = vdwg.mxu0
  %5484 = vmatprep.subr.mxu0 0.0
  %5485 = vmatpush1.msra.mxu0 %v1876
  %5486 = vmatprep.subr.mxu0 0.0
  %5487 = vmatpush1.msra.mxu0 %v1877
  %5488 = vmatprep.subr.mxu0 0.0
  %5489 = vmatpush1.msra.mxu0 %v1878
  %5490 = vmatprep.subr.mxu0 0.0
  %5491 = vmatpush1.msra.mxu0 %v1879
  %5492 = vmatprep.subr.mxu0 0.0
  %5493 = vmatpush1.msra.mxu0 %v1880
  %5494 = vmatprep.subr.mxu0 0.0
  %5495 = vmatpush1.msra.mxu0 %v1881
  %5496 = vmatprep.subr.mxu0 0.0
  %5497 = vmatpush1.msra.mxu0 %v1882
  %5498 = vmatprep.subr.mxu0 0.0
  %5499 = vmatpush1.msra.mxu0 %v1883
  %5500 = vmatprep.subr.mxu0 0.0
  %5501 = vmatpush1.msra.mxu0 %v1884
  %5502 = vmatprep.subr.mxu0 0.0
  %5503 = vmatpush1.msra.mxu0 %v1885
  %5504 = vmatprep.subr.mxu0 0.0
  %5505 = vmatpush1.msra.mxu0 %v1886
  %5506 = vmatprep.subr.mxu0 0.0
  %5507 = vmatpush1.msra.mxu0 %v1887
  %5508 = vmatprep.subr.mxu0 0.0
  %5509 = vmatpush1.msra.mxu0 %v1888
  %5510 = vmatprep.subr.mxu0 0.0
  %5511 = vmatpush1.msra.mxu0 %v1889
  %5512 = vmatprep.subr.mxu0 0.0
  %5513 = vmatpush1.msra.mxu0 %v1890
  %5514 = vmatprep.subr.mxu0 0.0
  %5515 = vmatpush1.msra.mxu0 %v1891
  %5516 = vmatprep.subr.mxu0 0.0
  %5517 = vmatpush1.msra.mxu0 %v1892
  %5518 = vmatprep.subr.mxu0 0.0
  %5519 = vmatpush1.msra.mxu0 %v1893
  %5520 = vmatprep.subr.mxu0 0.0
  %5521 = vmatpush1.msra.mxu0 %v1894
  %5522 = vmatprep.subr.mxu0 0.0
  %5523 = vmatpush1.msra.mxu0 %v1895
  %5524 = vmatprep.subr.mxu0 0.0
  %5525 = vmatpush1.msra.mxu0 %v1896
  %5526 = vmatprep.subr.mxu0 0.0
  %5527 = vmatpush1.msra.mxu0 %v1897
  %5528 = vmatprep.subr.mxu0 0.0
  %5529 = vmatpush1.msra.mxu0 %v1898
  %5530 = vmatprep.subr.mxu0 0.0
  %5531 = vmatpush1.msra.mxu0 %v1899
  %5532 = vmatprep.subr.mxu0 0.0
  %5533 = vmatpush1.msra.mxu0 %v1900
  %5534 = vmatprep.subr.mxu0 0.0
  %5535 = vmatpush1.msra.mxu0 %v1901
  %5536 = vmatprep.subr.mxu0 0.0
  %5537 = vmatpush1.msra.mxu0 %v1902
  %5538 = vmatprep.subr.mxu0 0.0
  %5539 = vmatpush1.msra.mxu0 %v1903
  %5540 = vmatprep.subr.mxu0 0.0
  %5541 = vmatpush1.msra.mxu0 %v1904
  %5542 = vmatprep.subr.mxu0 0.0
  %5543 = vmatpush1.msra.mxu0 %v1905
  %5544 = vmatprep.subr.mxu0 0.0
  %5545 = vmatpush1.msra.mxu0 %v1906
  %5546 = vmatprep.subr.mxu0 0.0
  %5547 = vmatpush1.msra.mxu0 %v1907
  %5548 = vmatprep.mubr.f32.mxu0 %v37
  %5549 = vmatmul.mubr.f32.gmra.mrb[0].mxu0 %v36
  %v5550 = vpop.f32.mrb[0].mxu0
  %v5551 = vadd.f32 %v5166, %v5550
  %v5552 = vpop.f32.mrb[0].mxu0
  %5553 = vmatprep.mubr.f32.mxu0 %v62
  %5554 = vmatmul.mubr.f32.gmra.mrb[0].mxu0 %v61
  %v5555 = vpop.f32.mrb[0].mxu0
  %v5556 = vadd.f32 %v5171, %v5555
  %v5557 = vpop.f32.mrb[0].mxu0
  %5558 = vmatprep.mubr.f32.mxu0 %v87
  %5559 = vmatmul.mubr.f32.gmra.mrb[0].mxu0 %v86
  %v5560 = vpop.f32.mrb[0].mxu0
  %v5561 = vadd.f32 %v5176, %v5560
  %v5562 = vpop.f32.mrb[0].mxu0
  %5563 = vmatprep.mubr.f32.mxu0 %v112
  %5564 = vmatmul.mubr.f32.gmra.mrb[0].mxu0 %v111
  %v5565 = vpop.f32.mrb[0].mxu0
  %v5566 = vadd.f32 %v5181, %v5565
  %v5567 = vpop.f32.mrb[0].mxu0
  %5568 = vmatprep.mubr.f32.mxu0 %v137
  %5569 = vmatmul.mubr.f32.gmra.mrb[0].mxu0 %v136
  %v5570 = vpop.f32.mrb[0].mxu0
  %v5571 = vadd.f32 %v5186, %v5570
  %v5572 = vpop.f32.mrb[0].mxu0
  %5573 = vmatprep.mubr.f32.mxu0 %v162
  %5574 = vmatmul.mubr.f32.gmra.mrb[0].mxu0 %v161
  %v5575 = vpop.f32.mrb[0].mxu0
  %v5576 = vadd.f32 %v5191, %v5575
  %v5577 = vpop.f32.mrb[0].mxu0
  %5578 = vmatprep.mubr.f32.mxu0 %v187
  %5579 = vmatmul.mubr.f32.gmra.mrb[0].mxu0 %v186
  %v5580 = vpop.f32.mrb[0].mxu0
  %v5581 = vadd.f32 %v5196, %v5580
  %v5582 = vpop.f32.mrb[0].mxu0
  %5583 = vmatprep.mubr.f32.mxu0 %v212
  %5584 = vmatmul.mubr.f32.gmra.mrb[0].mxu0 %v211
  %v5585 = vpop.f32.mrb[0].mxu0
  %v5586 = vadd.f32 %v5201, %v5585
  %v5587 = vpop.f32.mrb[0].mxu0
  %5588 = vmatprep.mubr.f32.mxu0 %v237
  %5589 = vmatmul.mubr.f32.gmra.mrb[0].mxu0 %v236
  %v5590 = vpop.f32.mrb[0].mxu0
  %v5591 = vadd.f32 %v5206, %v5590
  %v5592 = vpop.f32.mrb[0].mxu0
  %5593 = vmatprep.mubr.f32.mxu0 %v262
  %5594 = vmatmul.mubr.f32.gmra.mrb[0].mxu0 %v261
  %v5595 = vpop.f32.mrb[0].mxu0
  %v5596 = vadd.f32 %v5211, %v5595
  %v5597 = vpop.f32.mrb[0].mxu0
  %5598 = vmatprep.mubr.f32.mxu0 %v287
  %5599 = vmatmul.mubr.f32.gmra.mrb[0].mxu0 %v286
  %v5600 = vpop.f32.mrb[0].mxu0
  %v5601 = vadd.f32 %v5216, %v5600
  %v5602 = vpop.f32.mrb[0].mxu0
  %5603 = vmatprep.mubr.f32.mxu0 %v312
  %5604 = vmatmul.mubr.f32.gmra.mrb[0].mxu0 %v311
  %v5605 = vpop.f32.mrb[0].mxu0
  %v5606 = vadd.f32 %v5221, %v5605
  %v5607 = vpop.f32.mrb[0].mxu0
  %5608 = vmatprep.mubr.f32.mxu0 %v337
  %5609 = vmatmul.mubr.f32.gmra.mrb[0].mxu0 %v336
  %v5610 = vpop.f32.mrb[0].mxu0
  %v5611 = vadd.f32 %v5226, %v5610
  %v5612 = vpop.f32.mrb[0].mxu0
  %5613 = vmatprep.mubr.f32.mxu0 %v362
  %5614 = vmatmul.mubr.f32.gmra.mrb[0].mxu0 %v361
  %v5615 = vpop.f32.mrb[0].mxu0
  %v5616 = vadd.f32 %v5231, %v5615
  %v5617 = vpop.f32.mrb[0].mxu0
  %5618 = vmatprep.mubr.f32.mxu0 %v387
  %5619 = vmatmul.mubr.f32.gmra.mrb[0].mxu0 %v386
  %v5620 = vpop.f32.mrb[0].mxu0
  %v5621 = vadd.f32 %v5236, %v5620
  %v5622 = vpop.f32.mrb[0].mxu0
  %5623 = vmatprep.mubr.f32.mxu0 %v412
  %5624 = vmatmul.mubr.f32.gmra.mrb[0].mxu0 %v411
  %v5625 = vpop.f32.mrb[0].mxu0
  %v5626 = vadd.f32 %v5241, %v5625
  %v5627 = vpop.f32.mrb[0].mxu0
  %5628 = vmatprep.mubr.f32.mxu0 %v437
  %5629 = vmatmul.mubr.f32.gmra.mrb[0].mxu0 %v436
  %v5630 = vpop.f32.mrb[0].mxu0
  %v5631 = vadd.f32 %v5246, %v5630
  %v5632 = vpop.f32.mrb[0].mxu0
  %5633 = vmatprep.mubr.f32.mxu0 %v462
  %5634 = vmatmul.mubr.f32.gmra.mrb[0].mxu0 %v461
  %v5635 = vpop.f32.mrb[0].mxu0
  %v5636 = vadd.f32 %v5251, %v5635
  %v5637 = vpop.f32.mrb[0].mxu0
  %5638 = vmatprep.mubr.f32.mxu0 %v487
  %5639 = vmatmul.mubr.f32.gmra.mrb[0].mxu0 %v486
  %v5640 = vpop.f32.mrb[0].mxu0
  %v5641 = vadd.f32 %v5256, %v5640
  %v5642 = vpop.f32.mrb[0].mxu0
  %5643 = vmatprep.mubr.f32.mxu0 %v512
  %5644 = vmatmul.mubr.f32.gmra.mrb[0].mxu0 %v511
  %v5645 = vpop.f32.mrb[0].mxu0
  %v5646 = vadd.f32 %v5261, %v5645
  %v5647 = vpop.f32.mrb[0].mxu0
  %5648 = vmatprep.mubr.f32.mxu0 %v537
  %5649 = vmatmul.mubr.f32.gmra.mrb[0].mxu0 %v536
  %v5650 = vpop.f32.mrb[0].mxu0
  %v5651 = vadd.f32 %v5266, %v5650
  %v5652 = vpop.f32.mrb[0].mxu0
  %5653 = vmatprep.mubr.f32.mxu0 %v562
  %5654 = vmatmul.mubr.f32.gmra.mrb[0].mxu0 %v561
  %v5655 = vpop.f32.mrb[0].mxu0
  %v5656 = vadd.f32 %v5271, %v5655
  %v5657 = vpop.f32.mrb[0].mxu0
  %5658 = vmatprep.mubr.f32.mxu0 %v587
  %5659 = vmatmul.mubr.f32.gmra.mrb[0].mxu0 %v586
  %v5660 = vpop.f32.mrb[0].mxu0
  %v5661 = vadd.f32 %v5276, %v5660
  %v5662 = vpop.f32.mrb[0].mxu0
  %5663 = vmatprep.mubr.f32.mxu0 %v612
  %5664 = vmatmul.mubr.f32.gmra.mrb[0].mxu0 %v611
  %v5665 = vpop.f32.mrb[0].mxu0
  %v5666 = vadd.f32 %v5281, %v5665
  %v5667 = vpop.f32.mrb[0].mxu0
  %5668 = vmatprep.mubr.f32.mxu0 %v637
  %5669 = vmatmul.mubr.f32.gmra.mrb[0].mxu0 %v636
  %v5670 = vpop.f32.mrb[0].mxu0
  %v5671 = vadd.f32 %v5286, %v5670
  %v5672 = vpop.f32.mrb[0].mxu0
  %5673 = vmatprep.mubr.f32.mxu0 %v662
  %5674 = vmatmul.mubr.f32.gmra.mrb[0].mxu0 %v661
  %v5675 = vpop.f32.mrb[0].mxu0
  %v5676 = vadd.f32 %v5291, %v5675
  %v5677 = vpop.f32.mrb[0].mxu0
  %5678 = vmatprep.mubr.f32.mxu0 %v687
  %5679 = vmatmul.mubr.f32.gmra.mrb[0].mxu0 %v686
  %v5680 = vpop.f32.mrb[0].mxu0
  %v5681 = vadd.f32 %v5296, %v5680
  %v5682 = vpop.f32.mrb[0].mxu0
  %5683 = vmatprep.mubr.f32.mxu0 %v712
  %5684 = vmatmul.mubr.f32.gmra.mrb[0].mxu0 %v711
  %v5685 = vpop.f32.mrb[0].mxu0
  %v5686 = vadd.f32 %v5301, %v5685
  %v5687 = vpop.f32.mrb[0].mxu0
  %5688 = vmatprep.mubr.f32.mxu0 %v737
  %5689 = vmatmul.mubr.f32.gmra.mrb[0].mxu0 %v736
  %v5690 = vpop.f32.mrb[0].mxu0
  %v5691 = vadd.f32 %v5306, %v5690
  %v5692 = vpop.f32.mrb[0].mxu0
  %5693 = vmatprep.mubr.f32.mxu0 %v762
  %5694 = vmatmul.mubr.f32.gmra.mrb[0].mxu0 %v761
  %v5695 = vpop.f32.mrb[0].mxu0
  %v5696 = vadd.f32 %v5311, %v5695
  %v5697 = vpop.f32.mrb[0].mxu0
  %5698 = vmatprep.mubr.f32.mxu0 %v787
  %5699 = vmatmul.mubr.f32.gmra.mrb[0].mxu0 %v786
  %v5700 = vpop.f32.mrb[0].mxu0
  %v5701 = vadd.f32 %v5316, %v5700
  %v5702 = vpop.f32.mrb[0].mxu0
  %5703 = vmatprep.mubr.f32.mxu0 %v812
  %5704 = vmatmul.mubr.f32.gmra.mrb[0].mxu0 %v811
  %v5705 = vpop.f32.mrb[0].mxu0
  %v5706 = vadd.f32 %v5321, %v5705
  %v5707 = vpop.f32.mrb[0].mxu0
  %5708 = vmatprep.mubr.f32.mxu0 %v837
  %5709 = vmatmul.mubr.f32.gmra.mrb[0].mxu0 %v836
  %v5710 = vpop.f32.mrb[0].mxu0
  %v5711 = vadd.f32 %v5326, %v5710
  %v5712 = vpop.f32.mrb[0].mxu0
  %5713 = vmatprep.mubr.f32.mxu0 %v862
  %5714 = vmatmul.mubr.f32.gmra.mrb[0].mxu0 %v861
  %v5715 = vpop.f32.mrb[0].mxu0
  %v5716 = vadd.f32 %v5331, %v5715
  %v5717 = vpop.f32.mrb[0].mxu0
  %5718 = vmatprep.mubr.f32.mxu0 %v887
  %5719 = vmatmul.mubr.f32.gmra.mrb[0].mxu0 %v886
  %v5720 = vpop.f32.mrb[0].mxu0
  %v5721 = vadd.f32 %v5336, %v5720
  %v5722 = vpop.f32.mrb[0].mxu0
  %5723 = vmatprep.mubr.f32.mxu0 %v912
  %5724 = vmatmul.mubr.f32.gmra.mrb[0].mxu0 %v911
  %v5725 = vpop.f32.mrb[0].mxu0
  %v5726 = vadd.f32 %v5341, %v5725
  %v5727 = vpop.f32.mrb[0].mxu0
  %5728 = vmatprep.mubr.f32.mxu0 %v937
  %5729 = vmatmul.mubr.f32.gmra.mrb[0].mxu0 %v936
  %v5730 = vpop.f32.mrb[0].mxu0
  %v5731 = vadd.f32 %v5346, %v5730
  %v5732 = vpop.f32.mrb[0].mxu0
  %5733 = vmatprep.mubr.f32.mxu0 %v962
  %5734 = vmatmul.mubr.f32.gmra.mrb[0].mxu0 %v961
  %v5735 = vpop.f32.mrb[0].mxu0
  %v5736 = vadd.f32 %v5351, %v5735
  %v5737 = vpop.f32.mrb[0].mxu0
  %5738 = vmatprep.mubr.f32.mxu0 %v987
  %5739 = vmatmul.mubr.f32.gmra.mrb[0].mxu0 %v986
  %v5740 = vpop.f32.mrb[0].mxu0
  %v5741 = vadd.f32 %v5356, %v5740
  %v5742 = vpop.f32.mrb[0].mxu0
  %5743 = vmatprep.mubr.f32.mxu0 %v1012
  %5744 = vmatmul.mubr.f32.gmra.mrb[0].mxu0 %v1011
  %v5745 = vpop.f32.mrb[0].mxu0
  %v5746 = vadd.f32 %v5361, %v5745
  %v5747 = vpop.f32.mrb[0].mxu0
  %5748 = vmatprep.mubr.f32.mxu0 %v1037
  %5749 = vmatmul.mubr.f32.gmra.mrb[0].mxu0 %v1036
  %v5750 = vpop.f32.mrb[0].mxu0
  %v5751 = vadd.f32 %v5366, %v5750
  %v5752 = vpop.f32.mrb[0].mxu0
  %5753 = vmatprep.mubr.f32.mxu0 %v1062
  %5754 = vmatmul.mubr.f32.gmra.mrb[0].mxu0 %v1061
  %v5755 = vpop.f32.mrb[0].mxu0
  %v5756 = vadd.f32 %v5371, %v5755
  %v5757 = vpop.f32.mrb[0].mxu0
  %5758 = vmatprep.mubr.f32.mxu0 %v1087
  %5759 = vmatmul.mubr.f32.gmra.mrb[0].mxu0 %v1086
  %v5760 = vpop.f32.mrb[0].mxu0
  %v5761 = vadd.f32 %v5376, %v5760
  %v5762 = vpop.f32.mrb[0].mxu0
  %5763 = vmatprep.mubr.f32.mxu0 %v1112
  %5764 = vmatmul.mubr.f32.gmra.mrb[0].mxu0 %v1111
  %v5765 = vpop.f32.mrb[0].mxu0
  %v5766 = vadd.f32 %v5381, %v5765
  %v5767 = vpop.f32.mrb[0].mxu0
  %5768 = vmatprep.mubr.f32.mxu0 %v1137
  %5769 = vmatmul.mubr.f32.gmra.mrb[0].mxu0 %v1136
  %v5770 = vpop.f32.mrb[0].mxu0
  %v5771 = vadd.f32 %v5386, %v5770
  %v5772 = vpop.f32.mrb[0].mxu0
  %5773 = vmatprep.mubr.f32.mxu0 %v1162
  %5774 = vmatmul.mubr.f32.gmra.mrb[0].mxu0 %v1161
  %v5775 = vpop.f32.mrb[0].mxu0
  %v5776 = vadd.f32 %v5391, %v5775
  %v5777 = vpop.f32.mrb[0].mxu0
  %5778 = vmatprep.mubr.f32.mxu0 %v1187
  %5779 = vmatmul.mubr.f32.gmra.mrb[0].mxu0 %v1186
  %v5780 = vpop.f32.mrb[0].mxu0
  %v5781 = vadd.f32 %v5396, %v5780
  %v5782 = vpop.f32.mrb[0].mxu0
  %5783 = vmatprep.mubr.f32.mxu0 %v1212
  %5784 = vmatmul.mubr.f32.gmra.mrb[0].mxu0 %v1211
  %v5785 = vpop.f32.mrb[0].mxu0
  %v5786 = vadd.f32 %v5401, %v5785
  %v5787 = vpop.f32.mrb[0].mxu0
  %5788 = vmatprep.mubr.f32.mxu0 %v1237
  %5789 = vmatmul.mubr.f32.gmra.mrb[0].mxu0 %v1236
  %v5790 = vpop.f32.mrb[0].mxu0
  %v5791 = vadd.f32 %v5406, %v5790
  %v5792 = vpop.f32.mrb[0].mxu0
  %5793 = vmatprep.mubr.f32.mxu0 %v1262
  %5794 = vmatmul.mubr.f32.gmra.mrb[0].mxu0 %v1261
  %v5795 = vpop.f32.mrb[0].mxu0
  %v5796 = vadd.f32 %v5411, %v5795
  %v5797 = vpop.f32.mrb[0].mxu0
  %5798 = vmatprep.mubr.f32.mxu0 %v1287
  %5799 = vmatmul.mubr.f32.gmra.mrb[0].mxu0 %v1286
  %v5800 = vpop.f32.mrb[0].mxu0
  %v5801 = vadd.f32 %v5416, %v5800
  %v5802 = vpop.f32.mrb[0].mxu0
  %5803 = vmatprep.mubr.f32.mxu0 %v1312
  %5804 = vmatmul.mubr.f32.gmra.mrb[0].mxu0 %v1311
  %v5805 = vpop.f32.mrb[0].mxu0
  %v5806 = vadd.f32 %v5421, %v5805
  %v5807 = vpop.f32.mrb[0].mxu0
  %5808 = vmatprep.mubr.f32.mxu0 %v1337
  %5809 = vmatmul.mubr.f32.gmra.mrb[0].mxu0 %v1336
  %v5810 = vpop.f32.mrb[0].mxu0
  %v5811 = vadd.f32 %v5426, %v5810
  %v5812 = vpop.f32.mrb[0].mxu0
  %5813 = vmatprep.mubr.f32.mxu0 %v1362
  %5814 = vmatmul.mubr.f32.gmra.mrb[0].mxu0 %v1361
  %v5815 = vpop.f32.mrb[0].mxu0
  %v5816 = vadd.f32 %v5431, %v5815
  %v5817 = vpop.f32.mrb[0].mxu0
  %5818 = vmatprep.mubr.f32.mxu0 %v1387
  %5819 = vmatmul.mubr.f32.gmra.mrb[0].mxu0 %v1386
  %v5820 = vpop.f32.mrb[0].mxu0
  %v5821 = vadd.f32 %v5436, %v5820
  %v5822 = vpop.f32.mrb[0].mxu0
  %5823 = vmatprep.mubr.f32.mxu0 %v1412
  %5824 = vmatmul.mubr.f32.gmra.mrb[0].mxu0 %v1411
  %v5825 = vpop.f32.mrb[0].mxu0
  %v5826 = vadd.f32 %v5441, %v5825
  %v5827 = vpop.f32.mrb[0].mxu0
  %5828 = vmatprep.mubr.f32.mxu0 %v1437
  %5829 = vmatmul.mubr.f32.gmra.mrb[0].mxu0 %v1436
  %v5830 = vpop.f32.mrb[0].mxu0
  %v5831 = vadd.f32 %v5446, %v5830
  %v5832 = vpop.f32.mrb[0].mxu0
  %5833 = vmatprep.mubr.f32.mxu0 %v1462
  %5834 = vmatmul.mubr.f32.gmra.mrb[0].mxu0 %v1461
  %v5835 = vpop.f32.mrb[0].mxu0
  %v5836 = vadd.f32 %v5451, %v5835
  %v5837 = vpop.f32.mrb[0].mxu0
  %5838 = vmatprep.mubr.f32.mxu0 %v1487
  %5839 = vmatmul.mubr.f32.gmra.mrb[0].mxu0 %v1486
  %v5840 = vpop.f32.mrb[0].mxu0
  %v5841 = vadd.f32 %v5456, %v5840
  %v5842 = vpop.f32.mrb[0].mxu0
  %5843 = vmatprep.mubr.f32.mxu0 %v1512
  %5844 = vmatmul.mubr.f32.gmra.mrb[0].mxu0 %v1511
  %v5845 = vpop.f32.mrb[0].mxu0
  %v5846 = vadd.f32 %v5461, %v5845
  %v5847 = vpop.f32.mrb[0].mxu0
  %5848 = vmatprep.mubr.f32.mxu0 %v1537
  %5849 = vmatmul.mubr.f32.gmra.mrb[0].mxu0 %v1536
  %v5850 = vpop.f32.mrb[0].mxu0
  %v5851 = vadd.f32 %v5466, %v5850
  %v5852 = vpop.f32.mrb[0].mxu0
  %5853 = vmatprep.mubr.f32.mxu0 %v1562
  %5854 = vmatmul.mubr.f32.gmra.mrb[0].mxu0 %v1561
  %v5855 = vpop.f32.mrb[0].mxu0
  %v5856 = vadd.f32 %v5471, %v5855
  %v5857 = vpop.f32.mrb[0].mxu0
  %5858 = vmatprep.mubr.f32.mxu0 %v1587
  %5859 = vmatmul.mubr.f32.gmra.mrb[0].mxu0 %v1586
  %v5860 = vpop.f32.mrb[0].mxu0
  %v5861 = vadd.f32 %v5476, %v5860
  %v5862 = vpop.f32.mrb[0].mxu0
  %5863 = vmatprep.mubr.f32.mxu0 %v1612
  %5864 = vmatmul.mubr.f32.gmra.mrb[0].mxu0 %v1611
  %v5865 = vpop.f32.mrb[0].mxu0
  %v5866 = vadd.f32 %v5481, %v5865
  %v5867 = vpop.f32.mrb[0].mxu0
  %5868 = vdwg.mxu0
  %5869 = vmatprep.subr.mxu0 0.0
  %5870 = vmatpush1.msra.mxu0 %v1908
  %5871 = vmatprep.subr.mxu0 0.0
  %5872 = vmatpush1.msra.mxu0 %v1909
  %5873 = vmatprep.subr.mxu0 0.0
  %5874 = vmatpush1.msra.mxu0 %v1910
  %5875 = vmatprep.subr.mxu0 0.0
  %5876 = vmatpush1.msra.mxu0 %v1911
  %5877 = vmatprep.subr.mxu0 0.0
  %5878 = vmatpush1.msra.mxu0 %v1912
  %5879 = vmatprep.subr.mxu0 0.0
  %5880 = vmatpush1.msra.mxu0 %v1913
  %5881 = vmatprep.subr.mxu0 0.0
  %5882 = vmatpush1.msra.mxu0 %v1914
  %5883 = vmatprep.subr.mxu0 0.0
  %5884 = vmatpush1.msra.mxu0 %v1915
  %5885 = vmatprep.subr.mxu0 0.0
  %5886 = vmatpush1.msra.mxu0 %v1916
  %5887 = vmatprep.subr.mxu0 0.0
  %5888 = vmatpush1.msra.mxu0 %v1917
  %5889 = vmatprep.subr.mxu0 0.0
  %5890 = vmatpush1.msra.mxu0 %v1918
  %5891 = vmatprep.subr.mxu0 0.0
  %5892 = vmatpush1.msra.mxu0 %v1919
  %5893 = vmatprep.subr.mxu0 0.0
  %5894 = vmatpush1.msra.mxu0 %v1920
  %5895 = vmatprep.subr.mxu0 0.0
  %5896 = vmatpush1.msra.mxu0 %v1921
  %5897 = vmatprep.subr.mxu0 0.0
  %5898 = vmatpush1.msra.mxu0 %v1922
  %5899 = vmatprep.subr.mxu0 0.0
  %5900 = vmatpush1.msra.mxu0 %v1923
  %5901 = vmatprep.subr.mxu0 0.0
  %5902 = vmatpush1.msra.mxu0 %v1924
  %5903 = vmatprep.subr.mxu0 0.0
  %5904 = vmatpush1.msra.mxu0 %v1925
  %5905 = vmatprep.subr.mxu0 0.0
  %5906 = vmatpush1.msra.mxu0 %v1926
  %5907 = vmatprep.subr.mxu0 0.0
  %5908 = vmatpush1.msra.mxu0 %v1927
  %5909 = vmatprep.subr.mxu0 0.0
  %5910 = vmatpush1.msra.mxu0 %v1928
  %5911 = vmatprep.subr.mxu0 0.0
  %5912 = vmatpush1.msra.mxu0 %v1929
  %5913 = vmatprep.subr.mxu0 0.0
  %5914 = vmatpush1.msra.mxu0 %v1930
  %5915 = vmatprep.subr.mxu0 0.0
  %5916 = vmatpush1.msra.mxu0 %v1931
  %5917 = vmatprep.subr.mxu0 0.0
  %5918 = vmatpush1.msra.mxu0 %v1932
  %5919 = vmatprep.subr.mxu0 0.0
  %5920 = vmatpush1.msra.mxu0 %v1933
  %5921 = vmatprep.subr.mxu0 0.0
  %5922 = vmatpush1.msra.mxu0 %v1934
  %5923 = vmatprep.subr.mxu0 0.0
  %5924 = vmatpush1.msra.mxu0 %v1935
  %5925 = vmatprep.subr.mxu0 0.0
  %5926 = vmatpush1.msra.mxu0 %v1936
  %5927 = vmatprep.subr.mxu0 0.0
  %5928 = vmatpush1.msra.mxu0 %v1937
  %5929 = vmatprep.subr.mxu0 0.0
  %5930 = vmatpush1.msra.mxu0 %v1938
  %5931 = vmatprep.subr.mxu0 0.0
  %5932 = vmatpush1.msra.mxu0 %v1939
  %5933 = vmatprep.mubr.f32.mxu0 %v39
  %5934 = vmatmul.mubr.f32.gmra.mrb[0].mxu0 %v38
  %v5935 = vpop.f32.mrb[0].mxu0
  %v5936 = vadd.f32 %v5551, %v5935
  %v5937 = vpop.f32.mrb[0].mxu0
  %5938 = vmatprep.mubr.f32.mxu0 %v64
  %5939 = vmatmul.mubr.f32.gmra.mrb[0].mxu0 %v63
  %v5940 = vpop.f32.mrb[0].mxu0
  %v5941 = vadd.f32 %v5556, %v5940
  %v5942 = vpop.f32.mrb[0].mxu0
  %5943 = vmatprep.mubr.f32.mxu0 %v89
  %5944 = vmatmul.mubr.f32.gmra.mrb[0].mxu0 %v88
  %v5945 = vpop.f32.mrb[0].mxu0
  %v5946 = vadd.f32 %v5561, %v5945
  %v5947 = vpop.f32.mrb[0].mxu0
  %5948 = vmatprep.mubr.f32.mxu0 %v114
  %5949 = vmatmul.mubr.f32.gmra.mrb[0].mxu0 %v113
  %v5950 = vpop.f32.mrb[0].mxu0
  %v5951 = vadd.f32 %v5566, %v5950
  %v5952 = vpop.f32.mrb[0].mxu0
  %5953 = vmatprep.mubr.f32.mxu0 %v139
  %5954 = vmatmul.mubr.f32.gmra.mrb[0].mxu0 %v138
  %v5955 = vpop.f32.mrb[0].mxu0
  %v5956 = vadd.f32 %v5571, %v5955
  %v5957 = vpop.f32.mrb[0].mxu0
  %5958 = vmatprep.mubr.f32.mxu0 %v164
  %5959 = vmatmul.mubr.f32.gmra.mrb[0].mxu0 %v163
  %v5960 = vpop.f32.mrb[0].mxu0
  %v5961 = vadd.f32 %v5576, %v5960
  %v5962 = vpop.f32.mrb[0].mxu0
  %5963 = vmatprep.mubr.f32.mxu0 %v189
  %5964 = vmatmul.mubr.f32.gmra.mrb[0].mxu0 %v188
  %v5965 = vpop.f32.mrb[0].mxu0
  %v5966 = vadd.f32 %v5581, %v5965
  %v5967 = vpop.f32.mrb[0].mxu0
  %5968 = vmatprep.mubr.f32.mxu0 %v214
  %5969 = vmatmul.mubr.f32.gmra.mrb[0].mxu0 %v213
  %v5970 = vpop.f32.mrb[0].mxu0
  %v5971 = vadd.f32 %v5586, %v5970
  %v5972 = vpop.f32.mrb[0].mxu0
  %5973 = vmatprep.mubr.f32.mxu0 %v239
  %5974 = vmatmul.mubr.f32.gmra.mrb[0].mxu0 %v238
  %v5975 = vpop.f32.mrb[0].mxu0
  %v5976 = vadd.f32 %v5591, %v5975
  %v5977 = vpop.f32.mrb[0].mxu0
  %5978 = vmatprep.mubr.f32.mxu0 %v264
  %5979 = vmatmul.mubr.f32.gmra.mrb[0].mxu0 %v263
  %v5980 = vpop.f32.mrb[0].mxu0
  %v5981 = vadd.f32 %v5596, %v5980
  %v5982 = vpop.f32.mrb[0].mxu0
  %5983 = vmatprep.mubr.f32.mxu0 %v289
  %5984 = vmatmul.mubr.f32.gmra.mrb[0].mxu0 %v288
  %v5985 = vpop.f32.mrb[0].mxu0
  %v5986 = vadd.f32 %v5601, %v5985
  %v5987 = vpop.f32.mrb[0].mxu0
  %5988 = vmatprep.mubr.f32.mxu0 %v314
  %5989 = vmatmul.mubr.f32.gmra.mrb[0].mxu0 %v313
  %v5990 = vpop.f32.mrb[0].mxu0
  %v5991 = vadd.f32 %v5606, %v5990
  %v5992 = vpop.f32.mrb[0].mxu0
  %5993 = vmatprep.mubr.f32.mxu0 %v339
  %5994 = vmatmul.mubr.f32.gmra.mrb[0].mxu0 %v338
  %v5995 = vpop.f32.mrb[0].mxu0
  %v5996 = vadd.f32 %v5611, %v5995
  %v5997 = vpop.f32.mrb[0].mxu0
  %5998 = vmatprep.mubr.f32.mxu0 %v364
  %5999 = vmatmul.mubr.f32.gmra.mrb[0].mxu0 %v363
  %v6000 = vpop.f32.mrb[0].mxu0
  %v6001 = vadd.f32 %v5616, %v6000
  %v6002 = vpop.f32.mrb[0].mxu0
  %6003 = vmatprep.mubr.f32.mxu0 %v389
  %6004 = vmatmul.mubr.f32.gmra.mrb[0].mxu0 %v388
  %v6005 = vpop.f32.mrb[0].mxu0
  %v6006 = vadd.f32 %v5621, %v6005
  %v6007 = vpop.f32.mrb[0].mxu0
  %6008 = vmatprep.mubr.f32.mxu0 %v414
  %6009 = vmatmul.mubr.f32.gmra.mrb[0].mxu0 %v413
  %v6010 = vpop.f32.mrb[0].mxu0
  %v6011 = vadd.f32 %v5626, %v6010
  %v6012 = vpop.f32.mrb[0].mxu0
  %6013 = vmatprep.mubr.f32.mxu0 %v439
  %6014 = vmatmul.mubr.f32.gmra.mrb[0].mxu0 %v438
  %v6015 = vpop.f32.mrb[0].mxu0
  %v6016 = vadd.f32 %v5631, %v6015
  %v6017 = vpop.f32.mrb[0].mxu0
  %6018 = vmatprep.mubr.f32.mxu0 %v464
  %6019 = vmatmul.mubr.f32.gmra.mrb[0].mxu0 %v463
  %v6020 = vpop.f32.mrb[0].mxu0
  %v6021 = vadd.f32 %v5636, %v6020
  %v6022 = vpop.f32.mrb[0].mxu0
  %6023 = vmatprep.mubr.f32.mxu0 %v489
  %6024 = vmatmul.mubr.f32.gmra.mrb[0].mxu0 %v488
  %v6025 = vpop.f32.mrb[0].mxu0
  %v6026 = vadd.f32 %v5641, %v6025
  %v6027 = vpop.f32.mrb[0].mxu0
  %6028 = vmatprep.mubr.f32.mxu0 %v514
  %6029 = vmatmul.mubr.f32.gmra.mrb[0].mxu0 %v513
  %v6030 = vpop.f32.mrb[0].mxu0
  %v6031 = vadd.f32 %v5646, %v6030
  %v6032 = vpop.f32.mrb[0].mxu0
  %6033 = vmatprep.mubr.f32.mxu0 %v539
  %6034 = vmatmul.mubr.f32.gmra.mrb[0].mxu0 %v538
  %v6035 = vpop.f32.mrb[0].mxu0
  %v6036 = vadd.f32 %v5651, %v6035
  %v6037 = vpop.f32.mrb[0].mxu0
  %6038 = vmatprep.mubr.f32.mxu0 %v564
  %6039 = vmatmul.mubr.f32.gmra.mrb[0].mxu0 %v563
  %v6040 = vpop.f32.mrb[0].mxu0
  %v6041 = vadd.f32 %v5656, %v6040
  %v6042 = vpop.f32.mrb[0].mxu0
  %6043 = vmatprep.mubr.f32.mxu0 %v589
  %6044 = vmatmul.mubr.f32.gmra.mrb[0].mxu0 %v588
  %v6045 = vpop.f32.mrb[0].mxu0
  %v6046 = vadd.f32 %v5661, %v6045
  %v6047 = vpop.f32.mrb[0].mxu0
  %6048 = vmatprep.mubr.f32.mxu0 %v614
  %6049 = vmatmul.mubr.f32.gmra.mrb[0].mxu0 %v613
  %v6050 = vpop.f32.mrb[0].mxu0
  %v6051 = vadd.f32 %v5666, %v6050
  %v6052 = vpop.f32.mrb[0].mxu0
  %6053 = vmatprep.mubr.f32.mxu0 %v639
  %6054 = vmatmul.mubr.f32.gmra.mrb[0].mxu0 %v638
  %v6055 = vpop.f32.mrb[0].mxu0
  %v6056 = vadd.f32 %v5671, %v6055
  %v6057 = vpop.f32.mrb[0].mxu0
  %6058 = vmatprep.mubr.f32.mxu0 %v664
  %6059 = vmatmul.mubr.f32.gmra.mrb[0].mxu0 %v663
  %v6060 = vpop.f32.mrb[0].mxu0
  %v6061 = vadd.f32 %v5676, %v6060
  %v6062 = vpop.f32.mrb[0].mxu0
  %6063 = vmatprep.mubr.f32.mxu0 %v689
  %6064 = vmatmul.mubr.f32.gmra.mrb[0].mxu0 %v688
  %v6065 = vpop.f32.mrb[0].mxu0
  %v6066 = vadd.f32 %v5681, %v6065
  %v6067 = vpop.f32.mrb[0].mxu0
  %6068 = vmatprep.mubr.f32.mxu0 %v714
  %6069 = vmatmul.mubr.f32.gmra.mrb[0].mxu0 %v713
  %v6070 = vpop.f32.mrb[0].mxu0
  %v6071 = vadd.f32 %v5686, %v6070
  %v6072 = vpop.f32.mrb[0].mxu0
  %6073 = vmatprep.mubr.f32.mxu0 %v739
  %6074 = vmatmul.mubr.f32.gmra.mrb[0].mxu0 %v738
  %v6075 = vpop.f32.mrb[0].mxu0
  %v6076 = vadd.f32 %v5691, %v6075
  %v6077 = vpop.f32.mrb[0].mxu0
  %6078 = vmatprep.mubr.f32.mxu0 %v764
  %6079 = vmatmul.mubr.f32.gmra.mrb[0].mxu0 %v763
  %v6080 = vpop.f32.mrb[0].mxu0
  %v6081 = vadd.f32 %v5696, %v6080
  %v6082 = vpop.f32.mrb[0].mxu0
  %6083 = vmatprep.mubr.f32.mxu0 %v789
  %6084 = vmatmul.mubr.f32.gmra.mrb[0].mxu0 %v788
  %v6085 = vpop.f32.mrb[0].mxu0
  %v6086 = vadd.f32 %v5701, %v6085
  %v6087 = vpop.f32.mrb[0].mxu0
  %6088 = vmatprep.mubr.f32.mxu0 %v814
  %6089 = vmatmul.mubr.f32.gmra.mrb[0].mxu0 %v813
  %v6090 = vpop.f32.mrb[0].mxu0
  %v6091 = vadd.f32 %v5706, %v6090
  %v6092 = vpop.f32.mrb[0].mxu0
  %6093 = vmatprep.mubr.f32.mxu0 %v839
  %6094 = vmatmul.mubr.f32.gmra.mrb[0].mxu0 %v838
  %v6095 = vpop.f32.mrb[0].mxu0
  %v6096 = vadd.f32 %v5711, %v6095
  %v6097 = vpop.f32.mrb[0].mxu0
  %6098 = vmatprep.mubr.f32.mxu0 %v864
  %6099 = vmatmul.mubr.f32.gmra.mrb[0].mxu0 %v863
  %v6100 = vpop.f32.mrb[0].mxu0
  %v6101 = vadd.f32 %v5716, %v6100
  %v6102 = vpop.f32.mrb[0].mxu0
  %6103 = vmatprep.mubr.f32.mxu0 %v889
  %6104 = vmatmul.mubr.f32.gmra.mrb[0].mxu0 %v888
  %v6105 = vpop.f32.mrb[0].mxu0
  %v6106 = vadd.f32 %v5721, %v6105
  %v6107 = vpop.f32.mrb[0].mxu0
  %6108 = vmatprep.mubr.f32.mxu0 %v914
  %6109 = vmatmul.mubr.f32.gmra.mrb[0].mxu0 %v913
  %v6110 = vpop.f32.mrb[0].mxu0
  %v6111 = vadd.f32 %v5726, %v6110
  %v6112 = vpop.f32.mrb[0].mxu0
  %6113 = vmatprep.mubr.f32.mxu0 %v939
  %6114 = vmatmul.mubr.f32.gmra.mrb[0].mxu0 %v938
  %v6115 = vpop.f32.mrb[0].mxu0
  %v6116 = vadd.f32 %v5731, %v6115
  %v6117 = vpop.f32.mrb[0].mxu0
  %6118 = vmatprep.mubr.f32.mxu0 %v964
  %6119 = vmatmul.mubr.f32.gmra.mrb[0].mxu0 %v963
  %v6120 = vpop.f32.mrb[0].mxu0
  %v6121 = vadd.f32 %v5736, %v6120
  %v6122 = vpop.f32.mrb[0].mxu0
  %6123 = vmatprep.mubr.f32.mxu0 %v989
  %6124 = vmatmul.mubr.f32.gmra.mrb[0].mxu0 %v988
  %v6125 = vpop.f32.mrb[0].mxu0
  %v6126 = vadd.f32 %v5741, %v6125
  %v6127 = vpop.f32.mrb[0].mxu0
  %6128 = vmatprep.mubr.f32.mxu0 %v1014
  %6129 = vmatmul.mubr.f32.gmra.mrb[0].mxu0 %v1013
  %v6130 = vpop.f32.mrb[0].mxu0
  %v6131 = vadd.f32 %v5746, %v6130
  %v6132 = vpop.f32.mrb[0].mxu0
  %6133 = vmatprep.mubr.f32.mxu0 %v1039
  %6134 = vmatmul.mubr.f32.gmra.mrb[0].mxu0 %v1038
  %v6135 = vpop.f32.mrb[0].mxu0
  %v6136 = vadd.f32 %v5751, %v6135
  %v6137 = vpop.f32.mrb[0].mxu0
  %6138 = vmatprep.mubr.f32.mxu0 %v1064
  %6139 = vmatmul.mubr.f32.gmra.mrb[0].mxu0 %v1063
  %v6140 = vpop.f32.mrb[0].mxu0
  %v6141 = vadd.f32 %v5756, %v6140
  %v6142 = vpop.f32.mrb[0].mxu0
  %6143 = vmatprep.mubr.f32.mxu0 %v1089
  %6144 = vmatmul.mubr.f32.gmra.mrb[0].mxu0 %v1088
  %v6145 = vpop.f32.mrb[0].mxu0
  %v6146 = vadd.f32 %v5761, %v6145
  %v6147 = vpop.f32.mrb[0].mxu0
  %6148 = vmatprep.mubr.f32.mxu0 %v1114
  %6149 = vmatmul.mubr.f32.gmra.mrb[0].mxu0 %v1113
  %v6150 = vpop.f32.mrb[0].mxu0
  %v6151 = vadd.f32 %v5766, %v6150
  %v6152 = vpop.f32.mrb[0].mxu0
  %6153 = vmatprep.mubr.f32.mxu0 %v1139
  %6154 = vmatmul.mubr.f32.gmra.mrb[0].mxu0 %v1138
  %v6155 = vpop.f32.mrb[0].mxu0
  %v6156 = vadd.f32 %v5771, %v6155
  %v6157 = vpop.f32.mrb[0].mxu0
  %6158 = vmatprep.mubr.f32.mxu0 %v1164
  %6159 = vmatmul.mubr.f32.gmra.mrb[0].mxu0 %v1163
  %v6160 = vpop.f32.mrb[0].mxu0
  %v6161 = vadd.f32 %v5776, %v6160
  %v6162 = vpop.f32.mrb[0].mxu0
  %6163 = vmatprep.mubr.f32.mxu0 %v1189
  %6164 = vmatmul.mubr.f32.gmra.mrb[0].mxu0 %v1188
  %v6165 = vpop.f32.mrb[0].mxu0
  %v6166 = vadd.f32 %v5781, %v6165
  %v6167 = vpop.f32.mrb[0].mxu0
  %6168 = vmatprep.mubr.f32.mxu0 %v1214
  %6169 = vmatmul.mubr.f32.gmra.mrb[0].mxu0 %v1213
  %v6170 = vpop.f32.mrb[0].mxu0
  %v6171 = vadd.f32 %v5786, %v6170
  %v6172 = vpop.f32.mrb[0].mxu0
  %6173 = vmatprep.mubr.f32.mxu0 %v1239
  %6174 = vmatmul.mubr.f32.gmra.mrb[0].mxu0 %v1238
  %v6175 = vpop.f32.mrb[0].mxu0
  %v6176 = vadd.f32 %v5791, %v6175
  %v6177 = vpop.f32.mrb[0].mxu0
  %6178 = vmatprep.mubr.f32.mxu0 %v1264
  %6179 = vmatmul.mubr.f32.gmra.mrb[0].mxu0 %v1263
  %v6180 = vpop.f32.mrb[0].mxu0
  %v6181 = vadd.f32 %v5796, %v6180
  %v6182 = vpop.f32.mrb[0].mxu0
  %6183 = vmatprep.mubr.f32.mxu0 %v1289
  %6184 = vmatmul.mubr.f32.gmra.mrb[0].mxu0 %v1288
  %v6185 = vpop.f32.mrb[0].mxu0
  %v6186 = vadd.f32 %v5801, %v6185
  %v6187 = vpop.f32.mrb[0].mxu0
  %6188 = vmatprep.mubr.f32.mxu0 %v1314
  %6189 = vmatmul.mubr.f32.gmra.mrb[0].mxu0 %v1313
  %v6190 = vpop.f32.mrb[0].mxu0
  %v6191 = vadd.f32 %v5806, %v6190
  %v6192 = vpop.f32.mrb[0].mxu0
  %6193 = vmatprep.mubr.f32.mxu0 %v1339
  %6194 = vmatmul.mubr.f32.gmra.mrb[0].mxu0 %v1338
  %v6195 = vpop.f32.mrb[0].mxu0
  %v6196 = vadd.f32 %v5811, %v6195
  %v6197 = vpop.f32.mrb[0].mxu0
  %6198 = vmatprep.mubr.f32.mxu0 %v1364
  %6199 = vmatmul.mubr.f32.gmra.mrb[0].mxu0 %v1363
  %v6200 = vpop.f32.mrb[0].mxu0
  %v6201 = vadd.f32 %v5816, %v6200
  %v6202 = vpop.f32.mrb[0].mxu0
  %6203 = vmatprep.mubr.f32.mxu0 %v1389
  %6204 = vmatmul.mubr.f32.gmra.mrb[0].mxu0 %v1388
  %v6205 = vpop.f32.mrb[0].mxu0
  %v6206 = vadd.f32 %v5821, %v6205
  %v6207 = vpop.f32.mrb[0].mxu0
  %6208 = vmatprep.mubr.f32.mxu0 %v1414
  %6209 = vmatmul.mubr.f32.gmra.mrb[0].mxu0 %v1413
  %v6210 = vpop.f32.mrb[0].mxu0
  %v6211 = vadd.f32 %v5826, %v6210
  %v6212 = vpop.f32.mrb[0].mxu0
  %6213 = vmatprep.mubr.f32.mxu0 %v1439
  %6214 = vmatmul.mubr.f32.gmra.mrb[0].mxu0 %v1438
  %v6215 = vpop.f32.mrb[0].mxu0
  %v6216 = vadd.f32 %v5831, %v6215
  %v6217 = vpop.f32.mrb[0].mxu0
  %6218 = vmatprep.mubr.f32.mxu0 %v1464
  %6219 = vmatmul.mubr.f32.gmra.mrb[0].mxu0 %v1463
  %v6220 = vpop.f32.mrb[0].mxu0
  %v6221 = vadd.f32 %v5836, %v6220
  %v6222 = vpop.f32.mrb[0].mxu0
  %6223 = vmatprep.mubr.f32.mxu0 %v1489
  %6224 = vmatmul.mubr.f32.gmra.mrb[0].mxu0 %v1488
  %v6225 = vpop.f32.mrb[0].mxu0
  %v6226 = vadd.f32 %v5841, %v6225
  %v6227 = vpop.f32.mrb[0].mxu0
  %6228 = vmatprep.mubr.f32.mxu0 %v1514
  %6229 = vmatmul.mubr.f32.gmra.mrb[0].mxu0 %v1513
  %v6230 = vpop.f32.mrb[0].mxu0
  %v6231 = vadd.f32 %v5846, %v6230
  %v6232 = vpop.f32.mrb[0].mxu0
  %6233 = vmatprep.mubr.f32.mxu0 %v1539
  %6234 = vmatmul.mubr.f32.gmra.mrb[0].mxu0 %v1538
  %v6235 = vpop.f32.mrb[0].mxu0
  %v6236 = vadd.f32 %v5851, %v6235
  %v6237 = vpop.f32.mrb[0].mxu0
  %6238 = vmatprep.mubr.f32.mxu0 %v1564
  %6239 = vmatmul.mubr.f32.gmra.mrb[0].mxu0 %v1563
  %v6240 = vpop.f32.mrb[0].mxu0
  %v6241 = vadd.f32 %v5856, %v6240
  %v6242 = vpop.f32.mrb[0].mxu0
  %6243 = vmatprep.mubr.f32.mxu0 %v1589
  %6244 = vmatmul.mubr.f32.gmra.mrb[0].mxu0 %v1588
  %v6245 = vpop.f32.mrb[0].mxu0
  %v6246 = vadd.f32 %v5861, %v6245
  %v6247 = vpop.f32.mrb[0].mxu0
  %6248 = vmatprep.mubr.f32.mxu0 %v1614
  %6249 = vmatmul.mubr.f32.gmra.mrb[0].mxu0 %v1613
  %v6250 = vpop.f32.mrb[0].mxu0
  %v6251 = vadd.f32 %v5866, %v6250
  %v6252 = vpop.f32.mrb[0].mxu0
  %6253 = vdwg.mxu0
  %6254 = vmatprep.subr.mxu0 0.0
  %6255 = vmatpush1.msra.mxu0 %v1940
  %6256 = vmatprep.subr.mxu0 0.0
  %6257 = vmatpush1.msra.mxu0 %v1941
  %6258 = vmatprep.subr.mxu0 0.0
  %6259 = vmatpush1.msra.mxu0 %v1942
  %6260 = vmatprep.subr.mxu0 0.0
  %6261 = vmatpush1.msra.mxu0 %v1943
  %6262 = vmatprep.subr.mxu0 0.0
  %6263 = vmatpush1.msra.mxu0 %v1944
  %6264 = vmatprep.subr.mxu0 0.0
  %6265 = vmatpush1.msra.mxu0 %v1945
  %6266 = vmatprep.subr.mxu0 0.0
  %6267 = vmatpush1.msra.mxu0 %v1946
  %6268 = vmatprep.subr.mxu0 0.0
  %6269 = vmatpush1.msra.mxu0 %v1947
  %6270 = vmatprep.subr.mxu0 0.0
  %6271 = vmatpush1.msra.mxu0 %v1948
  %6272 = vmatprep.subr.mxu0 0.0
  %6273 = vmatpush1.msra.mxu0 %v1949
  %6274 = vmatprep.subr.mxu0 0.0
  %6275 = vmatpush1.msra.mxu0 %v1950
  %6276 = vmatprep.subr.mxu0 0.0
  %6277 = vmatpush1.msra.mxu0 %v1951
  %6278 = vmatprep.subr.mxu0 0.0
  %6279 = vmatpush1.msra.mxu0 %v1952
  %6280 = vmatprep.subr.mxu0 0.0
  %6281 = vmatpush1.msra.mxu0 %v1953
  %6282 = vmatprep.subr.mxu0 0.0
  %6283 = vmatpush1.msra.mxu0 %v1954
  %6284 = vmatprep.subr.mxu0 0.0
  %6285 = vmatpush1.msra.mxu0 %v1955
  %6286 = vmatprep.subr.mxu0 0.0
  %6287 = vmatpush1.msra.mxu0 %v1956
  %6288 = vmatprep.subr.mxu0 0.0
  %6289 = vmatpush1.msra.mxu0 %v1957
  %6290 = vmatprep.subr.mxu0 0.0
  %6291 = vmatpush1.msra.mxu0 %v1958
  %6292 = vmatprep.subr.mxu0 0.0
  %6293 = vmatpush1.msra.mxu0 %v1959
  %6294 = vmatprep.subr.mxu0 0.0
  %6295 = vmatpush1.msra.mxu0 %v1960
  %6296 = vmatprep.subr.mxu0 0.0
  %6297 = vmatpush1.msra.mxu0 %v1961
  %6298 = vmatprep.subr.mxu0 0.0
  %6299 = vmatpush1.msra.mxu0 %v1962
  %6300 = vmatprep.subr.mxu0 0.0
  %6301 = vmatpush1.msra.mxu0 %v1963
  %6302 = vmatprep.subr.mxu0 0.0
  %6303 = vmatpush1.msra.mxu0 %v1964
  %6304 = vmatprep.subr.mxu0 0.0
  %6305 = vmatpush1.msra.mxu0 %v1965
  %6306 = vmatprep.subr.mxu0 0.0
  %6307 = vmatpush1.msra.mxu0 %v1966
  %6308 = vmatprep.subr.mxu0 0.0
  %6309 = vmatpush1.msra.mxu0 %v1967
  %6310 = vmatprep.subr.mxu0 0.0
  %6311 = vmatpush1.msra.mxu0 %v1968
  %6312 = vmatprep.subr.mxu0 0.0
  %6313 = vmatpush1.msra.mxu0 %v1969
  %6314 = vmatprep.subr.mxu0 0.0
  %6315 = vmatpush1.msra.mxu0 %v1970
  %6316 = vmatprep.subr.mxu0 0.0
  %6317 = vmatpush1.msra.mxu0 %v1971
  %6318 = vmatprep.mubr.f32.mxu0 %v41
  %6319 = vmatmul.mubr.f32.gmra.mrb[0].mxu0 %v40
  %v6320 = vpop.f32.mrb[0].mxu0
  %v6321 = vadd.f32 %v5936, %v6320
  %v6322 = vpop.f32.mrb[0].mxu0
  %6323 = vmatprep.mubr.f32.mxu0 %v66
  %6324 = vmatmul.mubr.f32.gmra.mrb[0].mxu0 %v65
  %v6325 = vpop.f32.mrb[0].mxu0
  %v6326 = vadd.f32 %v5941, %v6325
  %v6327 = vpop.f32.mrb[0].mxu0
  %6328 = vmatprep.mubr.f32.mxu0 %v91
  %6329 = vmatmul.mubr.f32.gmra.mrb[0].mxu0 %v90
  %v6330 = vpop.f32.mrb[0].mxu0
  %v6331 = vadd.f32 %v5946, %v6330
  %v6332 = vpop.f32.mrb[0].mxu0
  %6333 = vmatprep.mubr.f32.mxu0 %v116
  %6334 = vmatmul.mubr.f32.gmra.mrb[0].mxu0 %v115
  %v6335 = vpop.f32.mrb[0].mxu0
  %v6336 = vadd.f32 %v5951, %v6335
  %v6337 = vpop.f32.mrb[0].mxu0
  %6338 = vmatprep.mubr.f32.mxu0 %v141
  %6339 = vmatmul.mubr.f32.gmra.mrb[0].mxu0 %v140
  %v6340 = vpop.f32.mrb[0].mxu0
  %v6341 = vadd.f32 %v5956, %v6340
  %v6342 = vpop.f32.mrb[0].mxu0
  %6343 = vmatprep.mubr.f32.mxu0 %v166
  %6344 = vmatmul.mubr.f32.gmra.mrb[0].mxu0 %v165
  %v6345 = vpop.f32.mrb[0].mxu0
  %v6346 = vadd.f32 %v5961, %v6345
  %v6347 = vpop.f32.mrb[0].mxu0
  %6348 = vmatprep.mubr.f32.mxu0 %v191
  %6349 = vmatmul.mubr.f32.gmra.mrb[0].mxu0 %v190
  %v6350 = vpop.f32.mrb[0].mxu0
  %v6351 = vadd.f32 %v5966, %v6350
  %v6352 = vpop.f32.mrb[0].mxu0
  %6353 = vmatprep.mubr.f32.mxu0 %v216
  %6354 = vmatmul.mubr.f32.gmra.mrb[0].mxu0 %v215
  %v6355 = vpop.f32.mrb[0].mxu0
  %v6356 = vadd.f32 %v5971, %v6355
  %v6357 = vpop.f32.mrb[0].mxu0
  %6358 = vmatprep.mubr.f32.mxu0 %v241
  %6359 = vmatmul.mubr.f32.gmra.mrb[0].mxu0 %v240
  %v6360 = vpop.f32.mrb[0].mxu0
  %v6361 = vadd.f32 %v5976, %v6360
  %v6362 = vpop.f32.mrb[0].mxu0
  %6363 = vmatprep.mubr.f32.mxu0 %v266
  %6364 = vmatmul.mubr.f32.gmra.mrb[0].mxu0 %v265
  %v6365 = vpop.f32.mrb[0].mxu0
  %v6366 = vadd.f32 %v5981, %v6365
  %v6367 = vpop.f32.mrb[0].mxu0
  %6368 = vmatprep.mubr.f32.mxu0 %v291
  %6369 = vmatmul.mubr.f32.gmra.mrb[0].mxu0 %v290
  %v6370 = vpop.f32.mrb[0].mxu0
  %v6371 = vadd.f32 %v5986, %v6370
  %v6372 = vpop.f32.mrb[0].mxu0
  %6373 = vmatprep.mubr.f32.mxu0 %v316
  %6374 = vmatmul.mubr.f32.gmra.mrb[0].mxu0 %v315
  %v6375 = vpop.f32.mrb[0].mxu0
  %v6376 = vadd.f32 %v5991, %v6375
  %v6377 = vpop.f32.mrb[0].mxu0
  %6378 = vmatprep.mubr.f32.mxu0 %v341
  %6379 = vmatmul.mubr.f32.gmra.mrb[0].mxu0 %v340
  %v6380 = vpop.f32.mrb[0].mxu0
  %v6381 = vadd.f32 %v5996, %v6380
  %v6382 = vpop.f32.mrb[0].mxu0
  %6383 = vmatprep.mubr.f32.mxu0 %v366
  %6384 = vmatmul.mubr.f32.gmra.mrb[0].mxu0 %v365
  %v6385 = vpop.f32.mrb[0].mxu0
  %v6386 = vadd.f32 %v6001, %v6385
  %v6387 = vpop.f32.mrb[0].mxu0
  %6388 = vmatprep.mubr.f32.mxu0 %v391
  %6389 = vmatmul.mubr.f32.gmra.mrb[0].mxu0 %v390
  %v6390 = vpop.f32.mrb[0].mxu0
  %v6391 = vadd.f32 %v6006, %v6390
  %v6392 = vpop.f32.mrb[0].mxu0
  %6393 = vmatprep.mubr.f32.mxu0 %v416
  %6394 = vmatmul.mubr.f32.gmra.mrb[0].mxu0 %v415
  %v6395 = vpop.f32.mrb[0].mxu0
  %v6396 = vadd.f32 %v6011, %v6395
  %v6397 = vpop.f32.mrb[0].mxu0
  %6398 = vmatprep.mubr.f32.mxu0 %v441
  %6399 = vmatmul.mubr.f32.gmra.mrb[0].mxu0 %v440
  %v6400 = vpop.f32.mrb[0].mxu0
  %v6401 = vadd.f32 %v6016, %v6400
  %v6402 = vpop.f32.mrb[0].mxu0
  %6403 = vmatprep.mubr.f32.mxu0 %v466
  %6404 = vmatmul.mubr.f32.gmra.mrb[0].mxu0 %v465
  %v6405 = vpop.f32.mrb[0].mxu0
  %v6406 = vadd.f32 %v6021, %v6405
  %v6407 = vpop.f32.mrb[0].mxu0
  %6408 = vmatprep.mubr.f32.mxu0 %v491
  %6409 = vmatmul.mubr.f32.gmra.mrb[0].mxu0 %v490
  %v6410 = vpop.f32.mrb[0].mxu0
  %v6411 = vadd.f32 %v6026, %v6410
  %v6412 = vpop.f32.mrb[0].mxu0
  %6413 = vmatprep.mubr.f32.mxu0 %v516
  %6414 = vmatmul.mubr.f32.gmra.mrb[0].mxu0 %v515
  %v6415 = vpop.f32.mrb[0].mxu0
  %v6416 = vadd.f32 %v6031, %v6415
  %v6417 = vpop.f32.mrb[0].mxu0
  %6418 = vmatprep.mubr.f32.mxu0 %v541
  %6419 = vmatmul.mubr.f32.gmra.mrb[0].mxu0 %v540
  %v6420 = vpop.f32.mrb[0].mxu0
  %v6421 = vadd.f32 %v6036, %v6420
  %v6422 = vpop.f32.mrb[0].mxu0
  %6423 = vmatprep.mubr.f32.mxu0 %v566
  %6424 = vmatmul.mubr.f32.gmra.mrb[0].mxu0 %v565
  %v6425 = vpop.f32.mrb[0].mxu0
  %v6426 = vadd.f32 %v6041, %v6425
  %v6427 = vpop.f32.mrb[0].mxu0
  %6428 = vmatprep.mubr.f32.mxu0 %v591
  %6429 = vmatmul.mubr.f32.gmra.mrb[0].mxu0 %v590
  %v6430 = vpop.f32.mrb[0].mxu0
  %v6431 = vadd.f32 %v6046, %v6430
  %v6432 = vpop.f32.mrb[0].mxu0
  %6433 = vmatprep.mubr.f32.mxu0 %v616
  %6434 = vmatmul.mubr.f32.gmra.mrb[0].mxu0 %v615
  %v6435 = vpop.f32.mrb[0].mxu0
  %v6436 = vadd.f32 %v6051, %v6435
  %v6437 = vpop.f32.mrb[0].mxu0
  %6438 = vmatprep.mubr.f32.mxu0 %v641
  %6439 = vmatmul.mubr.f32.gmra.mrb[0].mxu0 %v640
  %v6440 = vpop.f32.mrb[0].mxu0
  %v6441 = vadd.f32 %v6056, %v6440
  %v6442 = vpop.f32.mrb[0].mxu0
  %6443 = vmatprep.mubr.f32.mxu0 %v666
  %6444 = vmatmul.mubr.f32.gmra.mrb[0].mxu0 %v665
  %v6445 = vpop.f32.mrb[0].mxu0
  %v6446 = vadd.f32 %v6061, %v6445
  %v6447 = vpop.f32.mrb[0].mxu0
  %6448 = vmatprep.mubr.f32.mxu0 %v691
  %6449 = vmatmul.mubr.f32.gmra.mrb[0].mxu0 %v690
  %v6450 = vpop.f32.mrb[0].mxu0
  %v6451 = vadd.f32 %v6066, %v6450
  %v6452 = vpop.f32.mrb[0].mxu0
  %6453 = vmatprep.mubr.f32.mxu0 %v716
  %6454 = vmatmul.mubr.f32.gmra.mrb[0].mxu0 %v715
  %v6455 = vpop.f32.mrb[0].mxu0
  %v6456 = vadd.f32 %v6071, %v6455
  %v6457 = vpop.f32.mrb[0].mxu0
  %6458 = vmatprep.mubr.f32.mxu0 %v741
  %6459 = vmatmul.mubr.f32.gmra.mrb[0].mxu0 %v740
  %v6460 = vpop.f32.mrb[0].mxu0
  %v6461 = vadd.f32 %v6076, %v6460
  %v6462 = vpop.f32.mrb[0].mxu0
  %6463 = vmatprep.mubr.f32.mxu0 %v766
  %6464 = vmatmul.mubr.f32.gmra.mrb[0].mxu0 %v765
  %v6465 = vpop.f32.mrb[0].mxu0
  %v6466 = vadd.f32 %v6081, %v6465
  %v6467 = vpop.f32.mrb[0].mxu0
  %6468 = vmatprep.mubr.f32.mxu0 %v791
  %6469 = vmatmul.mubr.f32.gmra.mrb[0].mxu0 %v790
  %v6470 = vpop.f32.mrb[0].mxu0
  %v6471 = vadd.f32 %v6086, %v6470
  %v6472 = vpop.f32.mrb[0].mxu0
  %6473 = vmatprep.mubr.f32.mxu0 %v816
  %6474 = vmatmul.mubr.f32.gmra.mrb[0].mxu0 %v815
  %v6475 = vpop.f32.mrb[0].mxu0
  %v6476 = vadd.f32 %v6091, %v6475
  %v6477 = vpop.f32.mrb[0].mxu0
  %6478 = vmatprep.mubr.f32.mxu0 %v841
  %6479 = vmatmul.mubr.f32.gmra.mrb[0].mxu0 %v840
  %v6480 = vpop.f32.mrb[0].mxu0
  %v6481 = vadd.f32 %v6096, %v6480
  %v6482 = vpop.f32.mrb[0].mxu0
  %6483 = vmatprep.mubr.f32.mxu0 %v866
  %6484 = vmatmul.mubr.f32.gmra.mrb[0].mxu0 %v865
  %v6485 = vpop.f32.mrb[0].mxu0
  %v6486 = vadd.f32 %v6101, %v6485
  %v6487 = vpop.f32.mrb[0].mxu0
  %6488 = vmatprep.mubr.f32.mxu0 %v891
  %6489 = vmatmul.mubr.f32.gmra.mrb[0].mxu0 %v890
  %v6490 = vpop.f32.mrb[0].mxu0
  %v6491 = vadd.f32 %v6106, %v6490
  %v6492 = vpop.f32.mrb[0].mxu0
  %6493 = vmatprep.mubr.f32.mxu0 %v916
  %6494 = vmatmul.mubr.f32.gmra.mrb[0].mxu0 %v915
  %v6495 = vpop.f32.mrb[0].mxu0
  %v6496 = vadd.f32 %v6111, %v6495
  %v6497 = vpop.f32.mrb[0].mxu0
  %6498 = vmatprep.mubr.f32.mxu0 %v941
  %6499 = vmatmul.mubr.f32.gmra.mrb[0].mxu0 %v940
  %v6500 = vpop.f32.mrb[0].mxu0
  %v6501 = vadd.f32 %v6116, %v6500
  %v6502 = vpop.f32.mrb[0].mxu0
  %6503 = vmatprep.mubr.f32.mxu0 %v966
  %6504 = vmatmul.mubr.f32.gmra.mrb[0].mxu0 %v965
  %v6505 = vpop.f32.mrb[0].mxu0
  %v6506 = vadd.f32 %v6121, %v6505
  %v6507 = vpop.f32.mrb[0].mxu0
  %6508 = vmatprep.mubr.f32.mxu0 %v991
  %6509 = vmatmul.mubr.f32.gmra.mrb[0].mxu0 %v990
  %v6510 = vpop.f32.mrb[0].mxu0
  %v6511 = vadd.f32 %v6126, %v6510
  %v6512 = vpop.f32.mrb[0].mxu0
  %6513 = vmatprep.mubr.f32.mxu0 %v1016
  %6514 = vmatmul.mubr.f32.gmra.mrb[0].mxu0 %v1015
  %v6515 = vpop.f32.mrb[0].mxu0
  %v6516 = vadd.f32 %v6131, %v6515
  %v6517 = vpop.f32.mrb[0].mxu0
  %6518 = vmatprep.mubr.f32.mxu0 %v1041
  %6519 = vmatmul.mubr.f32.gmra.mrb[0].mxu0 %v1040
  %v6520 = vpop.f32.mrb[0].mxu0
  %v6521 = vadd.f32 %v6136, %v6520
  %v6522 = vpop.f32.mrb[0].mxu0
  %6523 = vmatprep.mubr.f32.mxu0 %v1066
  %6524 = vmatmul.mubr.f32.gmra.mrb[0].mxu0 %v1065
  %v6525 = vpop.f32.mrb[0].mxu0
  %v6526 = vadd.f32 %v6141, %v6525
  %v6527 = vpop.f32.mrb[0].mxu0
  %6528 = vmatprep.mubr.f32.mxu0 %v1091
  %6529 = vmatmul.mubr.f32.gmra.mrb[0].mxu0 %v1090
  %v6530 = vpop.f32.mrb[0].mxu0
  %v6531 = vadd.f32 %v6146, %v6530
  %v6532 = vpop.f32.mrb[0].mxu0
  %6533 = vmatprep.mubr.f32.mxu0 %v1116
  %6534 = vmatmul.mubr.f32.gmra.mrb[0].mxu0 %v1115
  %v6535 = vpop.f32.mrb[0].mxu0
  %v6536 = vadd.f32 %v6151, %v6535
  %v6537 = vpop.f32.mrb[0].mxu0
  %6538 = vmatprep.mubr.f32.mxu0 %v1141
  %6539 = vmatmul.mubr.f32.gmra.mrb[0].mxu0 %v1140
  %v6540 = vpop.f32.mrb[0].mxu0
  %v6541 = vadd.f32 %v6156, %v6540
  %v6542 = vpop.f32.mrb[0].mxu0
  %6543 = vmatprep.mubr.f32.mxu0 %v1166
  %6544 = vmatmul.mubr.f32.gmra.mrb[0].mxu0 %v1165
  %v6545 = vpop.f32.mrb[0].mxu0
  %v6546 = vadd.f32 %v6161, %v6545
  %v6547 = vpop.f32.mrb[0].mxu0
  %6548 = vmatprep.mubr.f32.mxu0 %v1191
  %6549 = vmatmul.mubr.f32.gmra.mrb[0].mxu0 %v1190
  %v6550 = vpop.f32.mrb[0].mxu0
  %v6551 = vadd.f32 %v6166, %v6550
  %v6552 = vpop.f32.mrb[0].mxu0
  %6553 = vmatprep.mubr.f32.mxu0 %v1216
  %6554 = vmatmul.mubr.f32.gmra.mrb[0].mxu0 %v1215
  %v6555 = vpop.f32.mrb[0].mxu0
  %v6556 = vadd.f32 %v6171, %v6555
  %v6557 = vpop.f32.mrb[0].mxu0
  %6558 = vmatprep.mubr.f32.mxu0 %v1241
  %6559 = vmatmul.mubr.f32.gmra.mrb[0].mxu0 %v1240
  %v6560 = vpop.f32.mrb[0].mxu0
  %v6561 = vadd.f32 %v6176, %v6560
  %v6562 = vpop.f32.mrb[0].mxu0
  %6563 = vmatprep.mubr.f32.mxu0 %v1266
  %6564 = vmatmul.mubr.f32.gmra.mrb[0].mxu0 %v1265
  %v6565 = vpop.f32.mrb[0].mxu0
  %v6566 = vadd.f32 %v6181, %v6565
  %v6567 = vpop.f32.mrb[0].mxu0
  %6568 = vmatprep.mubr.f32.mxu0 %v1291
  %6569 = vmatmul.mubr.f32.gmra.mrb[0].mxu0 %v1290
  %v6570 = vpop.f32.mrb[0].mxu0
  %v6571 = vadd.f32 %v6186, %v6570
  %v6572 = vpop.f32.mrb[0].mxu0
  %6573 = vmatprep.mubr.f32.mxu0 %v1316
  %6574 = vmatmul.mubr.f32.gmra.mrb[0].mxu0 %v1315
  %v6575 = vpop.f32.mrb[0].mxu0
  %v6576 = vadd.f32 %v6191, %v6575
  %v6577 = vpop.f32.mrb[0].mxu0
  %6578 = vmatprep.mubr.f32.mxu0 %v1341
  %6579 = vmatmul.mubr.f32.gmra.mrb[0].mxu0 %v1340
  %v6580 = vpop.f32.mrb[0].mxu0
  %v6581 = vadd.f32 %v6196, %v6580
  %v6582 = vpop.f32.mrb[0].mxu0
  %6583 = vmatprep.mubr.f32.mxu0 %v1366
  %6584 = vmatmul.mubr.f32.gmra.mrb[0].mxu0 %v1365
  %v6585 = vpop.f32.mrb[0].mxu0
  %v6586 = vadd.f32 %v6201, %v6585
  %v6587 = vpop.f32.mrb[0].mxu0
  %6588 = vmatprep.mubr.f32.mxu0 %v1391
  %6589 = vmatmul.mubr.f32.gmra.mrb[0].mxu0 %v1390
  %v6590 = vpop.f32.mrb[0].mxu0
  %v6591 = vadd.f32 %v6206, %v6590
  %v6592 = vpop.f32.mrb[0].mxu0
  %6593 = vmatprep.mubr.f32.mxu0 %v1416
  %6594 = vmatmul.mubr.f32.gmra.mrb[0].mxu0 %v1415
  %v6595 = vpop.f32.mrb[0].mxu0
  %v6596 = vadd.f32 %v6211, %v6595
  %v6597 = vpop.f32.mrb[0].mxu0
  %6598 = vmatprep.mubr.f32.mxu0 %v1441
  %6599 = vmatmul.mubr.f32.gmra.mrb[0].mxu0 %v1440
  %v6600 = vpop.f32.mrb[0].mxu0
  %v6601 = vadd.f32 %v6216, %v6600
  %v6602 = vpop.f32.mrb[0].mxu0
  %6603 = vmatprep.mubr.f32.mxu0 %v1466
  %6604 = vmatmul.mubr.f32.gmra.mrb[0].mxu0 %v1465
  %v6605 = vpop.f32.mrb[0].mxu0
  %v6606 = vadd.f32 %v6221, %v6605
  %v6607 = vpop.f32.mrb[0].mxu0
  %6608 = vmatprep.mubr.f32.mxu0 %v1491
  %6609 = vmatmul.mubr.f32.gmra.mrb[0].mxu0 %v1490
  %v6610 = vpop.f32.mrb[0].mxu0
  %v6611 = vadd.f32 %v6226, %v6610
  %v6612 = vpop.f32.mrb[0].mxu0
  %6613 = vmatprep.mubr.f32.mxu0 %v1516
  %6614 = vmatmul.mubr.f32.gmra.mrb[0].mxu0 %v1515
  %v6615 = vpop.f32.mrb[0].mxu0
  %v6616 = vadd.f32 %v6231, %v6615
  %v6617 = vpop.f32.mrb[0].mxu0
  %6618 = vmatprep.mubr.f32.mxu0 %v1541
  %6619 = vmatmul.mubr.f32.gmra.mrb[0].mxu0 %v1540
  %v6620 = vpop.f32.mrb[0].mxu0
  %v6621 = vadd.f32 %v6236, %v6620
  %v6622 = vpop.f32.mrb[0].mxu0
  %6623 = vmatprep.mubr.f32.mxu0 %v1566
  %6624 = vmatmul.mubr.f32.gmra.mrb[0].mxu0 %v1565
  %v6625 = vpop.f32.mrb[0].mxu0
  %v6626 = vadd.f32 %v6241, %v6625
  %v6627 = vpop.f32.mrb[0].mxu0
  %6628 = vmatprep.mubr.f32.mxu0 %v1591
  %6629 = vmatmul.mubr.f32.gmra.mrb[0].mxu0 %v1590
  %v6630 = vpop.f32.mrb[0].mxu0
  %v6631 = vadd.f32 %v6246, %v6630
  %v6632 = vpop.f32.mrb[0].mxu0
  %6633 = vmatprep.mubr.f32.mxu0 %v1616
  %6634 = vmatmul.mubr.f32.gmra.mrb[0].mxu0 %v1615
  %v6635 = vpop.f32.mrb[0].mxu0
  %v6636 = vadd.f32 %v6251, %v6635
  %v6637 = vpop.f32.mrb[0].mxu0
  %6638 = vdwg.mxu0
  %6639 = vmatprep.subr.mxu0 0.0
  %6640 = vmatpush1.msra.mxu0 %v1972
  %6641 = vmatprep.subr.mxu0 0.0
  %6642 = vmatpush1.msra.mxu0 %v1973
  %6643 = vmatprep.subr.mxu0 0.0
  %6644 = vmatpush1.msra.mxu0 %v1974
  %6645 = vmatprep.subr.mxu0 0.0
  %6646 = vmatpush1.msra.mxu0 %v1975
  %6647 = vmatprep.subr.mxu0 0.0
  %6648 = vmatpush1.msra.mxu0 %v1976
  %6649 = vmatprep.subr.mxu0 0.0
  %6650 = vmatpush1.msra.mxu0 %v1977
  %6651 = vmatprep.subr.mxu0 0.0
  %6652 = vmatpush1.msra.mxu0 %v1978
  %6653 = vmatprep.subr.mxu0 0.0
  %6654 = vmatpush1.msra.mxu0 %v1979
  %6655 = vmatprep.subr.mxu0 0.0
  %6656 = vmatpush1.msra.mxu0 %v1980
  %6657 = vmatprep.subr.mxu0 0.0
  %6658 = vmatpush1.msra.mxu0 %v1981
  %6659 = vmatprep.subr.mxu0 0.0
  %6660 = vmatpush1.msra.mxu0 %v1982
  %6661 = vmatprep.subr.mxu0 0.0
  %6662 = vmatpush1.msra.mxu0 %v1983
  %6663 = vmatprep.subr.mxu0 0.0
  %6664 = vmatpush1.msra.mxu0 %v1984
  %6665 = vmatprep.subr.mxu0 0.0
  %6666 = vmatpush1.msra.mxu0 %v1985
  %6667 = vmatprep.subr.mxu0 0.0
  %6668 = vmatpush1.msra.mxu0 %v1986
  %6669 = vmatprep.subr.mxu0 0.0
  %6670 = vmatpush1.msra.mxu0 %v1987
  %6671 = vmatprep.subr.mxu0 0.0
  %6672 = vmatpush1.msra.mxu0 %v1988
  %6673 = vmatprep.subr.mxu0 0.0
  %6674 = vmatpush1.msra.mxu0 %v1989
  %6675 = vmatprep.subr.mxu0 0.0
  %6676 = vmatpush1.msra.mxu0 %v1990
  %6677 = vmatprep.subr.mxu0 0.0
  %6678 = vmatpush1.msra.mxu0 %v1991
  %6679 = vmatprep.subr.mxu0 0.0
  %6680 = vmatpush1.msra.mxu0 %v1992
  %6681 = vmatprep.subr.mxu0 0.0
  %6682 = vmatpush1.msra.mxu0 %v1993
  %6683 = vmatprep.subr.mxu0 0.0
  %6684 = vmatpush1.msra.mxu0 %v1994
  %6685 = vmatprep.subr.mxu0 0.0
  %6686 = vmatpush1.msra.mxu0 %v1995
  %6687 = vmatprep.subr.mxu0 0.0
  %6688 = vmatpush1.msra.mxu0 %v1996
  %6689 = vmatprep.subr.mxu0 0.0
  %6690 = vmatpush1.msra.mxu0 %v1997
  %6691 = vmatprep.subr.mxu0 0.0
  %6692 = vmatpush1.msra.mxu0 %v1998
  %6693 = vmatprep.subr.mxu0 0.0
  %6694 = vmatpush1.msra.mxu0 %v1999
  %6695 = vmatprep.subr.mxu0 0.0
  %6696 = vmatpush1.msra.mxu0 %v2000
  %6697 = vmatprep.subr.mxu0 0.0
  %6698 = vmatpush1.msra.mxu0 %v2001
  %6699 = vmatprep.subr.mxu0 0.0
  %6700 = vmatpush1.msra.mxu0 %v2002
  %6701 = vmatprep.subr.mxu0 0.0
  %6702 = vmatpush1.msra.mxu0 %v2003
  %6703 = vmatprep.mubr.f32.mxu0 %v43
  %6704 = vmatmul.mubr.f32.gmra.mrb[0].mxu0 %v42
  %v6705 = vpop.f32.mrb[0].mxu0
  %v6706 = vadd.f32 %v6321, %v6705
  %v6707 = vpop.f32.mrb[0].mxu0
  %6708 = vmatprep.mubr.f32.mxu0 %v68
  %6709 = vmatmul.mubr.f32.gmra.mrb[0].mxu0 %v67
  %v6710 = vpop.f32.mrb[0].mxu0
  %v6711 = vadd.f32 %v6326, %v6710
  %v6712 = vpop.f32.mrb[0].mxu0
  %6713 = vmatprep.mubr.f32.mxu0 %v93
  %6714 = vmatmul.mubr.f32.gmra.mrb[0].mxu0 %v92
  %v6715 = vpop.f32.mrb[0].mxu0
  %v6716 = vadd.f32 %v6331, %v6715
  %v6717 = vpop.f32.mrb[0].mxu0
  %6718 = vmatprep.mubr.f32.mxu0 %v118
  %6719 = vmatmul.mubr.f32.gmra.mrb[0].mxu0 %v117
  %v6720 = vpop.f32.mrb[0].mxu0
  %v6721 = vadd.f32 %v6336, %v6720
  %v6722 = vpop.f32.mrb[0].mxu0
  %6723 = vmatprep.mubr.f32.mxu0 %v143
  %6724 = vmatmul.mubr.f32.gmra.mrb[0].mxu0 %v142
  %v6725 = vpop.f32.mrb[0].mxu0
  %v6726 = vadd.f32 %v6341, %v6725
  %v6727 = vpop.f32.mrb[0].mxu0
  %6728 = vmatprep.mubr.f32.mxu0 %v168
  %6729 = vmatmul.mubr.f32.gmra.mrb[0].mxu0 %v167
  %v6730 = vpop.f32.mrb[0].mxu0
  %v6731 = vadd.f32 %v6346, %v6730
  %v6732 = vpop.f32.mrb[0].mxu0
  %6733 = vmatprep.mubr.f32.mxu0 %v193
  %6734 = vmatmul.mubr.f32.gmra.mrb[0].mxu0 %v192
  %v6735 = vpop.f32.mrb[0].mxu0
  %v6736 = vadd.f32 %v6351, %v6735
  %v6737 = vpop.f32.mrb[0].mxu0
  %6738 = vmatprep.mubr.f32.mxu0 %v218
  %6739 = vmatmul.mubr.f32.gmra.mrb[0].mxu0 %v217
  %v6740 = vpop.f32.mrb[0].mxu0
  %v6741 = vadd.f32 %v6356, %v6740
  %v6742 = vpop.f32.mrb[0].mxu0
  %6743 = vmatprep.mubr.f32.mxu0 %v243
  %6744 = vmatmul.mubr.f32.gmra.mrb[0].mxu0 %v242
  %v6745 = vpop.f32.mrb[0].mxu0
  %v6746 = vadd.f32 %v6361, %v6745
  %v6747 = vpop.f32.mrb[0].mxu0
  %6748 = vmatprep.mubr.f32.mxu0 %v268
  %6749 = vmatmul.mubr.f32.gmra.mrb[0].mxu0 %v267
  %v6750 = vpop.f32.mrb[0].mxu0
  %v6751 = vadd.f32 %v6366, %v6750
  %v6752 = vpop.f32.mrb[0].mxu0
  %6753 = vmatprep.mubr.f32.mxu0 %v293
  %6754 = vmatmul.mubr.f32.gmra.mrb[0].mxu0 %v292
  %v6755 = vpop.f32.mrb[0].mxu0
  %v6756 = vadd.f32 %v6371, %v6755
  %v6757 = vpop.f32.mrb[0].mxu0
  %6758 = vmatprep.mubr.f32.mxu0 %v318
  %6759 = vmatmul.mubr.f32.gmra.mrb[0].mxu0 %v317
  %v6760 = vpop.f32.mrb[0].mxu0
  %v6761 = vadd.f32 %v6376, %v6760
  %v6762 = vpop.f32.mrb[0].mxu0
  %6763 = vmatprep.mubr.f32.mxu0 %v343
  %6764 = vmatmul.mubr.f32.gmra.mrb[0].mxu0 %v342
  %v6765 = vpop.f32.mrb[0].mxu0
  %v6766 = vadd.f32 %v6381, %v6765
  %v6767 = vpop.f32.mrb[0].mxu0
  %6768 = vmatprep.mubr.f32.mxu0 %v368
  %6769 = vmatmul.mubr.f32.gmra.mrb[0].mxu0 %v367
  %v6770 = vpop.f32.mrb[0].mxu0
  %v6771 = vadd.f32 %v6386, %v6770
  %v6772 = vpop.f32.mrb[0].mxu0
  %6773 = vmatprep.mubr.f32.mxu0 %v393
  %6774 = vmatmul.mubr.f32.gmra.mrb[0].mxu0 %v392
  %v6775 = vpop.f32.mrb[0].mxu0
  %v6776 = vadd.f32 %v6391, %v6775
  %v6777 = vpop.f32.mrb[0].mxu0
  %6778 = vmatprep.mubr.f32.mxu0 %v418
  %6779 = vmatmul.mubr.f32.gmra.mrb[0].mxu0 %v417
  %v6780 = vpop.f32.mrb[0].mxu0
  %v6781 = vadd.f32 %v6396, %v6780
  %v6782 = vpop.f32.mrb[0].mxu0
  %6783 = vmatprep.mubr.f32.mxu0 %v443
  %6784 = vmatmul.mubr.f32.gmra.mrb[0].mxu0 %v442
  %v6785 = vpop.f32.mrb[0].mxu0
  %v6786 = vadd.f32 %v6401, %v6785
  %v6787 = vpop.f32.mrb[0].mxu0
  %6788 = vmatprep.mubr.f32.mxu0 %v468
  %6789 = vmatmul.mubr.f32.gmra.mrb[0].mxu0 %v467
  %v6790 = vpop.f32.mrb[0].mxu0
  %v6791 = vadd.f32 %v6406, %v6790
  %v6792 = vpop.f32.mrb[0].mxu0
  %6793 = vmatprep.mubr.f32.mxu0 %v493
  %6794 = vmatmul.mubr.f32.gmra.mrb[0].mxu0 %v492
  %v6795 = vpop.f32.mrb[0].mxu0
  %v6796 = vadd.f32 %v6411, %v6795
  %v6797 = vpop.f32.mrb[0].mxu0
  %6798 = vmatprep.mubr.f32.mxu0 %v518
  %6799 = vmatmul.mubr.f32.gmra.mrb[0].mxu0 %v517
  %v6800 = vpop.f32.mrb[0].mxu0
  %v6801 = vadd.f32 %v6416, %v6800
  %v6802 = vpop.f32.mrb[0].mxu0
  %6803 = vmatprep.mubr.f32.mxu0 %v543
  %6804 = vmatmul.mubr.f32.gmra.mrb[0].mxu0 %v542
  %v6805 = vpop.f32.mrb[0].mxu0
  %v6806 = vadd.f32 %v6421, %v6805
  %v6807 = vpop.f32.mrb[0].mxu0
  %6808 = vmatprep.mubr.f32.mxu0 %v568
  %6809 = vmatmul.mubr.f32.gmra.mrb[0].mxu0 %v567
  %v6810 = vpop.f32.mrb[0].mxu0
  %v6811 = vadd.f32 %v6426, %v6810
  %v6812 = vpop.f32.mrb[0].mxu0
  %6813 = vmatprep.mubr.f32.mxu0 %v593
  %6814 = vmatmul.mubr.f32.gmra.mrb[0].mxu0 %v592
  %v6815 = vpop.f32.mrb[0].mxu0
  %v6816 = vadd.f32 %v6431, %v6815
  %v6817 = vpop.f32.mrb[0].mxu0
  %6818 = vmatprep.mubr.f32.mxu0 %v618
  %6819 = vmatmul.mubr.f32.gmra.mrb[0].mxu0 %v617
  %v6820 = vpop.f32.mrb[0].mxu0
  %v6821 = vadd.f32 %v6436, %v6820
  %v6822 = vpop.f32.mrb[0].mxu0
  %6823 = vmatprep.mubr.f32.mxu0 %v643
  %6824 = vmatmul.mubr.f32.gmra.mrb[0].mxu0 %v642
  %v6825 = vpop.f32.mrb[0].mxu0
  %v6826 = vadd.f32 %v6441, %v6825
  %v6827 = vpop.f32.mrb[0].mxu0
  %6828 = vmatprep.mubr.f32.mxu0 %v668
  %6829 = vmatmul.mubr.f32.gmra.mrb[0].mxu0 %v667
  %v6830 = vpop.f32.mrb[0].mxu0
  %v6831 = vadd.f32 %v6446, %v6830
  %v6832 = vpop.f32.mrb[0].mxu0
  %6833 = vmatprep.mubr.f32.mxu0 %v693
  %6834 = vmatmul.mubr.f32.gmra.mrb[0].mxu0 %v692
  %v6835 = vpop.f32.mrb[0].mxu0
  %v6836 = vadd.f32 %v6451, %v6835
  %v6837 = vpop.f32.mrb[0].mxu0
  %6838 = vmatprep.mubr.f32.mxu0 %v718
  %6839 = vmatmul.mubr.f32.gmra.mrb[0].mxu0 %v717
  %v6840 = vpop.f32.mrb[0].mxu0
  %v6841 = vadd.f32 %v6456, %v6840
  %v6842 = vpop.f32.mrb[0].mxu0
  %6843 = vmatprep.mubr.f32.mxu0 %v743
  %6844 = vmatmul.mubr.f32.gmra.mrb[0].mxu0 %v742
  %v6845 = vpop.f32.mrb[0].mxu0
  %v6846 = vadd.f32 %v6461, %v6845
  %v6847 = vpop.f32.mrb[0].mxu0
  %6848 = vmatprep.mubr.f32.mxu0 %v768
  %6849 = vmatmul.mubr.f32.gmra.mrb[0].mxu0 %v767
  %v6850 = vpop.f32.mrb[0].mxu0
  %v6851 = vadd.f32 %v6466, %v6850
  %v6852 = vpop.f32.mrb[0].mxu0
  %6853 = vmatprep.mubr.f32.mxu0 %v793
  %6854 = vmatmul.mubr.f32.gmra.mrb[0].mxu0 %v792
  %v6855 = vpop.f32.mrb[0].mxu0
  %v6856 = vadd.f32 %v6471, %v6855
  %v6857 = vpop.f32.mrb[0].mxu0
  %6858 = vmatprep.mubr.f32.mxu0 %v818
  %6859 = vmatmul.mubr.f32.gmra.mrb[0].mxu0 %v817
  %v6860 = vpop.f32.mrb[0].mxu0
  %v6861 = vadd.f32 %v6476, %v6860
  %v6862 = vpop.f32.mrb[0].mxu0
  %6863 = vmatprep.mubr.f32.mxu0 %v843
  %6864 = vmatmul.mubr.f32.gmra.mrb[0].mxu0 %v842
  %v6865 = vpop.f32.mrb[0].mxu0
  %v6866 = vadd.f32 %v6481, %v6865
  %v6867 = vpop.f32.mrb[0].mxu0
  %6868 = vmatprep.mubr.f32.mxu0 %v868
  %6869 = vmatmul.mubr.f32.gmra.mrb[0].mxu0 %v867
  %v6870 = vpop.f32.mrb[0].mxu0
  %v6871 = vadd.f32 %v6486, %v6870
  %v6872 = vpop.f32.mrb[0].mxu0
  %6873 = vmatprep.mubr.f32.mxu0 %v893
  %6874 = vmatmul.mubr.f32.gmra.mrb[0].mxu0 %v892
  %v6875 = vpop.f32.mrb[0].mxu0
  %v6876 = vadd.f32 %v6491, %v6875
  %v6877 = vpop.f32.mrb[0].mxu0
  %6878 = vmatprep.mubr.f32.mxu0 %v918
  %6879 = vmatmul.mubr.f32.gmra.mrb[0].mxu0 %v917
  %v6880 = vpop.f32.mrb[0].mxu0
  %v6881 = vadd.f32 %v6496, %v6880
  %v6882 = vpop.f32.mrb[0].mxu0
  %6883 = vmatprep.mubr.f32.mxu0 %v943
  %6884 = vmatmul.mubr.f32.gmra.mrb[0].mxu0 %v942
  %v6885 = vpop.f32.mrb[0].mxu0
  %v6886 = vadd.f32 %v6501, %v6885
  %v6887 = vpop.f32.mrb[0].mxu0
  %6888 = vmatprep.mubr.f32.mxu0 %v968
  %6889 = vmatmul.mubr.f32.gmra.mrb[0].mxu0 %v967
  %v6890 = vpop.f32.mrb[0].mxu0
  %v6891 = vadd.f32 %v6506, %v6890
  %v6892 = vpop.f32.mrb[0].mxu0
  %6893 = vmatprep.mubr.f32.mxu0 %v993
  %6894 = vmatmul.mubr.f32.gmra.mrb[0].mxu0 %v992
  %v6895 = vpop.f32.mrb[0].mxu0
  %v6896 = vadd.f32 %v6511, %v6895
  %v6897 = vpop.f32.mrb[0].mxu0
  %6898 = vmatprep.mubr.f32.mxu0 %v1018
  %6899 = vmatmul.mubr.f32.gmra.mrb[0].mxu0 %v1017
  %v6900 = vpop.f32.mrb[0].mxu0
  %v6901 = vadd.f32 %v6516, %v6900
  %v6902 = vpop.f32.mrb[0].mxu0
  %6903 = vmatprep.mubr.f32.mxu0 %v1043
  %6904 = vmatmul.mubr.f32.gmra.mrb[0].mxu0 %v1042
  %v6905 = vpop.f32.mrb[0].mxu0
  %v6906 = vadd.f32 %v6521, %v6905
  %v6907 = vpop.f32.mrb[0].mxu0
  %6908 = vmatprep.mubr.f32.mxu0 %v1068
  %6909 = vmatmul.mubr.f32.gmra.mrb[0].mxu0 %v1067
  %v6910 = vpop.f32.mrb[0].mxu0
  %v6911 = vadd.f32 %v6526, %v6910
  %v6912 = vpop.f32.mrb[0].mxu0
  %6913 = vmatprep.mubr.f32.mxu0 %v1093
  %6914 = vmatmul.mubr.f32.gmra.mrb[0].mxu0 %v1092
  %v6915 = vpop.f32.mrb[0].mxu0
  %v6916 = vadd.f32 %v6531, %v6915
  %v6917 = vpop.f32.mrb[0].mxu0
  %6918 = vmatprep.mubr.f32.mxu0 %v1118
  %6919 = vmatmul.mubr.f32.gmra.mrb[0].mxu0 %v1117
  %v6920 = vpop.f32.mrb[0].mxu0
  %v6921 = vadd.f32 %v6536, %v6920
  %v6922 = vpop.f32.mrb[0].mxu0
  %6923 = vmatprep.mubr.f32.mxu0 %v1143
  %6924 = vmatmul.mubr.f32.gmra.mrb[0].mxu0 %v1142
  %v6925 = vpop.f32.mrb[0].mxu0
  %v6926 = vadd.f32 %v6541, %v6925
  %v6927 = vpop.f32.mrb[0].mxu0
  %6928 = vmatprep.mubr.f32.mxu0 %v1168
  %6929 = vmatmul.mubr.f32.gmra.mrb[0].mxu0 %v1167
  %v6930 = vpop.f32.mrb[0].mxu0
  %v6931 = vadd.f32 %v6546, %v6930
  %v6932 = vpop.f32.mrb[0].mxu0
  %6933 = vmatprep.mubr.f32.mxu0 %v1193
  %6934 = vmatmul.mubr.f32.gmra.mrb[0].mxu0 %v1192
  %v6935 = vpop.f32.mrb[0].mxu0
  %v6936 = vadd.f32 %v6551, %v6935
  %v6937 = vpop.f32.mrb[0].mxu0
  %6938 = vmatprep.mubr.f32.mxu0 %v1218
  %6939 = vmatmul.mubr.f32.gmra.mrb[0].mxu0 %v1217
  %v6940 = vpop.f32.mrb[0].mxu0
  %v6941 = vadd.f32 %v6556, %v6940
  %v6942 = vpop.f32.mrb[0].mxu0
  %6943 = vmatprep.mubr.f32.mxu0 %v1243
  %6944 = vmatmul.mubr.f32.gmra.mrb[0].mxu0 %v1242
  %v6945 = vpop.f32.mrb[0].mxu0
  %v6946 = vadd.f32 %v6561, %v6945
  %v6947 = vpop.f32.mrb[0].mxu0
  %6948 = vmatprep.mubr.f32.mxu0 %v1268
  %6949 = vmatmul.mubr.f32.gmra.mrb[0].mxu0 %v1267
  %v6950 = vpop.f32.mrb[0].mxu0
  %v6951 = vadd.f32 %v6566, %v6950
  %v6952 = vpop.f32.mrb[0].mxu0
  %6953 = vmatprep.mubr.f32.mxu0 %v1293
  %6954 = vmatmul.mubr.f32.gmra.mrb[0].mxu0 %v1292
  %v6955 = vpop.f32.mrb[0].mxu0
  %v6956 = vadd.f32 %v6571, %v6955
  %v6957 = vpop.f32.mrb[0].mxu0
  %6958 = vmatprep.mubr.f32.mxu0 %v1318
  %6959 = vmatmul.mubr.f32.gmra.mrb[0].mxu0 %v1317
  %v6960 = vpop.f32.mrb[0].mxu0
  %v6961 = vadd.f32 %v6576, %v6960
  %v6962 = vpop.f32.mrb[0].mxu0
  %6963 = vmatprep.mubr.f32.mxu0 %v1343
  %6964 = vmatmul.mubr.f32.gmra.mrb[0].mxu0 %v1342
  %v6965 = vpop.f32.mrb[0].mxu0
  %v6966 = vadd.f32 %v6581, %v6965
  %v6967 = vpop.f32.mrb[0].mxu0
  %6968 = vmatprep.mubr.f32.mxu0 %v1368
  %6969 = vmatmul.mubr.f32.gmra.mrb[0].mxu0 %v1367
  %v6970 = vpop.f32.mrb[0].mxu0
  %v6971 = vadd.f32 %v6586, %v6970
  %v6972 = vpop.f32.mrb[0].mxu0
  %6973 = vmatprep.mubr.f32.mxu0 %v1393
  %6974 = vmatmul.mubr.f32.gmra.mrb[0].mxu0 %v1392
  %v6975 = vpop.f32.mrb[0].mxu0
  %v6976 = vadd.f32 %v6591, %v6975
  %v6977 = vpop.f32.mrb[0].mxu0
  %6978 = vmatprep.mubr.f32.mxu0 %v1418
  %6979 = vmatmul.mubr.f32.gmra.mrb[0].mxu0 %v1417
  %v6980 = vpop.f32.mrb[0].mxu0
  %v6981 = vadd.f32 %v6596, %v6980
  %v6982 = vpop.f32.mrb[0].mxu0
  %6983 = vmatprep.mubr.f32.mxu0 %v1443
  %6984 = vmatmul.mubr.f32.gmra.mrb[0].mxu0 %v1442
  %v6985 = vpop.f32.mrb[0].mxu0
  %v6986 = vadd.f32 %v6601, %v6985
  %v6987 = vpop.f32.mrb[0].mxu0
  %6988 = vmatprep.mubr.f32.mxu0 %v1468
  %6989 = vmatmul.mubr.f32.gmra.mrb[0].mxu0 %v1467
  %v6990 = vpop.f32.mrb[0].mxu0
  %v6991 = vadd.f32 %v6606, %v6990
  %v6992 = vpop.f32.mrb[0].mxu0
  %6993 = vmatprep.mubr.f32.mxu0 %v1493
  %6994 = vmatmul.mubr.f32.gmra.mrb[0].mxu0 %v1492
  %v6995 = vpop.f32.mrb[0].mxu0
  %v6996 = vadd.f32 %v6611, %v6995
  %v6997 = vpop.f32.mrb[0].mxu0
  %6998 = vmatprep.mubr.f32.mxu0 %v1518
  %6999 = vmatmul.mubr.f32.gmra.mrb[0].mxu0 %v1517
  %v7000 = vpop.f32.mrb[0].mxu0
  %v7001 = vadd.f32 %v6616, %v7000
  %v7002 = vpop.f32.mrb[0].mxu0
  %7003 = vmatprep.mubr.f32.mxu0 %v1543
  %7004 = vmatmul.mubr.f32.gmra.mrb[0].mxu0 %v1542
  %v7005 = vpop.f32.mrb[0].mxu0
  %v7006 = vadd.f32 %v6621, %v7005
  %v7007 = vpop.f32.mrb[0].mxu0
  %7008 = vmatprep.mubr.f32.mxu0 %v1568
  %7009 = vmatmul.mubr.f32.gmra.mrb[0].mxu0 %v1567
  %v7010 = vpop.f32.mrb[0].mxu0
  %v7011 = vadd.f32 %v6626, %v7010
  %v7012 = vpop.f32.mrb[0].mxu0
  %7013 = vmatprep.mubr.f32.mxu0 %v1593
  %7014 = vmatmul.mubr.f32.gmra.mrb[0].mxu0 %v1592
  %v7015 = vpop.f32.mrb[0].mxu0
  %v7016 = vadd.f32 %v6631, %v7015
  %v7017 = vpop.f32.mrb[0].mxu0
  %7018 = vmatprep.mubr.f32.mxu0 %v1618
  %7019 = vmatmul.mubr.f32.gmra.mrb[0].mxu0 %v1617
  %v7020 = vpop.f32.mrb[0].mxu0
  %v7021 = vadd.f32 %v6636, %v7020
  %v7022 = vpop.f32.mrb[0].mxu0
  %7023 = vdwg.mxu0
  %7024 = vmatprep.subr.mxu0 0.0
  %7025 = vmatpush1.msra.mxu0 %v2004
  %7026 = vmatprep.subr.mxu0 0.0
  %7027 = vmatpush1.msra.mxu0 %v2005
  %7028 = vmatprep.subr.mxu0 0.0
  %7029 = vmatpush1.msra.mxu0 %v2006
  %7030 = vmatprep.subr.mxu0 0.0
  %7031 = vmatpush1.msra.mxu0 %v2007
  %7032 = vmatprep.subr.mxu0 0.0
  %7033 = vmatpush1.msra.mxu0 %v2008
  %7034 = vmatprep.subr.mxu0 0.0
  %7035 = vmatpush1.msra.mxu0 %v2009
  %7036 = vmatprep.subr.mxu0 0.0
  %7037 = vmatpush1.msra.mxu0 %v2010
  %7038 = vmatprep.subr.mxu0 0.0
  %7039 = vmatpush1.msra.mxu0 %v2011
  %7040 = vmatprep.subr.mxu0 0.0
  %7041 = vmatpush1.msra.mxu0 %v2012
  %7042 = vmatprep.subr.mxu0 0.0
  %7043 = vmatpush1.msra.mxu0 %v2013
  %7044 = vmatprep.subr.mxu0 0.0
  %7045 = vmatpush1.msra.mxu0 %v2014
  %7046 = vmatprep.subr.mxu0 0.0
  %7047 = vmatpush1.msra.mxu0 %v2015
  %7048 = vmatprep.subr.mxu0 0.0
  %7049 = vmatpush1.msra.mxu0 %v2016
  %7050 = vmatprep.subr.mxu0 0.0
  %7051 = vmatpush1.msra.mxu0 %v2017
  %7052 = vmatprep.subr.mxu0 0.0
  %7053 = vmatpush1.msra.mxu0 %v2018
  %7054 = vmatprep.subr.mxu0 0.0
  %7055 = vmatpush1.msra.mxu0 %v2019
  %7056 = vmatprep.subr.mxu0 0.0
  %7057 = vmatpush1.msra.mxu0 0.0
  %7058 = vmatprep.subr.mxu0 0.0
  %7059 = vmatpush1.msra.mxu0 0.0
  %7060 = vmatprep.subr.mxu0 0.0
  %7061 = vmatpush1.msra.mxu0 0.0
  %7062 = vmatprep.subr.mxu0 0.0
  %7063 = vmatpush1.msra.mxu0 0.0
  %7064 = vmatprep.subr.mxu0 0.0
  %7065 = vmatpush1.msra.mxu0 0.0
  %7066 = vmatprep.subr.mxu0 0.0
  %7067 = vmatpush1.msra.mxu0 0.0
  %7068 = vmatprep.subr.mxu0 0.0
  %7069 = vmatpush1.msra.mxu0 0.0
  %7070 = vmatprep.subr.mxu0 0.0
  %7071 = vmatpush1.msra.mxu0 0.0
  %7072 = vmatprep.subr.mxu0 0.0
  %7073 = vmatpush1.msra.mxu0 0.0
  %7074 = vmatprep.subr.mxu0 0.0
  %7075 = vmatpush1.msra.mxu0 0.0
  %7076 = vmatprep.subr.mxu0 0.0
  %7077 = vmatpush1.msra.mxu0 0.0
  %7078 = vmatprep.subr.mxu0 0.0
  %7079 = vmatpush1.msra.mxu0 0.0
  %7080 = vmatprep.subr.mxu0 0.0
  %7081 = vmatpush1.msra.mxu0 0.0
  %7082 = vmatprep.subr.mxu0 0.0
  %7083 = vmatpush1.msra.mxu0 0.0
  %7084 = vmatprep.subr.mxu0 0.0
  %7085 = vmatpush1.msra.mxu0 0.0
  %7086 = vmatprep.subr.mxu0 0.0
  %7087 = vmatpush1.msra.mxu0 0.0
  %7088 = vmatprep.mubr.f32.mxu0 0.0
  %7089 = vmatmul.mubr.f32.gmra.mrb[0].mxu0 %v44
  %v7090 = vpop.f32.mrb[0].mxu0
  %v7091 = vadd.f32 %v6706, %v7090
  %v7092 = vpop.f32.mrb[0].mxu0
  %7093 = vmatprep.mubr.f32.mxu0 0.0
  %7094 = vmatmul.mubr.f32.gmra.mrb[0].mxu0 %v69
  %v7095 = vpop.f32.mrb[0].mxu0
  %v7096 = vadd.f32 %v6711, %v7095
  %v7097 = vpop.f32.mrb[0].mxu0
  %7098 = vmatprep.mubr.f32.mxu0 0.0
  %7099 = vmatmul.mubr.f32.gmra.mrb[0].mxu0 %v94
  %v7100 = vpop.f32.mrb[0].mxu0
  %v7101 = vadd.f32 %v6716, %v7100
  %v7102 = vpop.f32.mrb[0].mxu0
  %7103 = vmatprep.mubr.f32.mxu0 0.0
  %7104 = vmatmul.mubr.f32.gmra.mrb[0].mxu0 %v119
  %v7105 = vpop.f32.mrb[0].mxu0
  %v7106 = vadd.f32 %v6721, %v7105
  %v7107 = vpop.f32.mrb[0].mxu0
  %7108 = vmatprep.mubr.f32.mxu0 0.0
  %7109 = vmatmul.mubr.f32.gmra.mrb[0].mxu0 %v144
  %v7110 = vpop.f32.mrb[0].mxu0
  %v7111 = vadd.f32 %v6726, %v7110
  %v7112 = vpop.f32.mrb[0].mxu0
  %7113 = vmatprep.mubr.f32.mxu0 0.0
  %7114 = vmatmul.mubr.f32.gmra.mrb[0].mxu0 %v169
  %v7115 = vpop.f32.mrb[0].mxu0
  %v7116 = vadd.f32 %v6731, %v7115
  %v7117 = vpop.f32.mrb[0].mxu0
  %7118 = vmatprep.mubr.f32.mxu0 0.0
  %7119 = vmatmul.mubr.f32.gmra.mrb[0].mxu0 %v194
  %v7120 = vpop.f32.mrb[0].mxu0
  %v7121 = vadd.f32 %v6736, %v7120
  %v7122 = vpop.f32.mrb[0].mxu0
  %7123 = vmatprep.mubr.f32.mxu0 0.0
  %7124 = vmatmul.mubr.f32.gmra.mrb[0].mxu0 %v219
  %v7125 = vpop.f32.mrb[0].mxu0
  %v7126 = vadd.f32 %v6741, %v7125
  %v7127 = vpop.f32.mrb[0].mxu0
  %7128 = vmatprep.mubr.f32.mxu0 0.0
  %7129 = vmatmul.mubr.f32.gmra.mrb[0].mxu0 %v244
  %v7130 = vpop.f32.mrb[0].mxu0
  %v7131 = vadd.f32 %v6746, %v7130
  %v7132 = vpop.f32.mrb[0].mxu0
  %7133 = vmatprep.mubr.f32.mxu0 0.0
  %7134 = vmatmul.mubr.f32.gmra.mrb[0].mxu0 %v269
  %v7135 = vpop.f32.mrb[0].mxu0
  %v7136 = vadd.f32 %v6751, %v7135
  %v7137 = vpop.f32.mrb[0].mxu0
  %7138 = vmatprep.mubr.f32.mxu0 0.0
  %7139 = vmatmul.mubr.f32.gmra.mrb[0].mxu0 %v294
  %v7140 = vpop.f32.mrb[0].mxu0
  %v7141 = vadd.f32 %v6756, %v7140
  %v7142 = vpop.f32.mrb[0].mxu0
  %7143 = vmatprep.mubr.f32.mxu0 0.0
  %7144 = vmatmul.mubr.f32.gmra.mrb[0].mxu0 %v319
  %v7145 = vpop.f32.mrb[0].mxu0
  %v7146 = vadd.f32 %v6761, %v7145
  %v7147 = vpop.f32.mrb[0].mxu0
  %7148 = vmatprep.mubr.f32.mxu0 0.0
  %7149 = vmatmul.mubr.f32.gmra.mrb[0].mxu0 %v344
  %v7150 = vpop.f32.mrb[0].mxu0
  %v7151 = vadd.f32 %v6766, %v7150
  %v7152 = vpop.f32.mrb[0].mxu0
  %7153 = vmatprep.mubr.f32.mxu0 0.0
  %7154 = vmatmul.mubr.f32.gmra.mrb[0].mxu0 %v369
  %v7155 = vpop.f32.mrb[0].mxu0
  %v7156 = vadd.f32 %v6771, %v7155
  %v7157 = vpop.f32.mrb[0].mxu0
  %7158 = vmatprep.mubr.f32.mxu0 0.0
  %7159 = vmatmul.mubr.f32.gmra.mrb[0].mxu0 %v394
  %v7160 = vpop.f32.mrb[0].mxu0
  %v7161 = vadd.f32 %v6776, %v7160
  %v7162 = vpop.f32.mrb[0].mxu0
  %7163 = vmatprep.mubr.f32.mxu0 0.0
  %7164 = vmatmul.mubr.f32.gmra.mrb[0].mxu0 %v419
  %v7165 = vpop.f32.mrb[0].mxu0
  %v7166 = vadd.f32 %v6781, %v7165
  %v7167 = vpop.f32.mrb[0].mxu0
  %7168 = vmatprep.mubr.f32.mxu0 0.0
  %7169 = vmatmul.mubr.f32.gmra.mrb[0].mxu0 %v444
  %v7170 = vpop.f32.mrb[0].mxu0
  %v7171 = vadd.f32 %v6786, %v7170
  %v7172 = vpop.f32.mrb[0].mxu0
  %7173 = vmatprep.mubr.f32.mxu0 0.0
  %7174 = vmatmul.mubr.f32.gmra.mrb[0].mxu0 %v469
  %v7175 = vpop.f32.mrb[0].mxu0
  %v7176 = vadd.f32 %v6791, %v7175
  %v7177 = vpop.f32.mrb[0].mxu0
  %7178 = vmatprep.mubr.f32.mxu0 0.0
  %7179 = vmatmul.mubr.f32.gmra.mrb[0].mxu0 %v494
  %v7180 = vpop.f32.mrb[0].mxu0
  %v7181 = vadd.f32 %v6796, %v7180
  %v7182 = vpop.f32.mrb[0].mxu0
  %7183 = vmatprep.mubr.f32.mxu0 0.0
  %7184 = vmatmul.mubr.f32.gmra.mrb[0].mxu0 %v519
  %v7185 = vpop.f32.mrb[0].mxu0
  %v7186 = vadd.f32 %v6801, %v7185
  %v7187 = vpop.f32.mrb[0].mxu0
  %7188 = vmatprep.mubr.f32.mxu0 0.0
  %7189 = vmatmul.mubr.f32.gmra.mrb[0].mxu0 %v544
  %v7190 = vpop.f32.mrb[0].mxu0
  %v7191 = vadd.f32 %v6806, %v7190
  %v7192 = vpop.f32.mrb[0].mxu0
  %7193 = vmatprep.mubr.f32.mxu0 0.0
  %7194 = vmatmul.mubr.f32.gmra.mrb[0].mxu0 %v569
  %v7195 = vpop.f32.mrb[0].mxu0
  %v7196 = vadd.f32 %v6811, %v7195
  %v7197 = vpop.f32.mrb[0].mxu0
  %7198 = vmatprep.mubr.f32.mxu0 0.0
  %7199 = vmatmul.mubr.f32.gmra.mrb[0].mxu0 %v594
  %v7200 = vpop.f32.mrb[0].mxu0
  %v7201 = vadd.f32 %v6816, %v7200
  %v7202 = vpop.f32.mrb[0].mxu0
  %7203 = vmatprep.mubr.f32.mxu0 0.0
  %7204 = vmatmul.mubr.f32.gmra.mrb[0].mxu0 %v619
  %v7205 = vpop.f32.mrb[0].mxu0
  %v7206 = vadd.f32 %v6821, %v7205
  %v7207 = vpop.f32.mrb[0].mxu0
  %7208 = vmatprep.mubr.f32.mxu0 0.0
  %7209 = vmatmul.mubr.f32.gmra.mrb[0].mxu0 %v644
  %v7210 = vpop.f32.mrb[0].mxu0
  %v7211 = vadd.f32 %v6826, %v7210
  %v7212 = vpop.f32.mrb[0].mxu0
  %7213 = vmatprep.mubr.f32.mxu0 0.0
  %7214 = vmatmul.mubr.f32.gmra.mrb[0].mxu0 %v669
  %v7215 = vpop.f32.mrb[0].mxu0
  %v7216 = vadd.f32 %v6831, %v7215
  %v7217 = vpop.f32.mrb[0].mxu0
  %7218 = vmatprep.mubr.f32.mxu0 0.0
  %7219 = vmatmul.mubr.f32.gmra.mrb[0].mxu0 %v694
  %v7220 = vpop.f32.mrb[0].mxu0
  %v7221 = vadd.f32 %v6836, %v7220
  %v7222 = vpop.f32.mrb[0].mxu0
  %7223 = vmatprep.mubr.f32.mxu0 0.0
  %7224 = vmatmul.mubr.f32.gmra.mrb[0].mxu0 %v719
  %v7225 = vpop.f32.mrb[0].mxu0
  %v7226 = vadd.f32 %v6841, %v7225
  %v7227 = vpop.f32.mrb[0].mxu0
  %7228 = vmatprep.mubr.f32.mxu0 0.0
  %7229 = vmatmul.mubr.f32.gmra.mrb[0].mxu0 %v744
  %v7230 = vpop.f32.mrb[0].mxu0
  %v7231 = vadd.f32 %v6846, %v7230
  %v7232 = vpop.f32.mrb[0].mxu0
  %7233 = vmatprep.mubr.f32.mxu0 0.0
  %7234 = vmatmul.mubr.f32.gmra.mrb[0].mxu0 %v769
  %v7235 = vpop.f32.mrb[0].mxu0
  %v7236 = vadd.f32 %v6851, %v7235
  %v7237 = vpop.f32.mrb[0].mxu0
  %7238 = vmatprep.mubr.f32.mxu0 0.0
  %7239 = vmatmul.mubr.f32.gmra.mrb[0].mxu0 %v794
  %v7240 = vpop.f32.mrb[0].mxu0
  %v7241 = vadd.f32 %v6856, %v7240
  %v7242 = vpop.f32.mrb[0].mxu0
  %7243 = vmatprep.mubr.f32.mxu0 0.0
  %7244 = vmatmul.mubr.f32.gmra.mrb[0].mxu0 %v819
  %v7245 = vpop.f32.mrb[0].mxu0
  %v7246 = vadd.f32 %v6861, %v7245
  %v7247 = vpop.f32.mrb[0].mxu0
  %7248 = vmatprep.mubr.f32.mxu0 0.0
  %7249 = vmatmul.mubr.f32.gmra.mrb[0].mxu0 %v844
  %v7250 = vpop.f32.mrb[0].mxu0
  %v7251 = vadd.f32 %v6866, %v7250
  %v7252 = vpop.f32.mrb[0].mxu0
  %7253 = vmatprep.mubr.f32.mxu0 0.0
  %7254 = vmatmul.mubr.f32.gmra.mrb[0].mxu0 %v869
  %v7255 = vpop.f32.mrb[0].mxu0
  %v7256 = vadd.f32 %v6871, %v7255
  %v7257 = vpop.f32.mrb[0].mxu0
  %7258 = vmatprep.mubr.f32.mxu0 0.0
  %7259 = vmatmul.mubr.f32.gmra.mrb[0].mxu0 %v894
  %v7260 = vpop.f32.mrb[0].mxu0
  %v7261 = vadd.f32 %v6876, %v7260
  %v7262 = vpop.f32.mrb[0].mxu0
  %7263 = vmatprep.mubr.f32.mxu0 0.0
  %7264 = vmatmul.mubr.f32.gmra.mrb[0].mxu0 %v919
  %v7265 = vpop.f32.mrb[0].mxu0
  %v7266 = vadd.f32 %v6881, %v7265
  %v7267 = vpop.f32.mrb[0].mxu0
  %7268 = vmatprep.mubr.f32.mxu0 0.0
  %7269 = vmatmul.mubr.f32.gmra.mrb[0].mxu0 %v944
  %v7270 = vpop.f32.mrb[0].mxu0
  %v7271 = vadd.f32 %v6886, %v7270
  %v7272 = vpop.f32.mrb[0].mxu0
  %7273 = vmatprep.mubr.f32.mxu0 0.0
  %7274 = vmatmul.mubr.f32.gmra.mrb[0].mxu0 %v969
  %v7275 = vpop.f32.mrb[0].mxu0
  %v7276 = vadd.f32 %v6891, %v7275
  %v7277 = vpop.f32.mrb[0].mxu0
  %7278 = vmatprep.mubr.f32.mxu0 0.0
  %7279 = vmatmul.mubr.f32.gmra.mrb[0].mxu0 %v994
  %v7280 = vpop.f32.mrb[0].mxu0
  %v7281 = vadd.f32 %v6896, %v7280
  %v7282 = vpop.f32.mrb[0].mxu0
  %7283 = vmatprep.mubr.f32.mxu0 0.0
  %7284 = vmatmul.mubr.f32.gmra.mrb[0].mxu0 %v1019
  %v7285 = vpop.f32.mrb[0].mxu0
  %v7286 = vadd.f32 %v6901, %v7285
  %v7287 = vpop.f32.mrb[0].mxu0
  %7288 = vmatprep.mubr.f32.mxu0 0.0
  %7289 = vmatmul.mubr.f32.gmra.mrb[0].mxu0 %v1044
  %v7290 = vpop.f32.mrb[0].mxu0
  %v7291 = vadd.f32 %v6906, %v7290
  %v7292 = vpop.f32.mrb[0].mxu0
  %7293 = vmatprep.mubr.f32.mxu0 0.0
  %7294 = vmatmul.mubr.f32.gmra.mrb[0].mxu0 %v1069
  %v7295 = vpop.f32.mrb[0].mxu0
  %v7296 = vadd.f32 %v6911, %v7295
  %v7297 = vpop.f32.mrb[0].mxu0
  %7298 = vmatprep.mubr.f32.mxu0 0.0
  %7299 = vmatmul.mubr.f32.gmra.mrb[0].mxu0 %v1094
  %v7300 = vpop.f32.mrb[0].mxu0
  %v7301 = vadd.f32 %v6916, %v7300
  %v7302 = vpop.f32.mrb[0].mxu0
  %7303 = vmatprep.mubr.f32.mxu0 0.0
  %7304 = vmatmul.mubr.f32.gmra.mrb[0].mxu0 %v1119
  %v7305 = vpop.f32.mrb[0].mxu0
  %v7306 = vadd.f32 %v6921, %v7305
  %v7307 = vpop.f32.mrb[0].mxu0
  %7308 = vmatprep.mubr.f32.mxu0 0.0
  %7309 = vmatmul.mubr.f32.gmra.mrb[0].mxu0 %v1144
  %v7310 = vpop.f32.mrb[0].mxu0
  %v7311 = vadd.f32 %v6926, %v7310
  %v7312 = vpop.f32.mrb[0].mxu0
  %7313 = vmatprep.mubr.f32.mxu0 0.0
  %7314 = vmatmul.mubr.f32.gmra.mrb[0].mxu0 %v1169
  %v7315 = vpop.f32.mrb[0].mxu0
  %v7316 = vadd.f32 %v6931, %v7315
  %v7317 = vpop.f32.mrb[0].mxu0
  %7318 = vmatprep.mubr.f32.mxu0 0.0
  %7319 = vmatmul.mubr.f32.gmra.mrb[0].mxu0 %v1194
  %v7320 = vpop.f32.mrb[0].mxu0
  %v7321 = vadd.f32 %v6936, %v7320
  %v7322 = vpop.f32.mrb[0].mxu0
  %7323 = vmatprep.mubr.f32.mxu0 0.0
  %7324 = vmatmul.mubr.f32.gmra.mrb[0].mxu0 %v1219
  %v7325 = vpop.f32.mrb[0].mxu0
  %v7326 = vadd.f32 %v6941, %v7325
  %v7327 = vpop.f32.mrb[0].mxu0
  %7328 = vmatprep.mubr.f32.mxu0 0.0
  %7329 = vmatmul.mubr.f32.gmra.mrb[0].mxu0 %v1244
  %v7330 = vpop.f32.mrb[0].mxu0
  %v7331 = vadd.f32 %v6946, %v7330
  %v7332 = vpop.f32.mrb[0].mxu0
  %7333 = vmatprep.mubr.f32.mxu0 0.0
  %7334 = vmatmul.mubr.f32.gmra.mrb[0].mxu0 %v1269
  %v7335 = vpop.f32.mrb[0].mxu0
  %v7336 = vadd.f32 %v6951, %v7335
  %v7337 = vpop.f32.mrb[0].mxu0
  %7338 = vmatprep.mubr.f32.mxu0 0.0
  %7339 = vmatmul.mubr.f32.gmra.mrb[0].mxu0 %v1294
  %v7340 = vpop.f32.mrb[0].mxu0
  %v7341 = vadd.f32 %v6956, %v7340
  %v7342 = vpop.f32.mrb[0].mxu0
  %7343 = vmatprep.mubr.f32.mxu0 0.0
  %7344 = vmatmul.mubr.f32.gmra.mrb[0].mxu0 %v1319
  %v7345 = vpop.f32.mrb[0].mxu0
  %v7346 = vadd.f32 %v6961, %v7345
  %v7347 = vpop.f32.mrb[0].mxu0
  %7348 = vmatprep.mubr.f32.mxu0 0.0
  %7349 = vmatmul.mubr.f32.gmra.mrb[0].mxu0 %v1344
  %v7350 = vpop.f32.mrb[0].mxu0
  %v7351 = vadd.f32 %v6966, %v7350
  %v7352 = vpop.f32.mrb[0].mxu0
  %7353 = vmatprep.mubr.f32.mxu0 0.0
  %7354 = vmatmul.mubr.f32.gmra.mrb[0].mxu0 %v1369
  %v7355 = vpop.f32.mrb[0].mxu0
  %v7356 = vadd.f32 %v6971, %v7355
  %v7357 = vpop.f32.mrb[0].mxu0
  %7358 = vmatprep.mubr.f32.mxu0 0.0
  %7359 = vmatmul.mubr.f32.gmra.mrb[0].mxu0 %v1394
  %v7360 = vpop.f32.mrb[0].mxu0
  %v7361 = vadd.f32 %v6976, %v7360
  %v7362 = vpop.f32.mrb[0].mxu0
  %7363 = vmatprep.mubr.f32.mxu0 0.0
  %7364 = vmatmul.mubr.f32.gmra.mrb[0].mxu0 %v1419
  %v7365 = vpop.f32.mrb[0].mxu0
  %v7366 = vadd.f32 %v6981, %v7365
  %v7367 = vpop.f32.mrb[0].mxu0
  %7368 = vmatprep.mubr.f32.mxu0 0.0
  %7369 = vmatmul.mubr.f32.gmra.mrb[0].mxu0 %v1444
  %v7370 = vpop.f32.mrb[0].mxu0
  %v7371 = vadd.f32 %v6986, %v7370
  %v7372 = vpop.f32.mrb[0].mxu0
  %7373 = vmatprep.mubr.f32.mxu0 0.0
  %7374 = vmatmul.mubr.f32.gmra.mrb[0].mxu0 %v1469
  %v7375 = vpop.f32.mrb[0].mxu0
  %v7376 = vadd.f32 %v6991, %v7375
  %v7377 = vpop.f32.mrb[0].mxu0
  %7378 = vmatprep.mubr.f32.mxu0 0.0
  %7379 = vmatmul.mubr.f32.gmra.mrb[0].mxu0 %v1494
  %v7380 = vpop.f32.mrb[0].mxu0
  %v7381 = vadd.f32 %v6996, %v7380
  %v7382 = vpop.f32.mrb[0].mxu0
  %7383 = vmatprep.mubr.f32.mxu0 0.0
  %7384 = vmatmul.mubr.f32.gmra.mrb[0].mxu0 %v1519
  %v7385 = vpop.f32.mrb[0].mxu0
  %v7386 = vadd.f32 %v7001, %v7385
  %v7387 = vpop.f32.mrb[0].mxu0
  %7388 = vmatprep.mubr.f32.mxu0 0.0
  %7389 = vmatmul.mubr.f32.gmra.mrb[0].mxu0 %v1544
  %v7390 = vpop.f32.mrb[0].mxu0
  %v7391 = vadd.f32 %v7006, %v7390
  %v7392 = vpop.f32.mrb[0].mxu0
  %7393 = vmatprep.mubr.f32.mxu0 0.0
  %7394 = vmatmul.mubr.f32.gmra.mrb[0].mxu0 %v1569
  %v7395 = vpop.f32.mrb[0].mxu0
  %v7396 = vadd.f32 %v7011, %v7395
  %v7397 = vpop.f32.mrb[0].mxu0
  %7398 = vmatprep.mubr.f32.mxu0 0.0
  %7399 = vmatmul.mubr.f32.gmra.mrb[0].mxu0 %v1594
  %v7400 = vpop.f32.mrb[0].mxu0
  %v7401 = vadd.f32 %v7016, %v7400
  %v7402 = vpop.f32.mrb[0].mxu0
  %7403 = vmatprep.mubr.f32.mxu0 0.0
  %7404 = vmatmul.mubr.f32.gmra.mrb[0].mxu0 %v1619
  %v7405 = vpop.f32.mrb[0].mxu0
  %v7406 = vadd.f32 %v7021, %v7405
  %v7407 = vpop.f32.mrb[0].mxu0
  %7408 = vdwg.mxu0
  %v7409 = vmax.f32 %v7091, 0.0
  %v7410 = vmax.f32 %v7096, 0.0
  %v7411 = vmax.f32 %v7101, 0.0
  %v7412 = vmax.f32 %v7106, 0.0
  %v7413 = vmax.f32 %v7111, 0.0
  %v7414 = vmax.f32 %v7116, 0.0
  %v7415 = vmax.f32 %v7121, 0.0
  %v7416 = vmax.f32 %v7126, 0.0
  %v7417 = vmax.f32 %v7131, 0.0
  %v7418 = vmax.f32 %v7136, 0.0
  %v7419 = vmax.f32 %v7141, 0.0
  %v7420 = vmax.f32 %v7146, 0.0
  %v7421 = vmax.f32 %v7151, 0.0
  %v7422 = vmax.f32 %v7156, 0.0
  %v7423 = vmax.f32 %v7161, 0.0
  %v7424 = vmax.f32 %v7166, 0.0
  %v7425 = vmax.f32 %v7171, 0.0
  %v7426 = vmax.f32 %v7176, 0.0
  %v7427 = vmax.f32 %v7181, 0.0
  %v7428 = vmax.f32 %v7186, 0.0
  %v7429 = vmax.f32 %v7191, 0.0
  %v7430 = vmax.f32 %v7196, 0.0
  %v7431 = vmax.f32 %v7201, 0.0
  %v7432 = vmax.f32 %v7206, 0.0
  %v7433 = vmax.f32 %v7211, 0.0
  %v7434 = vmax.f32 %v7216, 0.0
  %v7435 = vmax.f32 %v7221, 0.0
  %v7436 = vmax.f32 %v7226, 0.0
  %v7437 = vmax.f32 %v7231, 0.0
  %v7438 = vmax.f32 %v7236, 0.0
  %v7439 = vmax.f32 %v7241, 0.0
  %v7440 = vmax.f32 %v7246, 0.0
  %v7441 = vmax.f32 %v7251, 0.0
  %v7442 = vmax.f32 %v7256, 0.0
  %v7443 = vmax.f32 %v7261, 0.0
  %v7444 = vmax.f32 %v7266, 0.0
  %v7445 = vmax.f32 %v7271, 0.0
  %v7446 = vmax.f32 %v7276, 0.0
  %v7447 = vmax.f32 %v7281, 0.0
  %v7448 = vmax.f32 %v7286, 0.0
  %v7449 = vmax.f32 %v7291, 0.0
  %v7450 = vmax.f32 %v7296, 0.0
  %v7451 = vmax.f32 %v7301, 0.0
  %v7452 = vmax.f32 %v7306, 0.0
  %v7453 = vmax.f32 %v7311, 0.0
  %v7454 = vmax.f32 %v7316, 0.0
  %v7455 = vmax.f32 %v7321, 0.0
  %v7456 = vmax.f32 %v7326, 0.0
  %v7457 = vmax.f32 %v7331, 0.0
  %v7458 = vmax.f32 %v7336, 0.0
  %v7459 = vmax.f32 %v7341, 0.0
  %v7460 = vmax.f32 %v7346, 0.0
  %v7461 = vmax.f32 %v7351, 0.0
  %v7462 = vmax.f32 %v7356, 0.0
  %v7463 = vmax.f32 %v7361, 0.0
  %v7464 = vmax.f32 %v7366, 0.0
  %v7465 = vmax.f32 %v7371, 0.0
  %v7466 = vmax.f32 %v7376, 0.0
  %v7467 = vmax.f32 %v7381, 0.0
  %v7468 = vmax.f32 %v7386, 0.0
  %v7469 = vmax.f32 %v7391, 0.0
  %v7470 = vmax.f32 %v7396, 0.0
  %v7471 = vmax.f32 %v7401, 0.0
  %v7472 = vmax.f32 %v7406, 0.0
  %v7473 = vld [vmem:[%s3] sm:$0x3f]
  %v7474 = vld [vmem:[%s3 + $0x8] sm:$0x3f]
  %v7475 = vld [vmem:[%s3 + $0x10] sm:$0x3f]
  %v7476 = vld [vmem:[%s3 + $0x18] sm:$0x3f]
  %v7477 = vld [vmem:[%s4] sm:$0x3f]
  %7479 = vset.pattern.permute.xlu0 0
  %7480 = vperm.xlu0 %7479, %v7477
  %v7481 = vpop.permute.xlu0 %7480
  %7483 = vmatprep.subr.mxu0 0.0
  %7484 = vmatpush1.msra.mxu0 %v7409
  %7485 = vmatprep.subr.mxu0 0.0
  %7486 = vmatpush1.msra.mxu0 %v7410
  %7487 = vmatprep.subr.mxu0 0.0
  %7488 = vmatpush1.msra.mxu0 %v7411
  %7489 = vmatprep.subr.mxu0 0.0
  %7490 = vmatpush1.msra.mxu0 %v7412
  %7491 = vmatprep.subr.mxu0 0.0
  %7492 = vmatpush1.msra.mxu0 %v7413
  %7493 = vmatprep.subr.mxu0 0.0
  %7494 = vmatpush1.msra.mxu0 %v7414
  %7495 = vmatprep.subr.mxu0 0.0
  %7496 = vmatpush1.msra.mxu0 %v7415
  %7497 = vmatprep.subr.mxu0 0.0
  %7498 = vmatpush1.msra.mxu0 %v7416
  %7499 = vmatprep.subr.mxu0 0.0
  %7500 = vmatpush1.msra.mxu0 %v7417
  %7501 = vmatprep.subr.mxu0 0.0
  %7502 = vmatpush1.msra.mxu0 %v7418
  %7503 = vmatprep.subr.mxu0 0.0
  %7504 = vmatpush1.msra.mxu0 %v7419
  %7505 = vmatprep.subr.mxu0 0.0
  %7506 = vmatpush1.msra.mxu0 %v7420
  %7507 = vmatprep.subr.mxu0 0.0
  %7508 = vmatpush1.msra.mxu0 %v7421
  %7509 = vmatprep.subr.mxu0 0.0
  %7510 = vmatpush1.msra.mxu0 %v7422
  %7511 = vmatprep.subr.mxu0 0.0
  %7512 = vmatpush1.msra.mxu0 %v7423
  %7513 = vmatprep.subr.mxu0 0.0
  %7514 = vmatpush1.msra.mxu0 %v7424
  %7515 = vmatprep.subr.mxu0 0.0
  %7516 = vmatpush1.msra.mxu0 %v7425
  %7517 = vmatprep.subr.mxu0 0.0
  %7518 = vmatpush1.msra.mxu0 %v7426
  %7519 = vmatprep.subr.mxu0 0.0
  %7520 = vmatpush1.msra.mxu0 %v7427
  %7521 = vmatprep.subr.mxu0 0.0
  %7522 = vmatpush1.msra.mxu0 %v7428
  %7523 = vmatprep.subr.mxu0 0.0
  %7524 = vmatpush1.msra.mxu0 %v7429
  %7525 = vmatprep.subr.mxu0 0.0
  %7526 = vmatpush1.msra.mxu0 %v7430
  %7527 = vmatprep.subr.mxu0 0.0
  %7528 = vmatpush1.msra.mxu0 %v7431
  %7529 = vmatprep.subr.mxu0 0.0
  %7530 = vmatpush1.msra.mxu0 %v7432
  %7531 = vmatprep.subr.mxu0 0.0
  %7532 = vmatpush1.msra.mxu0 %v7433
  %7533 = vmatprep.subr.mxu0 0.0
  %7534 = vmatpush1.msra.mxu0 %v7434
  %7535 = vmatprep.subr.mxu0 0.0
  %7536 = vmatpush1.msra.mxu0 %v7435
  %7537 = vmatprep.subr.mxu0 0.0
  %7538 = vmatpush1.msra.mxu0 %v7436
  %7539 = vmatprep.subr.mxu0 0.0
  %7540 = vmatpush1.msra.mxu0 %v7437
  %7541 = vmatprep.subr.mxu0 0.0
  %7542 = vmatpush1.msra.mxu0 %v7438
  %7543 = vmatprep.subr.mxu0 0.0
  %7544 = vmatpush1.msra.mxu0 %v7439
  %7545 = vmatprep.subr.mxu0 0.0
  %7546 = vmatpush1.msra.mxu0 %v7440
  %7547 = vmatprep.mubr.f32.mxu0 %v7474
  %7548 = vmatmul.mubr.f32.gmra.mrb[0].mxu0 %v7473
  %v7549 = vpop.f32.mrb[0].mxu0
  %v7550 = vadd.f32 %v7481, %v7549
  %v7551 = vpop.f32.mrb[0].mxu0
  %7552 = vdwg.mxu0
  %7553 = vmatprep.subr.mxu0 0.0
  %7554 = vmatpush1.msra.mxu0 %v7441
  %7555 = vmatprep.subr.mxu0 0.0
  %7556 = vmatpush1.msra.mxu0 %v7442
  %7557 = vmatprep.subr.mxu0 0.0
  %7558 = vmatpush1.msra.mxu0 %v7443
  %7559 = vmatprep.subr.mxu0 0.0
  %7560 = vmatpush1.msra.mxu0 %v7444
  %7561 = vmatprep.subr.mxu0 0.0
  %7562 = vmatpush1.msra.mxu0 %v7445
  %7563 = vmatprep.subr.mxu0 0.0
  %7564 = vmatpush1.msra.mxu0 %v7446
  %7565 = vmatprep.subr.mxu0 0.0
  %7566 = vmatpush1.msra.mxu0 %v7447
  %7567 = vmatprep.subr.mxu0 0.0
  %7568 = vmatpush1.msra.mxu0 %v7448
  %7569 = vmatprep.subr.mxu0 0.0
  %7570 = vmatpush1.msra.mxu0 %v7449
  %7571 = vmatprep.subr.mxu0 0.0
  %7572 = vmatpush1.msra.mxu0 %v7450
  %7573 = vmatprep.subr.mxu0 0.0
  %7574 = vmatpush1.msra.mxu0 %v7451
  %7575 = vmatprep.subr.mxu0 0.0
  %7576 = vmatpush1.msra.mxu0 %v7452
  %7577 = vmatprep.subr.mxu0 0.0
  %7578 = vmatpush1.msra.mxu0 %v7453
  %7579 = vmatprep.subr.mxu0 0.0
  %7580 = vmatpush1.msra.mxu0 %v7454
  %7581 = vmatprep.subr.mxu0 0.0
  %7582 = vmatpush1.msra.mxu0 %v7455
  %7583 = vmatprep.subr.mxu0 0.0
  %7584 = vmatpush1.msra.mxu0 %v7456
  %7585 = vmatprep.subr.mxu0 0.0
  %7586 = vmatpush1.msra.mxu0 %v7457
  %7587 = vmatprep.subr.mxu0 0.0
  %7588 = vmatpush1.msra.mxu0 %v7458
  %7589 = vmatprep.subr.mxu0 0.0
  %7590 = vmatpush1.msra.mxu0 %v7459
  %7591 = vmatprep.subr.mxu0 0.0
  %7592 = vmatpush1.msra.mxu0 %v7460
  %7593 = vmatprep.subr.mxu0 0.0
  %7594 = vmatpush1.msra.mxu0 %v7461
  %7595 = vmatprep.subr.mxu0 0.0
  %7596 = vmatpush1.msra.mxu0 %v7462
  %7597 = vmatprep.subr.mxu0 0.0
  %7598 = vmatpush1.msra.mxu0 %v7463
  %7599 = vmatprep.subr.mxu0 0.0
  %7600 = vmatpush1.msra.mxu0 %v7464
  %7601 = vmatprep.subr.mxu0 0.0
  %7602 = vmatpush1.msra.mxu0 %v7465
  %7603 = vmatprep.subr.mxu0 0.0
  %7604 = vmatpush1.msra.mxu0 %v7466
  %7605 = vmatprep.subr.mxu0 0.0
  %7606 = vmatpush1.msra.mxu0 %v7467
  %7607 = vmatprep.subr.mxu0 0.0
  %7608 = vmatpush1.msra.mxu0 %v7468
  %7609 = vmatprep.subr.mxu0 0.0
  %7610 = vmatpush1.msra.mxu0 %v7469
  %7611 = vmatprep.subr.mxu0 0.0
  %7612 = vmatpush1.msra.mxu0 %v7470
  %7613 = vmatprep.subr.mxu0 0.0
  %7614 = vmatpush1.msra.mxu0 %v7471
  %7615 = vmatprep.subr.mxu0 0.0
  %7616 = vmatpush1.msra.mxu0 %v7472
  %7617 = vmatprep.mubr.f32.mxu0 %v7476
  %7618 = vmatmul.mubr.f32.gmra.mrb[0].mxu0 %v7475
  %v7619 = vpop.f32.mrb[0].mxu0
  %v7620 = vadd.f32 %v7550, %v7619
  %v7621 = vpop.f32.mrb[0].mxu0
  %7622 = vdwg.mxu0
  %vm7623 = vcmask 13312
  %7624 = vst.msk [vmem:[%s5] sm:$0x3f] %vm7623, %v7620
  // Predicated region
  $region22: #{dqn_forward.5} parent=0 // pred_check
    _
  $region23: #{dqn_forward.5} parent=0 // pred_check_branch
    %7626 = sbr.rel (0) target = $region25
  $region24: #{dqn_forward.5} parent=0 // pred_region
    _
  $region25: #{dqn_forward.5} parent=0 // pred_fallthru
    _
  // Predicated region
  $region26: #{dqn_forward.5} parent=0 // pred_check
    _
  $region27: #{dqn_forward.5} parent=0 // pred_check_branch
    %7628 = sbr.rel (0) target = $region29
  $region28: #{dqn_forward.5} parent=0 // pred_region
    _
  $region29: #{dqn_forward.5} parent=0 // pred_fallthru
    _

</llo_original>
